<compile_context>
chip_gen: v5e
topology: v5e:2x2
jax: 0.10.0
libtpu: 0.0.40
codegen_flags: <defaults>
</compile_context>

<pallas_src>
import functools

import jax
import jax.numpy as jnp
from jax.experimental import pallas as pl
from jax.experimental.pallas import tpu as pltpu

F32 = jnp.float32
BF16 = jnp.bfloat16
BN_EPS = 1e-5
LEAK = 0.2
VMEM_LIMIT = 28 * 1024 * 1024      # sized to leave headroom under v7x's 64 MiB VMEM


# --------------------------------------------------------------- kernels ---

def _conv_bn_stats_kernel(x_ref, sc_ref, sh_ref, w_ref, y_ref, st_ref,
                          xpad_ref, patch_ref, *, H, W, Cin, apply_bn):
    """(optional BN-apply + LeakyReLU on the input) -> 3x3 conv (pad=1) as a
    single K=9*Cin bf16 MXU matmul (f32 accumulation) -> per-image partial
    BatchNorm statistics (sum, sum-of-squares).

    The conv bias is intentionally omitted: training-mode BatchNorm follows,
    so the bias is cancelled by the mean subtraction (bit-equivalent output).
    The conv output is written pre-BN (bf16); the wrapper folds the partial
    stats into per-channel scale/shift and the *next* kernel applies them
    (two-pass training-mode BatchNorm).  One grid step = one image.
    # TODO(synk): row-tile with a 1-row halo (element-indexed blocks) for
    # realistic H*W so the pipeline gets >2 steps and v7x's 64 MiB VMEM holds.
    """
    a = x_ref[0].astype(F32)                              # (H, W, Cin)
    if apply_bn:                                          # BN of previous conv + LeakyReLU
        a = a * sc_ref[0] + sh_ref[0]
        a = jnp.where(a >= 0.0, a, LEAK * a)

    # Zero-padded activation lives only in VMEM.  Re-zero just the 1-px border
    # strips each step (cheap; no full-buffer store, megacore-safe).  xpad is
    # kept f32 because the interior store starts at sublane offset 1 and
    # unaligned packed-sublane bf16 stores are the lowering-risky op; the 9x
    # larger patch scratch and both MXU operands are bf16.
    zr = jnp.zeros((1, W + 2, Cin), F32)
    zc = jnp.zeros((H, 1, Cin), F32)
    xpad_ref[0:1, :, :] = zr
    xpad_ref[H + 1:H + 2, :, :] = zr
    xpad_ref[1:H + 1, 0:1, :] = zc
    xpad_ref[1:H + 1, W + 1:W + 2, :] = zc
    xpad_ref[1:H + 1, 1:W + 1, :] = a

    # im2col patch (H*W, 9*Cin) built in VMEM -> ONE matmul with K = 9*Cin.
    t = 0
    for dh in range(3):
        for dw in range(3):
            patch_ref[:, t * Cin:(t + 1) * Cin] = (
                xpad_ref[dh:dh + H, dw:dw + W, :].astype(BF16).reshape(H * W, Cin))
            t += 1
    acc = jnp.dot(patch_ref[...], w_ref[...], preferred_element_type=F32)

    st_ref[0] = jnp.concatenate(
        [jnp.sum(acc, axis=0, keepdims=True),
         jnp.sum(acc * acc, axis=0, keepdims=True)], axis=0)
    y_ref[0] = acc.astype(BF16).reshape(H, W, acc.shape[-1])   # bf16 pre-BN output


def _bn_pool_gates_kernel(y_ref, sc_ref, sh_ref, w1_ref, b1_ref, w2_ref, b2_ref,
                          w7_ref, xg_ref, s_ref, comp_ref, *, Hp, Wp, C2):
    """BN2-apply + LeakyReLU + 2x2/2 max-pool + CBAM channel gate + CBAM
    spatial-gate front half (ChannelPool + 7x7 conv, pre-BN) - per image.

    The input was reshaped (free, contiguous) to (N, Hp, 2, Wp, 2*C2) so the
    pooled W-pair lands on aligned lane halves.  The 7x7-conv output `s` is
    emitted pre-BatchNorm; the wrapper reduces its batch statistics and the
    next kernel applies BN + sigmoid + scaling (two-pass BN again)."""
    v = y_ref[0].astype(F32)                              # (Hp, 2, Wp, 2*C2)
    sc = sc_ref[0]
    sh = sh_ref[0]

    def bnl(u):
        z = u * sc + sh
        return jnp.where(z >= 0.0, z, LEAK * z)

    m = jnp.maximum(bnl(v[..., :C2]), bnl(v[..., C2:]))   # max over the W pair
    p = jnp.max(m, axis=1)                                # max over H pair -> (Hp, Wp, C2)

    # ---- channel gate: shared MLP over global average & max pooling --------
    pr = p.reshape(Hp * Wp, C2)
    z = jnp.concatenate([jnp.mean(pr, axis=0, keepdims=True),
                         jnp.max(pr, axis=0, keepdims=True)], axis=0)   # (2, C2)
    h = jnp.dot(z.astype(BF16), w1_ref[...], preferred_element_type=F32) + b1_ref[...]
    h = jnp.maximum(h, 0.0)
    o = jnp.dot(h.astype(BF16), w2_ref[...], preferred_element_type=F32) + b2_ref[...]
    att = o[0:1, :] + o[1:2, :]                           # (1, C2)
    cgate = pl.reciprocal(1.0 + jnp.exp(-att), approx=True)    # sigmoid on the EUP
    xg = p * cgate[0]
    xg_ref[0] = xg

    # ---- spatial gate, front half: ChannelPool + 7x7 conv (pre-BN) ---------
    mx = jnp.max(xg, axis=-1)                             # (Hp, Wp)  (no padded lanes)
    me = jnp.mean(xg, axis=-1)
    comp_ref[...] = jnp.zeros((2, Hp + 6, Wp + 6), F32)   # tiny; W on the lane axis
    comp_ref[0, 3:3 + Hp, 3:3 + Wp] = mx
    comp_ref[1, 3:3 + Hp, 3:3 + Wp] = me
    s = jnp.zeros((Hp, Wp), F32)
    for c in range(2):                                    # 49 taps x 2 channels: each is a
        for dh in range(7):                               # lane-offset slice * SMEM scalar
            for dw in range(7):
                s = s + comp_ref[c, dh:dh + Hp, dw:dw + Wp] * w7_ref[c, dh * 7 + dw]
    s_ref[0] = s


def _spatial_apply_kernel(xg_ref, s_ref, bn_ref, o_ref):
    """Spatial-gate back half: BN(1) with wrapper-reduced batch scale/shift +
    sigmoid + broadcast scaling of the gated features - per image."""
    z = s_ref[0] * bn_ref[0, 0] + bn_ref[0, 1]
    gate = pl.reciprocal(1.0 + jnp.exp(-z), approx=True)
    o_ref[0] = xg_ref[0] * gate[:, :, None]


# ------------------------------------------------------------------ glue ---

def _bn_scale_shift(stats, count, gamma, beta):
    """Finalize two-pass training-mode BatchNorm: per-channel scale/shift (O(C))."""
    total = jnp.sum(stats[:, 0, :], axis=0)
    total_sq = jnp.sum(stats[:, 1, :], axis=0)
    mean = total / count
    var = jnp.maximum(total_sq / count - mean * mean, 0.0)     # biased var (torch BN)
    scale = gamma * jax.lax.rsqrt(var + BN_EPS)
    shift = beta - mean * scale
    return scale.reshape(1, -1), shift.reshape(1, -1)


def _conv_call(x, sc, sh, w, *, H, W, Cin, Cout, N, apply_bn):
    par = pltpu.CompilerParams(dimension_semantics=("parallel",),
                               vmem_limit_bytes=VMEM_LIMIT)
    return pl.pallas_call(
        functools.partial(_conv_bn_stats_kernel, H=H, W=W, Cin=Cin, apply_bn=apply_bn),
        out_shape=(jax.ShapeDtypeStruct((N, H, W, Cout), BF16),
                   jax.ShapeDtypeStruct((N, 2, Cout), F32)),
        grid=(N,),
        in_specs=[pl.BlockSpec((1, H, W, Cin), lambda n: (n, 0, 0, 0)),
                  pl.BlockSpec((1, Cin), lambda n: (0, 0)),
                  pl.BlockSpec((1, Cin), lambda n: (0, 0)),
                  pl.BlockSpec((9 * Cin, Cout), lambda n: (0, 0))],
        out_specs=(pl.BlockSpec((1, H, W, Cout), lambda n: (n, 0, 0, 0)),
                   pl.BlockSpec((1, 2, Cout), lambda n: (n, 0, 0))),
        scratch_shapes=[pltpu.VMEM((H + 2, W + 2, Cin), F32),
                        pltpu.VMEM((H * W, 9 * Cin), BF16)],
        compiler_params=par,
    )(x, sc, sh, w)


def contracting_block_forward(x_nchw, p):
    N, C, H, W = x_nchw.shape
    C2, Hp, Wp = 2 * C, H // 2, W // 2
    HIDP = p["mlp_w1"].shape[-1]

    par = pltpu.CompilerParams(dimension_semantics=("parallel",),
                               vmem_limit_bytes=VMEM_LIMIT)

    # TODO(synk): fold the NCHW<->NHWC relayouts into the first/last kernels
    # (in-kernel transpose) to drop two wrapper HBM passes; kept outside for
    # lowering simplicity at these sizes.
    x = jnp.transpose(x_nchw, (0, 2, 3, 1)).astype(F32)

    id_sc = jnp.ones((1, C), F32)                          # unused (apply_bn=False)
    id_sh = jnp.zeros((1, C), F32)

    # --- conv1 (bias absorbed by BN) -> bf16 pre-BN output + BN1 partials ---
    y1, st1 = _conv_call(x, id_sc, id_sh, p["w1"],
                         H=H, W=W, Cin=C, Cout=C2, N=N, apply_bn=False)
    sc1, sh1 = _bn_scale_shift(st1, N * H * W, p["bn_gamma"], p["bn_beta"])

    # --- BN1-apply + LeakyReLU + conv2 -> bf16 pre-BN output + BN2 partials -
    y2, st2 = _conv_call(y1, sc1, sh1, p["w2"],
                         H=H, W=W, Cin=C2, Cout=C2, N=N, apply_bn=True)
    sc2, sh2 = _bn_scale_shift(st2, N * H * W, p["bn_gamma"], p["bn_beta"])

    # --- BN2 + LeakyReLU + maxpool + channel gate + spatial-gate front half -
    # TODO(synk): CBAM class definition is not in the provided source; the
    # canonical CBAM (reduction_ratio=16, ['avg','max'] pools, 7x7 spatial
    # conv with BN(1) and no bias) is implemented here.
    y2r = y2.reshape(N, Hp, 2, Wp, 2 * C2)                 # free contiguous reshape
    xg, s_raw = pl.pallas_call(
        functools.partial(_bn_pool_gates_kernel, Hp=Hp, Wp=Wp, C2=C2),
        out_shape=(jax.ShapeDtypeStruct((N, Hp, Wp, C2), F32),
                   jax.ShapeDtypeStruct((N, Hp, Wp), F32)),
        grid=(N,),
        in_specs=[pl.BlockSpec((1, Hp, 2, Wp, 2 * C2), lambda n: (n, 0, 0, 0, 0)),
                  pl.BlockSpec((1, C2), lambda n: (0, 0)),
                  pl.BlockSpec((1, C2), lambda n: (0, 0)),
                  pl.BlockSpec((C2, HIDP), lambda n: (0, 0)),
                  pl.BlockSpec((1, HIDP), lambda n: (0, 0)),
                  pl.BlockSpec((HIDP, C2), lambda n: (0, 0)),
                  pl.BlockSpec((1, C2), lambda n: (0, 0)),
                  pl.BlockSpec(memory_space=pltpu.MemorySpace.SMEM)],
        out_specs=(pl.BlockSpec((1, Hp, Wp, C2), lambda n: (n, 0, 0, 0)),
                   pl.BlockSpec((1, Hp, Wp), lambda n: (n, 0, 0))),
        scratch_shapes=[pltpu.VMEM((2, Hp + 6, Wp + 6), F32)],
        compiler_params=par,
    )(y2r, sc2, sh2, p["mlp_w1"], p["mlp_b1"], p["mlp_w2"], p["mlp_b2"], p["w7"])

    # spatial-gate BatchNorm2d(1): fold batch stats into a scalar scale/shift
    mu = jnp.mean(s_raw)
    var = jnp.mean(jnp.square(s_raw - mu))
    sg_scale = p["sg_gamma"] * jax.lax.rsqrt(var + BN_EPS)
    sg_shift = p["sg_beta"] - mu * sg_scale
    sg = jnp.stack([sg_scale, sg_shift]).reshape(1, 2).astype(F32)

    # --- spatial-gate back half: BN + sigmoid + scale ------------------------
    out = pl.pallas_call(
        _spatial_apply_kernel,
        out_shape=jax.ShapeDtypeStruct((N, Hp, Wp, C2), F32),
        grid=(N,),
        in_specs=[pl.BlockSpec((1, Hp, Wp, C2), lambda n: (n, 0, 0, 0)),
                  pl.BlockSpec((1, Hp, Wp), lambda n: (n, 0, 0)),
                  pl.BlockSpec(memory_space=pltpu.MemorySpace.SMEM)],
        out_specs=pl.BlockSpec((1, Hp, Wp, C2), lambda n: (n, 0, 0, 0)),
        compiler_params=par,
    )(xg, s_raw, sg)

    return jnp.transpose(out, (0, 3, 1, 2))                # NHWC -> NCHW


# ------------------------------------------------------------ parameters ---

def init_params(key, in_channels):
    """PyTorch-layout parameters converted to kernel layouts.  The conv biases
    are kept for reference but never used: training-mode BatchNorm follows
    each conv, so they are exactly absorbed by the mean subtraction."""
    C, C2 = in_channels, 2 * in_channels
    hidden = max(C2 // 16, 1)                              # CBAM reduction_ratio = 16
    HIDP = 128                                             # lane-pad only the tiny MLP hidden
    ks = jax.random.split(key, 11)

    def n(k, shape, s=0.1):
        return s * jax.random.normal(k, shape, F32)

    w1 = n(ks[0], (C2, C, 3, 3))                           # torch conv weights (OIHW)
    b1 = n(ks[1], (C2,))
    w2 = n(ks[2], (C2, C2, 3, 3))
    b2 = n(ks[3], (C2,))
    gamma = 1.0 + n(ks[4], (C2,))                          # shared BatchNorm2d(C2)
    beta = n(ks[5], (C2,))
    mw1 = n(ks[6], (hidden, C2))                           # torch Linear (out, in)
    mb1 = n(ks[7], (hidden,))
    mw2 = n(ks[8], (C2, hidden))
    mb2 = n(ks[9], (C2,))
    w7 = n(ks[10], (1, 2, 7, 7))                           # CBAM 7x7 spatial conv, bias=False

    def conv_taps(w_oihw):
        t = jnp.transpose(w_oihw, (2, 3, 1, 0))            # (kh, kw, Cin, Cout)
        return t.reshape(9 * t.shape[2], t.shape[3]).astype(BF16)   # rows = tap*Cin + cin

    def pad_axis(a, axis, target):
        pad = [(0, 0)] * a.ndim
        pad[axis] = (0, target - a.shape[axis])
        return jnp.pad(a, pad)

    return {
        "w1": conv_taps(w1),                               # (9*C, C2) bf16
        "w2": conv_taps(w2),                               # (9*C2, C2) bf16
        "b1": b1, "b2": b2,                                # absorbed by BN (unused)
        "bn_gamma": gamma, "bn_beta": beta,
        "mlp_w1": pad_axis(mw1.T, 1, HIDP).astype(BF16),   # (C2, HIDP)
        "mlp_b1": pad_axis(mb1.reshape(1, -1), 1, HIDP),   # (1, HIDP) f32 (pad -> 0)
        "mlp_w2": pad_axis(mw2.T, 0, HIDP).astype(BF16),   # (HIDP, C2) (pad rows -> 0)
        "mlp_b2": mb2.reshape(1, C2),                      # (1, C2) f32
        "w7": w7[0].reshape(2, 49),                        # (c=[max,mean], tap) f32, SMEM
        "sg_gamma": jnp.array(1.0, F32),                   # BatchNorm2d(1) fresh affine
        "sg_beta": jnp.array(0.0, F32),
    }


if __name__ == "__main__":
    key = jax.random.PRNGKey(0)
    k_x, k_p = jax.random.split(key)

    N, C, H, W = 2, 16, 16, 16                             # NCHW, like PyTorch
    x = jax.random.normal(k_x, (N, C, H, W), F32)
    params = init_params(k_p, C)

    fwd = jax.jit(contracting_block_forward)
    out = fwd(x, params)
    jax.block_until_ready(out)

    assert out.shape == (N, 2 * C, H // 2, W // 2), out.shape
    assert bool(jnp.all(jnp.isfinite(out)))
    print("KERNEL_OK")
</pallas_src>

<mosaic_0001>
module attributes {stable_mosaic.version = 11 : i64} {
  func.func @_conv_bn_stats_kernel(%arg0: i32, %arg1: memref<1x16x16x16xf32, #tpu.memory_space<vmem>>, %arg2: memref<1x16xf32, #tpu.memory_space<vmem>>, %arg3: memref<1x16xf32, #tpu.memory_space<vmem>>, %arg4: memref<144x32xbf16, #tpu.memory_space<vmem>>, %arg5: memref<1x16x16x32xbf16, #tpu.memory_space<vmem>>, %arg6: memref<1x2x32xf32, #tpu.memory_space<vmem>>, %arg7: memref<18x18x16xf32, #tpu.memory_space<vmem>>, %arg8: memref<256x144xbf16, #tpu.memory_space<vmem>>) attributes {dimension_semantics = [#tpu.dimension_semantics<parallel>], iteration_bounds = array<i64: 2>, scalar_prefetch = 0 : i64, scratch_operands = 2 : i64, tpu.core_type = #tpu.core_type<tc>, window_params = [{transform_indices = @transform_0, window_bounds = array<i64: 1, 16, 16, 16>}, {pipeline_mode = #tpu.pipeline_mode<synchronous>, transform_indices = @transform_1, window_bounds = array<i64: 1, 16>}, {pipeline_mode = #tpu.pipeline_mode<synchronous>, transform_indices = @transform_2, window_bounds = array<i64: 1, 16>}, {pipeline_mode = #tpu.pipeline_mode<synchronous>, transform_indices = @transform_3, window_bounds = array<i64: 144, 32>}, {transform_indices = @transform_4, window_bounds = array<i64: 1, 16, 16, 32>}, {transform_indices = @transform_5, window_bounds = array<i64: 1, 2, 32>}]} {
    %c0 = arith.constant 0 : index
    %c0_0 = arith.constant 0 : index
    %c0_1 = arith.constant 0 : index
    %c0_2 = arith.constant 0 : index
    %0 = vector.load %arg1[%c0, %c0_0, %c0_1, %c0_2] : memref<1x16x16x16xf32, #tpu.memory_space<vmem>>, vector<1x16x16x16xf32>
    %1 = vector.shape_cast %0 : vector<1x16x16x16xf32> to vector<16x16x16xf32>
    %cst = arith.constant 0.000000e+00 : f32
    %2 = vector.broadcast %cst : f32 to vector<1x18x16xf32>
    %cst_3 = arith.constant 0.000000e+00 : f32
    %3 = vector.broadcast %cst_3 : f32 to vector<16x1x16xf32>
    %c0_4 = arith.constant 0 : index
    %c0_5 = arith.constant 0 : index
    %c0_6 = arith.constant 0 : index
    %4 = vector.load %arg7[%c0_4, %c0_5, %c0_6] : memref<18x18x16xf32, #tpu.memory_space<vmem>>, vector<1x18x16xf32>
    tpu.vector_store %arg7[%c0_4, %c0_5, %c0_6], %2 {strides = array<i32>} : memref<18x18x16xf32, #tpu.memory_space<vmem>>, vector<1x18x16xf32>,
    %c17 = arith.constant 17 : index
    %c0_7 = arith.constant 0 : index
    %c0_8 = arith.constant 0 : index
    %5 = vector.load %arg7[%c17, %c0_7, %c0_8] : memref<18x18x16xf32, #tpu.memory_space<vmem>>, vector<1x18x16xf32>
    tpu.vector_store %arg7[%c17, %c0_7, %c0_8], %2 {strides = array<i32>} : memref<18x18x16xf32, #tpu.memory_space<vmem>>, vector<1x18x16xf32>,
    %c1 = arith.constant 1 : index
    %c0_9 = arith.constant 0 : index
    %c0_10 = arith.constant 0 : index
    %6 = vector.load %arg7[%c1, %c0_9, %c0_10] : memref<18x18x16xf32, #tpu.memory_space<vmem>>, vector<16x1x16xf32>
    tpu.vector_store %arg7[%c1, %c0_9, %c0_10], %3 {strides = array<i32>} : memref<18x18x16xf32, #tpu.memory_space<vmem>>, vector<16x1x16xf32>,
    %c1_11 = arith.constant 1 : index
    %c17_12 = arith.constant 17 : index
    %c0_13 = arith.constant 0 : index
    %7 = vector.load %arg7[%c1_11, %c17_12, %c0_13] : memref<18x18x16xf32, #tpu.memory_space<vmem>>, vector<16x1x16xf32>
    tpu.vector_store %arg7[%c1_11, %c17_12, %c0_13], %3 {strides = array<i32>} : memref<18x18x16xf32, #tpu.memory_space<vmem>>, vector<16x1x16xf32>,
    %c1_14 = arith.constant 1 : index
    %c1_15 = arith.constant 1 : index
    %c0_16 = arith.constant 0 : index
    %8 = vector.load %arg7[%c1_14, %c1_15, %c0_16] : memref<18x18x16xf32, #tpu.memory_space<vmem>>, vector<16x16x16xf32>
    tpu.vector_store %arg7[%c1_14, %c1_15, %c0_16], %1 {strides = array<i32>} : memref<18x18x16xf32, #tpu.memory_space<vmem>>, vector<16x16x16xf32>,
    %c0_17 = arith.constant 0 : index
    %c0_18 = arith.constant 0 : index
    %c0_19 = arith.constant 0 : index
    %9 = vector.load %arg7[%c0_17, %c0_18, %c0_19] : memref<18x18x16xf32, #tpu.memory_space<vmem>>, vector<16x16x16xf32>
    %10 = arith.truncf %9 : vector<16x16x16xf32> to vector<16x16x16xbf16>
    %11 = vector.shape_cast %10 : vector<16x16x16xbf16> to vector<256x16xbf16>
    %c0_20 = arith.constant 0 : index
    %c0_21 = arith.constant 0 : index
    %12 = vector.load %arg8[%c0_20, %c0_21] : memref<256x144xbf16, #tpu.memory_space<vmem>>, vector<256x16xbf16>
    tpu.vector_store %arg8[%c0_20, %c0_21], %11 {strides = array<i32>} : memref<256x144xbf16, #tpu.memory_space<vmem>>, vector<256x16xbf16>,
    %c0_22 = arith.constant 0 : index
    %c1_23 = arith.constant 1 : index
    %c0_24 = arith.constant 0 : index
    %13 = vector.load %arg7[%c0_22, %c1_23, %c0_24] : memref<18x18x16xf32, #tpu.memory_space<vmem>>, vector<16x16x16xf32>
    %14 = arith.truncf %13 : vector<16x16x16xf32> to vector<16x16x16xbf16>
    %15 = vector.shape_cast %14 : vector<16x16x16xbf16> to vector<256x16xbf16>
    %c0_25 = arith.constant 0 : index
    %c16 = arith.constant 16 : index
    %16 = vector.load %arg8[%c0_25, %c16] : memref<256x144xbf16, #tpu.memory_space<vmem>>, vector<256x16xbf16>
    tpu.vector_store %arg8[%c0_25, %c16], %15 {strides = array<i32>} : memref<256x144xbf16, #tpu.memory_space<vmem>>, vector<256x16xbf16>,
    %c0_26 = arith.constant 0 : index
    %c2 = arith.constant 2 : index
    %c0_27 = arith.constant 0 : index
    %17 = vector.load %arg7[%c0_26, %c2, %c0_27] : memref<18x18x16xf32, #tpu.memory_space<vmem>>, vector<16x16x16xf32>
    %18 = arith.truncf %17 : vector<16x16x16xf32> to vector<16x16x16xbf16>
    %19 = vector.shape_cast %18 : vector<16x16x16xbf16> to vector<256x16xbf16>
    %c0_28 = arith.constant 0 : index
    %c32 = arith.constant 32 : index
    %20 = vector.load %arg8[%c0_28, %c32] : memref<256x144xbf16, #tpu.memory_space<vmem>>, vector<256x16xbf16>
    tpu.vector_store %arg8[%c0_28, %c32], %19 {strides = array<i32>} : memref<256x144xbf16, #tpu.memory_space<vmem>>, vector<256x16xbf16>,
    %c1_29 = arith.constant 1 : index
    %c0_30 = arith.constant 0 : index
    %c0_31 = arith.constant 0 : index
    %21 = vector.load %arg7[%c1_29, %c0_30, %c0_31] : memref<18x18x16xf32, #tpu.memory_space<vmem>>, vector<16x16x16xf32>
    %22 = arith.truncf %21 : vector<16x16x16xf32> to vector<16x16x16xbf16>
    %23 = vector.shape_cast %22 : vector<16x16x16xbf16> to vector<256x16xbf16>
    %c0_32 = arith.constant 0 : index
    %c48 = arith.constant 48 : index
    %24 = vector.load %arg8[%c0_32, %c48] : memref<256x144xbf16, #tpu.memory_space<vmem>>, vector<256x16xbf16>
    tpu.vector_store %arg8[%c0_32, %c48], %23 {strides = array<i32>} : memref<256x144xbf16, #tpu.memory_space<vmem>>, vector<256x16xbf16>,
    %c1_33 = arith.constant 1 : index
    %c1_34 = arith.constant 1 : index
    %c0_35 = arith.constant 0 : index
    %25 = vector.load %arg7[%c1_33, %c1_34, %c0_35] : memref<18x18x16xf32, #tpu.memory_space<vmem>>, vector<16x16x16xf32>
    %26 = arith.truncf %25 : vector<16x16x16xf32> to vector<16x16x16xbf16>
    %27 = vector.shape_cast %26 : vector<16x16x16xbf16> to vector<256x16xbf16>
    %c0_36 = arith.constant 0 : index
    %c64 = arith.constant 64 : index
    %28 = vector.load %arg8[%c0_36, %c64] : memref<256x144xbf16, #tpu.memory_space<vmem>>, vector<256x16xbf16>
    tpu.vector_store %arg8[%c0_36, %c64], %27 {strides = array<i32>} : memref<256x144xbf16, #tpu.memory_space<vmem>>, vector<256x16xbf16>,
    %c1_37 = arith.constant 1 : index
    %c2_38 = arith.constant 2 : index
    %c0_39 = arith.constant 0 : index
    %29 = vector.load %arg7[%c1_37, %c2_38, %c0_39] : memref<18x18x16xf32, #tpu.memory_space<vmem>>, vector<16x16x16xf32>
    %30 = arith.truncf %29 : vector<16x16x16xf32> to vector<16x16x16xbf16>
    %31 = vector.shape_cast %30 : vector<16x16x16xbf16> to vector<256x16xbf16>
    %c0_40 = arith.constant 0 : index
    %c80 = arith.constant 80 : index
    %32 = vector.load %arg8[%c0_40, %c80] : memref<256x144xbf16, #tpu.memory_space<vmem>>, vector<256x16xbf16>
    tpu.vector_store %arg8[%c0_40, %c80], %31 {strides = array<i32>} : memref<256x144xbf16, #tpu.memory_space<vmem>>, vector<256x16xbf16>,
    %c2_41 = arith.constant 2 : index
    %c0_42 = arith.constant 0 : index
    %c0_43 = arith.constant 0 : index
    %33 = vector.load %arg7[%c2_41, %c0_42, %c0_43] : memref<18x18x16xf32, #tpu.memory_space<vmem>>, vector<16x16x16xf32>
    %34 = arith.truncf %33 : vector<16x16x16xf32> to vector<16x16x16xbf16>
    %35 = vector.shape_cast %34 : vector<16x16x16xbf16> to vector<256x16xbf16>
    %c0_44 = arith.constant 0 : index
    %c96 = arith.constant 96 : index
    %36 = vector.load %arg8[%c0_44, %c96] : memref<256x144xbf16, #tpu.memory_space<vmem>>, vector<256x16xbf16>
    tpu.vector_store %arg8[%c0_44, %c96], %35 {strides = array<i32>} : memref<256x144xbf16, #tpu.memory_space<vmem>>, vector<256x16xbf16>,
    %c2_45 = arith.constant 2 : index
    %c1_46 = arith.constant 1 : index
    %c0_47 = arith.constant 0 : index
    %37 = vector.load %arg7[%c2_45, %c1_46, %c0_47] : memref<18x18x16xf32, #tpu.memory_space<vmem>>, vector<16x16x16xf32>
    %38 = arith.truncf %37 : vector<16x16x16xf32> to vector<16x16x16xbf16>
    %39 = vector.shape_cast %38 : vector<16x16x16xbf16> to vector<256x16xbf16>
    %c0_48 = arith.constant 0 : index
    %c112 = arith.constant 112 : index
    %40 = vector.load %arg8[%c0_48, %c112] : memref<256x144xbf16, #tpu.memory_space<vmem>>, vector<256x16xbf16>
    tpu.vector_store %arg8[%c0_48, %c112], %39 {strides = array<i32>} : memref<256x144xbf16, #tpu.memory_space<vmem>>, vector<256x16xbf16>,
    %c2_49 = arith.constant 2 : index
    %c2_50 = arith.constant 2 : index
    %c0_51 = arith.constant 0 : index
    %41 = vector.load %arg7[%c2_49, %c2_50, %c0_51] : memref<18x18x16xf32, #tpu.memory_space<vmem>>, vector<16x16x16xf32>
    %42 = arith.truncf %41 : vector<16x16x16xf32> to vector<16x16x16xbf16>
    %43 = vector.shape_cast %42 : vector<16x16x16xbf16> to vector<256x16xbf16>
    %c0_52 = arith.constant 0 : index
    %c128 = arith.constant 128 : index
    %44 = vector.load %arg8[%c0_52, %c128] : memref<256x144xbf16, #tpu.memory_space<vmem>>, vector<256x16xbf16>
    tpu.vector_store %arg8[%c0_52, %c128], %43 {strides = array<i32>} : memref<256x144xbf16, #tpu.memory_space<vmem>>, vector<256x16xbf16>,
    %c0_53 = arith.constant 0 : index
    %c0_54 = arith.constant 0 : index
    %45 = vector.load %arg8[%c0_53, %c0_54] : memref<256x144xbf16, #tpu.memory_space<vmem>>, vector<256x144xbf16>
    %c0_55 = arith.constant 0 : index
    %c0_56 = arith.constant 0 : index
    %46 = vector.load %arg4[%c0_55, %c0_56] : memref<144x32xbf16, #tpu.memory_space<vmem>>, vector<144x32xbf16>
    %cst_57 = arith.constant dense<0.000000e+00> : vector<256x32xf32>
    %47 = tpu.matmul %45, %46, %cst_57 {dimension_numbers = #tpu.dot_dimension_numbers<[1], [0], [0], [1], [0, 0, 1, 1], [], []>} : vector<256x144xbf16>, vector<144x32xbf16>, vector<256x32xf32> -> vector<256x32xf32>
    %cst_58 = arith.constant dense<0.000000e+00> : vector<32xf32>
    %48 = vector.multi_reduction <add>, %47, %cst_58 [0] : vector<256x32xf32> to vector<32xf32>
    %49 = vector.shape_cast %48 : vector<32xf32> to vector<1x32xf32>
    %50 = arith.mulf %47, %47 : vector<256x32xf32>
    %cst_59 = arith.constant dense<0.000000e+00> : vector<32xf32>
    %51 = vector.multi_reduction <add>, %50, %cst_59 [0] : vector<256x32xf32> to vector<32xf32>
    %52 = vector.shape_cast %51 : vector<32xf32> to vector<1x32xf32>
    %53 = tpu.concatenate %49, %52 in 0 : vector<1x32xf32>, vector<1x32xf32> -> vector<2x32xf32>
    %c0_60 = arith.constant 0 : index
    %c0_61 = arith.constant 0 : index
    %c0_62 = arith.constant 0 : index
    %54 = vector.load %arg6[%c0_60, %c0_61, %c0_62] : memref<1x2x32xf32, #tpu.memory_space<vmem>>, vector<1x2x32xf32>
    %55 = vector.shape_cast %54 : vector<1x2x32xf32> to vector<2x32xf32>
    %56 = vector.shape_cast %53 : vector<2x32xf32> to vector<1x2x32xf32>
    tpu.vector_store %arg6[%c0_60, %c0_61, %c0_62], %56 {strides = array<i32>} : memref<1x2x32xf32, #tpu.memory_space<vmem>>, vector<1x2x32xf32>,
    %57 = arith.truncf %47 : vector<256x32xf32> to vector<256x32xbf16>
    %58 = vector.shape_cast %57 : vector<256x32xbf16> to vector<16x16x32xbf16>
    %c0_63 = arith.constant 0 : index
    %c0_64 = arith.constant 0 : index
    %c0_65 = arith.constant 0 : index
    %c0_66 = arith.constant 0 : index
    %59 = vector.load %arg5[%c0_63, %c0_64, %c0_65, %c0_66] : memref<1x16x16x32xbf16, #tpu.memory_space<vmem>>, vector<1x16x16x32xbf16>
    %60 = vector.shape_cast %59 : vector<1x16x16x32xbf16> to vector<16x16x32xbf16>
    %61 = vector.shape_cast %58 : vector<16x16x32xbf16> to vector<1x16x16x32xbf16>
    tpu.vector_store %arg5[%c0_63, %c0_64, %c0_65, %c0_66], %61 {strides = array<i32>} : memref<1x16x16x32xbf16, #tpu.memory_space<vmem>>, vector<1x16x16x32xbf16>,
    return
  }
  func.func @transform_0(%arg0: i32) -> (i32, i32, i32, i32) {
    %c0_i32 = arith.constant 0 : i32
    %c0_i32_0 = arith.constant 0 : i32
    %c0_i32_1 = arith.constant 0 : i32
    %c0_i32_2 = arith.constant 0 : i32
    return %arg0, %c0_i32, %c0_i32_0, %c0_i32_1 : i32, i32, i32, i32
  }
  func.func @transform_1(%arg0: i32) -> (i32, i32) {
    %c0_i32 = arith.constant 0 : i32
    %c0_i32_0 = arith.constant 0 : i32
    %c0_i32_1 = arith.constant 0 : i32
    return %c0_i32, %c0_i32_0 : i32, i32
  }
  func.func @transform_2(%arg0: i32) -> (i32, i32) {
    %c0_i32 = arith.constant 0 : i32
    %c0_i32_0 = arith.constant 0 : i32
    %c0_i32_1 = arith.constant 0 : i32
    return %c0_i32, %c0_i32_0 : i32, i32
  }
  func.func @transform_3(%arg0: i32) -> (i32, i32) {
    %c0_i32 = arith.constant 0 : i32
    %c0_i32_0 = arith.constant 0 : i32
    %c0_i32_1 = arith.constant 0 : i32
    return %c0_i32, %c0_i32_0 : i32, i32
  }
  func.func @transform_4(%arg0: i32) -> (i32, i32, i32, i32) {
    %c0_i32 = arith.constant 0 : i32
    %c0_i32_0 = arith.constant 0 : i32
    %c0_i32_1 = arith.constant 0 : i32
    %c0_i32_2 = arith.constant 0 : i32
    return %arg0, %c0_i32, %c0_i32_0, %c0_i32_1 : i32, i32, i32, i32
  }
  func.func @transform_5(%arg0: i32) -> (i32, i32, i32) {
    %c0_i32 = arith.constant 0 : i32
    %c0_i32_0 = arith.constant 0 : i32
    %c0_i32_1 = arith.constant 0 : i32
    return %arg0, %c0_i32, %c0_i32_0 : i32, i32, i32
  }
}

module attributes {stable_mosaic.version = 11 : i64} {
  func.func @_conv_bn_stats_kernel(%arg0: i32, %arg1: memref<1x16x16x32xbf16, #tpu.memory_space<vmem>>, %arg2: memref<1x32xf32, #tpu.memory_space<vmem>>, %arg3: memref<1x32xf32, #tpu.memory_space<vmem>>, %arg4: memref<288x32xbf16, #tpu.memory_space<vmem>>, %arg5: memref<1x16x16x32xbf16, #tpu.memory_space<vmem>>, %arg6: memref<1x2x32xf32, #tpu.memory_space<vmem>>, %arg7: memref<18x18x32xf32, #tpu.memory_space<vmem>>, %arg8: memref<256x288xbf16, #tpu.memory_space<vmem>>) attributes {dimension_semantics = [#tpu.dimension_semantics<parallel>], iteration_bounds = array<i64: 2>, scalar_prefetch = 0 : i64, scratch_operands = 2 : i64, tpu.core_type = #tpu.core_type<tc>, window_params = [{transform_indices = @transform_0, window_bounds = array<i64: 1, 16, 16, 32>}, {pipeline_mode = #tpu.pipeline_mode<synchronous>, transform_indices = @transform_1, window_bounds = array<i64: 1, 32>}, {pipeline_mode = #tpu.pipeline_mode<synchronous>, transform_indices = @transform_2, window_bounds = array<i64: 1, 32>}, {pipeline_mode = #tpu.pipeline_mode<synchronous>, transform_indices = @transform_3, window_bounds = array<i64: 288, 32>}, {transform_indices = @transform_4, window_bounds = array<i64: 1, 16, 16, 32>}, {transform_indices = @transform_5, window_bounds = array<i64: 1, 2, 32>}]} {
    %c0 = arith.constant 0 : index
    %c0_0 = arith.constant 0 : index
    %c0_1 = arith.constant 0 : index
    %c0_2 = arith.constant 0 : index
    %0 = vector.load %arg1[%c0, %c0_0, %c0_1, %c0_2] : memref<1x16x16x32xbf16, #tpu.memory_space<vmem>>, vector<1x16x16x32xbf16>
    %1 = vector.shape_cast %0 : vector<1x16x16x32xbf16> to vector<16x16x32xbf16>
    %2 = arith.extf %1 : vector<16x16x32xbf16> to vector<16x16x32xf32>
    %c0_3 = arith.constant 0 : index
    %c0_4 = arith.constant 0 : index
    %3 = vector.load %arg2[%c0_3, %c0_4] : memref<1x32xf32, #tpu.memory_space<vmem>>, vector<1x32xf32>
    %4 = vector.shape_cast %3 : vector<1x32xf32> to vector<32xf32>
    %5 = vector.shape_cast %4 : vector<32xf32> to vector<1x1x32xf32>
    %6 = vector.broadcast %5 : vector<1x1x32xf32> to vector<16x16x32xf32>
    %7 = arith.mulf %2, %6 : vector<16x16x32xf32>
    %c0_5 = arith.constant 0 : index
    %c0_6 = arith.constant 0 : index
    %8 = vector.load %arg3[%c0_5, %c0_6] : memref<1x32xf32, #tpu.memory_space<vmem>>, vector<1x32xf32>
    %9 = vector.shape_cast %8 : vector<1x32xf32> to vector<32xf32>
    %10 = vector.shape_cast %9 : vector<32xf32> to vector<1x1x32xf32>
    %11 = vector.broadcast %10 : vector<1x1x32xf32> to vector<16x16x32xf32>
    %12 = arith.addf %7, %11 : vector<16x16x32xf32>
    %cst = arith.constant 0.000000e+00 : f32
    %13 = vector.broadcast %cst : f32 to vector<16x16x32xf32>
    %14 = arith.cmpf oge, %12, %13 : vector<16x16x32xf32>
    %cst_7 = arith.constant 2.000000e-01 : f32
    %15 = vector.broadcast %cst_7 : f32 to vector<16x16x32xf32>
    %16 = arith.mulf %15, %12 : vector<16x16x32xf32>
    %17 = arith.select %14, %12, %16 : vector<16x16x32xi1>, vector<16x16x32xf32>
    %cst_8 = arith.constant 0.000000e+00 : f32
    %18 = vector.broadcast %cst_8 : f32 to vector<1x18x32xf32>
    %cst_9 = arith.constant 0.000000e+00 : f32
    %19 = vector.broadcast %cst_9 : f32 to vector<16x1x32xf32>
    %c0_10 = arith.constant 0 : index
    %c0_11 = arith.constant 0 : index
    %c0_12 = arith.constant 0 : index
    %20 = vector.load %arg7[%c0_10, %c0_11, %c0_12] : memref<18x18x32xf32, #tpu.memory_space<vmem>>, vector<1x18x32xf32>
    tpu.vector_store %arg7[%c0_10, %c0_11, %c0_12], %18 {strides = array<i32>} : memref<18x18x32xf32, #tpu.memory_space<vmem>>, vector<1x18x32xf32>,
    %c17 = arith.constant 17 : index
    %c0_13 = arith.constant 0 : index
    %c0_14 = arith.constant 0 : index
    %21 = vector.load %arg7[%c17, %c0_13, %c0_14] : memref<18x18x32xf32, #tpu.memory_space<vmem>>, vector<1x18x32xf32>
    tpu.vector_store %arg7[%c17, %c0_13, %c0_14], %18 {strides = array<i32>} : memref<18x18x32xf32, #tpu.memory_space<vmem>>, vector<1x18x32xf32>,
    %c1 = arith.constant 1 : index
    %c0_15 = arith.constant 0 : index
    %c0_16 = arith.constant 0 : index
    %22 = vector.load %arg7[%c1, %c0_15, %c0_16] : memref<18x18x32xf32, #tpu.memory_space<vmem>>, vector<16x1x32xf32>
    tpu.vector_store %arg7[%c1, %c0_15, %c0_16], %19 {strides = array<i32>} : memref<18x18x32xf32, #tpu.memory_space<vmem>>, vector<16x1x32xf32>,
    %c1_17 = arith.constant 1 : index
    %c17_18 = arith.constant 17 : index
    %c0_19 = arith.constant 0 : index
    %23 = vector.load %arg7[%c1_17, %c17_18, %c0_19] : memref<18x18x32xf32, #tpu.memory_space<vmem>>, vector<16x1x32xf32>
    tpu.vector_store %arg7[%c1_17, %c17_18, %c0_19], %19 {strides = array<i32>} : memref<18x18x32xf32, #tpu.memory_space<vmem>>, vector<16x1x32xf32>,
    %c1_20 = arith.constant 1 : index
    %c1_21 = arith.constant 1 : index
    %c0_22 = arith.constant 0 : index
    %24 = vector.load %arg7[%c1_20, %c1_21, %c0_22] : memref<18x18x32xf32, #tpu.memory_space<vmem>>, vector<16x16x32xf32>
    tpu.vector_store %arg7[%c1_20, %c1_21, %c0_22], %17 {strides = array<i32>} : memref<18x18x32xf32, #tpu.memory_space<vmem>>, vector<16x16x32xf32>,
    %c0_23 = arith.constant 0 : index
    %c0_24 = arith.constant 0 : index
    %c0_25 = arith.constant 0 : index
    %25 = vector.load %arg7[%c0_23, %c0_24, %c0_25] : memref<18x18x32xf32, #tpu.memory_space<vmem>>, vector<16x16x32xf32>
    %26 = arith.truncf %25 : vector<16x16x32xf32> to vector<16x16x32xbf16>
    %27 = vector.shape_cast %26 : vector<16x16x32xbf16> to vector<256x32xbf16>
    %c0_26 = arith.constant 0 : index
    %c0_27 = arith.constant 0 : index
    %28 = vector.load %arg8[%c0_26, %c0_27] : memref<256x288xbf16, #tpu.memory_space<vmem>>, vector<256x32xbf16>
    tpu.vector_store %arg8[%c0_26, %c0_27], %27 {strides = array<i32>} : memref<256x288xbf16, #tpu.memory_space<vmem>>, vector<256x32xbf16>,
    %c0_28 = arith.constant 0 : index
    %c1_29 = arith.constant 1 : index
    %c0_30 = arith.constant 0 : index
    %29 = vector.load %arg7[%c0_28, %c1_29, %c0_30] : memref<18x18x32xf32, #tpu.memory_space<vmem>>, vector<16x16x32xf32>
    %30 = arith.truncf %29 : vector<16x16x32xf32> to vector<16x16x32xbf16>
    %31 = vector.shape_cast %30 : vector<16x16x32xbf16> to vector<256x32xbf16>
    %c0_31 = arith.constant 0 : index
    %c32 = arith.constant 32 : index
    %32 = vector.load %arg8[%c0_31, %c32] : memref<256x288xbf16, #tpu.memory_space<vmem>>, vector<256x32xbf16>
    tpu.vector_store %arg8[%c0_31, %c32], %31 {strides = array<i32>} : memref<256x288xbf16, #tpu.memory_space<vmem>>, vector<256x32xbf16>,
    %c0_32 = arith.constant 0 : index
    %c2 = arith.constant 2 : index
    %c0_33 = arith.constant 0 : index
    %33 = vector.load %arg7[%c0_32, %c2, %c0_33] : memref<18x18x32xf32, #tpu.memory_space<vmem>>, vector<16x16x32xf32>
    %34 = arith.truncf %33 : vector<16x16x32xf32> to vector<16x16x32xbf16>
    %35 = vector.shape_cast %34 : vector<16x16x32xbf16> to vector<256x32xbf16>
    %c0_34 = arith.constant 0 : index
    %c64 = arith.constant 64 : index
    %36 = vector.load %arg8[%c0_34, %c64] : memref<256x288xbf16, #tpu.memory_space<vmem>>, vector<256x32xbf16>
    tpu.vector_store %arg8[%c0_34, %c64], %35 {strides = array<i32>} : memref<256x288xbf16, #tpu.memory_space<vmem>>, vector<256x32xbf16>,
    %c1_35 = arith.constant 1 : index
    %c0_36 = arith.constant 0 : index
    %c0_37 = arith.constant 0 : index
    %37 = vector.load %arg7[%c1_35, %c0_36, %c0_37] : memref<18x18x32xf32, #tpu.memory_space<vmem>>, vector<16x16x32xf32>
    %38 = arith.truncf %37 : vector<16x16x32xf32> to vector<16x16x32xbf16>
    %39 = vector.shape_cast %38 : vector<16x16x32xbf16> to vector<256x32xbf16>
    %c0_38 = arith.constant 0 : index
    %c96 = arith.constant 96 : index
    %40 = vector.load %arg8[%c0_38, %c96] : memref<256x288xbf16, #tpu.memory_space<vmem>>, vector<256x32xbf16>
    tpu.vector_store %arg8[%c0_38, %c96], %39 {strides = array<i32>} : memref<256x288xbf16, #tpu.memory_space<vmem>>, vector<256x32xbf16>,
    %c1_39 = arith.constant 1 : index
    %c1_40 = arith.constant 1 : index
    %c0_41 = arith.constant 0 : index
    %41 = vector.load %arg7[%c1_39, %c1_40, %c0_41] : memref<18x18x32xf32, #tpu.memory_space<vmem>>, vector<16x16x32xf32>
    %42 = arith.truncf %41 : vector<16x16x32xf32> to vector<16x16x32xbf16>
    %43 = vector.shape_cast %42 : vector<16x16x32xbf16> to vector<256x32xbf16>
    %c0_42 = arith.constant 0 : index
    %c128 = arith.constant 128 : index
    %44 = vector.load %arg8[%c0_42, %c128] : memref<256x288xbf16, #tpu.memory_space<vmem>>, vector<256x32xbf16>
    tpu.vector_store %arg8[%c0_42, %c128], %43 {strides = array<i32>} : memref<256x288xbf16, #tpu.memory_space<vmem>>, vector<256x32xbf16>,
    %c1_43 = arith.constant 1 : index
    %c2_44 = arith.constant 2 : index
    %c0_45 = arith.constant 0 : index
    %45 = vector.load %arg7[%c1_43, %c2_44, %c0_45] : memref<18x18x32xf32, #tpu.memory_space<vmem>>, vector<16x16x32xf32>
    %46 = arith.truncf %45 : vector<16x16x32xf32> to vector<16x16x32xbf16>
    %47 = vector.shape_cast %46 : vector<16x16x32xbf16> to vector<256x32xbf16>
    %c0_46 = arith.constant 0 : index
    %c160 = arith.constant 160 : index
    %48 = vector.load %arg8[%c0_46, %c160] : memref<256x288xbf16, #tpu.memory_space<vmem>>, vector<256x32xbf16>
    tpu.vector_store %arg8[%c0_46, %c160], %47 {strides = array<i32>} : memref<256x288xbf16, #tpu.memory_space<vmem>>, vector<256x32xbf16>,
    %c2_47 = arith.constant 2 : index
    %c0_48 = arith.constant 0 : index
    %c0_49 = arith.constant 0 : index
    %49 = vector.load %arg7[%c2_47, %c0_48, %c0_49] : memref<18x18x32xf32, #tpu.memory_space<vmem>>, vector<16x16x32xf32>
    %50 = arith.truncf %49 : vector<16x16x32xf32> to vector<16x16x32xbf16>
    %51 = vector.shape_cast %50 : vector<16x16x32xbf16> to vector<256x32xbf16>
    %c0_50 = arith.constant 0 : index
    %c192 = arith.constant 192 : index
    %52 = vector.load %arg8[%c0_50, %c192] : memref<256x288xbf16, #tpu.memory_space<vmem>>, vector<256x32xbf16>
    tpu.vector_store %arg8[%c0_50, %c192], %51 {strides = array<i32>} : memref<256x288xbf16, #tpu.memory_space<vmem>>, vector<256x32xbf16>,
    %c2_51 = arith.constant 2 : index
    %c1_52 = arith.constant 1 : index
    %c0_53 = arith.constant 0 : index
    %53 = vector.load %arg7[%c2_51, %c1_52, %c0_53] : memref<18x18x32xf32, #tpu.memory_space<vmem>>, vector<16x16x32xf32>
    %54 = arith.truncf %53 : vector<16x16x32xf32> to vector<16x16x32xbf16>
    %55 = vector.shape_cast %54 : vector<16x16x32xbf16> to vector<256x32xbf16>
    %c0_54 = arith.constant 0 : index
    %c224 = arith.constant 224 : index
    %56 = vector.load %arg8[%c0_54, %c224] : memref<256x288xbf16, #tpu.memory_space<vmem>>, vector<256x32xbf16>
    tpu.vector_store %arg8[%c0_54, %c224], %55 {strides = array<i32>} : memref<256x288xbf16, #tpu.memory_space<vmem>>, vector<256x32xbf16>,
    %c2_55 = arith.constant 2 : index
    %c2_56 = arith.constant 2 : index
    %c0_57 = arith.constant 0 : index
    %57 = vector.load %arg7[%c2_55, %c2_56, %c0_57] : memref<18x18x32xf32, #tpu.memory_space<vmem>>, vector<16x16x32xf32>
    %58 = arith.truncf %57 : vector<16x16x32xf32> to vector<16x16x32xbf16>
    %59 = vector.shape_cast %58 : vector<16x16x32xbf16> to vector<256x32xbf16>
    %c0_58 = arith.constant 0 : index
    %c256 = arith.constant 256 : index
    %60 = vector.load %arg8[%c0_58, %c256] : memref<256x288xbf16, #tpu.memory_space<vmem>>, vector<256x32xbf16>
    tpu.vector_store %arg8[%c0_58, %c256], %59 {strides = array<i32>} : memref<256x288xbf16, #tpu.memory_space<vmem>>, vector<256x32xbf16>,
    %c0_59 = arith.constant 0 : index
    %c0_60 = arith.constant 0 : index
    %61 = vector.load %arg8[%c0_59, %c0_60] : memref<256x288xbf16, #tpu.memory_space<vmem>>, vector<256x288xbf16>
    %c0_61 = arith.constant 0 : index
    %c0_62 = arith.constant 0 : index
    %62 = vector.load %arg4[%c0_61, %c0_62] : memref<288x32xbf16, #tpu.memory_space<vmem>>, vector<288x32xbf16>
    %cst_63 = arith.constant dense<0.000000e+00> : vector<256x32xf32>
    %63 = tpu.matmul %61, %62, %cst_63 {dimension_numbers = #tpu.dot_dimension_numbers<[1], [0], [0], [1], [0, 0, 1, 1], [], []>} : vector<256x288xbf16>, vector<288x32xbf16>, vector<256x32xf32> -> vector<256x32xf32>
    %cst_64 = arith.constant dense<0.000000e+00> : vector<32xf32>
    %64 = vector.multi_reduction <add>, %63, %cst_64 [0] : vector<256x32xf32> to vector<32xf32>
    %65 = vector.shape_cast %64 : vector<32xf32> to vector<1x32xf32>
    %66 = arith.mulf %63, %63 : vector<256x32xf32>
    %cst_65 = arith.constant dense<0.000000e+00> : vector<32xf32>
    %67 = vector.multi_reduction <add>, %66, %cst_65 [0] : vector<256x32xf32> to vector<32xf32>
    %68 = vector.shape_cast %67 : vector<32xf32> to vector<1x32xf32>
    %69 = tpu.concatenate %65, %68 in 0 : vector<1x32xf32>, vector<1x32xf32> -> vector<2x32xf32>
    %c0_66 = arith.constant 0 : index
    %c0_67 = arith.constant 0 : index
    %c0_68 = arith.constant 0 : index
    %70 = vector.load %arg6[%c0_66, %c0_67, %c0_68] : memref<1x2x32xf32, #tpu.memory_space<vmem>>, vector<1x2x32xf32>
    %71 = vector.shape_cast %70 : vector<1x2x32xf32> to vector<2x32xf32>
    %72 = vector.shape_cast %69 : vector<2x32xf32> to vector<1x2x32xf32>
    tpu.vector_store %arg6[%c0_66, %c0_67, %c0_68], %72 {strides = array<i32>} : memref<1x2x32xf32, #tpu.memory_space<vmem>>, vector<1x2x32xf32>,
    %73 = arith.truncf %63 : vector<256x32xf32> to vector<256x32xbf16>
    %74 = vector.shape_cast %73 : vector<256x32xbf16> to vector<16x16x32xbf16>
    %c0_69 = arith.constant 0 : index
    %c0_70 = arith.constant 0 : index
    %c0_71 = arith.constant 0 : index
    %c0_72 = arith.constant 0 : index
    %75 = vector.load %arg5[%c0_69, %c0_70, %c0_71, %c0_72] : memref<1x16x16x32xbf16, #tpu.memory_space<vmem>>, vector<1x16x16x32xbf16>
    %76 = vector.shape_cast %75 : vector<1x16x16x32xbf16> to vector<16x16x32xbf16>
    %77 = vector.shape_cast %74 : vector<16x16x32xbf16> to vector<1x16x16x32xbf16>
    tpu.vector_store %arg5[%c0_69, %c0_70, %c0_71, %c0_72], %77 {strides = array<i32>} : memref<1x16x16x32xbf16, #tpu.memory_space<vmem>>, vector<1x16x16x32xbf16>,
    return
  }
  func.func @transform_0(%arg0: i32) -> (i32, i32, i32, i32) {
    %c0_i32 = arith.constant 0 : i32
    %c0_i32_0 = arith.constant 0 : i32
    %c0_i32_1 = arith.constant 0 : i32
    %c0_i32_2 = arith.constant 0 : i32
    return %arg0, %c0_i32, %c0_i32_0, %c0_i32_1 : i32, i32, i32, i32
  }
  func.func @transform_1(%arg0: i32) -> (i32, i32) {
    %c0_i32 = arith.constant 0 : i32
    %c0_i32_0 = arith.constant 0 : i32
    %c0_i32_1 = arith.constant 0 : i32
    return %c0_i32, %c0_i32_0 : i32, i32
  }
  func.func @transform_2(%arg0: i32) -> (i32, i32) {
    %c0_i32 = arith.constant 0 : i32
    %c0_i32_0 = arith.constant 0 : i32
    %c0_i32_1 = arith.constant 0 : i32
    return %c0_i32, %c0_i32_0 : i32, i32
  }
  func.func @transform_3(%arg0: i32) -> (i32, i32) {
    %c0_i32 = arith.constant 0 : i32
    %c0_i32_0 = arith.constant 0 : i32
    %c0_i32_1 = arith.constant 0 : i32
    return %c0_i32, %c0_i32_0 : i32, i32
  }
  func.func @transform_4(%arg0: i32) -> (i32, i32, i32, i32) {
    %c0_i32 = arith.constant 0 : i32
    %c0_i32_0 = arith.constant 0 : i32
    %c0_i32_1 = arith.constant 0 : i32
    %c0_i32_2 = arith.constant 0 : i32
    return %arg0, %c0_i32, %c0_i32_0, %c0_i32_1 : i32, i32, i32, i32
  }
  func.func @transform_5(%arg0: i32) -> (i32, i32, i32) {
    %c0_i32 = arith.constant 0 : i32
    %c0_i32_0 = arith.constant 0 : i32
    %c0_i32_1 = arith.constant 0 : i32
    return %arg0, %c0_i32, %c0_i32_0 : i32, i32, i32
  }
}

module attributes {stable_mosaic.version = 11 : i64} {
  func.func @_bn_pool_gates_kernel(%arg0: i32, %arg1: memref<1x8x2x8x64xbf16, #tpu.memory_space<vmem>>, %arg2: memref<1x32xf32, #tpu.memory_space<vmem>>, %arg3: memref<1x32xf32, #tpu.memory_space<vmem>>, %arg4: memref<32x128xbf16, #tpu.memory_space<vmem>>, %arg5: memref<1x128xf32, #tpu.memory_space<vmem>>, %arg6: memref<128x32xbf16, #tpu.memory_space<vmem>>, %arg7: memref<1x32xf32, #tpu.memory_space<vmem>>, %arg8: memref<2x49xf32, #tpu.memory_space<smem>>, %arg9: memref<1x8x8x32xf32, #tpu.memory_space<vmem>>, %arg10: memref<1x8x8xf32, #tpu.memory_space<vmem>>, %arg11: memref<2x14x14xf32, #tpu.memory_space<vmem>>) attributes {dimension_semantics = [#tpu.dimension_semantics<parallel>], iteration_bounds = array<i64: 2>, scalar_prefetch = 0 : i64, scratch_operands = 1 : i64, tpu.core_type = #tpu.core_type<tc>, window_params = [{transform_indices = @transform_0, window_bounds = array<i64: 1, 8, 2, 8, 64>}, {pipeline_mode = #tpu.pipeline_mode<synchronous>, transform_indices = @transform_1, window_bounds = array<i64: 1, 32>}, {pipeline_mode = #tpu.pipeline_mode<synchronous>, transform_indices = @transform_2, window_bounds = array<i64: 1, 32>}, {pipeline_mode = #tpu.pipeline_mode<synchronous>, transform_indices = @transform_3, window_bounds = array<i64: 32, 128>}, {pipeline_mode = #tpu.pipeline_mode<synchronous>, transform_indices = @transform_4, window_bounds = array<i64: 1, 128>}, {pipeline_mode = #tpu.pipeline_mode<synchronous>, transform_indices = @transform_5, window_bounds = array<i64: 128, 32>}, {pipeline_mode = #tpu.pipeline_mode<synchronous>, transform_indices = @transform_6, window_bounds = array<i64: 1, 32>}, {transform_indices = @transform_7, window_bounds = array<i64: 2, 49>}, {transform_indices = @transform_8, window_bounds = array<i64: 1, 8, 8, 32>}, {transform_indices = @transform_9, window_bounds = array<i64: 1, 8, 8>}]} {
    %c0 = arith.constant 0 : index
    %c0_0 = arith.constant 0 : index
    %c0_1 = arith.constant 0 : index
    %c0_2 = arith.constant 0 : index
    %c0_3 = arith.constant 0 : index
    %0 = vector.load %arg1[%c0, %c0_0, %c0_1, %c0_2, %c0_3] : memref<1x8x2x8x64xbf16, #tpu.memory_space<vmem>>, vector<1x8x2x8x64xbf16>
    %1 = vector.shape_cast %0 : vector<1x8x2x8x64xbf16> to vector<8x2x8x64xbf16>
    %2 = arith.extf %1 : vector<8x2x8x64xbf16> to vector<8x2x8x64xf32>
    %c0_4 = arith.constant 0 : index
    %c0_5 = arith.constant 0 : index
    %3 = vector.load %arg2[%c0_4, %c0_5] : memref<1x32xf32, #tpu.memory_space<vmem>>, vector<1x32xf32>
    %4 = vector.shape_cast %3 : vector<1x32xf32> to vector<32xf32>
    %c0_6 = arith.constant 0 : index
    %c0_7 = arith.constant 0 : index
    %5 = vector.load %arg3[%c0_6, %c0_7] : memref<1x32xf32, #tpu.memory_space<vmem>>, vector<1x32xf32>
    %6 = vector.shape_cast %5 : vector<1x32xf32> to vector<32xf32>
    %7 = vector.extract_strided_slice %2 {offsets = [0, 0, 0, 0], sizes = [8, 2, 8, 32], strides = [1, 1, 1, 1]} : vector<8x2x8x64xf32> to vector<8x2x8x32xf32>
    %8 = vector.shape_cast %4 : vector<32xf32> to vector<1x1x1x32xf32>
    %9 = vector.broadcast %8 : vector<1x1x1x32xf32> to vector<8x2x8x32xf32>
    %10 = arith.mulf %7, %9 : vector<8x2x8x32xf32>
    %11 = vector.shape_cast %6 : vector<32xf32> to vector<1x1x1x32xf32>
    %12 = vector.broadcast %11 : vector<1x1x1x32xf32> to vector<8x2x8x32xf32>
    %13 = arith.addf %10, %12 : vector<8x2x8x32xf32>
    %cst = arith.constant 0.000000e+00 : f32
    %14 = vector.broadcast %cst : f32 to vector<8x2x8x32xf32>
    %15 = arith.cmpf oge, %13, %14 : vector<8x2x8x32xf32>
    %cst_8 = arith.constant 2.000000e-01 : f32
    %16 = vector.broadcast %cst_8 : f32 to vector<8x2x8x32xf32>
    %17 = arith.mulf %16, %13 : vector<8x2x8x32xf32>
    %18 = arith.select %15, %13, %17 : vector<8x2x8x32xi1>, vector<8x2x8x32xf32>
    %19 = vector.extract_strided_slice %2 {offsets = [0, 0, 0, 32], sizes = [8, 2, 8, 32], strides = [1, 1, 1, 1]} : vector<8x2x8x64xf32> to vector<8x2x8x32xf32>
    %20 = vector.shape_cast %4 : vector<32xf32> to vector<1x1x1x32xf32>
    %21 = vector.broadcast %20 : vector<1x1x1x32xf32> to vector<8x2x8x32xf32>
    %22 = arith.mulf %19, %21 : vector<8x2x8x32xf32>
    %23 = vector.shape_cast %6 : vector<32xf32> to vector<1x1x1x32xf32>
    %24 = vector.broadcast %23 : vector<1x1x1x32xf32> to vector<8x2x8x32xf32>
    %25 = arith.addf %22, %24 : vector<8x2x8x32xf32>
    %cst_9 = arith.constant 0.000000e+00 : f32
    %26 = vector.broadcast %cst_9 : f32 to vector<8x2x8x32xf32>
    %27 = arith.cmpf oge, %25, %26 : vector<8x2x8x32xf32>
    %cst_10 = arith.constant 2.000000e-01 : f32
    %28 = vector.broadcast %cst_10 : f32 to vector<8x2x8x32xf32>
    %29 = arith.mulf %28, %25 : vector<8x2x8x32xf32>
    %30 = arith.select %27, %25, %29 : vector<8x2x8x32xi1>, vector<8x2x8x32xf32>
    %31 = arith.maximumf %18, %30 : vector<8x2x8x32xf32>
    %cst_11 = arith.constant dense<0xFF800000> : vector<8x8x32xf32>
    %32 = vector.multi_reduction <maximumf>, %31, %cst_11 [1] : vector<8x2x8x32xf32> to vector<8x8x32xf32>
    %33 = vector.shape_cast %32 : vector<8x8x32xf32> to vector<64x32xf32>
    %cst_12 = arith.constant dense<0.000000e+00> : vector<32xf32>
    %34 = vector.multi_reduction <add>, %33, %cst_12 [0] : vector<64x32xf32> to vector<32xf32>
    %35 = vector.shape_cast %34 : vector<32xf32> to vector<1x32xf32>
    %cst_13 = arith.constant 6.400000e+01 : f32
    %36 = vector.broadcast %cst_13 : f32 to vector<1x32xf32>
    %37 = arith.divf %35, %36 : vector<1x32xf32>
    %cst_14 = arith.constant dense<0xFF800000> : vector<32xf32>
    %38 = vector.multi_reduction <maximumf>, %33, %cst_14 [0] : vector<64x32xf32> to vector<32xf32>
    %39 = vector.shape_cast %38 : vector<32xf32> to vector<1x32xf32>
    %40 = tpu.concatenate %37, %39 in 0 : vector<1x32xf32>, vector<1x32xf32> -> vector<2x32xf32>
    %41 = arith.truncf %40 : vector<2x32xf32> to vector<2x32xbf16>
    %c0_15 = arith.constant 0 : index
    %c0_16 = arith.constant 0 : index
    %42 = vector.load %arg4[%c0_15, %c0_16] : memref<32x128xbf16, #tpu.memory_space<vmem>>, vector<32x128xbf16>
    %cst_17 = arith.constant dense<0.000000e+00> : vector<2x128xf32>
    %43 = tpu.matmul %41, %42, %cst_17 {dimension_numbers = #tpu.dot_dimension_numbers<[1], [0], [0], [1], [0, 0, 1, 1], [], []>} : vector<2x32xbf16>, vector<32x128xbf16>, vector<2x128xf32> -> vector<2x128xf32>
    %c0_18 = arith.constant 0 : index
    %c0_19 = arith.constant 0 : index
    %44 = vector.load %arg5[%c0_18, %c0_19] : memref<1x128xf32, #tpu.memory_space<vmem>>, vector<1x128xf32>
    %45 = vector.broadcast %44 : vector<1x128xf32> to vector<2x128xf32>
    %46 = arith.addf %43, %45 : vector<2x128xf32>
    %cst_20 = arith.constant 0.000000e+00 : f32
    %47 = vector.broadcast %cst_20 : f32 to vector<2x128xf32>
    %48 = arith.maximumf %46, %47 : vector<2x128xf32>
    %49 = arith.truncf %48 : vector<2x128xf32> to vector<2x128xbf16>
    %c0_21 = arith.constant 0 : index
    %c0_22 = arith.constant 0 : index
    %50 = vector.load %arg6[%c0_21, %c0_22] : memref<128x32xbf16, #tpu.memory_space<vmem>>, vector<128x32xbf16>
    %cst_23 = arith.constant dense<0.000000e+00> : vector<2x32xf32>
    %51 = tpu.matmul %49, %50, %cst_23 {dimension_numbers = #tpu.dot_dimension_numbers<[1], [0], [0], [1], [0, 0, 1, 1], [], []>} : vector<2x128xbf16>, vector<128x32xbf16>, vector<2x32xf32> -> vector<2x32xf32>
    %c0_24 = arith.constant 0 : index
    %c0_25 = arith.constant 0 : index
    %52 = vector.load %arg7[%c0_24, %c0_25] : memref<1x32xf32, #tpu.memory_space<vmem>>, vector<1x32xf32>
    %53 = vector.broadcast %52 : vector<1x32xf32> to vector<2x32xf32>
    %54 = arith.addf %51, %53 : vector<2x32xf32>
    %55 = vector.extract_strided_slice %54 {offsets = [0, 0], sizes = [1, 32], strides = [1, 1]} : vector<2x32xf32> to vector<1x32xf32>
    %56 = vector.extract_strided_slice %54 {offsets = [1, 0], sizes = [1, 32], strides = [1, 1]} : vector<2x32xf32> to vector<1x32xf32>
    %57 = arith.addf %55, %56 : vector<1x32xf32>
    %cst_26 = arith.constant 0.000000e+00 : f32
    %58 = vector.broadcast %cst_26 : f32 to vector<1x32xf32>
    %59 = arith.subf %58, %57 : vector<1x32xf32>
    %60 = math.exp %59 : vector<1x32xf32>
    %cst_27 = arith.constant 1.000000e+00 : f32
    %61 = vector.broadcast %cst_27 : f32 to vector<1x32xf32>
    %62 = arith.addf %61, %60 : vector<1x32xf32>
    %63 = tpu.reciprocal %62 {approx = true} : vector<1x32xf32> -> vector<1x32xf32>
    %64 = vector.shape_cast %63 : vector<1x32xf32> to vector<32xf32>
    %65 = vector.shape_cast %64 : vector<32xf32> to vector<1x1x32xf32>
    %66 = vector.broadcast %65 : vector<1x1x32xf32> to vector<8x8x32xf32>
    %67 = arith.mulf %32, %66 : vector<8x8x32xf32>
    %c0_28 = arith.constant 0 : index
    %c0_29 = arith.constant 0 : index
    %c0_30 = arith.constant 0 : index
    %c0_31 = arith.constant 0 : index
    %68 = vector.load %arg9[%c0_28, %c0_29, %c0_30, %c0_31] : memref<1x8x8x32xf32, #tpu.memory_space<vmem>>, vector<1x8x8x32xf32>
    %69 = vector.shape_cast %68 : vector<1x8x8x32xf32> to vector<8x8x32xf32>
    %70 = vector.shape_cast %67 : vector<8x8x32xf32> to vector<1x8x8x32xf32>
    tpu.vector_store %arg9[%c0_28, %c0_29, %c0_30, %c0_31], %70 {strides = array<i32>} : memref<1x8x8x32xf32, #tpu.memory_space<vmem>>, vector<1x8x8x32xf32>,
    %cst_32 = arith.constant dense<0xFF800000> : vector<8x8xf32>
    %71 = vector.multi_reduction <maximumf>, %67, %cst_32 [2] : vector<8x8x32xf32> to vector<8x8xf32>
    %cst_33 = arith.constant dense<0.000000e+00> : vector<8x8xf32>
    %72 = vector.multi_reduction <add>, %67, %cst_33 [2] : vector<8x8x32xf32> to vector<8x8xf32>
    %cst_34 = arith.constant 3.200000e+01 : f32
    %73 = vector.broadcast %cst_34 : f32 to vector<8x8xf32>
    %74 = arith.divf %72, %73 : vector<8x8xf32>
    %cst_35 = arith.constant 0.000000e+00 : f32
    %75 = vector.broadcast %cst_35 : f32 to vector<2x14x14xf32>
    %c0_36 = arith.constant 0 : index
    %c0_37 = arith.constant 0 : index
    %c0_38 = arith.constant 0 : index
    %76 = vector.load %arg11[%c0_36, %c0_37, %c0_38] : memref<2x14x14xf32, #tpu.memory_space<vmem>>, vector<2x14x14xf32>
    tpu.vector_store %arg11[%c0_36, %c0_37, %c0_38], %75 {strides = array<i32>} : memref<2x14x14xf32, #tpu.memory_space<vmem>>, vector<2x14x14xf32>,
    %c0_39 = arith.constant 0 : index
    %c3 = arith.constant 3 : index
    %c3_40 = arith.constant 3 : index
    %77 = vector.load %arg11[%c0_39, %c3, %c3_40] : memref<2x14x14xf32, #tpu.memory_space<vmem>>, vector<1x8x8xf32>
    %78 = vector.shape_cast %77 : vector<1x8x8xf32> to vector<8x8xf32>
    %79 = vector.shape_cast %71 : vector<8x8xf32> to vector<1x8x8xf32>
    tpu.vector_store %arg11[%c0_39, %c3, %c3_40], %79 {strides = array<i32>} : memref<2x14x14xf32, #tpu.memory_space<vmem>>, vector<1x8x8xf32>,
    %c1 = arith.constant 1 : index
    %c3_41 = arith.constant 3 : index
    %c3_42 = arith.constant 3 : index
    %80 = vector.load %arg11[%c1, %c3_41, %c3_42] : memref<2x14x14xf32, #tpu.memory_space<vmem>>, vector<1x8x8xf32>
    %81 = vector.shape_cast %80 : vector<1x8x8xf32> to vector<8x8xf32>
    %82 = vector.shape_cast %74 : vector<8x8xf32> to vector<1x8x8xf32>
    tpu.vector_store %arg11[%c1, %c3_41, %c3_42], %82 {strides = array<i32>} : memref<2x14x14xf32, #tpu.memory_space<vmem>>, vector<1x8x8xf32>,
    %cst_43 = arith.constant 0.000000e+00 : f32
    %83 = vector.broadcast %cst_43 : f32 to vector<8x8xf32>
    %c0_44 = arith.constant 0 : index
    %c0_45 = arith.constant 0 : index
    %c0_46 = arith.constant 0 : index
    %84 = vector.load %arg11[%c0_44, %c0_45, %c0_46] : memref<2x14x14xf32, #tpu.memory_space<vmem>>, vector<1x8x8xf32>
    %85 = vector.shape_cast %84 : vector<1x8x8xf32> to vector<8x8xf32>
    %c0_47 = arith.constant 0 : index
    %c0_48 = arith.constant 0 : index
    %86 = memref.load %arg8[%c0_47, %c0_48] : memref<2x49xf32, #tpu.memory_space<smem>>
    %87 = vector.broadcast %86 : f32 to vector<8x8xf32>
    %88 = arith.mulf %85, %87 : vector<8x8xf32>
    %89 = arith.addf %83, %88 : vector<8x8xf32>
    %c0_49 = arith.constant 0 : index
    %c0_50 = arith.constant 0 : index
    %c1_51 = arith.constant 1 : index
    %90 = vector.load %arg11[%c0_49, %c0_50, %c1_51] : memref<2x14x14xf32, #tpu.memory_space<vmem>>, vector<1x8x8xf32>
    %91 = vector.shape_cast %90 : vector<1x8x8xf32> to vector<8x8xf32>
    %c0_52 = arith.constant 0 : index
    %c1_53 = arith.constant 1 : index
    %92 = memref.load %arg8[%c0_52, %c1_53] : memref<2x49xf32, #tpu.memory_space<smem>>
    %93 = vector.broadcast %92 : f32 to vector<8x8xf32>
    %94 = arith.mulf %91, %93 : vector<8x8xf32>
    %95 = arith.addf %89, %94 : vector<8x8xf32>
    %c0_54 = arith.constant 0 : index
    %c0_55 = arith.constant 0 : index
    %c2 = arith.constant 2 : index
    %96 = vector.load %arg11[%c0_54, %c0_55, %c2] : memref<2x14x14xf32, #tpu.memory_space<vmem>>, vector<1x8x8xf32>
    %97 = vector.shape_cast %96 : vector<1x8x8xf32> to vector<8x8xf32>
    %c0_56 = arith.constant 0 : index
    %c2_57 = arith.constant 2 : index
    %98 = memref.load %arg8[%c0_56, %c2_57] : memref<2x49xf32, #tpu.memory_space<smem>>
    %99 = vector.broadcast %98 : f32 to vector<8x8xf32>
    %100 = arith.mulf %97, %99 : vector<8x8xf32>
    %101 = arith.addf %95, %100 : vector<8x8xf32>
    %c0_58 = arith.constant 0 : index
    %c0_59 = arith.constant 0 : index
    %c3_60 = arith.constant 3 : index
    %102 = vector.load %arg11[%c0_58, %c0_59, %c3_60] : memref<2x14x14xf32, #tpu.memory_space<vmem>>, vector<1x8x8xf32>
    %103 = vector.shape_cast %102 : vector<1x8x8xf32> to vector<8x8xf32>
    %c0_61 = arith.constant 0 : index
    %c3_62 = arith.constant 3 : index
    %104 = memref.load %arg8[%c0_61, %c3_62] : memref<2x49xf32, #tpu.memory_space<smem>>
    %105 = vector.broadcast %104 : f32 to vector<8x8xf32>
    %106 = arith.mulf %103, %105 : vector<8x8xf32>
    %107 = arith.addf %101, %106 : vector<8x8xf32>
    %c0_63 = arith.constant 0 : index
    %c0_64 = arith.constant 0 : index
    %c4 = arith.constant 4 : index
    %108 = vector.load %arg11[%c0_63, %c0_64, %c4] : memref<2x14x14xf32, #tpu.memory_space<vmem>>, vector<1x8x8xf32>
    %109 = vector.shape_cast %108 : vector<1x8x8xf32> to vector<8x8xf32>
    %c0_65 = arith.constant 0 : index
    %c4_66 = arith.constant 4 : index
    %110 = memref.load %arg8[%c0_65, %c4_66] : memref<2x49xf32, #tpu.memory_space<smem>>
    %111 = vector.broadcast %110 : f32 to vector<8x8xf32>
    %112 = arith.mulf %109, %111 : vector<8x8xf32>
    %113 = arith.addf %107, %112 : vector<8x8xf32>
    %c0_67 = arith.constant 0 : index
    %c0_68 = arith.constant 0 : index
    %c5 = arith.constant 5 : index
    %114 = vector.load %arg11[%c0_67, %c0_68, %c5] : memref<2x14x14xf32, #tpu.memory_space<vmem>>, vector<1x8x8xf32>
    %115 = vector.shape_cast %114 : vector<1x8x8xf32> to vector<8x8xf32>
    %c0_69 = arith.constant 0 : index
    %c5_70 = arith.constant 5 : index
    %116 = memref.load %arg8[%c0_69, %c5_70] : memref<2x49xf32, #tpu.memory_space<smem>>
    %117 = vector.broadcast %116 : f32 to vector<8x8xf32>
    %118 = arith.mulf %115, %117 : vector<8x8xf32>
    %119 = arith.addf %113, %118 : vector<8x8xf32>
    %c0_71 = arith.constant 0 : index
    %c0_72 = arith.constant 0 : index
    %c6 = arith.constant 6 : index
    %120 = vector.load %arg11[%c0_71, %c0_72, %c6] : memref<2x14x14xf32, #tpu.memory_space<vmem>>, vector<1x8x8xf32>
    %121 = vector.shape_cast %120 : vector<1x8x8xf32> to vector<8x8xf32>
    %c0_73 = arith.constant 0 : index
    %c6_74 = arith.constant 6 : index
    %122 = memref.load %arg8[%c0_73, %c6_74] : memref<2x49xf32, #tpu.memory_space<smem>>
    %123 = vector.broadcast %122 : f32 to vector<8x8xf32>
    %124 = arith.mulf %121, %123 : vector<8x8xf32>
    %125 = arith.addf %119, %124 : vector<8x8xf32>
    %c0_75 = arith.constant 0 : index
    %c1_76 = arith.constant 1 : index
    %c0_77 = arith.constant 0 : index
    %126 = vector.load %arg11[%c0_75, %c1_76, %c0_77] : memref<2x14x14xf32, #tpu.memory_space<vmem>>, vector<1x8x8xf32>
    %127 = vector.shape_cast %126 : vector<1x8x8xf32> to vector<8x8xf32>
    %c0_78 = arith.constant 0 : index
    %c7 = arith.constant 7 : index
    %128 = memref.load %arg8[%c0_78, %c7] : memref<2x49xf32, #tpu.memory_space<smem>>
    %129 = vector.broadcast %128 : f32 to vector<8x8xf32>
    %130 = arith.mulf %127, %129 : vector<8x8xf32>
    %131 = arith.addf %125, %130 : vector<8x8xf32>
    %c0_79 = arith.constant 0 : index
    %c1_80 = arith.constant 1 : index
    %c1_81 = arith.constant 1 : index
    %132 = vector.load %arg11[%c0_79, %c1_80, %c1_81] : memref<2x14x14xf32, #tpu.memory_space<vmem>>, vector<1x8x8xf32>
    %133 = vector.shape_cast %132 : vector<1x8x8xf32> to vector<8x8xf32>
    %c0_82 = arith.constant 0 : index
    %c8 = arith.constant 8 : index
    %134 = memref.load %arg8[%c0_82, %c8] : memref<2x49xf32, #tpu.memory_space<smem>>
    %135 = vector.broadcast %134 : f32 to vector<8x8xf32>
    %136 = arith.mulf %133, %135 : vector<8x8xf32>
    %137 = arith.addf %131, %136 : vector<8x8xf32>
    %c0_83 = arith.constant 0 : index
    %c1_84 = arith.constant 1 : index
    %c2_85 = arith.constant 2 : index
    %138 = vector.load %arg11[%c0_83, %c1_84, %c2_85] : memref<2x14x14xf32, #tpu.memory_space<vmem>>, vector<1x8x8xf32>
    %139 = vector.shape_cast %138 : vector<1x8x8xf32> to vector<8x8xf32>
    %c0_86 = arith.constant 0 : index
    %c9 = arith.constant 9 : index
    %140 = memref.load %arg8[%c0_86, %c9] : memref<2x49xf32, #tpu.memory_space<smem>>
    %141 = vector.broadcast %140 : f32 to vector<8x8xf32>
    %142 = arith.mulf %139, %141 : vector<8x8xf32>
    %143 = arith.addf %137, %142 : vector<8x8xf32>
    %c0_87 = arith.constant 0 : index
    %c1_88 = arith.constant 1 : index
    %c3_89 = arith.constant 3 : index
    %144 = vector.load %arg11[%c0_87, %c1_88, %c3_89] : memref<2x14x14xf32, #tpu.memory_space<vmem>>, vector<1x8x8xf32>
    %145 = vector.shape_cast %144 : vector<1x8x8xf32> to vector<8x8xf32>
    %c0_90 = arith.constant 0 : index
    %c10 = arith.constant 10 : index
    %146 = memref.load %arg8[%c0_90, %c10] : memref<2x49xf32, #tpu.memory_space<smem>>
    %147 = vector.broadcast %146 : f32 to vector<8x8xf32>
    %148 = arith.mulf %145, %147 : vector<8x8xf32>
    %149 = arith.addf %143, %148 : vector<8x8xf32>
    %c0_91 = arith.constant 0 : index
    %c1_92 = arith.constant 1 : index
    %c4_93 = arith.constant 4 : index
    %150 = vector.load %arg11[%c0_91, %c1_92, %c4_93] : memref<2x14x14xf32, #tpu.memory_space<vmem>>, vector<1x8x8xf32>
    %151 = vector.shape_cast %150 : vector<1x8x8xf32> to vector<8x8xf32>
    %c0_94 = arith.constant 0 : index
    %c11 = arith.constant 11 : index
    %152 = memref.load %arg8[%c0_94, %c11] : memref<2x49xf32, #tpu.memory_space<smem>>
    %153 = vector.broadcast %152 : f32 to vector<8x8xf32>
    %154 = arith.mulf %151, %153 : vector<8x8xf32>
    %155 = arith.addf %149, %154 : vector<8x8xf32>
    %c0_95 = arith.constant 0 : index
    %c1_96 = arith.constant 1 : index
    %c5_97 = arith.constant 5 : index
    %156 = vector.load %arg11[%c0_95, %c1_96, %c5_97] : memref<2x14x14xf32, #tpu.memory_space<vmem>>, vector<1x8x8xf32>
    %157 = vector.shape_cast %156 : vector<1x8x8xf32> to vector<8x8xf32>
    %c0_98 = arith.constant 0 : index
    %c12 = arith.constant 12 : index
    %158 = memref.load %arg8[%c0_98, %c12] : memref<2x49xf32, #tpu.memory_space<smem>>
    %159 = vector.broadcast %158 : f32 to vector<8x8xf32>
    %160 = arith.mulf %157, %159 : vector<8x8xf32>
    %161 = arith.addf %155, %160 : vector<8x8xf32>
    %c0_99 = arith.constant 0 : index
    %c1_100 = arith.constant 1 : index
    %c6_101 = arith.constant 6 : index
    %162 = vector.load %arg11[%c0_99, %c1_100, %c6_101] : memref<2x14x14xf32, #tpu.memory_space<vmem>>, vector<1x8x8xf32>
    %163 = vector.shape_cast %162 : vector<1x8x8xf32> to vector<8x8xf32>
    %c0_102 = arith.constant 0 : index
    %c13 = arith.constant 13 : index
    %164 = memref.load %arg8[%c0_102, %c13] : memref<2x49xf32, #tpu.memory_space<smem>>
    %165 = vector.broadcast %164 : f32 to vector<8x8xf32>
    %166 = arith.mulf %163, %165 : vector<8x8xf32>
    %167 = arith.addf %161, %166 : vector<8x8xf32>
    %c0_103 = arith.constant 0 : index
    %c2_104 = arith.constant 2 : index
    %c0_105 = arith.constant 0 : index
    %168 = vector.load %arg11[%c0_103, %c2_104, %c0_105] : memref<2x14x14xf32, #tpu.memory_space<vmem>>, vector<1x8x8xf32>
    %169 = vector.shape_cast %168 : vector<1x8x8xf32> to vector<8x8xf32>
    %c0_106 = arith.constant 0 : index
    %c14 = arith.constant 14 : index
    %170 = memref.load %arg8[%c0_106, %c14] : memref<2x49xf32, #tpu.memory_space<smem>>
    %171 = vector.broadcast %170 : f32 to vector<8x8xf32>
    %172 = arith.mulf %169, %171 : vector<8x8xf32>
    %173 = arith.addf %167, %172 : vector<8x8xf32>
    %c0_107 = arith.constant 0 : index
    %c2_108 = arith.constant 2 : index
    %c1_109 = arith.constant 1 : index
    %174 = vector.load %arg11[%c0_107, %c2_108, %c1_109] : memref<2x14x14xf32, #tpu.memory_space<vmem>>, vector<1x8x8xf32>
    %175 = vector.shape_cast %174 : vector<1x8x8xf32> to vector<8x8xf32>
    %c0_110 = arith.constant 0 : index
    %c15 = arith.constant 15 : index
    %176 = memref.load %arg8[%c0_110, %c15] : memref<2x49xf32, #tpu.memory_space<smem>>
    %177 = vector.broadcast %176 : f32 to vector<8x8xf32>
    %178 = arith.mulf %175, %177 : vector<8x8xf32>
    %179 = arith.addf %173, %178 : vector<8x8xf32>
    %c0_111 = arith.constant 0 : index
    %c2_112 = arith.constant 2 : index
    %c2_113 = arith.constant 2 : index
    %180 = vector.load %arg11[%c0_111, %c2_112, %c2_113] : memref<2x14x14xf32, #tpu.memory_space<vmem>>, vector<1x8x8xf32>
    %181 = vector.shape_cast %180 : vector<1x8x8xf32> to vector<8x8xf32>
    %c0_114 = arith.constant 0 : index
    %c16 = arith.constant 16 : index
    %182 = memref.load %arg8[%c0_114, %c16] : memref<2x49xf32, #tpu.memory_space<smem>>
    %183 = vector.broadcast %182 : f32 to vector<8x8xf32>
    %184 = arith.mulf %181, %183 : vector<8x8xf32>
    %185 = arith.addf %179, %184 : vector<8x8xf32>
    %c0_115 = arith.constant 0 : index
    %c2_116 = arith.constant 2 : index
    %c3_117 = arith.constant 3 : index
    %186 = vector.load %arg11[%c0_115, %c2_116, %c3_117] : memref<2x14x14xf32, #tpu.memory_space<vmem>>, vector<1x8x8xf32>
    %187 = vector.shape_cast %186 : vector<1x8x8xf32> to vector<8x8xf32>
    %c0_118 = arith.constant 0 : index
    %c17 = arith.constant 17 : index
    %188 = memref.load %arg8[%c0_118, %c17] : memref<2x49xf32, #tpu.memory_space<smem>>
    %189 = vector.broadcast %188 : f32 to vector<8x8xf32>
    %190 = arith.mulf %187, %189 : vector<8x8xf32>
    %191 = arith.addf %185, %190 : vector<8x8xf32>
    %c0_119 = arith.constant 0 : index
    %c2_120 = arith.constant 2 : index
    %c4_121 = arith.constant 4 : index
    %192 = vector.load %arg11[%c0_119, %c2_120, %c4_121] : memref<2x14x14xf32, #tpu.memory_space<vmem>>, vector<1x8x8xf32>
    %193 = vector.shape_cast %192 : vector<1x8x8xf32> to vector<8x8xf32>
    %c0_122 = arith.constant 0 : index
    %c18 = arith.constant 18 : index
    %194 = memref.load %arg8[%c0_122, %c18] : memref<2x49xf32, #tpu.memory_space<smem>>
    %195 = vector.broadcast %194 : f32 to vector<8x8xf32>
    %196 = arith.mulf %193, %195 : vector<8x8xf32>
    %197 = arith.addf %191, %196 : vector<8x8xf32>
    %c0_123 = arith.constant 0 : index
    %c2_124 = arith.constant 2 : index
    %c5_125 = arith.constant 5 : index
    %198 = vector.load %arg11[%c0_123, %c2_124, %c5_125] : memref<2x14x14xf32, #tpu.memory_space<vmem>>, vector<1x8x8xf32>
    %199 = vector.shape_cast %198 : vector<1x8x8xf32> to vector<8x8xf32>
    %c0_126 = arith.constant 0 : index
    %c19 = arith.constant 19 : index
    %200 = memref.load %arg8[%c0_126, %c19] : memref<2x49xf32, #tpu.memory_space<smem>>
    %201 = vector.broadcast %200 : f32 to vector<8x8xf32>
    %202 = arith.mulf %199, %201 : vector<8x8xf32>
    %203 = arith.addf %197, %202 : vector<8x8xf32>
    %c0_127 = arith.constant 0 : index
    %c2_128 = arith.constant 2 : index
    %c6_129 = arith.constant 6 : index
    %204 = vector.load %arg11[%c0_127, %c2_128, %c6_129] : memref<2x14x14xf32, #tpu.memory_space<vmem>>, vector<1x8x8xf32>
    %205 = vector.shape_cast %204 : vector<1x8x8xf32> to vector<8x8xf32>
    %c0_130 = arith.constant 0 : index
    %c20 = arith.constant 20 : index
    %206 = memref.load %arg8[%c0_130, %c20] : memref<2x49xf32, #tpu.memory_space<smem>>
    %207 = vector.broadcast %206 : f32 to vector<8x8xf32>
    %208 = arith.mulf %205, %207 : vector<8x8xf32>
    %209 = arith.addf %203, %208 : vector<8x8xf32>
    %c0_131 = arith.constant 0 : index
    %c3_132 = arith.constant 3 : index
    %c0_133 = arith.constant 0 : index
    %210 = vector.load %arg11[%c0_131, %c3_132, %c0_133] : memref<2x14x14xf32, #tpu.memory_space<vmem>>, vector<1x8x8xf32>
    %211 = vector.shape_cast %210 : vector<1x8x8xf32> to vector<8x8xf32>
    %c0_134 = arith.constant 0 : index
    %c21 = arith.constant 21 : index
    %212 = memref.load %arg8[%c0_134, %c21] : memref<2x49xf32, #tpu.memory_space<smem>>
    %213 = vector.broadcast %212 : f32 to vector<8x8xf32>
    %214 = arith.mulf %211, %213 : vector<8x8xf32>
    %215 = arith.addf %209, %214 : vector<8x8xf32>
    %c0_135 = arith.constant 0 : index
    %c3_136 = arith.constant 3 : index
    %c1_137 = arith.constant 1 : index
    %216 = vector.load %arg11[%c0_135, %c3_136, %c1_137] : memref<2x14x14xf32, #tpu.memory_space<vmem>>, vector<1x8x8xf32>
    %217 = vector.shape_cast %216 : vector<1x8x8xf32> to vector<8x8xf32>
    %c0_138 = arith.constant 0 : index
    %c22 = arith.constant 22 : index
    %218 = memref.load %arg8[%c0_138, %c22] : memref<2x49xf32, #tpu.memory_space<smem>>
    %219 = vector.broadcast %218 : f32 to vector<8x8xf32>
    %220 = arith.mulf %217, %219 : vector<8x8xf32>
    %221 = arith.addf %215, %220 : vector<8x8xf32>
    %c0_139 = arith.constant 0 : index
    %c3_140 = arith.constant 3 : index
    %c2_141 = arith.constant 2 : index
    %222 = vector.load %arg11[%c0_139, %c3_140, %c2_141] : memref<2x14x14xf32, #tpu.memory_space<vmem>>, vector<1x8x8xf32>
    %223 = vector.shape_cast %222 : vector<1x8x8xf32> to vector<8x8xf32>
    %c0_142 = arith.constant 0 : index
    %c23 = arith.constant 23 : index
    %224 = memref.load %arg8[%c0_142, %c23] : memref<2x49xf32, #tpu.memory_space<smem>>
    %225 = vector.broadcast %224 : f32 to vector<8x8xf32>
    %226 = arith.mulf %223, %225 : vector<8x8xf32>
    %227 = arith.addf %221, %226 : vector<8x8xf32>
    %c0_143 = arith.constant 0 : index
    %c3_144 = arith.constant 3 : index
    %c3_145 = arith.constant 3 : index
    %228 = vector.load %arg11[%c0_143, %c3_144, %c3_145] : memref<2x14x14xf32, #tpu.memory_space<vmem>>, vector<1x8x8xf32>
    %229 = vector.shape_cast %228 : vector<1x8x8xf32> to vector<8x8xf32>
    %c0_146 = arith.constant 0 : index
    %c24 = arith.constant 24 : index
    %230 = memref.load %arg8[%c0_146, %c24] : memref<2x49xf32, #tpu.memory_space<smem>>
    %231 = vector.broadcast %230 : f32 to vector<8x8xf32>
    %232 = arith.mulf %229, %231 : vector<8x8xf32>
    %233 = arith.addf %227, %232 : vector<8x8xf32>
    %c0_147 = arith.constant 0 : index
    %c3_148 = arith.constant 3 : index
    %c4_149 = arith.constant 4 : index
    %234 = vector.load %arg11[%c0_147, %c3_148, %c4_149] : memref<2x14x14xf32, #tpu.memory_space<vmem>>, vector<1x8x8xf32>
    %235 = vector.shape_cast %234 : vector<1x8x8xf32> to vector<8x8xf32>
    %c0_150 = arith.constant 0 : index
    %c25 = arith.constant 25 : index
    %236 = memref.load %arg8[%c0_150, %c25] : memref<2x49xf32, #tpu.memory_space<smem>>
    %237 = vector.broadcast %236 : f32 to vector<8x8xf32>
    %238 = arith.mulf %235, %237 : vector<8x8xf32>
    %239 = arith.addf %233, %238 : vector<8x8xf32>
    %c0_151 = arith.constant 0 : index
    %c3_152 = arith.constant 3 : index
    %c5_153 = arith.constant 5 : index
    %240 = vector.load %arg11[%c0_151, %c3_152, %c5_153] : memref<2x14x14xf32, #tpu.memory_space<vmem>>, vector<1x8x8xf32>
    %241 = vector.shape_cast %240 : vector<1x8x8xf32> to vector<8x8xf32>
    %c0_154 = arith.constant 0 : index
    %c26 = arith.constant 26 : index
    %242 = memref.load %arg8[%c0_154, %c26] : memref<2x49xf32, #tpu.memory_space<smem>>
    %243 = vector.broadcast %242 : f32 to vector<8x8xf32>
    %244 = arith.mulf %241, %243 : vector<8x8xf32>
    %245 = arith.addf %239, %244 : vector<8x8xf32>
    %c0_155 = arith.constant 0 : index
    %c3_156 = arith.constant 3 : index
    %c6_157 = arith.constant 6 : index
    %246 = vector.load %arg11[%c0_155, %c3_156, %c6_157] : memref<2x14x14xf32, #tpu.memory_space<vmem>>, vector<1x8x8xf32>
    %247 = vector.shape_cast %246 : vector<1x8x8xf32> to vector<8x8xf32>
    %c0_158 = arith.constant 0 : index
    %c27 = arith.constant 27 : index
    %248 = memref.load %arg8[%c0_158, %c27] : memref<2x49xf32, #tpu.memory_space<smem>>
    %249 = vector.broadcast %248 : f32 to vector<8x8xf32>
    %250 = arith.mulf %247, %249 : vector<8x8xf32>
    %251 = arith.addf %245, %250 : vector<8x8xf32>
    %c0_159 = arith.constant 0 : index
    %c4_160 = arith.constant 4 : index
    %c0_161 = arith.constant 0 : index
    %252 = vector.load %arg11[%c0_159, %c4_160, %c0_161] : memref<2x14x14xf32, #tpu.memory_space<vmem>>, vector<1x8x8xf32>
    %253 = vector.shape_cast %252 : vector<1x8x8xf32> to vector<8x8xf32>
    %c0_162 = arith.constant 0 : index
    %c28 = arith.constant 28 : index
    %254 = memref.load %arg8[%c0_162, %c28] : memref<2x49xf32, #tpu.memory_space<smem>>
    %255 = vector.broadcast %254 : f32 to vector<8x8xf32>
    %256 = arith.mulf %253, %255 : vector<8x8xf32>
    %257 = arith.addf %251, %256 : vector<8x8xf32>
    %c0_163 = arith.constant 0 : index
    %c4_164 = arith.constant 4 : index
    %c1_165 = arith.constant 1 : index
    %258 = vector.load %arg11[%c0_163, %c4_164, %c1_165] : memref<2x14x14xf32, #tpu.memory_space<vmem>>, vector<1x8x8xf32>
    %259 = vector.shape_cast %258 : vector<1x8x8xf32> to vector<8x8xf32>
    %c0_166 = arith.constant 0 : index
    %c29 = arith.constant 29 : index
    %260 = memref.load %arg8[%c0_166, %c29] : memref<2x49xf32, #tpu.memory_space<smem>>
    %261 = vector.broadcast %260 : f32 to vector<8x8xf32>
    %262 = arith.mulf %259, %261 : vector<8x8xf32>
    %263 = arith.addf %257, %262 : vector<8x8xf32>
    %c0_167 = arith.constant 0 : index
    %c4_168 = arith.constant 4 : index
    %c2_169 = arith.constant 2 : index
    %264 = vector.load %arg11[%c0_167, %c4_168, %c2_169] : memref<2x14x14xf32, #tpu.memory_space<vmem>>, vector<1x8x8xf32>
    %265 = vector.shape_cast %264 : vector<1x8x8xf32> to vector<8x8xf32>
    %c0_170 = arith.constant 0 : index
    %c30 = arith.constant 30 : index
    %266 = memref.load %arg8[%c0_170, %c30] : memref<2x49xf32, #tpu.memory_space<smem>>
    %267 = vector.broadcast %266 : f32 to vector<8x8xf32>
    %268 = arith.mulf %265, %267 : vector<8x8xf32>
    %269 = arith.addf %263, %268 : vector<8x8xf32>
    %c0_171 = arith.constant 0 : index
    %c4_172 = arith.constant 4 : index
    %c3_173 = arith.constant 3 : index
    %270 = vector.load %arg11[%c0_171, %c4_172, %c3_173] : memref<2x14x14xf32, #tpu.memory_space<vmem>>, vector<1x8x8xf32>
    %271 = vector.shape_cast %270 : vector<1x8x8xf32> to vector<8x8xf32>
    %c0_174 = arith.constant 0 : index
    %c31 = arith.constant 31 : index
    %272 = memref.load %arg8[%c0_174, %c31] : memref<2x49xf32, #tpu.memory_space<smem>>
    %273 = vector.broadcast %272 : f32 to vector<8x8xf32>
    %274 = arith.mulf %271, %273 : vector<8x8xf32>
    %275 = arith.addf %269, %274 : vector<8x8xf32>
    %c0_175 = arith.constant 0 : index
    %c4_176 = arith.constant 4 : index
    %c4_177 = arith.constant 4 : index
    %276 = vector.load %arg11[%c0_175, %c4_176, %c4_177] : memref<2x14x14xf32, #tpu.memory_space<vmem>>, vector<1x8x8xf32>
    %277 = vector.shape_cast %276 : vector<1x8x8xf32> to vector<8x8xf32>
    %c0_178 = arith.constant 0 : index
    %c32 = arith.constant 32 : index
    %278 = memref.load %arg8[%c0_178, %c32] : memref<2x49xf32, #tpu.memory_space<smem>>
    %279 = vector.broadcast %278 : f32 to vector<8x8xf32>
    %280 = arith.mulf %277, %279 : vector<8x8xf32>
    %281 = arith.addf %275, %280 : vector<8x8xf32>
    %c0_179 = arith.constant 0 : index
    %c4_180 = arith.constant 4 : index
    %c5_181 = arith.constant 5 : index
    %282 = vector.load %arg11[%c0_179, %c4_180, %c5_181] : memref<2x14x14xf32, #tpu.memory_space<vmem>>, vector<1x8x8xf32>
    %283 = vector.shape_cast %282 : vector<1x8x8xf32> to vector<8x8xf32>
    %c0_182 = arith.constant 0 : index
    %c33 = arith.constant 33 : index
    %284 = memref.load %arg8[%c0_182, %c33] : memref<2x49xf32, #tpu.memory_space<smem>>
    %285 = vector.broadcast %284 : f32 to vector<8x8xf32>
    %286 = arith.mulf %283, %285 : vector<8x8xf32>
    %287 = arith.addf %281, %286 : vector<8x8xf32>
    %c0_183 = arith.constant 0 : index
    %c4_184 = arith.constant 4 : index
    %c6_185 = arith.constant 6 : index
    %288 = vector.load %arg11[%c0_183, %c4_184, %c6_185] : memref<2x14x14xf32, #tpu.memory_space<vmem>>, vector<1x8x8xf32>
    %289 = vector.shape_cast %288 : vector<1x8x8xf32> to vector<8x8xf32>
    %c0_186 = arith.constant 0 : index
    %c34 = arith.constant 34 : index
    %290 = memref.load %arg8[%c0_186, %c34] : memref<2x49xf32, #tpu.memory_space<smem>>
    %291 = vector.broadcast %290 : f32 to vector<8x8xf32>
    %292 = arith.mulf %289, %291 : vector<8x8xf32>
    %293 = arith.addf %287, %292 : vector<8x8xf32>
    %c0_187 = arith.constant 0 : index
    %c5_188 = arith.constant 5 : index
    %c0_189 = arith.constant 0 : index
    %294 = vector.load %arg11[%c0_187, %c5_188, %c0_189] : memref<2x14x14xf32, #tpu.memory_space<vmem>>, vector<1x8x8xf32>
    %295 = vector.shape_cast %294 : vector<1x8x8xf32> to vector<8x8xf32>
    %c0_190 = arith.constant 0 : index
    %c35 = arith.constant 35 : index
    %296 = memref.load %arg8[%c0_190, %c35] : memref<2x49xf32, #tpu.memory_space<smem>>
    %297 = vector.broadcast %296 : f32 to vector<8x8xf32>
    %298 = arith.mulf %295, %297 : vector<8x8xf32>
    %299 = arith.addf %293, %298 : vector<8x8xf32>
    %c0_191 = arith.constant 0 : index
    %c5_192 = arith.constant 5 : index
    %c1_193 = arith.constant 1 : index
    %300 = vector.load %arg11[%c0_191, %c5_192, %c1_193] : memref<2x14x14xf32, #tpu.memory_space<vmem>>, vector<1x8x8xf32>
    %301 = vector.shape_cast %300 : vector<1x8x8xf32> to vector<8x8xf32>
    %c0_194 = arith.constant 0 : index
    %c36 = arith.constant 36 : index
    %302 = memref.load %arg8[%c0_194, %c36] : memref<2x49xf32, #tpu.memory_space<smem>>
    %303 = vector.broadcast %302 : f32 to vector<8x8xf32>
    %304 = arith.mulf %301, %303 : vector<8x8xf32>
    %305 = arith.addf %299, %304 : vector<8x8xf32>
    %c0_195 = arith.constant 0 : index
    %c5_196 = arith.constant 5 : index
    %c2_197 = arith.constant 2 : index
    %306 = vector.load %arg11[%c0_195, %c5_196, %c2_197] : memref<2x14x14xf32, #tpu.memory_space<vmem>>, vector<1x8x8xf32>
    %307 = vector.shape_cast %306 : vector<1x8x8xf32> to vector<8x8xf32>
    %c0_198 = arith.constant 0 : index
    %c37 = arith.constant 37 : index
    %308 = memref.load %arg8[%c0_198, %c37] : memref<2x49xf32, #tpu.memory_space<smem>>
    %309 = vector.broadcast %308 : f32 to vector<8x8xf32>
    %310 = arith.mulf %307, %309 : vector<8x8xf32>
    %311 = arith.addf %305, %310 : vector<8x8xf32>
    %c0_199 = arith.constant 0 : index
    %c5_200 = arith.constant 5 : index
    %c3_201 = arith.constant 3 : index
    %312 = vector.load %arg11[%c0_199, %c5_200, %c3_201] : memref<2x14x14xf32, #tpu.memory_space<vmem>>, vector<1x8x8xf32>
    %313 = vector.shape_cast %312 : vector<1x8x8xf32> to vector<8x8xf32>
    %c0_202 = arith.constant 0 : index
    %c38 = arith.constant 38 : index
    %314 = memref.load %arg8[%c0_202, %c38] : memref<2x49xf32, #tpu.memory_space<smem>>
    %315 = vector.broadcast %314 : f32 to vector<8x8xf32>
    %316 = arith.mulf %313, %315 : vector<8x8xf32>
    %317 = arith.addf %311, %316 : vector<8x8xf32>
    %c0_203 = arith.constant 0 : index
    %c5_204 = arith.constant 5 : index
    %c4_205 = arith.constant 4 : index
    %318 = vector.load %arg11[%c0_203, %c5_204, %c4_205] : memref<2x14x14xf32, #tpu.memory_space<vmem>>, vector<1x8x8xf32>
    %319 = vector.shape_cast %318 : vector<1x8x8xf32> to vector<8x8xf32>
    %c0_206 = arith.constant 0 : index
    %c39 = arith.constant 39 : index
    %320 = memref.load %arg8[%c0_206, %c39] : memref<2x49xf32, #tpu.memory_space<smem>>
    %321 = vector.broadcast %320 : f32 to vector<8x8xf32>
    %322 = arith.mulf %319, %321 : vector<8x8xf32>
    %323 = arith.addf %317, %322 : vector<8x8xf32>
    %c0_207 = arith.constant 0 : index
    %c5_208 = arith.constant 5 : index
    %c5_209 = arith.constant 5 : index
    %324 = vector.load %arg11[%c0_207, %c5_208, %c5_209] : memref<2x14x14xf32, #tpu.memory_space<vmem>>, vector<1x8x8xf32>
    %325 = vector.shape_cast %324 : vector<1x8x8xf32> to vector<8x8xf32>
    %c0_210 = arith.constant 0 : index
    %c40 = arith.constant 40 : index
    %326 = memref.load %arg8[%c0_210, %c40] : memref<2x49xf32, #tpu.memory_space<smem>>
    %327 = vector.broadcast %326 : f32 to vector<8x8xf32>
    %328 = arith.mulf %325, %327 : vector<8x8xf32>
    %329 = arith.addf %323, %328 : vector<8x8xf32>
    %c0_211 = arith.constant 0 : index
    %c5_212 = arith.constant 5 : index
    %c6_213 = arith.constant 6 : index
    %330 = vector.load %arg11[%c0_211, %c5_212, %c6_213] : memref<2x14x14xf32, #tpu.memory_space<vmem>>, vector<1x8x8xf32>
    %331 = vector.shape_cast %330 : vector<1x8x8xf32> to vector<8x8xf32>
    %c0_214 = arith.constant 0 : index
    %c41 = arith.constant 41 : index
    %332 = memref.load %arg8[%c0_214, %c41] : memref<2x49xf32, #tpu.memory_space<smem>>
    %333 = vector.broadcast %332 : f32 to vector<8x8xf32>
    %334 = arith.mulf %331, %333 : vector<8x8xf32>
    %335 = arith.addf %329, %334 : vector<8x8xf32>
    %c0_215 = arith.constant 0 : index
    %c6_216 = arith.constant 6 : index
    %c0_217 = arith.constant 0 : index
    %336 = vector.load %arg11[%c0_215, %c6_216, %c0_217] : memref<2x14x14xf32, #tpu.memory_space<vmem>>, vector<1x8x8xf32>
    %337 = vector.shape_cast %336 : vector<1x8x8xf32> to vector<8x8xf32>
    %c0_218 = arith.constant 0 : index
    %c42 = arith.constant 42 : index
    %338 = memref.load %arg8[%c0_218, %c42] : memref<2x49xf32, #tpu.memory_space<smem>>
    %339 = vector.broadcast %338 : f32 to vector<8x8xf32>
    %340 = arith.mulf %337, %339 : vector<8x8xf32>
    %341 = arith.addf %335, %340 : vector<8x8xf32>
    %c0_219 = arith.constant 0 : index
    %c6_220 = arith.constant 6 : index
    %c1_221 = arith.constant 1 : index
    %342 = vector.load %arg11[%c0_219, %c6_220, %c1_221] : memref<2x14x14xf32, #tpu.memory_space<vmem>>, vector<1x8x8xf32>
    %343 = vector.shape_cast %342 : vector<1x8x8xf32> to vector<8x8xf32>
    %c0_222 = arith.constant 0 : index
    %c43 = arith.constant 43 : index
    %344 = memref.load %arg8[%c0_222, %c43] : memref<2x49xf32, #tpu.memory_space<smem>>
    %345 = vector.broadcast %344 : f32 to vector<8x8xf32>
    %346 = arith.mulf %343, %345 : vector<8x8xf32>
    %347 = arith.addf %341, %346 : vector<8x8xf32>
    %c0_223 = arith.constant 0 : index
    %c6_224 = arith.constant 6 : index
    %c2_225 = arith.constant 2 : index
    %348 = vector.load %arg11[%c0_223, %c6_224, %c2_225] : memref<2x14x14xf32, #tpu.memory_space<vmem>>, vector<1x8x8xf32>
    %349 = vector.shape_cast %348 : vector<1x8x8xf32> to vector<8x8xf32>
    %c0_226 = arith.constant 0 : index
    %c44 = arith.constant 44 : index
    %350 = memref.load %arg8[%c0_226, %c44] : memref<2x49xf32, #tpu.memory_space<smem>>
    %351 = vector.broadcast %350 : f32 to vector<8x8xf32>
    %352 = arith.mulf %349, %351 : vector<8x8xf32>
    %353 = arith.addf %347, %352 : vector<8x8xf32>
    %c0_227 = arith.constant 0 : index
    %c6_228 = arith.constant 6 : index
    %c3_229 = arith.constant 3 : index
    %354 = vector.load %arg11[%c0_227, %c6_228, %c3_229] : memref<2x14x14xf32, #tpu.memory_space<vmem>>, vector<1x8x8xf32>
    %355 = vector.shape_cast %354 : vector<1x8x8xf32> to vector<8x8xf32>
    %c0_230 = arith.constant 0 : index
    %c45 = arith.constant 45 : index
    %356 = memref.load %arg8[%c0_230, %c45] : memref<2x49xf32, #tpu.memory_space<smem>>
    %357 = vector.broadcast %356 : f32 to vector<8x8xf32>
    %358 = arith.mulf %355, %357 : vector<8x8xf32>
    %359 = arith.addf %353, %358 : vector<8x8xf32>
    %c0_231 = arith.constant 0 : index
    %c6_232 = arith.constant 6 : index
    %c4_233 = arith.constant 4 : index
    %360 = vector.load %arg11[%c0_231, %c6_232, %c4_233] : memref<2x14x14xf32, #tpu.memory_space<vmem>>, vector<1x8x8xf32>
    %361 = vector.shape_cast %360 : vector<1x8x8xf32> to vector<8x8xf32>
    %c0_234 = arith.constant 0 : index
    %c46 = arith.constant 46 : index
    %362 = memref.load %arg8[%c0_234, %c46] : memref<2x49xf32, #tpu.memory_space<smem>>
    %363 = vector.broadcast %362 : f32 to vector<8x8xf32>
    %364 = arith.mulf %361, %363 : vector<8x8xf32>
    %365 = arith.addf %359, %364 : vector<8x8xf32>
    %c0_235 = arith.constant 0 : index
    %c6_236 = arith.constant 6 : index
    %c5_237 = arith.constant 5 : index
    %366 = vector.load %arg11[%c0_235, %c6_236, %c5_237] : memref<2x14x14xf32, #tpu.memory_space<vmem>>, vector<1x8x8xf32>
    %367 = vector.shape_cast %366 : vector<1x8x8xf32> to vector<8x8xf32>
    %c0_238 = arith.constant 0 : index
    %c47 = arith.constant 47 : index
    %368 = memref.load %arg8[%c0_238, %c47] : memref<2x49xf32, #tpu.memory_space<smem>>
    %369 = vector.broadcast %368 : f32 to vector<8x8xf32>
    %370 = arith.mulf %367, %369 : vector<8x8xf32>
    %371 = arith.addf %365, %370 : vector<8x8xf32>
    %c0_239 = arith.constant 0 : index
    %c6_240 = arith.constant 6 : index
    %c6_241 = arith.constant 6 : index
    %372 = vector.load %arg11[%c0_239, %c6_240, %c6_241] : memref<2x14x14xf32, #tpu.memory_space<vmem>>, vector<1x8x8xf32>
    %373 = vector.shape_cast %372 : vector<1x8x8xf32> to vector<8x8xf32>
    %c0_242 = arith.constant 0 : index
    %c48 = arith.constant 48 : index
    %374 = memref.load %arg8[%c0_242, %c48] : memref<2x49xf32, #tpu.memory_space<smem>>
    %375 = vector.broadcast %374 : f32 to vector<8x8xf32>
    %376 = arith.mulf %373, %375 : vector<8x8xf32>
    %377 = arith.addf %371, %376 : vector<8x8xf32>
    %c1_243 = arith.constant 1 : index
    %c0_244 = arith.constant 0 : index
    %c0_245 = arith.constant 0 : index
    %378 = vector.load %arg11[%c1_243, %c0_244, %c0_245] : memref<2x14x14xf32, #tpu.memory_space<vmem>>, vector<1x8x8xf32>
    %379 = vector.shape_cast %378 : vector<1x8x8xf32> to vector<8x8xf32>
    %c1_246 = arith.constant 1 : index
    %c0_247 = arith.constant 0 : index
    %380 = memref.load %arg8[%c1_246, %c0_247] : memref<2x49xf32, #tpu.memory_space<smem>>
    %381 = vector.broadcast %380 : f32 to vector<8x8xf32>
    %382 = arith.mulf %379, %381 : vector<8x8xf32>
    %383 = arith.addf %377, %382 : vector<8x8xf32>
    %c1_248 = arith.constant 1 : index
    %c0_249 = arith.constant 0 : index
    %c1_250 = arith.constant 1 : index
    %384 = vector.load %arg11[%c1_248, %c0_249, %c1_250] : memref<2x14x14xf32, #tpu.memory_space<vmem>>, vector<1x8x8xf32>
    %385 = vector.shape_cast %384 : vector<1x8x8xf32> to vector<8x8xf32>
    %c1_251 = arith.constant 1 : index
    %c1_252 = arith.constant 1 : index
    %386 = memref.load %arg8[%c1_251, %c1_252] : memref<2x49xf32, #tpu.memory_space<smem>>
    %387 = vector.broadcast %386 : f32 to vector<8x8xf32>
    %388 = arith.mulf %385, %387 : vector<8x8xf32>
    %389 = arith.addf %383, %388 : vector<8x8xf32>
    %c1_253 = arith.constant 1 : index
    %c0_254 = arith.constant 0 : index
    %c2_255 = arith.constant 2 : index
    %390 = vector.load %arg11[%c1_253, %c0_254, %c2_255] : memref<2x14x14xf32, #tpu.memory_space<vmem>>, vector<1x8x8xf32>
    %391 = vector.shape_cast %390 : vector<1x8x8xf32> to vector<8x8xf32>
    %c1_256 = arith.constant 1 : index
    %c2_257 = arith.constant 2 : index
    %392 = memref.load %arg8[%c1_256, %c2_257] : memref<2x49xf32, #tpu.memory_space<smem>>
    %393 = vector.broadcast %392 : f32 to vector<8x8xf32>
    %394 = arith.mulf %391, %393 : vector<8x8xf32>
    %395 = arith.addf %389, %394 : vector<8x8xf32>
    %c1_258 = arith.constant 1 : index
    %c0_259 = arith.constant 0 : index
    %c3_260 = arith.constant 3 : index
    %396 = vector.load %arg11[%c1_258, %c0_259, %c3_260] : memref<2x14x14xf32, #tpu.memory_space<vmem>>, vector<1x8x8xf32>
    %397 = vector.shape_cast %396 : vector<1x8x8xf32> to vector<8x8xf32>
    %c1_261 = arith.constant 1 : index
    %c3_262 = arith.constant 3 : index
    %398 = memref.load %arg8[%c1_261, %c3_262] : memref<2x49xf32, #tpu.memory_space<smem>>
    %399 = vector.broadcast %398 : f32 to vector<8x8xf32>
    %400 = arith.mulf %397, %399 : vector<8x8xf32>
    %401 = arith.addf %395, %400 : vector<8x8xf32>
    %c1_263 = arith.constant 1 : index
    %c0_264 = arith.constant 0 : index
    %c4_265 = arith.constant 4 : index
    %402 = vector.load %arg11[%c1_263, %c0_264, %c4_265] : memref<2x14x14xf32, #tpu.memory_space<vmem>>, vector<1x8x8xf32>
    %403 = vector.shape_cast %402 : vector<1x8x8xf32> to vector<8x8xf32>
    %c1_266 = arith.constant 1 : index
    %c4_267 = arith.constant 4 : index
    %404 = memref.load %arg8[%c1_266, %c4_267] : memref<2x49xf32, #tpu.memory_space<smem>>
    %405 = vector.broadcast %404 : f32 to vector<8x8xf32>
    %406 = arith.mulf %403, %405 : vector<8x8xf32>
    %407 = arith.addf %401, %406 : vector<8x8xf32>
    %c1_268 = arith.constant 1 : index
    %c0_269 = arith.constant 0 : index
    %c5_270 = arith.constant 5 : index
    %408 = vector.load %arg11[%c1_268, %c0_269, %c5_270] : memref<2x14x14xf32, #tpu.memory_space<vmem>>, vector<1x8x8xf32>
    %409 = vector.shape_cast %408 : vector<1x8x8xf32> to vector<8x8xf32>
    %c1_271 = arith.constant 1 : index
    %c5_272 = arith.constant 5 : index
    %410 = memref.load %arg8[%c1_271, %c5_272] : memref<2x49xf32, #tpu.memory_space<smem>>
    %411 = vector.broadcast %410 : f32 to vector<8x8xf32>
    %412 = arith.mulf %409, %411 : vector<8x8xf32>
    %413 = arith.addf %407, %412 : vector<8x8xf32>
    %c1_273 = arith.constant 1 : index
    %c0_274 = arith.constant 0 : index
    %c6_275 = arith.constant 6 : index
    %414 = vector.load %arg11[%c1_273, %c0_274, %c6_275] : memref<2x14x14xf32, #tpu.memory_space<vmem>>, vector<1x8x8xf32>
    %415 = vector.shape_cast %414 : vector<1x8x8xf32> to vector<8x8xf32>
    %c1_276 = arith.constant 1 : index
    %c6_277 = arith.constant 6 : index
    %416 = memref.load %arg8[%c1_276, %c6_277] : memref<2x49xf32, #tpu.memory_space<smem>>
    %417 = vector.broadcast %416 : f32 to vector<8x8xf32>
    %418 = arith.mulf %415, %417 : vector<8x8xf32>
    %419 = arith.addf %413, %418 : vector<8x8xf32>
    %c1_278 = arith.constant 1 : index
    %c1_279 = arith.constant 1 : index
    %c0_280 = arith.constant 0 : index
    %420 = vector.load %arg11[%c1_278, %c1_279, %c0_280] : memref<2x14x14xf32, #tpu.memory_space<vmem>>, vector<1x8x8xf32>
    %421 = vector.shape_cast %420 : vector<1x8x8xf32> to vector<8x8xf32>
    %c1_281 = arith.constant 1 : index
    %c7_282 = arith.constant 7 : index
    %422 = memref.load %arg8[%c1_281, %c7_282] : memref<2x49xf32, #tpu.memory_space<smem>>
    %423 = vector.broadcast %422 : f32 to vector<8x8xf32>
    %424 = arith.mulf %421, %423 : vector<8x8xf32>
    %425 = arith.addf %419, %424 : vector<8x8xf32>
    %c1_283 = arith.constant 1 : index
    %c1_284 = arith.constant 1 : index
    %c1_285 = arith.constant 1 : index
    %426 = vector.load %arg11[%c1_283, %c1_284, %c1_285] : memref<2x14x14xf32, #tpu.memory_space<vmem>>, vector<1x8x8xf32>
    %427 = vector.shape_cast %426 : vector<1x8x8xf32> to vector<8x8xf32>
    %c1_286 = arith.constant 1 : index
    %c8_287 = arith.constant 8 : index
    %428 = memref.load %arg8[%c1_286, %c8_287] : memref<2x49xf32, #tpu.memory_space<smem>>
    %429 = vector.broadcast %428 : f32 to vector<8x8xf32>
    %430 = arith.mulf %427, %429 : vector<8x8xf32>
    %431 = arith.addf %425, %430 : vector<8x8xf32>
    %c1_288 = arith.constant 1 : index
    %c1_289 = arith.constant 1 : index
    %c2_290 = arith.constant 2 : index
    %432 = vector.load %arg11[%c1_288, %c1_289, %c2_290] : memref<2x14x14xf32, #tpu.memory_space<vmem>>, vector<1x8x8xf32>
    %433 = vector.shape_cast %432 : vector<1x8x8xf32> to vector<8x8xf32>
    %c1_291 = arith.constant 1 : index
    %c9_292 = arith.constant 9 : index
    %434 = memref.load %arg8[%c1_291, %c9_292] : memref<2x49xf32, #tpu.memory_space<smem>>
    %435 = vector.broadcast %434 : f32 to vector<8x8xf32>
    %436 = arith.mulf %433, %435 : vector<8x8xf32>
    %437 = arith.addf %431, %436 : vector<8x8xf32>
    %c1_293 = arith.constant 1 : index
    %c1_294 = arith.constant 1 : index
    %c3_295 = arith.constant 3 : index
    %438 = vector.load %arg11[%c1_293, %c1_294, %c3_295] : memref<2x14x14xf32, #tpu.memory_space<vmem>>, vector<1x8x8xf32>
    %439 = vector.shape_cast %438 : vector<1x8x8xf32> to vector<8x8xf32>
    %c1_296 = arith.constant 1 : index
    %c10_297 = arith.constant 10 : index
    %440 = memref.load %arg8[%c1_296, %c10_297] : memref<2x49xf32, #tpu.memory_space<smem>>
    %441 = vector.broadcast %440 : f32 to vector<8x8xf32>
    %442 = arith.mulf %439, %441 : vector<8x8xf32>
    %443 = arith.addf %437, %442 : vector<8x8xf32>
    %c1_298 = arith.constant 1 : index
    %c1_299 = arith.constant 1 : index
    %c4_300 = arith.constant 4 : index
    %444 = vector.load %arg11[%c1_298, %c1_299, %c4_300] : memref<2x14x14xf32, #tpu.memory_space<vmem>>, vector<1x8x8xf32>
    %445 = vector.shape_cast %444 : vector<1x8x8xf32> to vector<8x8xf32>
    %c1_301 = arith.constant 1 : index
    %c11_302 = arith.constant 11 : index
    %446 = memref.load %arg8[%c1_301, %c11_302] : memref<2x49xf32, #tpu.memory_space<smem>>
    %447 = vector.broadcast %446 : f32 to vector<8x8xf32>
    %448 = arith.mulf %445, %447 : vector<8x8xf32>
    %449 = arith.addf %443, %448 : vector<8x8xf32>
    %c1_303 = arith.constant 1 : index
    %c1_304 = arith.constant 1 : index
    %c5_305 = arith.constant 5 : index
    %450 = vector.load %arg11[%c1_303, %c1_304, %c5_305] : memref<2x14x14xf32, #tpu.memory_space<vmem>>, vector<1x8x8xf32>
    %451 = vector.shape_cast %450 : vector<1x8x8xf32> to vector<8x8xf32>
    %c1_306 = arith.constant 1 : index
    %c12_307 = arith.constant 12 : index
    %452 = memref.load %arg8[%c1_306, %c12_307] : memref<2x49xf32, #tpu.memory_space<smem>>
    %453 = vector.broadcast %452 : f32 to vector<8x8xf32>
    %454 = arith.mulf %451, %453 : vector<8x8xf32>
    %455 = arith.addf %449, %454 : vector<8x8xf32>
    %c1_308 = arith.constant 1 : index
    %c1_309 = arith.constant 1 : index
    %c6_310 = arith.constant 6 : index
    %456 = vector.load %arg11[%c1_308, %c1_309, %c6_310] : memref<2x14x14xf32, #tpu.memory_space<vmem>>, vector<1x8x8xf32>
    %457 = vector.shape_cast %456 : vector<1x8x8xf32> to vector<8x8xf32>
    %c1_311 = arith.constant 1 : index
    %c13_312 = arith.constant 13 : index
    %458 = memref.load %arg8[%c1_311, %c13_312] : memref<2x49xf32, #tpu.memory_space<smem>>
    %459 = vector.broadcast %458 : f32 to vector<8x8xf32>
    %460 = arith.mulf %457, %459 : vector<8x8xf32>
    %461 = arith.addf %455, %460 : vector<8x8xf32>
    %c1_313 = arith.constant 1 : index
    %c2_314 = arith.constant 2 : index
    %c0_315 = arith.constant 0 : index
    %462 = vector.load %arg11[%c1_313, %c2_314, %c0_315] : memref<2x14x14xf32, #tpu.memory_space<vmem>>, vector<1x8x8xf32>
    %463 = vector.shape_cast %462 : vector<1x8x8xf32> to vector<8x8xf32>
    %c1_316 = arith.constant 1 : index
    %c14_317 = arith.constant 14 : index
    %464 = memref.load %arg8[%c1_316, %c14_317] : memref<2x49xf32, #tpu.memory_space<smem>>
    %465 = vector.broadcast %464 : f32 to vector<8x8xf32>
    %466 = arith.mulf %463, %465 : vector<8x8xf32>
    %467 = arith.addf %461, %466 : vector<8x8xf32>
    %c1_318 = arith.constant 1 : index
    %c2_319 = arith.constant 2 : index
    %c1_320 = arith.constant 1 : index
    %468 = vector.load %arg11[%c1_318, %c2_319, %c1_320] : memref<2x14x14xf32, #tpu.memory_space<vmem>>, vector<1x8x8xf32>
    %469 = vector.shape_cast %468 : vector<1x8x8xf32> to vector<8x8xf32>
    %c1_321 = arith.constant 1 : index
    %c15_322 = arith.constant 15 : index
    %470 = memref.load %arg8[%c1_321, %c15_322] : memref<2x49xf32, #tpu.memory_space<smem>>
    %471 = vector.broadcast %470 : f32 to vector<8x8xf32>
    %472 = arith.mulf %469, %471 : vector<8x8xf32>
    %473 = arith.addf %467, %472 : vector<8x8xf32>
    %c1_323 = arith.constant 1 : index
    %c2_324 = arith.constant 2 : index
    %c2_325 = arith.constant 2 : index
    %474 = vector.load %arg11[%c1_323, %c2_324, %c2_325] : memref<2x14x14xf32, #tpu.memory_space<vmem>>, vector<1x8x8xf32>
    %475 = vector.shape_cast %474 : vector<1x8x8xf32> to vector<8x8xf32>
    %c1_326 = arith.constant 1 : index
    %c16_327 = arith.constant 16 : index
    %476 = memref.load %arg8[%c1_326, %c16_327] : memref<2x49xf32, #tpu.memory_space<smem>>
    %477 = vector.broadcast %476 : f32 to vector<8x8xf32>
    %478 = arith.mulf %475, %477 : vector<8x8xf32>
    %479 = arith.addf %473, %478 : vector<8x8xf32>
    %c1_328 = arith.constant 1 : index
    %c2_329 = arith.constant 2 : index
    %c3_330 = arith.constant 3 : index
    %480 = vector.load %arg11[%c1_328, %c2_329, %c3_330] : memref<2x14x14xf32, #tpu.memory_space<vmem>>, vector<1x8x8xf32>
    %481 = vector.shape_cast %480 : vector<1x8x8xf32> to vector<8x8xf32>
    %c1_331 = arith.constant 1 : index
    %c17_332 = arith.constant 17 : index
    %482 = memref.load %arg8[%c1_331, %c17_332] : memref<2x49xf32, #tpu.memory_space<smem>>
    %483 = vector.broadcast %482 : f32 to vector<8x8xf32>
    %484 = arith.mulf %481, %483 : vector<8x8xf32>
    %485 = arith.addf %479, %484 : vector<8x8xf32>
    %c1_333 = arith.constant 1 : index
    %c2_334 = arith.constant 2 : index
    %c4_335 = arith.constant 4 : index
    %486 = vector.load %arg11[%c1_333, %c2_334, %c4_335] : memref<2x14x14xf32, #tpu.memory_space<vmem>>, vector<1x8x8xf32>
    %487 = vector.shape_cast %486 : vector<1x8x8xf32> to vector<8x8xf32>
    %c1_336 = arith.constant 1 : index
    %c18_337 = arith.constant 18 : index
    %488 = memref.load %arg8[%c1_336, %c18_337] : memref<2x49xf32, #tpu.memory_space<smem>>
    %489 = vector.broadcast %488 : f32 to vector<8x8xf32>
    %490 = arith.mulf %487, %489 : vector<8x8xf32>
    %491 = arith.addf %485, %490 : vector<8x8xf32>
    %c1_338 = arith.constant 1 : index
    %c2_339 = arith.constant 2 : index
    %c5_340 = arith.constant 5 : index
    %492 = vector.load %arg11[%c1_338, %c2_339, %c5_340] : memref<2x14x14xf32, #tpu.memory_space<vmem>>, vector<1x8x8xf32>
    %493 = vector.shape_cast %492 : vector<1x8x8xf32> to vector<8x8xf32>
    %c1_341 = arith.constant 1 : index
    %c19_342 = arith.constant 19 : index
    %494 = memref.load %arg8[%c1_341, %c19_342] : memref<2x49xf32, #tpu.memory_space<smem>>
    %495 = vector.broadcast %494 : f32 to vector<8x8xf32>
    %496 = arith.mulf %493, %495 : vector<8x8xf32>
    %497 = arith.addf %491, %496 : vector<8x8xf32>
    %c1_343 = arith.constant 1 : index
    %c2_344 = arith.constant 2 : index
    %c6_345 = arith.constant 6 : index
    %498 = vector.load %arg11[%c1_343, %c2_344, %c6_345] : memref<2x14x14xf32, #tpu.memory_space<vmem>>, vector<1x8x8xf32>
    %499 = vector.shape_cast %498 : vector<1x8x8xf32> to vector<8x8xf32>
    %c1_346 = arith.constant 1 : index
    %c20_347 = arith.constant 20 : index
    %500 = memref.load %arg8[%c1_346, %c20_347] : memref<2x49xf32, #tpu.memory_space<smem>>
    %501 = vector.broadcast %500 : f32 to vector<8x8xf32>
    %502 = arith.mulf %499, %501 : vector<8x8xf32>
    %503 = arith.addf %497, %502 : vector<8x8xf32>
    %c1_348 = arith.constant 1 : index
    %c3_349 = arith.constant 3 : index
    %c0_350 = arith.constant 0 : index
    %504 = vector.load %arg11[%c1_348, %c3_349, %c0_350] : memref<2x14x14xf32, #tpu.memory_space<vmem>>, vector<1x8x8xf32>
    %505 = vector.shape_cast %504 : vector<1x8x8xf32> to vector<8x8xf32>
    %c1_351 = arith.constant 1 : index
    %c21_352 = arith.constant 21 : index
    %506 = memref.load %arg8[%c1_351, %c21_352] : memref<2x49xf32, #tpu.memory_space<smem>>
    %507 = vector.broadcast %506 : f32 to vector<8x8xf32>
    %508 = arith.mulf %505, %507 : vector<8x8xf32>
    %509 = arith.addf %503, %508 : vector<8x8xf32>
    %c1_353 = arith.constant 1 : index
    %c3_354 = arith.constant 3 : index
    %c1_355 = arith.constant 1 : index
    %510 = vector.load %arg11[%c1_353, %c3_354, %c1_355] : memref<2x14x14xf32, #tpu.memory_space<vmem>>, vector<1x8x8xf32>
    %511 = vector.shape_cast %510 : vector<1x8x8xf32> to vector<8x8xf32>
    %c1_356 = arith.constant 1 : index
    %c22_357 = arith.constant 22 : index
    %512 = memref.load %arg8[%c1_356, %c22_357] : memref<2x49xf32, #tpu.memory_space<smem>>
    %513 = vector.broadcast %512 : f32 to vector<8x8xf32>
    %514 = arith.mulf %511, %513 : vector<8x8xf32>
    %515 = arith.addf %509, %514 : vector<8x8xf32>
    %c1_358 = arith.constant 1 : index
    %c3_359 = arith.constant 3 : index
    %c2_360 = arith.constant 2 : index
    %516 = vector.load %arg11[%c1_358, %c3_359, %c2_360] : memref<2x14x14xf32, #tpu.memory_space<vmem>>, vector<1x8x8xf32>
    %517 = vector.shape_cast %516 : vector<1x8x8xf32> to vector<8x8xf32>
    %c1_361 = arith.constant 1 : index
    %c23_362 = arith.constant 23 : index
    %518 = memref.load %arg8[%c1_361, %c23_362] : memref<2x49xf32, #tpu.memory_space<smem>>
    %519 = vector.broadcast %518 : f32 to vector<8x8xf32>
    %520 = arith.mulf %517, %519 : vector<8x8xf32>
    %521 = arith.addf %515, %520 : vector<8x8xf32>
    %c1_363 = arith.constant 1 : index
    %c3_364 = arith.constant 3 : index
    %c3_365 = arith.constant 3 : index
    %522 = vector.load %arg11[%c1_363, %c3_364, %c3_365] : memref<2x14x14xf32, #tpu.memory_space<vmem>>, vector<1x8x8xf32>
    %523 = vector.shape_cast %522 : vector<1x8x8xf32> to vector<8x8xf32>
    %c1_366 = arith.constant 1 : index
    %c24_367 = arith.constant 24 : index
    %524 = memref.load %arg8[%c1_366, %c24_367] : memref<2x49xf32, #tpu.memory_space<smem>>
    %525 = vector.broadcast %524 : f32 to vector<8x8xf32>
    %526 = arith.mulf %523, %525 : vector<8x8xf32>
    %527 = arith.addf %521, %526 : vector<8x8xf32>
    %c1_368 = arith.constant 1 : index
    %c3_369 = arith.constant 3 : index
    %c4_370 = arith.constant 4 : index
    %528 = vector.load %arg11[%c1_368, %c3_369, %c4_370] : memref<2x14x14xf32, #tpu.memory_space<vmem>>, vector<1x8x8xf32>
    %529 = vector.shape_cast %528 : vector<1x8x8xf32> to vector<8x8xf32>
    %c1_371 = arith.constant 1 : index
    %c25_372 = arith.constant 25 : index
    %530 = memref.load %arg8[%c1_371, %c25_372] : memref<2x49xf32, #tpu.memory_space<smem>>
    %531 = vector.broadcast %530 : f32 to vector<8x8xf32>
    %532 = arith.mulf %529, %531 : vector<8x8xf32>
    %533 = arith.addf %527, %532 : vector<8x8xf32>
    %c1_373 = arith.constant 1 : index
    %c3_374 = arith.constant 3 : index
    %c5_375 = arith.constant 5 : index
    %534 = vector.load %arg11[%c1_373, %c3_374, %c5_375] : memref<2x14x14xf32, #tpu.memory_space<vmem>>, vector<1x8x8xf32>
    %535 = vector.shape_cast %534 : vector<1x8x8xf32> to vector<8x8xf32>
    %c1_376 = arith.constant 1 : index
    %c26_377 = arith.constant 26 : index
    %536 = memref.load %arg8[%c1_376, %c26_377] : memref<2x49xf32, #tpu.memory_space<smem>>
    %537 = vector.broadcast %536 : f32 to vector<8x8xf32>
    %538 = arith.mulf %535, %537 : vector<8x8xf32>
    %539 = arith.addf %533, %538 : vector<8x8xf32>
    %c1_378 = arith.constant 1 : index
    %c3_379 = arith.constant 3 : index
    %c6_380 = arith.constant 6 : index
    %540 = vector.load %arg11[%c1_378, %c3_379, %c6_380] : memref<2x14x14xf32, #tpu.memory_space<vmem>>, vector<1x8x8xf32>
    %541 = vector.shape_cast %540 : vector<1x8x8xf32> to vector<8x8xf32>
    %c1_381 = arith.constant 1 : index
    %c27_382 = arith.constant 27 : index
    %542 = memref.load %arg8[%c1_381, %c27_382] : memref<2x49xf32, #tpu.memory_space<smem>>
    %543 = vector.broadcast %542 : f32 to vector<8x8xf32>
    %544 = arith.mulf %541, %543 : vector<8x8xf32>
    %545 = arith.addf %539, %544 : vector<8x8xf32>
    %c1_383 = arith.constant 1 : index
    %c4_384 = arith.constant 4 : index
    %c0_385 = arith.constant 0 : index
    %546 = vector.load %arg11[%c1_383, %c4_384, %c0_385] : memref<2x14x14xf32, #tpu.memory_space<vmem>>, vector<1x8x8xf32>
    %547 = vector.shape_cast %546 : vector<1x8x8xf32> to vector<8x8xf32>
    %c1_386 = arith.constant 1 : index
    %c28_387 = arith.constant 28 : index
    %548 = memref.load %arg8[%c1_386, %c28_387] : memref<2x49xf32, #tpu.memory_space<smem>>
    %549 = vector.broadcast %548 : f32 to vector<8x8xf32>
    %550 = arith.mulf %547, %549 : vector<8x8xf32>
    %551 = arith.addf %545, %550 : vector<8x8xf32>
    %c1_388 = arith.constant 1 : index
    %c4_389 = arith.constant 4 : index
    %c1_390 = arith.constant 1 : index
    %552 = vector.load %arg11[%c1_388, %c4_389, %c1_390] : memref<2x14x14xf32, #tpu.memory_space<vmem>>, vector<1x8x8xf32>
    %553 = vector.shape_cast %552 : vector<1x8x8xf32> to vector<8x8xf32>
    %c1_391 = arith.constant 1 : index
    %c29_392 = arith.constant 29 : index
    %554 = memref.load %arg8[%c1_391, %c29_392] : memref<2x49xf32, #tpu.memory_space<smem>>
    %555 = vector.broadcast %554 : f32 to vector<8x8xf32>
    %556 = arith.mulf %553, %555 : vector<8x8xf32>
    %557 = arith.addf %551, %556 : vector<8x8xf32>
    %c1_393 = arith.constant 1 : index
    %c4_394 = arith.constant 4 : index
    %c2_395 = arith.constant 2 : index
    %558 = vector.load %arg11[%c1_393, %c4_394, %c2_395] : memref<2x14x14xf32, #tpu.memory_space<vmem>>, vector<1x8x8xf32>
    %559 = vector.shape_cast %558 : vector<1x8x8xf32> to vector<8x8xf32>
    %c1_396 = arith.constant 1 : index
    %c30_397 = arith.constant 30 : index
    %560 = memref.load %arg8[%c1_396, %c30_397] : memref<2x49xf32, #tpu.memory_space<smem>>
    %561 = vector.broadcast %560 : f32 to vector<8x8xf32>
    %562 = arith.mulf %559, %561 : vector<8x8xf32>
    %563 = arith.addf %557, %562 : vector<8x8xf32>
    %c1_398 = arith.constant 1 : index
    %c4_399 = arith.constant 4 : index
    %c3_400 = arith.constant 3 : index
    %564 = vector.load %arg11[%c1_398, %c4_399, %c3_400] : memref<2x14x14xf32, #tpu.memory_space<vmem>>, vector<1x8x8xf32>
    %565 = vector.shape_cast %564 : vector<1x8x8xf32> to vector<8x8xf32>
    %c1_401 = arith.constant 1 : index
    %c31_402 = arith.constant 31 : index
    %566 = memref.load %arg8[%c1_401, %c31_402] : memref<2x49xf32, #tpu.memory_space<smem>>
    %567 = vector.broadcast %566 : f32 to vector<8x8xf32>
    %568 = arith.mulf %565, %567 : vector<8x8xf32>
    %569 = arith.addf %563, %568 : vector<8x8xf32>
    %c1_403 = arith.constant 1 : index
    %c4_404 = arith.constant 4 : index
    %c4_405 = arith.constant 4 : index
    %570 = vector.load %arg11[%c1_403, %c4_404, %c4_405] : memref<2x14x14xf32, #tpu.memory_space<vmem>>, vector<1x8x8xf32>
    %571 = vector.shape_cast %570 : vector<1x8x8xf32> to vector<8x8xf32>
    %c1_406 = arith.constant 1 : index
    %c32_407 = arith.constant 32 : index
    %572 = memref.load %arg8[%c1_406, %c32_407] : memref<2x49xf32, #tpu.memory_space<smem>>
    %573 = vector.broadcast %572 : f32 to vector<8x8xf32>
    %574 = arith.mulf %571, %573 : vector<8x8xf32>
    %575 = arith.addf %569, %574 : vector<8x8xf32>
    %c1_408 = arith.constant 1 : index
    %c4_409 = arith.constant 4 : index
    %c5_410 = arith.constant 5 : index
    %576 = vector.load %arg11[%c1_408, %c4_409, %c5_410] : memref<2x14x14xf32, #tpu.memory_space<vmem>>, vector<1x8x8xf32>
    %577 = vector.shape_cast %576 : vector<1x8x8xf32> to vector<8x8xf32>
    %c1_411 = arith.constant 1 : index
    %c33_412 = arith.constant 33 : index
    %578 = memref.load %arg8[%c1_411, %c33_412] : memref<2x49xf32, #tpu.memory_space<smem>>
    %579 = vector.broadcast %578 : f32 to vector<8x8xf32>
    %580 = arith.mulf %577, %579 : vector<8x8xf32>
    %581 = arith.addf %575, %580 : vector<8x8xf32>
    %c1_413 = arith.constant 1 : index
    %c4_414 = arith.constant 4 : index
    %c6_415 = arith.constant 6 : index
    %582 = vector.load %arg11[%c1_413, %c4_414, %c6_415] : memref<2x14x14xf32, #tpu.memory_space<vmem>>, vector<1x8x8xf32>
    %583 = vector.shape_cast %582 : vector<1x8x8xf32> to vector<8x8xf32>
    %c1_416 = arith.constant 1 : index
    %c34_417 = arith.constant 34 : index
    %584 = memref.load %arg8[%c1_416, %c34_417] : memref<2x49xf32, #tpu.memory_space<smem>>
    %585 = vector.broadcast %584 : f32 to vector<8x8xf32>
    %586 = arith.mulf %583, %585 : vector<8x8xf32>
    %587 = arith.addf %581, %586 : vector<8x8xf32>
    %c1_418 = arith.constant 1 : index
    %c5_419 = arith.constant 5 : index
    %c0_420 = arith.constant 0 : index
    %588 = vector.load %arg11[%c1_418, %c5_419, %c0_420] : memref<2x14x14xf32, #tpu.memory_space<vmem>>, vector<1x8x8xf32>
    %589 = vector.shape_cast %588 : vector<1x8x8xf32> to vector<8x8xf32>
    %c1_421 = arith.constant 1 : index
    %c35_422 = arith.constant 35 : index
    %590 = memref.load %arg8[%c1_421, %c35_422] : memref<2x49xf32, #tpu.memory_space<smem>>
    %591 = vector.broadcast %590 : f32 to vector<8x8xf32>
    %592 = arith.mulf %589, %591 : vector<8x8xf32>
    %593 = arith.addf %587, %592 : vector<8x8xf32>
    %c1_423 = arith.constant 1 : index
    %c5_424 = arith.constant 5 : index
    %c1_425 = arith.constant 1 : index
    %594 = vector.load %arg11[%c1_423, %c5_424, %c1_425] : memref<2x14x14xf32, #tpu.memory_space<vmem>>, vector<1x8x8xf32>
    %595 = vector.shape_cast %594 : vector<1x8x8xf32> to vector<8x8xf32>
    %c1_426 = arith.constant 1 : index
    %c36_427 = arith.constant 36 : index
    %596 = memref.load %arg8[%c1_426, %c36_427] : memref<2x49xf32, #tpu.memory_space<smem>>
    %597 = vector.broadcast %596 : f32 to vector<8x8xf32>
    %598 = arith.mulf %595, %597 : vector<8x8xf32>
    %599 = arith.addf %593, %598 : vector<8x8xf32>
    %c1_428 = arith.constant 1 : index
    %c5_429 = arith.constant 5 : index
    %c2_430 = arith.constant 2 : index
    %600 = vector.load %arg11[%c1_428, %c5_429, %c2_430] : memref<2x14x14xf32, #tpu.memory_space<vmem>>, vector<1x8x8xf32>
    %601 = vector.shape_cast %600 : vector<1x8x8xf32> to vector<8x8xf32>
    %c1_431 = arith.constant 1 : index
    %c37_432 = arith.constant 37 : index
    %602 = memref.load %arg8[%c1_431, %c37_432] : memref<2x49xf32, #tpu.memory_space<smem>>
    %603 = vector.broadcast %602 : f32 to vector<8x8xf32>
    %604 = arith.mulf %601, %603 : vector<8x8xf32>
    %605 = arith.addf %599, %604 : vector<8x8xf32>
    %c1_433 = arith.constant 1 : index
    %c5_434 = arith.constant 5 : index
    %c3_435 = arith.constant 3 : index
    %606 = vector.load %arg11[%c1_433, %c5_434, %c3_435] : memref<2x14x14xf32, #tpu.memory_space<vmem>>, vector<1x8x8xf32>
    %607 = vector.shape_cast %606 : vector<1x8x8xf32> to vector<8x8xf32>
    %c1_436 = arith.constant 1 : index
    %c38_437 = arith.constant 38 : index
    %608 = memref.load %arg8[%c1_436, %c38_437] : memref<2x49xf32, #tpu.memory_space<smem>>
    %609 = vector.broadcast %608 : f32 to vector<8x8xf32>
    %610 = arith.mulf %607, %609 : vector<8x8xf32>
    %611 = arith.addf %605, %610 : vector<8x8xf32>
    %c1_438 = arith.constant 1 : index
    %c5_439 = arith.constant 5 : index
    %c4_440 = arith.constant 4 : index
    %612 = vector.load %arg11[%c1_438, %c5_439, %c4_440] : memref<2x14x14xf32, #tpu.memory_space<vmem>>, vector<1x8x8xf32>
    %613 = vector.shape_cast %612 : vector<1x8x8xf32> to vector<8x8xf32>
    %c1_441 = arith.constant 1 : index
    %c39_442 = arith.constant 39 : index
    %614 = memref.load %arg8[%c1_441, %c39_442] : memref<2x49xf32, #tpu.memory_space<smem>>
    %615 = vector.broadcast %614 : f32 to vector<8x8xf32>
    %616 = arith.mulf %613, %615 : vector<8x8xf32>
    %617 = arith.addf %611, %616 : vector<8x8xf32>
    %c1_443 = arith.constant 1 : index
    %c5_444 = arith.constant 5 : index
    %c5_445 = arith.constant 5 : index
    %618 = vector.load %arg11[%c1_443, %c5_444, %c5_445] : memref<2x14x14xf32, #tpu.memory_space<vmem>>, vector<1x8x8xf32>
    %619 = vector.shape_cast %618 : vector<1x8x8xf32> to vector<8x8xf32>
    %c1_446 = arith.constant 1 : index
    %c40_447 = arith.constant 40 : index
    %620 = memref.load %arg8[%c1_446, %c40_447] : memref<2x49xf32, #tpu.memory_space<smem>>
    %621 = vector.broadcast %620 : f32 to vector<8x8xf32>
    %622 = arith.mulf %619, %621 : vector<8x8xf32>
    %623 = arith.addf %617, %622 : vector<8x8xf32>
    %c1_448 = arith.constant 1 : index
    %c5_449 = arith.constant 5 : index
    %c6_450 = arith.constant 6 : index
    %624 = vector.load %arg11[%c1_448, %c5_449, %c6_450] : memref<2x14x14xf32, #tpu.memory_space<vmem>>, vector<1x8x8xf32>
    %625 = vector.shape_cast %624 : vector<1x8x8xf32> to vector<8x8xf32>
    %c1_451 = arith.constant 1 : index
    %c41_452 = arith.constant 41 : index
    %626 = memref.load %arg8[%c1_451, %c41_452] : memref<2x49xf32, #tpu.memory_space<smem>>
    %627 = vector.broadcast %626 : f32 to vector<8x8xf32>
    %628 = arith.mulf %625, %627 : vector<8x8xf32>
    %629 = arith.addf %623, %628 : vector<8x8xf32>
    %c1_453 = arith.constant 1 : index
    %c6_454 = arith.constant 6 : index
    %c0_455 = arith.constant 0 : index
    %630 = vector.load %arg11[%c1_453, %c6_454, %c0_455] : memref<2x14x14xf32, #tpu.memory_space<vmem>>, vector<1x8x8xf32>
    %631 = vector.shape_cast %630 : vector<1x8x8xf32> to vector<8x8xf32>
    %c1_456 = arith.constant 1 : index
    %c42_457 = arith.constant 42 : index
    %632 = memref.load %arg8[%c1_456, %c42_457] : memref<2x49xf32, #tpu.memory_space<smem>>
    %633 = vector.broadcast %632 : f32 to vector<8x8xf32>
    %634 = arith.mulf %631, %633 : vector<8x8xf32>
    %635 = arith.addf %629, %634 : vector<8x8xf32>
    %c1_458 = arith.constant 1 : index
    %c6_459 = arith.constant 6 : index
    %c1_460 = arith.constant 1 : index
    %636 = vector.load %arg11[%c1_458, %c6_459, %c1_460] : memref<2x14x14xf32, #tpu.memory_space<vmem>>, vector<1x8x8xf32>
    %637 = vector.shape_cast %636 : vector<1x8x8xf32> to vector<8x8xf32>
    %c1_461 = arith.constant 1 : index
    %c43_462 = arith.constant 43 : index
    %638 = memref.load %arg8[%c1_461, %c43_462] : memref<2x49xf32, #tpu.memory_space<smem>>
    %639 = vector.broadcast %638 : f32 to vector<8x8xf32>
    %640 = arith.mulf %637, %639 : vector<8x8xf32>
    %641 = arith.addf %635, %640 : vector<8x8xf32>
    %c1_463 = arith.constant 1 : index
    %c6_464 = arith.constant 6 : index
    %c2_465 = arith.constant 2 : index
    %642 = vector.load %arg11[%c1_463, %c6_464, %c2_465] : memref<2x14x14xf32, #tpu.memory_space<vmem>>, vector<1x8x8xf32>
    %643 = vector.shape_cast %642 : vector<1x8x8xf32> to vector<8x8xf32>
    %c1_466 = arith.constant 1 : index
    %c44_467 = arith.constant 44 : index
    %644 = memref.load %arg8[%c1_466, %c44_467] : memref<2x49xf32, #tpu.memory_space<smem>>
    %645 = vector.broadcast %644 : f32 to vector<8x8xf32>
    %646 = arith.mulf %643, %645 : vector<8x8xf32>
    %647 = arith.addf %641, %646 : vector<8x8xf32>
    %c1_468 = arith.constant 1 : index
    %c6_469 = arith.constant 6 : index
    %c3_470 = arith.constant 3 : index
    %648 = vector.load %arg11[%c1_468, %c6_469, %c3_470] : memref<2x14x14xf32, #tpu.memory_space<vmem>>, vector<1x8x8xf32>
    %649 = vector.shape_cast %648 : vector<1x8x8xf32> to vector<8x8xf32>
    %c1_471 = arith.constant 1 : index
    %c45_472 = arith.constant 45 : index
    %650 = memref.load %arg8[%c1_471, %c45_472] : memref<2x49xf32, #tpu.memory_space<smem>>
    %651 = vector.broadcast %650 : f32 to vector<8x8xf32>
    %652 = arith.mulf %649, %651 : vector<8x8xf32>
    %653 = arith.addf %647, %652 : vector<8x8xf32>
    %c1_473 = arith.constant 1 : index
    %c6_474 = arith.constant 6 : index
    %c4_475 = arith.constant 4 : index
    %654 = vector.load %arg11[%c1_473, %c6_474, %c4_475] : memref<2x14x14xf32, #tpu.memory_space<vmem>>, vector<1x8x8xf32>
    %655 = vector.shape_cast %654 : vector<1x8x8xf32> to vector<8x8xf32>
    %c1_476 = arith.constant 1 : index
    %c46_477 = arith.constant 46 : index
    %656 = memref.load %arg8[%c1_476, %c46_477] : memref<2x49xf32, #tpu.memory_space<smem>>
    %657 = vector.broadcast %656 : f32 to vector<8x8xf32>
    %658 = arith.mulf %655, %657 : vector<8x8xf32>
    %659 = arith.addf %653, %658 : vector<8x8xf32>
    %c1_478 = arith.constant 1 : index
    %c6_479 = arith.constant 6 : index
    %c5_480 = arith.constant 5 : index
    %660 = vector.load %arg11[%c1_478, %c6_479, %c5_480] : memref<2x14x14xf32, #tpu.memory_space<vmem>>, vector<1x8x8xf32>
    %661 = vector.shape_cast %660 : vector<1x8x8xf32> to vector<8x8xf32>
    %c1_481 = arith.constant 1 : index
    %c47_482 = arith.constant 47 : index
    %662 = memref.load %arg8[%c1_481, %c47_482] : memref<2x49xf32, #tpu.memory_space<smem>>
    %663 = vector.broadcast %662 : f32 to vector<8x8xf32>
    %664 = arith.mulf %661, %663 : vector<8x8xf32>
    %665 = arith.addf %659, %664 : vector<8x8xf32>
    %c1_483 = arith.constant 1 : index
    %c6_484 = arith.constant 6 : index
    %c6_485 = arith.constant 6 : index
    %666 = vector.load %arg11[%c1_483, %c6_484, %c6_485] : memref<2x14x14xf32, #tpu.memory_space<vmem>>, vector<1x8x8xf32>
    %667 = vector.shape_cast %666 : vector<1x8x8xf32> to vector<8x8xf32>
    %c1_486 = arith.constant 1 : index
    %c48_487 = arith.constant 48 : index
    %668 = memref.load %arg8[%c1_486, %c48_487] : memref<2x49xf32, #tpu.memory_space<smem>>
    %669 = vector.broadcast %668 : f32 to vector<8x8xf32>
    %670 = arith.mulf %667, %669 : vector<8x8xf32>
    %671 = arith.addf %665, %670 : vector<8x8xf32>
    %c0_488 = arith.constant 0 : index
    %c0_489 = arith.constant 0 : index
    %c0_490 = arith.constant 0 : index
    %672 = vector.load %arg10[%c0_488, %c0_489, %c0_490] : memref<1x8x8xf32, #tpu.memory_space<vmem>>, vector<1x8x8xf32>
    %673 = vector.shape_cast %672 : vector<1x8x8xf32> to vector<8x8xf32>
    %674 = vector.shape_cast %671 : vector<8x8xf32> to vector<1x8x8xf32>
    tpu.vector_store %arg10[%c0_488, %c0_489, %c0_490], %674 {strides = array<i32>} : memref<1x8x8xf32, #tpu.memory_space<vmem>>, vector<1x8x8xf32>,
    return
  }
  func.func @transform_0(%arg0: i32) -> (i32, i32, i32, i32, i32) {
    %c0_i32 = arith.constant 0 : i32
    %c0_i32_0 = arith.constant 0 : i32
    %c0_i32_1 = arith.constant 0 : i32
    %c0_i32_2 = arith.constant 0 : i32
    %c0_i32_3 = arith.constant 0 : i32
    return %arg0, %c0_i32, %c0_i32_0, %c0_i32_1, %c0_i32_2 : i32, i32, i32, i32, i32
  }
  func.func @transform_1(%arg0: i32) -> (i32, i32) {
    %c0_i32 = arith.constant 0 : i32
    %c0_i32_0 = arith.constant 0 : i32
    %c0_i32_1 = arith.constant 0 : i32
    return %c0_i32, %c0_i32_0 : i32, i32
  }
  func.func @transform_2(%arg0: i32) -> (i32, i32) {
    %c0_i32 = arith.constant 0 : i32
    %c0_i32_0 = arith.constant 0 : i32
    %c0_i32_1 = arith.constant 0 : i32
    return %c0_i32, %c0_i32_0 : i32, i32
  }
  func.func @transform_3(%arg0: i32) -> (i32, i32) {
    %c0_i32 = arith.constant 0 : i32
    %c0_i32_0 = arith.constant 0 : i32
    %c0_i32_1 = arith.constant 0 : i32
    return %c0_i32, %c0_i32_0 : i32, i32
  }
  func.func @transform_4(%arg0: i32) -> (i32, i32) {
    %c0_i32 = arith.constant 0 : i32
    %c0_i32_0 = arith.constant 0 : i32
    %c0_i32_1 = arith.constant 0 : i32
    return %c0_i32, %c0_i32_0 : i32, i32
  }
  func.func @transform_5(%arg0: i32) -> (i32, i32) {
    %c0_i32 = arith.constant 0 : i32
    %c0_i32_0 = arith.constant 0 : i32
    %c0_i32_1 = arith.constant 0 : i32
    return %c0_i32, %c0_i32_0 : i32, i32
  }
  func.func @transform_6(%arg0: i32) -> (i32, i32) {
    %c0_i32 = arith.constant 0 : i32
    %c0_i32_0 = arith.constant 0 : i32
    %c0_i32_1 = arith.constant 0 : i32
    return %c0_i32, %c0_i32_0 : i32, i32
  }
  func.func @transform_7(%arg0: i32) -> (i32, i32) {
    %c0_i32 = arith.constant 0 : i32
    %c0_i32_0 = arith.constant 0 : i32
    %c0_i32_1 = arith.constant 0 : i32
    return %c0_i32, %c0_i32_0 : i32, i32
  }
  func.func @transform_8(%arg0: i32) -> (i32, i32, i32, i32) {
    %c0_i32 = arith.constant 0 : i32
    %c0_i32_0 = arith.constant 0 : i32
    %c0_i32_1 = arith.constant 0 : i32
    %c0_i32_2 = arith.constant 0 : i32
    return %arg0, %c0_i32, %c0_i32_0, %c0_i32_1 : i32, i32, i32, i32
  }
  func.func @transform_9(%arg0: i32) -> (i32, i32, i32) {
    %c0_i32 = arith.constant 0 : i32
    %c0_i32_0 = arith.constant 0 : i32
    %c0_i32_1 = arith.constant 0 : i32
    return %arg0, %c0_i32, %c0_i32_0 : i32, i32, i32
  }
}

module attributes {stable_mosaic.version = 11 : i64} {
  func.func @_spatial_apply_kernel(%arg0: i32, %arg1: memref<1x8x8x32xf32, #tpu.memory_space<vmem>>, %arg2: memref<1x8x8xf32, #tpu.memory_space<vmem>>, %arg3: memref<1x2xf32, #tpu.memory_space<smem>>, %arg4: memref<1x8x8x32xf32, #tpu.memory_space<vmem>>) attributes {dimension_semantics = [#tpu.dimension_semantics<parallel>], iteration_bounds = array<i64: 2>, scalar_prefetch = 0 : i64, scratch_operands = 0 : i64, tpu.core_type = #tpu.core_type<tc>, window_params = [{transform_indices = @transform_0, window_bounds = array<i64: 1, 8, 8, 32>}, {transform_indices = @transform_1, window_bounds = array<i64: 1, 8, 8>}, {transform_indices = @transform_2, window_bounds = array<i64: 1, 2>}, {transform_indices = @transform_3, window_bounds = array<i64: 1, 8, 8, 32>}]} {
    %c0 = arith.constant 0 : index
    %c0_0 = arith.constant 0 : index
    %c0_1 = arith.constant 0 : index
    %0 = vector.load %arg2[%c0, %c0_0, %c0_1] : memref<1x8x8xf32, #tpu.memory_space<vmem>>, vector<1x8x8xf32>
    %1 = vector.shape_cast %0 : vector<1x8x8xf32> to vector<8x8xf32>
    %c0_2 = arith.constant 0 : index
    %c0_3 = arith.constant 0 : index
    %2 = memref.load %arg3[%c0_2, %c0_3] : memref<1x2xf32, #tpu.memory_space<smem>>
    %3 = vector.broadcast %2 : f32 to vector<8x8xf32>
    %4 = arith.mulf %1, %3 : vector<8x8xf32>
    %c0_4 = arith.constant 0 : index
    %c1 = arith.constant 1 : index
    %5 = memref.load %arg3[%c0_4, %c1] : memref<1x2xf32, #tpu.memory_space<smem>>
    %6 = vector.broadcast %5 : f32 to vector<8x8xf32>
    %7 = arith.addf %4, %6 : vector<8x8xf32>
    %cst = arith.constant 0.000000e+00 : f32
    %8 = vector.broadcast %cst : f32 to vector<8x8xf32>
    %9 = arith.subf %8, %7 : vector<8x8xf32>
    %10 = math.exp %9 : vector<8x8xf32>
    %cst_5 = arith.constant 1.000000e+00 : f32
    %11 = vector.broadcast %cst_5 : f32 to vector<8x8xf32>
    %12 = arith.addf %11, %10 : vector<8x8xf32>
    %13 = tpu.reciprocal %12 {approx = true} : vector<8x8xf32> -> vector<8x8xf32>
    %c0_6 = arith.constant 0 : index
    %c0_7 = arith.constant 0 : index
    %c0_8 = arith.constant 0 : index
    %c0_9 = arith.constant 0 : index
    %14 = vector.load %arg1[%c0_6, %c0_7, %c0_8, %c0_9] : memref<1x8x8x32xf32, #tpu.memory_space<vmem>>, vector<1x8x8x32xf32>
    %15 = vector.shape_cast %14 : vector<1x8x8x32xf32> to vector<8x8x32xf32>
    %16 = vector.shape_cast %13 : vector<8x8xf32> to vector<8x8x1xf32>
    %17 = vector.broadcast %16 : vector<8x8x1xf32> to vector<8x8x32xf32>
    %18 = arith.mulf %15, %17 : vector<8x8x32xf32>
    %c0_10 = arith.constant 0 : index
    %c0_11 = arith.constant 0 : index
    %c0_12 = arith.constant 0 : index
    %c0_13 = arith.constant 0 : index
    %19 = vector.load %arg4[%c0_10, %c0_11, %c0_12, %c0_13] : memref<1x8x8x32xf32, #tpu.memory_space<vmem>>, vector<1x8x8x32xf32>
    %20 = vector.shape_cast %19 : vector<1x8x8x32xf32> to vector<8x8x32xf32>
    %21 = vector.shape_cast %18 : vector<8x8x32xf32> to vector<1x8x8x32xf32>
    tpu.vector_store %arg4[%c0_10, %c0_11, %c0_12, %c0_13], %21 {strides = array<i32>} : memref<1x8x8x32xf32, #tpu.memory_space<vmem>>, vector<1x8x8x32xf32>,
    return
  }
  func.func @transform_0(%arg0: i32) -> (i32, i32, i32, i32) {
    %c0_i32 = arith.constant 0 : i32
    %c0_i32_0 = arith.constant 0 : i32
    %c0_i32_1 = arith.constant 0 : i32
    %c0_i32_2 = arith.constant 0 : i32
    return %arg0, %c0_i32, %c0_i32_0, %c0_i32_1 : i32, i32, i32, i32
  }
  func.func @transform_1(%arg0: i32) -> (i32, i32, i32) {
    %c0_i32 = arith.constant 0 : i32
    %c0_i32_0 = arith.constant 0 : i32
    %c0_i32_1 = arith.constant 0 : i32
    return %arg0, %c0_i32, %c0_i32_0 : i32, i32, i32
  }
  func.func @transform_2(%arg0: i32) -> (i32, i32) {
    %c0_i32 = arith.constant 0 : i32
    %c0_i32_0 = arith.constant 0 : i32
    %c0_i32_1 = arith.constant 0 : i32
    return %c0_i32, %c0_i32_0 : i32, i32
  }
  func.func @transform_3(%arg0: i32) -> (i32, i32, i32, i32) {
    %c0_i32 = arith.constant 0 : i32
    %c0_i32_0 = arith.constant 0 : i32
    %c0_i32_1 = arith.constant 0 : i32
    %c0_i32_2 = arith.constant 0 : i32
    return %arg0, %c0_i32, %c0_i32_0, %c0_i32_1 : i32, i32, i32, i32
  }
}

</mosaic_0001>

<llo_original>
// kernel: contracting_block_forward.7
$region0: #{contracting_block_forward.7}
  #allocation0 [shape = 'u32[]', space=smem, size = 0x4, offset = 0x4, fixed_abs, tag = 'smem constant byte address 0x4 - core index']
  #allocation1 [shape = 'u32[72,128]{1,0:T(1,128)}', space=vmem, size = 0x9000, scoped, tag = 'internal scratch']
  %s0 = inlined_call_operand.vmem [shape: f32[2,8,8,32], index: 0, kind: input, shape index: {}]
  %s1 = inlined_call_operand.vmem [shape: f32[2,8,8], index: 1, kind: input, shape index: {}]
  %s2 = inlined_call_operand.vmem [shape: f32[1,2], index: 2, kind: input, shape index: {}]
  %s3 = inlined_call_operand.hbm [shape: f32[2,8,8,32], index: 3, kind: output, shape index: {}]
  %s4 = sld [smem:[#allocation0]]
  $region49: #{contracting_block_forward.7} parent=0
    _
  %s6 = ssub.s32 1, %s4
  %s7 = scalar_select 0, %s6, %s4
  $region1: #{contracting_block_forward.7} parent=0
    #allocation2 [shape = 'u8[512]{0}', space=smem, size = 0x200, scoped, tag = 'input window, operand 2, single buffered']
    #allocation3 [shape = 's32[2]{0}', space=sflag, size = 0x8, scoped, tag = 'scoped memory for contracting_block_forward.7']
    #allocation4 [shape = 's32[2]{0}', space=sflag, size = 0x8, scoped, tag = 'scoped memory for contracting_block_forward.7']
    #allocation5 [shape = 'u8[65536]{0}', space=vmem, size = 0x10000, scoped, tag = 'output window, operand 0']
    %8 = vsyncpa [#allocation4], 0
    %9 = vsyncpa [#allocation3], 0
    %s10 = scalar_lea.sflag [#allocation3], 1
    %11 = vsyncpa %s10, 0
    loop: start=0, step=1, limit=4
    $region2: #{contracting_block_forward.7} parent=1 // loop_pre_header
      _
    $region3: #{contracting_block_forward.7} parent=1 // loop_header
      %s13 = sphi 0, %s17
      %p14 = scmp.ge.s32.totalorder %s13, 4
      %s23 = sphi 0, %s25
      %s26 = sphi 0, %s23
      %s27 = sphi 0, %s26
      %s43 = sphi 0, %s27
      %s49 = sphi 0, %s51
      %s52 = sphi 0, %s49
      %s53 = sphi 0, %s52
      %s69 = sphi 0, %s53
      %s73 = sphi 0, %s73
      %s75 = sphi 0, %s73
      %s76 = sphi 0, %s75
      %s90 = sphi 0, %s76
      %s96 = sphi 0, %s98
      %s99 = sphi 0, %s96
      %s100 = sphi 0, %s99
      %s116 = sphi 0, %s100
    $region4: #{contracting_block_forward.7} parent=1 // loop_header_branch
      %16 = sbr.rel (%p14) target = $region8
    $region5: #{contracting_block_forward.7} parent=1 // loop_body
      %s18 = ssub.s32 %s13, 1
      %s19 = ssub.s32 %s13, 2
      %s20 = sadd.s32 %s13, 1
      %s21 = ssub.s32 %s13, %s20
      %p22 = scmp.eq.s32.totalorder %s21, 0
      %s24 = sadd.s32 %s23, 1
      %s25 = scalar_select %p22, %s23, %s24
      %p28 = pneg %p22
      %p29 = scmp.eq.s32.totalorder %s13, 1
      %p30 = por %p28, %p29
      %p31 = scmp.ne.s32.totalorder %s23, %s26
      %p32 = scmp.eq.s32.totalorder %s13, 0
      %p33 = por %p31, %p32
      %p34 = scmp.ne.s32.totalorder %s23, %s26
      %p35 = scmp.eq.s32.totalorder %s18, 1
      %p36 = por %p34, %p35
      %p37 = scmp.ne.s32.totalorder %s26, %s27
      %p38 = scmp.eq.s32.totalorder %s18, 0
      %p39 = por %p37, %p38
      %p40 = scmp.ne.s32.totalorder %s26, %s27
      %p41 = scmp.eq.s32.totalorder %s19, 1
      %p42 = por %p40, %p41
      %p44 = scmp.ne.s32.totalorder %s27, %s43
      %p45 = scmp.eq.s32.totalorder %s19, 0
      %p46 = por %p44, %p45
      %s47 = ssub.s32 %s13, %s20
      %p48 = scmp.eq.s32.totalorder %s47, 0
      %s50 = sadd.s32 %s49, 1
      %s51 = scalar_select %p48, %s49, %s50
      %p54 = pneg %p48
      %p55 = scmp.eq.s32.totalorder %s13, 1
      %p56 = por %p54, %p55
      %p57 = scmp.ne.s32.totalorder %s49, %s52
      %p58 = scmp.eq.s32.totalorder %s13, 0
      %p59 = por %p57, %p58
      %p60 = scmp.ne.s32.totalorder %s49, %s52
      %p61 = scmp.eq.s32.totalorder %s18, 1
      %p62 = por %p60, %p61
      %p63 = scmp.ne.s32.totalorder %s52, %s53
      %p64 = scmp.eq.s32.totalorder %s18, 0
      %p65 = por %p63, %p64
      %p66 = scmp.ne.s32.totalorder %s52, %s53
      %p67 = scmp.eq.s32.totalorder %s19, 1
      %p68 = por %p66, %p67
      %p70 = scmp.ne.s32.totalorder %s53, %s69
      %p71 = scmp.eq.s32.totalorder %s19, 0
      %p72 = por %p70, %p71
      %s74 = sadd.s32 %s73, 1
      %p77 = scmp.eq.s32.totalorder %s13, 1
      %p78 = scmp.ne.s32.totalorder %s73, %s75
      %p79 = scmp.eq.s32.totalorder %s13, 0
      %p80 = por %p78, %p79
      %p81 = scmp.ne.s32.totalorder %s73, %s75
      %p82 = scmp.eq.s32.totalorder %s18, 1
      %p83 = por %p81, %p82
      %p84 = scmp.ne.s32.totalorder %s75, %s76
      %p85 = scmp.eq.s32.totalorder %s18, 0
      %p86 = por %p84, %p85
      %p87 = scmp.ne.s32.totalorder %s75, %s76
      %p88 = scmp.eq.s32.totalorder %s19, 1
      %p89 = por %p87, %p88
      %p91 = scmp.ne.s32.totalorder %s76, %s90
      %p92 = scmp.eq.s32.totalorder %s19, 0
      %p93 = por %p91, %p92
      %s94 = ssub.s32 %s13, %s20
      %p95 = scmp.eq.s32.totalorder %s94, 0
      %s97 = sadd.s32 %s96, 1
      %s98 = scalar_select %p95, %s96, %s97
      %p101 = pneg %p95
      %p102 = scmp.eq.s32.totalorder %s13, 1
      %p103 = por %p101, %p102
      %p104 = scmp.ne.s32.totalorder %s96, %s99
      %p105 = scmp.eq.s32.totalorder %s13, 0
      %p106 = por %p104, %p105
      %p107 = scmp.ne.s32.totalorder %s96, %s99
      %p108 = scmp.eq.s32.totalorder %s18, 1
      %p109 = por %p107, %p108
      %p110 = scmp.ne.s32.totalorder %s99, %s100
      %p111 = scmp.eq.s32.totalorder %s18, 0
      %p112 = por %p110, %p111
      %p113 = scmp.ne.s32.totalorder %s99, %s100
      %p114 = scmp.eq.s32.totalorder %s19, 1
      %p115 = por %p113, %p114
      %p117 = scmp.ne.s32.totalorder %s100, %s116
      %p118 = scmp.eq.s32.totalorder %s19, 0
      %p119 = por %p117, %p118
      %p120 = scmp.le.s32.totalorder 1, %s13
      %p121 = scmp.lt.s32.totalorder %s13, 3
      %p122 = pnand %p120, %p121
      %p123 = pneg %p122
      // Predicated region
      $region9: #{contracting_block_forward.7} parent=5 // pred_check
        _
      $region10: #{contracting_block_forward.7} parent=5 // pred_check_branch
        %125 = sbr.rel (%p122) target = $region12
      $region11: #{contracting_block_forward.7} parent=5 // pred_region
        %s126 = ssub.s32 %s13, 1
        // Predicated region
        $region13: #{contracting_block_forward.7} parent=11 // pred_check
          %p127 = pneg %p86
        $region14: #{contracting_block_forward.7} parent=11 // pred_check_branch
          %129 = sbr.rel (%p127) target = $region16
        $region15: #{contracting_block_forward.7} parent=11 // pred_region
          %131 = vsyncadd [#allocation4], 0
          %s133 = sshll.u32 %s2, 4
          %s134 = int_to_ptr.vmem [resolvable:$true] %s133
          %136 = dma.vmem_to_smem %s134, 16, [#allocation2], [#allocation4]
        $region16: #{contracting_block_forward.7} parent=11 // pred_fallthru
          _
      $region12: #{contracting_block_forward.7} parent=5 // pred_fallthru
        _
      %p137 = scmp.lt.s32.totalorder %s13, 2
      // Predicated region
      $region17: #{contracting_block_forward.7} parent=5 // pred_check
        %p138 = pneg %p137
      $region18: #{contracting_block_forward.7} parent=5 // pred_check_branch
        %140 = sbr.rel (%p138) target = $region20
      $region19: #{contracting_block_forward.7} parent=5 // pred_region
        // Predicated region
        $region21: #{contracting_block_forward.7} parent=19 // pred_check
          %p141 = pneg %p33
        $region22: #{contracting_block_forward.7} parent=19 // pred_check_branch
          %143 = sbr.rel (%p141) target = $region24
        $region23: #{contracting_block_forward.7} parent=19 // pred_region
          %p144 = scmp.lt.s32.totalorder %s13, 1
          %s145 = scalar_select %p144, %s13, 1
          %s146 = smul.addr %s145, 8
          %s147 = smul.addr %s146, 8
          %s148 = scalar_lea.vmem %s0, %s147
        $region24: #{contracting_block_forward.7} parent=19 // pred_fallthru
          _
        // Predicated region
        $region25: #{contracting_block_forward.7} parent=19 // pred_check
          %p149 = pneg %p59
        $region26: #{contracting_block_forward.7} parent=19 // pred_check_branch
          %151 = sbr.rel (%p149) target = $region28
        $region27: #{contracting_block_forward.7} parent=19 // pred_region
          %p152 = scmp.lt.s32.totalorder %s13, 1
          %s153 = scalar_select %p152, %s13, 1
          %s154 = smul.addr %s153, 8
          %s155 = scalar_lea.vmem %s1, %s154
        $region28: #{contracting_block_forward.7} parent=19 // pred_fallthru
          _
      $region20: #{contracting_block_forward.7} parent=5 // pred_fallthru
        _
      %p156 = scmp.le.s32.totalorder 1, %s13
      %p157 = scmp.lt.s32.totalorder %s13, 3
      %p158 = pnand %p156, %p157
      %p159 = pneg %p158
      // Predicated region
      $region29: #{contracting_block_forward.7} parent=5 // pred_check
        _
      $region30: #{contracting_block_forward.7} parent=5 // pred_check_branch
        %161 = sbr.rel (%p158) target = $region32
      $region31: #{contracting_block_forward.7} parent=5 // pred_region
        %s162 = ssub.s32 %s13, 1
        // Predicated region
        $region33: #{contracting_block_forward.7} parent=31 // pred_check
          %p163 = pneg %p86
        $region34: #{contracting_block_forward.7} parent=31 // pred_check_branch
          %165 = sbr.rel (%p163) target = $region36
        $region35: #{contracting_block_forward.7} parent=31 // pred_region
          %167 = dma.done [#allocation4], 16
        $region36: #{contracting_block_forward.7} parent=31 // pred_fallthru
          _
        %168 = sfence
        %p169 = scmp.lt.s32.totalorder %s18, 1
        %s170 = scalar_select %p169, %s18, 1
        %s171 = smul.addr %s170, 8
        %s172 = smul.addr %s171, 8
        %s173 = scalar_lea.vmem %s0, %s172
        %p174 = pneg %p39
        %p175 = pneg %p36
        %p176 = scmp.lt.s32.totalorder %s18, 1
        %s177 = scalar_select %p176, %s18, 1
        %s178 = smul.addr %s177, 8
        %s179 = scalar_lea.vmem %s1, %s178
        %p180 = pneg %p65
        %p181 = pneg %p62
        %p182 = pneg %p86
        %p183 = pneg %p83
        %p184 = pneg %p112
        %p185 = pneg %p109
        %s186 = sand.u32 %s99, 1
        %s187 = scalar_lea.sflag [#allocation3], %s186
        %s188 = sand.u32 %s99, 1
        %s189 = smul.addr %s188, 64
        %s190 = scalar_lea.vmem [#allocation5], %s189
        %p191 = scmp.lt.s32.totalorder %s18, 1
        %s192 = scalar_select %p191, %s18, 1
        %s193 = smul.addr %s192, 8
        %s194 = smul.addr %s193, 8
        %s195 = scalar_lea.vmem %s0, %s194
        %p196 = scmp.lt.s32.totalorder %s18, 1
        %s197 = scalar_select %p196, %s18, 1
        %s198 = smul.addr %s197, 8
        %s199 = scalar_lea.vmem %s1, %s198
        %v200 = vld [vmem:[%s199] sm:$0xff]
        %s201 = sld [smem:[#allocation2]]
        %v202 = vstv %s201
        %v203 = vmul.f32 %v200, %v202
        %s204 = sld [smem:[#allocation2 + $0x1]]
        %v205 = vstv %s204
        %v206 = vadd.f32 %v203, %v205
        %v207 = vsub.f32 0.0, %v206
        %v208 = vmul.f32 %v207, 1.442695
        %v209 = vpow.pop %v208
        %v210 = vadd.f32 %v209, 1.0
        %v211 = vrcp.pop %v210
        %v212 = vld [vmem:[%s195] sm:$0xff]
        %v213 = vld [vmem:[%s195 + $0x8] sm:$0xff]
        %v214 = vld [vmem:[%s195 + $0x10] sm:$0xff]
        %v215 = vld [vmem:[%s195 + $0x18] sm:$0xff]
        %v216 = vld [vmem:[%s195 + $0x20] sm:$0xff]
        %v217 = vld [vmem:[%s195 + $0x28] sm:$0xff]
        %v218 = vld [vmem:[%s195 + $0x30] sm:$0xff]
        %v219 = vld [vmem:[%s195 + $0x38] sm:$0xff]
        %v220 = vperm.slane %v211, 0
        %v221 = vlaneseq
        %v222 = vshrl.u32 %v221, 7
        %224 = vset.pattern.permute.xlu0 %v222
        %225 = vperm.xlu0 %224, %v220
        %v226 = vpop.permute.xlu0 %225
        %v227 = vperm.slane %v211, 1
        %v228 = vlaneseq
        %v229 = vshrl.u32 %v228, 7
        %231 = vset.pattern.permute.xlu0 %v229
        %232 = vperm.xlu0 %231, %v227
        %v233 = vpop.permute.xlu0 %232
        %v234 = vperm.slane %v211, 2
        %v235 = vlaneseq
        %v236 = vshrl.u32 %v235, 7
        %238 = vset.pattern.permute.xlu0 %v236
        %239 = vperm.xlu0 %238, %v234
        %v240 = vpop.permute.xlu0 %239
        %v241 = vperm.slane %v211, 3
        %v242 = vlaneseq
        %v243 = vshrl.u32 %v242, 7
        %245 = vset.pattern.permute.xlu0 %v243
        %246 = vperm.xlu0 %245, %v241
        %v247 = vpop.permute.xlu0 %246
        %v248 = vperm.slane %v211, 4
        %v249 = vlaneseq
        %v250 = vshrl.u32 %v249, 7
        %252 = vset.pattern.permute.xlu0 %v250
        %253 = vperm.xlu0 %252, %v248
        %v254 = vpop.permute.xlu0 %253
        %v255 = vperm.slane %v211, 5
        %v256 = vlaneseq
        %v257 = vshrl.u32 %v256, 7
        %259 = vset.pattern.permute.xlu0 %v257
        %260 = vperm.xlu0 %259, %v255
        %v261 = vpop.permute.xlu0 %260
        %v262 = vperm.slane %v211, 6
        %v263 = vlaneseq
        %v264 = vshrl.u32 %v263, 7
        %266 = vset.pattern.permute.xlu0 %v264
        %267 = vperm.xlu0 %266, %v262
        %v268 = vpop.permute.xlu0 %267
        %v269 = vperm.slane %v211, 7
        %v270 = vlaneseq
        %v271 = vshrl.u32 %v270, 7
        %273 = vset.pattern.permute.xlu0 %v271
        %274 = vperm.xlu0 %273, %v269
        %v275 = vpop.permute.xlu0 %274
        %v276 = vmul.f32 %v212, %v226
        %v277 = vmul.f32 %v213, %v233
        %v278 = vmul.f32 %v214, %v240
        %v279 = vmul.f32 %v215, %v247
        %v280 = vmul.f32 %v216, %v254
        %v281 = vmul.f32 %v217, %v261
        %v282 = vmul.f32 %v218, %v268
        %v283 = vmul.f32 %v219, %v275
        %vm284 = vcmask 261120
        %285 = vst.msk [vmem:[%s190] sm:$0xff] %vm284, %v276
        %286 = vst.msk [vmem:[%s190 + $0x8] sm:$0xff] %vm284, %v277
        %287 = vst.msk [vmem:[%s190 + $0x10] sm:$0xff] %vm284, %v278
        %288 = vst.msk [vmem:[%s190 + $0x18] sm:$0xff] %vm284, %v279
        %289 = vst.msk [vmem:[%s190 + $0x20] sm:$0xff] %vm284, %v280
        %290 = vst.msk [vmem:[%s190 + $0x28] sm:$0xff] %vm284, %v281
        %291 = vst.msk [vmem:[%s190 + $0x30] sm:$0xff] %vm284, %v282
        %292 = vst.msk [vmem:[%s190 + $0x38] sm:$0xff] %vm284, %v283
        %s293 = sand.u32 %s99, 1
        %s294 = scalar_lea.sflag [#allocation3], %s293
        %s295 = sand.u32 %s99, 1
        %s296 = smul.addr %s295, 64
        %s297 = scalar_lea.vmem [#allocation5], %s296
        // Predicated region
        $region37: #{contracting_block_forward.7} parent=31 // pred_check
          %p298 = pneg %p109
        $region38: #{contracting_block_forward.7} parent=31 // pred_check_branch
          %300 = sbr.rel (%p298) target = $region40
        $region39: #{contracting_block_forward.7} parent=31 // pred_region
          %302 = vsyncadd %s294, 0
          %s303 = smul.addr %s18, 8
          %s304 = smul.addr %s303, 8
          %s305 = scalar_lea.hbm %s3, %s304
          %s306 = sshll.u32 %s297, 4
          %s307 = int_to_ptr.vmem [resolvable:$true] %s306
          %s308 = sshll.u32 %s305, 4
          %s309 = int_to_ptr.hbm [resolvable:$true] %s308
          %314 = dma.vmem_to_hbm [thread:$0]  %s307, 1024, %s309, %s294, 128, 128, 8
        $region40: #{contracting_block_forward.7} parent=31 // pred_fallthru
          _
      $region32: #{contracting_block_forward.7} parent=5 // pred_fallthru
        _
      %p315 = scmp.le.s32.totalorder 2, %s13
      // Predicated region
      $region41: #{contracting_block_forward.7} parent=5 // pred_check
        %p316 = pneg %p315
      $region42: #{contracting_block_forward.7} parent=5 // pred_check_branch
        %318 = sbr.rel (%p316) target = $region44
      $region43: #{contracting_block_forward.7} parent=5 // pred_region
        %s319 = ssub.s32 %s13, 2
        // Predicated region
        $region45: #{contracting_block_forward.7} parent=43 // pred_check
          %p320 = pneg %p115
        $region46: #{contracting_block_forward.7} parent=43 // pred_check_branch
          %322 = sbr.rel (%p320) target = $region48
        $region47: #{contracting_block_forward.7} parent=43 // pred_region
          %s323 = sand.u32 %s100, 1
          %s324 = scalar_lea.sflag [#allocation3], %s323
          %s325 = sand.u32 %s100, 1
          %s326 = smul.addr %s325, 64
          %s327 = scalar_lea.vmem [#allocation5], %s326
          %329 = dma.done %s324, 1024
        $region48: #{contracting_block_forward.7} parent=43 // pred_fallthru
          _
      $region44: #{contracting_block_forward.7} parent=5 // pred_fallthru
        _
    $region6: #{contracting_block_forward.7} parent=1 // loop_footer
      %s17 = sadd.s32 1, %s13
    $region7: #{contracting_block_forward.7} parent=1 // loop_footer_branch
      %12 = sbr.rel target = $region3
    $region8: #{contracting_block_forward.7} parent=1 // loop_exit
      _
    %330 = vsyncpa [#allocation3], 1
    %s331 = scalar_lea.sflag [#allocation3], 1
    %332 = vsyncpa %s331, 1
    %333 = vsyncpa [#allocation4], 1
    %s334 = scalar_lea.sflag [#allocation4], 1
    %335 = vsyncpa %s334, 1

// kernel: contracting_block_forward.6
$region0: #{contracting_block_forward.6}
  #allocation0 [shape = 'u32[]', space=smem, size = 0x4, offset = 0x4, fixed_abs, tag = 'smem constant byte address 0x4 - core index']
  #allocation1 [shape = 'u32[72,128]{1,0:T(1,128)}', space=vmem, size = 0x9000, scoped, tag = 'internal scratch']
  #allocation2 [shape = 'f32[2,14,14]{2,1,0:T(8,128)}', space=vmem, size = 0x4000, scoped, tag = 'scratch operand']
  %s0 = inlined_call_operand.vmem [shape: bf16[2,8,2,8,64], index: 0, kind: input, shape index: {}]
  %s1 = inlined_call_operand.vmem [shape: f32[1,32], index: 1, kind: input, shape index: {}]
  %s2 = inlined_call_operand.vmem [shape: f32[1,32], index: 2, kind: input, shape index: {}]
  %s3 = inlined_call_operand.vmem [shape: bf16[32,128], index: 3, kind: input, shape index: {}]
  %s4 = inlined_call_operand.vmem [shape: f32[1,128], index: 4, kind: input, shape index: {}]
  %s5 = inlined_call_operand.vmem [shape: bf16[128,32], index: 5, kind: input, shape index: {}]
  %s6 = inlined_call_operand.vmem [shape: f32[1,32], index: 6, kind: input, shape index: {}]
  %s7 = inlined_call_operand.vmem [shape: f32[2,49], index: 7, kind: input, shape index: {}]
  %s8 = inlined_call_operand.vmem [shape: f32[2,8,8,32], index: 8, kind: output, shape index: {0}]
  %s9 = inlined_call_operand.vmem [shape: f32[2,8,8], index: 9, kind: output, shape index: {1}]
  %10 = xla_tuple %s8, %s9
  %s11 = sld [smem:[#allocation0]]
  $region77: #{contracting_block_forward.6} parent=0
    _
  %s13 = ssub.s32 1, %s11
  %s14 = scalar_select 0, %s13, %s11
  $region1: #{contracting_block_forward.6} parent=0
    #allocation3 [shape = 'u8[1024]{0}', space=smem, size = 0x400, scoped, tag = 'input window, operand 7, single buffered']
    #allocation4 [shape = 's32[2]{0}', space=sflag, size = 0x8, scoped, tag = 'scoped memory for contracting_block_forward.6']
    %15 = vsyncpa [#allocation4], 0
    loop: start=0, step=1, limit=4
    $region2: #{contracting_block_forward.6} parent=1 // loop_pre_header
      _
    $region3: #{contracting_block_forward.6} parent=1 // loop_header
      %s17 = sphi 0, %s21
      %p18 = scmp.ge.s32.totalorder %s17, 4
      %s27 = sphi 0, %s29
      %s30 = sphi 0, %s27
      %s31 = sphi 0, %s30
      %s47 = sphi 0, %s31
      %s51 = sphi 0, %s51
      %s53 = sphi 0, %s51
      %s54 = sphi 0, %s53
      %s68 = sphi 0, %s54
      %s72 = sphi 0, %s72
      %s74 = sphi 0, %s72
      %s75 = sphi 0, %s74
      %s89 = sphi 0, %s75
      %s93 = sphi 0, %s93
      %s95 = sphi 0, %s93
      %s96 = sphi 0, %s95
      %s110 = sphi 0, %s96
      %s114 = sphi 0, %s114
      %s116 = sphi 0, %s114
      %s117 = sphi 0, %s116
      %s131 = sphi 0, %s117
      %s135 = sphi 0, %s135
      %s137 = sphi 0, %s135
      %s138 = sphi 0, %s137
      %s152 = sphi 0, %s138
      %s156 = sphi 0, %s156
      %s158 = sphi 0, %s156
      %s159 = sphi 0, %s158
      %s173 = sphi 0, %s159
      %s177 = sphi 0, %s177
      %s179 = sphi 0, %s177
      %s180 = sphi 0, %s179
      %s194 = sphi 0, %s180
      %s200 = sphi 0, %s202
      %s203 = sphi 0, %s200
      %s204 = sphi 0, %s203
      %s220 = sphi 0, %s204
      %s226 = sphi 0, %s228
      %s229 = sphi 0, %s226
      %s230 = sphi 0, %s229
      %s246 = sphi 0, %s230
    $region4: #{contracting_block_forward.6} parent=1 // loop_header_branch
      %20 = sbr.rel (%p18) target = $region8
    $region5: #{contracting_block_forward.6} parent=1 // loop_body
      %s22 = ssub.s32 %s17, 1
      %s23 = ssub.s32 %s17, 2
      %s24 = sadd.s32 %s17, 1
      %s25 = ssub.s32 %s17, %s24
      %p26 = scmp.eq.s32.totalorder %s25, 0
      %s28 = sadd.s32 %s27, 1
      %s29 = scalar_select %p26, %s27, %s28
      %p32 = pneg %p26
      %p33 = scmp.eq.s32.totalorder %s17, 1
      %p34 = por %p32, %p33
      %p35 = scmp.ne.s32.totalorder %s27, %s30
      %p36 = scmp.eq.s32.totalorder %s17, 0
      %p37 = por %p35, %p36
      %p38 = scmp.ne.s32.totalorder %s27, %s30
      %p39 = scmp.eq.s32.totalorder %s22, 1
      %p40 = por %p38, %p39
      %p41 = scmp.ne.s32.totalorder %s30, %s31
      %p42 = scmp.eq.s32.totalorder %s22, 0
      %p43 = por %p41, %p42
      %p44 = scmp.ne.s32.totalorder %s30, %s31
      %p45 = scmp.eq.s32.totalorder %s23, 1
      %p46 = por %p44, %p45
      %p48 = scmp.ne.s32.totalorder %s31, %s47
      %p49 = scmp.eq.s32.totalorder %s23, 0
      %p50 = por %p48, %p49
      %s52 = sadd.s32 %s51, 1
      %p55 = scmp.eq.s32.totalorder %s17, 1
      %p56 = scmp.ne.s32.totalorder %s51, %s53
      %p57 = scmp.eq.s32.totalorder %s17, 0
      %p58 = por %p56, %p57
      %p59 = scmp.ne.s32.totalorder %s51, %s53
      %p60 = scmp.eq.s32.totalorder %s22, 1
      %p61 = por %p59, %p60
      %p62 = scmp.ne.s32.totalorder %s53, %s54
      %p63 = scmp.eq.s32.totalorder %s22, 0
      %p64 = por %p62, %p63
      %p65 = scmp.ne.s32.totalorder %s53, %s54
      %p66 = scmp.eq.s32.totalorder %s23, 1
      %p67 = por %p65, %p66
      %p69 = scmp.ne.s32.totalorder %s54, %s68
      %p70 = scmp.eq.s32.totalorder %s23, 0
      %p71 = por %p69, %p70
      %s73 = sadd.s32 %s72, 1
      %p76 = scmp.eq.s32.totalorder %s17, 1
      %p77 = scmp.ne.s32.totalorder %s72, %s74
      %p78 = scmp.eq.s32.totalorder %s17, 0
      %p79 = por %p77, %p78
      %p80 = scmp.ne.s32.totalorder %s72, %s74
      %p81 = scmp.eq.s32.totalorder %s22, 1
      %p82 = por %p80, %p81
      %p83 = scmp.ne.s32.totalorder %s74, %s75
      %p84 = scmp.eq.s32.totalorder %s22, 0
      %p85 = por %p83, %p84
      %p86 = scmp.ne.s32.totalorder %s74, %s75
      %p87 = scmp.eq.s32.totalorder %s23, 1
      %p88 = por %p86, %p87
      %p90 = scmp.ne.s32.totalorder %s75, %s89
      %p91 = scmp.eq.s32.totalorder %s23, 0
      %p92 = por %p90, %p91
      %s94 = sadd.s32 %s93, 1
      %p97 = scmp.eq.s32.totalorder %s17, 1
      %p98 = scmp.ne.s32.totalorder %s93, %s95
      %p99 = scmp.eq.s32.totalorder %s17, 0
      %p100 = por %p98, %p99
      %p101 = scmp.ne.s32.totalorder %s93, %s95
      %p102 = scmp.eq.s32.totalorder %s22, 1
      %p103 = por %p101, %p102
      %p104 = scmp.ne.s32.totalorder %s95, %s96
      %p105 = scmp.eq.s32.totalorder %s22, 0
      %p106 = por %p104, %p105
      %p107 = scmp.ne.s32.totalorder %s95, %s96
      %p108 = scmp.eq.s32.totalorder %s23, 1
      %p109 = por %p107, %p108
      %p111 = scmp.ne.s32.totalorder %s96, %s110
      %p112 = scmp.eq.s32.totalorder %s23, 0
      %p113 = por %p111, %p112
      %s115 = sadd.s32 %s114, 1
      %p118 = scmp.eq.s32.totalorder %s17, 1
      %p119 = scmp.ne.s32.totalorder %s114, %s116
      %p120 = scmp.eq.s32.totalorder %s17, 0
      %p121 = por %p119, %p120
      %p122 = scmp.ne.s32.totalorder %s114, %s116
      %p123 = scmp.eq.s32.totalorder %s22, 1
      %p124 = por %p122, %p123
      %p125 = scmp.ne.s32.totalorder %s116, %s117
      %p126 = scmp.eq.s32.totalorder %s22, 0
      %p127 = por %p125, %p126
      %p128 = scmp.ne.s32.totalorder %s116, %s117
      %p129 = scmp.eq.s32.totalorder %s23, 1
      %p130 = por %p128, %p129
      %p132 = scmp.ne.s32.totalorder %s117, %s131
      %p133 = scmp.eq.s32.totalorder %s23, 0
      %p134 = por %p132, %p133
      %s136 = sadd.s32 %s135, 1
      %p139 = scmp.eq.s32.totalorder %s17, 1
      %p140 = scmp.ne.s32.totalorder %s135, %s137
      %p141 = scmp.eq.s32.totalorder %s17, 0
      %p142 = por %p140, %p141
      %p143 = scmp.ne.s32.totalorder %s135, %s137
      %p144 = scmp.eq.s32.totalorder %s22, 1
      %p145 = por %p143, %p144
      %p146 = scmp.ne.s32.totalorder %s137, %s138
      %p147 = scmp.eq.s32.totalorder %s22, 0
      %p148 = por %p146, %p147
      %p149 = scmp.ne.s32.totalorder %s137, %s138
      %p150 = scmp.eq.s32.totalorder %s23, 1
      %p151 = por %p149, %p150
      %p153 = scmp.ne.s32.totalorder %s138, %s152
      %p154 = scmp.eq.s32.totalorder %s23, 0
      %p155 = por %p153, %p154
      %s157 = sadd.s32 %s156, 1
      %p160 = scmp.eq.s32.totalorder %s17, 1
      %p161 = scmp.ne.s32.totalorder %s156, %s158
      %p162 = scmp.eq.s32.totalorder %s17, 0
      %p163 = por %p161, %p162
      %p164 = scmp.ne.s32.totalorder %s156, %s158
      %p165 = scmp.eq.s32.totalorder %s22, 1
      %p166 = por %p164, %p165
      %p167 = scmp.ne.s32.totalorder %s158, %s159
      %p168 = scmp.eq.s32.totalorder %s22, 0
      %p169 = por %p167, %p168
      %p170 = scmp.ne.s32.totalorder %s158, %s159
      %p171 = scmp.eq.s32.totalorder %s23, 1
      %p172 = por %p170, %p171
      %p174 = scmp.ne.s32.totalorder %s159, %s173
      %p175 = scmp.eq.s32.totalorder %s23, 0
      %p176 = por %p174, %p175
      %s178 = sadd.s32 %s177, 1
      %p181 = scmp.eq.s32.totalorder %s17, 1
      %p182 = scmp.ne.s32.totalorder %s177, %s179
      %p183 = scmp.eq.s32.totalorder %s17, 0
      %p184 = por %p182, %p183
      %p185 = scmp.ne.s32.totalorder %s177, %s179
      %p186 = scmp.eq.s32.totalorder %s22, 1
      %p187 = por %p185, %p186
      %p188 = scmp.ne.s32.totalorder %s179, %s180
      %p189 = scmp.eq.s32.totalorder %s22, 0
      %p190 = por %p188, %p189
      %p191 = scmp.ne.s32.totalorder %s179, %s180
      %p192 = scmp.eq.s32.totalorder %s23, 1
      %p193 = por %p191, %p192
      %p195 = scmp.ne.s32.totalorder %s180, %s194
      %p196 = scmp.eq.s32.totalorder %s23, 0
      %p197 = por %p195, %p196
      %s198 = ssub.s32 %s17, %s24
      %p199 = scmp.eq.s32.totalorder %s198, 0
      %s201 = sadd.s32 %s200, 1
      %s202 = scalar_select %p199, %s200, %s201
      %p205 = pneg %p199
      %p206 = scmp.eq.s32.totalorder %s17, 1
      %p207 = por %p205, %p206
      %p208 = scmp.ne.s32.totalorder %s200, %s203
      %p209 = scmp.eq.s32.totalorder %s17, 0
      %p210 = por %p208, %p209
      %p211 = scmp.ne.s32.totalorder %s200, %s203
      %p212 = scmp.eq.s32.totalorder %s22, 1
      %p213 = por %p211, %p212
      %p214 = scmp.ne.s32.totalorder %s203, %s204
      %p215 = scmp.eq.s32.totalorder %s22, 0
      %p216 = por %p214, %p215
      %p217 = scmp.ne.s32.totalorder %s203, %s204
      %p218 = scmp.eq.s32.totalorder %s23, 1
      %p219 = por %p217, %p218
      %p221 = scmp.ne.s32.totalorder %s204, %s220
      %p222 = scmp.eq.s32.totalorder %s23, 0
      %p223 = por %p221, %p222
      %s224 = ssub.s32 %s17, %s24
      %p225 = scmp.eq.s32.totalorder %s224, 0
      %s227 = sadd.s32 %s226, 1
      %s228 = scalar_select %p225, %s226, %s227
      %p231 = pneg %p225
      %p232 = scmp.eq.s32.totalorder %s17, 1
      %p233 = por %p231, %p232
      %p234 = scmp.ne.s32.totalorder %s226, %s229
      %p235 = scmp.eq.s32.totalorder %s17, 0
      %p236 = por %p234, %p235
      %p237 = scmp.ne.s32.totalorder %s226, %s229
      %p238 = scmp.eq.s32.totalorder %s22, 1
      %p239 = por %p237, %p238
      %p240 = scmp.ne.s32.totalorder %s229, %s230
      %p241 = scmp.eq.s32.totalorder %s22, 0
      %p242 = por %p240, %p241
      %p243 = scmp.ne.s32.totalorder %s229, %s230
      %p244 = scmp.eq.s32.totalorder %s23, 1
      %p245 = por %p243, %p244
      %p247 = scmp.ne.s32.totalorder %s230, %s246
      %p248 = scmp.eq.s32.totalorder %s23, 0
      %p249 = por %p247, %p248
      %p250 = scmp.le.s32.totalorder 1, %s17
      %p251 = scmp.lt.s32.totalorder %s17, 3
      %p252 = pnand %p250, %p251
      %p253 = pneg %p252
      // Predicated region
      $region9: #{contracting_block_forward.6} parent=5 // pred_check
        _
      $region10: #{contracting_block_forward.6} parent=5 // pred_check_branch
        %255 = sbr.rel (%p252) target = $region12
      $region11: #{contracting_block_forward.6} parent=5 // pred_region
        %s256 = ssub.s32 %s17, 1
        // Predicated region
        $region13: #{contracting_block_forward.6} parent=11 // pred_check
          %p257 = pneg %p64
        $region14: #{contracting_block_forward.6} parent=11 // pred_check_branch
          %259 = sbr.rel (%p257) target = $region16
        $region15: #{contracting_block_forward.6} parent=11 // pred_region
          _
        $region16: #{contracting_block_forward.6} parent=11 // pred_fallthru
          _
        // Predicated region
        $region17: #{contracting_block_forward.6} parent=11 // pred_check
          %p260 = pneg %p85
        $region18: #{contracting_block_forward.6} parent=11 // pred_check_branch
          %262 = sbr.rel (%p260) target = $region20
        $region19: #{contracting_block_forward.6} parent=11 // pred_region
          _
        $region20: #{contracting_block_forward.6} parent=11 // pred_fallthru
          _
        // Predicated region
        $region21: #{contracting_block_forward.6} parent=11 // pred_check
          %p263 = pneg %p106
        $region22: #{contracting_block_forward.6} parent=11 // pred_check_branch
          %265 = sbr.rel (%p263) target = $region24
        $region23: #{contracting_block_forward.6} parent=11 // pred_region
          _
        $region24: #{contracting_block_forward.6} parent=11 // pred_fallthru
          _
        // Predicated region
        $region25: #{contracting_block_forward.6} parent=11 // pred_check
          %p266 = pneg %p127
        $region26: #{contracting_block_forward.6} parent=11 // pred_check_branch
          %268 = sbr.rel (%p266) target = $region28
        $region27: #{contracting_block_forward.6} parent=11 // pred_region
          _
        $region28: #{contracting_block_forward.6} parent=11 // pred_fallthru
          _
        // Predicated region
        $region29: #{contracting_block_forward.6} parent=11 // pred_check
          %p269 = pneg %p148
        $region30: #{contracting_block_forward.6} parent=11 // pred_check_branch
          %271 = sbr.rel (%p269) target = $region32
        $region31: #{contracting_block_forward.6} parent=11 // pred_region
          _
        $region32: #{contracting_block_forward.6} parent=11 // pred_fallthru
          _
        // Predicated region
        $region33: #{contracting_block_forward.6} parent=11 // pred_check
          %p272 = pneg %p169
        $region34: #{contracting_block_forward.6} parent=11 // pred_check_branch
          %274 = sbr.rel (%p272) target = $region36
        $region35: #{contracting_block_forward.6} parent=11 // pred_region
          _
        $region36: #{contracting_block_forward.6} parent=11 // pred_fallthru
          _
        // Predicated region
        $region37: #{contracting_block_forward.6} parent=11 // pred_check
          %p275 = pneg %p190
        $region38: #{contracting_block_forward.6} parent=11 // pred_check_branch
          %277 = sbr.rel (%p275) target = $region40
        $region39: #{contracting_block_forward.6} parent=11 // pred_region
          %279 = vsyncadd [#allocation4], 0
          %s281 = sshll.u32 %s7, 4
          %s282 = int_to_ptr.vmem [resolvable:$true] %s281
          %284 = dma.vmem_to_smem %s282, 32, [#allocation3], [#allocation4]
        $region40: #{contracting_block_forward.6} parent=11 // pred_fallthru
          _
      $region12: #{contracting_block_forward.6} parent=5 // pred_fallthru
        _
      %p285 = scmp.lt.s32.totalorder %s17, 2
      // Predicated region
      $region41: #{contracting_block_forward.6} parent=5 // pred_check
        %p286 = pneg %p285
      $region42: #{contracting_block_forward.6} parent=5 // pred_check_branch
        %288 = sbr.rel (%p286) target = $region44
      $region43: #{contracting_block_forward.6} parent=5 // pred_region
        // Predicated region
        $region45: #{contracting_block_forward.6} parent=43 // pred_check
          %p289 = pneg %p37
        $region46: #{contracting_block_forward.6} parent=43 // pred_check_branch
          %291 = sbr.rel (%p289) target = $region48
        $region47: #{contracting_block_forward.6} parent=43 // pred_region
          %p292 = scmp.lt.s32.totalorder %s17, 1
          %s293 = scalar_select %p292, %s17, 1
          %s294 = smul.addr %s293, 16
          %s295 = smul.addr %s294, 4
          %s296 = scalar_lea.vmem %s0, %s295
        $region48: #{contracting_block_forward.6} parent=43 // pred_fallthru
          _
      $region44: #{contracting_block_forward.6} parent=5 // pred_fallthru
        _
      %p297 = scmp.le.s32.totalorder 1, %s17
      %p298 = scmp.lt.s32.totalorder %s17, 3
      %p299 = pnand %p297, %p298
      %p300 = pneg %p299
      // Predicated region
      $region49: #{contracting_block_forward.6} parent=5 // pred_check
        _
      $region50: #{contracting_block_forward.6} parent=5 // pred_check_branch
        %302 = sbr.rel (%p299) target = $region52
      $region51: #{contracting_block_forward.6} parent=5 // pred_region
        %s303 = ssub.s32 %s17, 1
        // Predicated region
        $region53: #{contracting_block_forward.6} parent=51 // pred_check
          %p304 = pneg %p190
        $region54: #{contracting_block_forward.6} parent=51 // pred_check_branch
          %306 = sbr.rel (%p304) target = $region56
        $region55: #{contracting_block_forward.6} parent=51 // pred_region
          %308 = dma.done [#allocation4], 32
        $region56: #{contracting_block_forward.6} parent=51 // pred_fallthru
          _
        %309 = sfence
        %p310 = scmp.lt.s32.totalorder %s22, 1
        %s311 = scalar_select %p310, %s22, 1
        %s312 = smul.addr %s311, 16
        %s313 = smul.addr %s312, 4
        %s314 = scalar_lea.vmem %s0, %s313
        %p315 = pneg %p43
        %p316 = pneg %p40
        %p317 = pneg %p64
        %p318 = pneg %p61
        %p319 = pneg %p85
        %p320 = pneg %p82
        %p321 = pneg %p106
        %p322 = pneg %p103
        %p323 = pneg %p127
        %p324 = pneg %p124
        %p325 = pneg %p148
        %p326 = pneg %p145
        %p327 = pneg %p169
        %p328 = pneg %p166
        %p329 = pneg %p190
        %p330 = pneg %p187
        %p331 = pneg %p216
        %p332 = pneg %p213
        %p333 = scmp.lt.s32.totalorder %s22, 1
        %s334 = scalar_select %p333, %s22, 1
        %s335 = smul.addr %s334, 8
        %s336 = smul.addr %s335, 8
        %s337 = scalar_lea.vmem %s8, %s336
        %p338 = pneg %p242
        %p339 = pneg %p239
        %p340 = scmp.lt.s32.totalorder %s22, 1
        %s341 = scalar_select %p340, %s22, 1
        %s342 = smul.addr %s341, 8
        %s343 = scalar_lea.vmem %s9, %s342
        %p344 = scmp.lt.s32.totalorder %s22, 1
        %s345 = scalar_select %p344, %s22, 1
        %s346 = smul.addr %s345, 16
        %s347 = smul.addr %s346, 4
        %s348 = scalar_lea.vmem %s0, %s347
        %p349 = scmp.lt.s32.totalorder %s22, 1
        %s350 = scalar_select %p349, %s22, 1
        %s351 = smul.addr %s350, 8
        %s352 = smul.addr %s351, 8
        %s353 = scalar_lea.vmem %s8, %s352
        %p354 = scmp.lt.s32.totalorder %s22, 1
        %s355 = scalar_select %p354, %s22, 1
        %s356 = smul.addr %s355, 8
        %s357 = scalar_lea.vmem %s9, %s356
        %v359 = vld [vmem:[%s348] sm:$0xf]
        %v360 = vld [vmem:[%s348 + $0x4] sm:$0xf]
        %v361 = vld [vmem:[%s348 + $0x8] sm:$0xf]
        %v362 = vld [vmem:[%s348 + $0xc] sm:$0xf]
        %v363 = vld [vmem:[%s348 + $0x10] sm:$0xf]
        %v364 = vld [vmem:[%s348 + $0x14] sm:$0xf]
        %v365 = vld [vmem:[%s348 + $0x18] sm:$0xf]
        %v366 = vld [vmem:[%s348 + $0x1c] sm:$0xf]
        %v367 = vld [vmem:[%s348 + $0x20] sm:$0xf]
        %v368 = vld [vmem:[%s348 + $0x24] sm:$0xf]
        %v369 = vld [vmem:[%s348 + $0x28] sm:$0xf]
        %v370 = vld [vmem:[%s348 + $0x2c] sm:$0xf]
        %v371 = vld [vmem:[%s348 + $0x30] sm:$0xf]
        %v372 = vld [vmem:[%s348 + $0x34] sm:$0xf]
        %v373 = vld [vmem:[%s348 + $0x38] sm:$0xf]
        %v374 = vld [vmem:[%s348 + $0x3c] sm:$0xf]
        %v375 = vunpack.c.l.bf16 %v359
        %v376 = vunpack.c.l.bf16 %v360
        %v377 = vunpack.c.l.bf16 %v361
        %v378 = vunpack.c.l.bf16 %v362
        %v379 = vunpack.c.l.bf16 %v363
        %v380 = vunpack.c.l.bf16 %v364
        %v381 = vunpack.c.l.bf16 %v365
        %v382 = vunpack.c.l.bf16 %v366
        %v383 = vunpack.c.l.bf16 %v367
        %v384 = vunpack.c.l.bf16 %v368
        %v385 = vunpack.c.l.bf16 %v369
        %v386 = vunpack.c.l.bf16 %v370
        %v387 = vunpack.c.l.bf16 %v371
        %v388 = vunpack.c.l.bf16 %v372
        %v389 = vunpack.c.l.bf16 %v373
        %v390 = vunpack.c.l.bf16 %v374
        %v391 = vld [vmem:[%s1] sm:$0x1]
        %v392 = vld [vmem:[%s2] sm:$0x1]
        %v394 = vperm.slane %v391, 0
        %v396 = vmul.f32 %v375, %v394
        %v397 = vmul.f32 %v376, %v394
        %v398 = vmul.f32 %v377, %v394
        %v399 = vmul.f32 %v378, %v394
        %v400 = vmul.f32 %v379, %v394
        %v401 = vmul.f32 %v380, %v394
        %v402 = vmul.f32 %v381, %v394
        %v403 = vmul.f32 %v382, %v394
        %v404 = vmul.f32 %v383, %v394
        %v405 = vmul.f32 %v384, %v394
        %v406 = vmul.f32 %v385, %v394
        %v407 = vmul.f32 %v386, %v394
        %v408 = vmul.f32 %v387, %v394
        %v409 = vmul.f32 %v388, %v394
        %v410 = vmul.f32 %v389, %v394
        %v411 = vmul.f32 %v390, %v394
        %v413 = vperm.slane %v392, 0
        %v415 = vadd.f32 %v396, %v413
        %v416 = vadd.f32 %v397, %v413
        %v417 = vadd.f32 %v398, %v413
        %v418 = vadd.f32 %v399, %v413
        %v419 = vadd.f32 %v400, %v413
        %v420 = vadd.f32 %v401, %v413
        %v421 = vadd.f32 %v402, %v413
        %v422 = vadd.f32 %v403, %v413
        %v423 = vadd.f32 %v404, %v413
        %v424 = vadd.f32 %v405, %v413
        %v425 = vadd.f32 %v406, %v413
        %v426 = vadd.f32 %v407, %v413
        %v427 = vadd.f32 %v408, %v413
        %v428 = vadd.f32 %v409, %v413
        %v429 = vadd.f32 %v410, %v413
        %v430 = vadd.f32 %v411, %v413
        %vm431 = vcmp.ge.f32.partialorder %v415, 0.0
        %vm432 = vcmp.ge.f32.partialorder %v416, 0.0
        %vm433 = vcmp.ge.f32.partialorder %v417, 0.0
        %vm434 = vcmp.ge.f32.partialorder %v418, 0.0
        %vm435 = vcmp.ge.f32.partialorder %v419, 0.0
        %vm436 = vcmp.ge.f32.partialorder %v420, 0.0
        %vm437 = vcmp.ge.f32.partialorder %v421, 0.0
        %vm438 = vcmp.ge.f32.partialorder %v422, 0.0
        %vm439 = vcmp.ge.f32.partialorder %v423, 0.0
        %vm440 = vcmp.ge.f32.partialorder %v424, 0.0
        %vm441 = vcmp.ge.f32.partialorder %v425, 0.0
        %vm442 = vcmp.ge.f32.partialorder %v426, 0.0
        %vm443 = vcmp.ge.f32.partialorder %v427, 0.0
        %vm444 = vcmp.ge.f32.partialorder %v428, 0.0
        %vm445 = vcmp.ge.f32.partialorder %v429, 0.0
        %vm446 = vcmp.ge.f32.partialorder %v430, 0.0
        %v447 = vmul.f32 %v415, 0.2
        %v448 = vmul.f32 %v416, 0.2
        %v449 = vmul.f32 %v417, 0.2
        %v450 = vmul.f32 %v418, 0.2
        %v451 = vmul.f32 %v419, 0.2
        %v452 = vmul.f32 %v420, 0.2
        %v453 = vmul.f32 %v421, 0.2
        %v454 = vmul.f32 %v422, 0.2
        %v455 = vmul.f32 %v423, 0.2
        %v456 = vmul.f32 %v424, 0.2
        %v457 = vmul.f32 %v425, 0.2
        %v458 = vmul.f32 %v426, 0.2
        %v459 = vmul.f32 %v427, 0.2
        %v460 = vmul.f32 %v428, 0.2
        %v461 = vmul.f32 %v429, 0.2
        %v462 = vmul.f32 %v430, 0.2
        %v463 = vsel %vm431, %v415, %v447
        %v464 = vsel %vm432, %v416, %v448
        %v465 = vsel %vm433, %v417, %v449
        %v466 = vsel %vm434, %v418, %v450
        %v467 = vsel %vm435, %v419, %v451
        %v468 = vsel %vm436, %v420, %v452
        %v469 = vsel %vm437, %v421, %v453
        %v470 = vsel %vm438, %v422, %v454
        %v471 = vsel %vm439, %v423, %v455
        %v472 = vsel %vm440, %v424, %v456
        %v473 = vsel %vm441, %v425, %v457
        %v474 = vsel %vm442, %v426, %v458
        %v475 = vsel %vm443, %v427, %v459
        %v476 = vsel %vm444, %v428, %v460
        %v477 = vsel %vm445, %v429, %v461
        %v478 = vsel %vm446, %v430, %v462
        %479 = vrot.lane.b32.xlu0 %v394, 32
        %v480 = vpop.permute.xlu0 %479
        %v482 = vmul.f32 %v375, %v480
        %v483 = vmul.f32 %v376, %v480
        %v484 = vmul.f32 %v377, %v480
        %v485 = vmul.f32 %v378, %v480
        %v486 = vmul.f32 %v379, %v480
        %v487 = vmul.f32 %v380, %v480
        %v488 = vmul.f32 %v381, %v480
        %v489 = vmul.f32 %v382, %v480
        %v490 = vmul.f32 %v383, %v480
        %v491 = vmul.f32 %v384, %v480
        %v492 = vmul.f32 %v385, %v480
        %v493 = vmul.f32 %v386, %v480
        %v494 = vmul.f32 %v387, %v480
        %v495 = vmul.f32 %v388, %v480
        %v496 = vmul.f32 %v389, %v480
        %v497 = vmul.f32 %v390, %v480
        %498 = vrot.lane.b32.xlu0 %v413, 32
        %v499 = vpop.permute.xlu0 %498
        %v501 = vadd.f32 %v482, %v499
        %v502 = vadd.f32 %v483, %v499
        %v503 = vadd.f32 %v484, %v499
        %v504 = vadd.f32 %v485, %v499
        %v505 = vadd.f32 %v486, %v499
        %v506 = vadd.f32 %v487, %v499
        %v507 = vadd.f32 %v488, %v499
        %v508 = vadd.f32 %v489, %v499
        %v509 = vadd.f32 %v490, %v499
        %v510 = vadd.f32 %v491, %v499
        %v511 = vadd.f32 %v492, %v499
        %v512 = vadd.f32 %v493, %v499
        %v513 = vadd.f32 %v494, %v499
        %v514 = vadd.f32 %v495, %v499
        %v515 = vadd.f32 %v496, %v499
        %v516 = vadd.f32 %v497, %v499
        %vm517 = vcmp.ge.f32.partialorder %v501, 0.0
        %vm518 = vcmp.ge.f32.partialorder %v502, 0.0
        %vm519 = vcmp.ge.f32.partialorder %v503, 0.0
        %vm520 = vcmp.ge.f32.partialorder %v504, 0.0
        %vm521 = vcmp.ge.f32.partialorder %v505, 0.0
        %vm522 = vcmp.ge.f32.partialorder %v506, 0.0
        %vm523 = vcmp.ge.f32.partialorder %v507, 0.0
        %vm524 = vcmp.ge.f32.partialorder %v508, 0.0
        %vm525 = vcmp.ge.f32.partialorder %v509, 0.0
        %vm526 = vcmp.ge.f32.partialorder %v510, 0.0
        %vm527 = vcmp.ge.f32.partialorder %v511, 0.0
        %vm528 = vcmp.ge.f32.partialorder %v512, 0.0
        %vm529 = vcmp.ge.f32.partialorder %v513, 0.0
        %vm530 = vcmp.ge.f32.partialorder %v514, 0.0
        %vm531 = vcmp.ge.f32.partialorder %v515, 0.0
        %vm532 = vcmp.ge.f32.partialorder %v516, 0.0
        %v533 = vmul.f32 %v501, 0.2
        %v534 = vmul.f32 %v502, 0.2
        %v535 = vmul.f32 %v503, 0.2
        %v536 = vmul.f32 %v504, 0.2
        %v537 = vmul.f32 %v505, 0.2
        %v538 = vmul.f32 %v506, 0.2
        %v539 = vmul.f32 %v507, 0.2
        %v540 = vmul.f32 %v508, 0.2
        %v541 = vmul.f32 %v509, 0.2
        %v542 = vmul.f32 %v510, 0.2
        %v543 = vmul.f32 %v511, 0.2
        %v544 = vmul.f32 %v512, 0.2
        %v545 = vmul.f32 %v513, 0.2
        %v546 = vmul.f32 %v514, 0.2
        %v547 = vmul.f32 %v515, 0.2
        %v548 = vmul.f32 %v516, 0.2
        %v549 = vsel %vm517, %v501, %v533
        %v550 = vsel %vm518, %v502, %v534
        %v551 = vsel %vm519, %v503, %v535
        %v552 = vsel %vm520, %v504, %v536
        %v553 = vsel %vm521, %v505, %v537
        %v554 = vsel %vm522, %v506, %v538
        %v555 = vsel %vm523, %v507, %v539
        %v556 = vsel %vm524, %v508, %v540
        %v557 = vsel %vm525, %v509, %v541
        %v558 = vsel %vm526, %v510, %v542
        %v559 = vsel %vm527, %v511, %v543
        %v560 = vsel %vm528, %v512, %v544
        %v561 = vsel %vm529, %v513, %v545
        %v562 = vsel %vm530, %v514, %v546
        %v563 = vsel %vm531, %v515, %v547
        %v564 = vsel %vm532, %v516, %v548
        %581 = vrot.lane.b32.xlu0 %v549, 96
        %v582 = vpop.permute.xlu0 %581
        %583 = vrot.lane.b32.xlu0 %v550, 96
        %v584 = vpop.permute.xlu0 %583
        %585 = vrot.lane.b32.xlu0 %v551, 96
        %v586 = vpop.permute.xlu0 %585
        %587 = vrot.lane.b32.xlu0 %v552, 96
        %v588 = vpop.permute.xlu0 %587
        %589 = vrot.lane.b32.xlu0 %v553, 96
        %v590 = vpop.permute.xlu0 %589
        %591 = vrot.lane.b32.xlu0 %v554, 96
        %v592 = vpop.permute.xlu0 %591
        %593 = vrot.lane.b32.xlu0 %v555, 96
        %v594 = vpop.permute.xlu0 %593
        %595 = vrot.lane.b32.xlu0 %v556, 96
        %v596 = vpop.permute.xlu0 %595
        %597 = vrot.lane.b32.xlu0 %v557, 96
        %v598 = vpop.permute.xlu0 %597
        %599 = vrot.lane.b32.xlu0 %v558, 96
        %v600 = vpop.permute.xlu0 %599
        %601 = vrot.lane.b32.xlu0 %v559, 96
        %v602 = vpop.permute.xlu0 %601
        %603 = vrot.lane.b32.xlu0 %v560, 96
        %v604 = vpop.permute.xlu0 %603
        %605 = vrot.lane.b32.xlu0 %v561, 96
        %v606 = vpop.permute.xlu0 %605
        %607 = vrot.lane.b32.xlu0 %v562, 96
        %v608 = vpop.permute.xlu0 %607
        %609 = vrot.lane.b32.xlu0 %v563, 96
        %v610 = vpop.permute.xlu0 %609
        %611 = vrot.lane.b32.xlu0 %v564, 96
        %v612 = vpop.permute.xlu0 %611
        %v629 = vmax.f32 %v463, %v582
        %v630 = vmax.f32 %v464, %v584
        %v631 = vmax.f32 %v465, %v586
        %v632 = vmax.f32 %v466, %v588
        %v633 = vmax.f32 %v467, %v590
        %v634 = vmax.f32 %v468, %v592
        %v635 = vmax.f32 %v469, %v594
        %v636 = vmax.f32 %v470, %v596
        %v637 = vmax.f32 %v471, %v598
        %v638 = vmax.f32 %v472, %v600
        %v639 = vmax.f32 %v473, %v602
        %v640 = vmax.f32 %v474, %v604
        %v641 = vmax.f32 %v475, %v606
        %v642 = vmax.f32 %v476, %v608
        %v643 = vmax.f32 %v477, %v610
        %v644 = vmax.f32 %v478, %v612
        %vm645 = vcmask 261120
        %v646 = vsel %vm645, %v629, -inf
        %v647 = vsel %vm645, %v630, -inf
        %v648 = vmax.f32 %v646, %v647
        %v649 = vsel %vm645, %v631, -inf
        %v650 = vsel %vm645, %v632, -inf
        %v651 = vmax.f32 %v649, %v650
        %v652 = vsel %vm645, %v633, -inf
        %v653 = vsel %vm645, %v634, -inf
        %v654 = vmax.f32 %v652, %v653
        %v655 = vsel %vm645, %v635, -inf
        %v656 = vsel %vm645, %v636, -inf
        %v657 = vmax.f32 %v655, %v656
        %v658 = vsel %vm645, %v637, -inf
        %v659 = vsel %vm645, %v638, -inf
        %v660 = vmax.f32 %v658, %v659
        %v661 = vsel %vm645, %v639, -inf
        %v662 = vsel %vm645, %v640, -inf
        %v663 = vmax.f32 %v661, %v662
        %v664 = vsel %vm645, %v641, -inf
        %v665 = vsel %vm645, %v642, -inf
        %v666 = vmax.f32 %v664, %v665
        %v667 = vsel %vm645, %v643, -inf
        %v668 = vsel %vm645, %v644, -inf
        %v669 = vmax.f32 %v667, %v668
        %v670 = vsel %vm645, %v648, 0.0
        %v671 = vsel %vm645, %v651, 0.0
        %v672 = vadd.f32 %v670, %v671
        %v673 = vsel %vm645, %v654, 0.0
        %v674 = vadd.f32 %v672, %v673
        %v675 = vsel %vm645, %v657, 0.0
        %v676 = vadd.f32 %v674, %v675
        %v677 = vsel %vm645, %v660, 0.0
        %v678 = vadd.f32 %v676, %v677
        %v679 = vsel %vm645, %v663, 0.0
        %v680 = vadd.f32 %v678, %v679
        %v681 = vsel %vm645, %v666, 0.0
        %v682 = vadd.f32 %v680, %v681
        %v683 = vsel %vm645, %v669, 0.0
        %v684 = vadd.f32 %v682, %v683
        %v685 = vrot.slane %v684, 4
        %v686 = vadd.f32 %v684, %v685
        %v687 = vrot.slane %v686, 2
        %v688 = vadd.f32 %v686, %v687
        %v689 = vrot.slane %v688, 1
        %v690 = vadd.f32 %v688, %v689
        %v691 = vrcp.pop 64.0
        %v692 = vmul.f32 64.0, %v691
        %v693 = vsub.f32 1.0, %v692
        %v694 = vmul.f32 %v691, %v693
        %v695 = vadd.f32 %v691, %v694
        %vm696 = vweird.f32 %v691
        %v697 = vsel %vm696, %v691, %v695
        %v698 = vmul.f32 %v690, %v697
        %v699 = vsel %vm645, %v648, -inf
        %v700 = vsel %vm645, %v651, -inf
        %v701 = vsel %vm645, %v654, -inf
        %v702 = vsel %vm645, %v657, -inf
        %v703 = vsel %vm645, %v660, -inf
        %v704 = vmax.f32 %v699, %v703
        %v705 = vsel %vm645, %v663, -inf
        %v706 = vmax.f32 %v700, %v705
        %v707 = vsel %vm645, %v666, -inf
        %v708 = vmax.f32 %v701, %v707
        %v709 = vsel %vm645, %v669, -inf
        %v710 = vmax.f32 %v702, %v709
        %v711 = vmax.f32 %v704, %v706
        %v712 = vmax.f32 %v708, %v710
        %v713 = vmax.f32 %v711, %v712
        %v714 = vrot.slane %v713, 4
        %v715 = vmax.f32 %v713, %v714
        %v716 = vrot.slane %v715, 2
        %v717 = vmax.f32 %v715, %v716
        %v718 = vrot.slane %v717, 1
        %v719 = vmax.f32 %v717, %v718
        %vm720 = vcmask 1040384
        %v721 = vsel %vm720, %v698, %v719
        %v722 = vpack.c.bf16 %v721, %v721
        %v723 = vld [vmem:[%s3] sm:$0xf]
        %v724 = vld [vmem:[%s3 + $0x4] sm:$0xf]
        %v725 = vld [vmem:[%s3 + $0x8] sm:$0xf]
        %v726 = vld [vmem:[%s3 + $0xc] sm:$0xf]
        %v727 = vld [vmem:[%s4] sm:$0x1]
        %v729 = vperm.slane %v727, 0
        %v735 = vunpack.c.l.b16 %v723
        %v736 = vunpack.c.l.b16 %v724
        %v737 = vunpack.c.l.b16 %v725
        %v738 = vunpack.c.l.b16 %v726
        %v739 = vpack.c.b16 %v736, %v735
        %v740 = vpack.c.b16 %v738, %v737
        %v744 = vsel %vm645, %v722, 0
        %746 = vmatpush.bf16.msra.mxu0 0
        %747 = vmatpush.bf16.msra.mxu0 0
        %748 = vmatpush.bf16.msra.mxu0 0
        %749 = vmatpush.bf16.msra.mxu0 0
        %750 = vmatpush.bf16.msra.mxu0 0
        %751 = vmatpush.bf16.msra.mxu0 0
        %752 = vmatpush.bf16.msra.mxu0 %v740
        %753 = vmatpush.bf16.msra.mxu0 %v739
        %754 = vmatmul.bf16.gmra.mxu0 %v744
        %v755 = vpop.f32.mrf.mxu0
        %v756 = vadd.f32 %v729, %v755
        %v757 = vpop.f32.mrf.mxu0
        %758 = vdwg.mxu0
        %v759 = vmax.f32 %v756, 0.0
        %v760 = vpack.c.bf16 %v759, %v759
        %v761 = vld [vmem:[%s5] sm:$0xf]
        %v762 = vld [vmem:[%s5 + $0x4] sm:$0xf]
        %v763 = vld [vmem:[%s5 + $0x8] sm:$0xf]
        %v764 = vld [vmem:[%s5 + $0xc] sm:$0xf]
        %v765 = vld [vmem:[%s5 + $0x10] sm:$0xf]
        %v766 = vld [vmem:[%s5 + $0x14] sm:$0xf]
        %v767 = vld [vmem:[%s5 + $0x18] sm:$0xf]
        %v768 = vld [vmem:[%s5 + $0x1c] sm:$0xf]
        %v769 = vld [vmem:[%s5 + $0x20] sm:$0xf]
        %v770 = vld [vmem:[%s5 + $0x24] sm:$0xf]
        %v771 = vld [vmem:[%s5 + $0x28] sm:$0xf]
        %v772 = vld [vmem:[%s5 + $0x2c] sm:$0xf]
        %v773 = vld [vmem:[%s5 + $0x30] sm:$0xf]
        %v774 = vld [vmem:[%s5 + $0x34] sm:$0xf]
        %v775 = vld [vmem:[%s5 + $0x38] sm:$0xf]
        %v776 = vld [vmem:[%s5 + $0x3c] sm:$0xf]
        %v777 = vld [vmem:[%s6] sm:$0x1]
        %v779 = vperm.slane %v777, 0
        %v797 = vunpack.c.l.b16 %v761
        %v798 = vunpack.c.l.b16 %v762
        %v799 = vunpack.c.l.b16 %v763
        %v800 = vunpack.c.l.b16 %v764
        %v801 = vunpack.c.l.b16 %v765
        %v802 = vunpack.c.l.b16 %v766
        %v803 = vunpack.c.l.b16 %v767
        %v804 = vunpack.c.l.b16 %v768
        %v805 = vunpack.c.l.b16 %v769
        %v806 = vunpack.c.l.b16 %v770
        %v807 = vunpack.c.l.b16 %v771
        %v808 = vunpack.c.l.b16 %v772
        %v809 = vunpack.c.l.b16 %v773
        %v810 = vunpack.c.l.b16 %v774
        %v811 = vunpack.c.l.b16 %v775
        %v812 = vunpack.c.l.b16 %v776
        %v813 = vpack.c.b16 %v798, %v797
        %v814 = vpack.c.b16 %v800, %v799
        %v815 = vpack.c.b16 %v802, %v801
        %v816 = vpack.c.b16 %v804, %v803
        %v817 = vpack.c.b16 %v806, %v805
        %v818 = vpack.c.b16 %v808, %v807
        %v819 = vpack.c.b16 %v810, %v809
        %v820 = vpack.c.b16 %v812, %v811
        %829 = vmatpush.bf16.msra.mxu0 %v820
        %830 = vmatpush.bf16.msra.mxu0 %v819
        %831 = vmatpush.bf16.msra.mxu0 %v818
        %832 = vmatpush.bf16.msra.mxu0 %v817
        %833 = vmatpush.bf16.msra.mxu0 %v816
        %834 = vmatpush.bf16.msra.mxu0 %v815
        %835 = vmatpush.bf16.msra.mxu0 %v814
        %836 = vmatpush.bf16.msra.mxu0 %v813
        %837 = vmatmul.bf16.gmra.mxu0 %v760
        %v838 = vpop.f32.mrf.mxu0
        %v839 = vadd.f32 %v779, %v838
        %v840 = vpop.f32.mrf.mxu0
        %841 = vdwg.mxu0
        %v843 = vrot.slane %v839, 1
        %v845 = vadd.f32 %v839, %v843
        %v846 = vsub.f32 0.0, %v845
        %v847 = vmul.f32 %v846, 1.442695
        %v848 = vpow.pop %v847
        %v849 = vadd.f32 %v848, 1.0
        %v850 = vrcp.pop %v849
        %v851 = vperm.slane %v850, 0
        %v852 = vmul.f32 %v648, %v851
        %v853 = vmul.f32 %v651, %v851
        %v854 = vmul.f32 %v654, %v851
        %v855 = vmul.f32 %v657, %v851
        %v856 = vmul.f32 %v660, %v851
        %v857 = vmul.f32 %v663, %v851
        %v858 = vmul.f32 %v666, %v851
        %v859 = vmul.f32 %v669, %v851
        %860 = vst.msk [vmem:[%s353] sm:$0xff] %vm645, %v852
        %861 = vst.msk [vmem:[%s353 + $0x8] sm:$0xff] %vm645, %v853
        %862 = vst.msk [vmem:[%s353 + $0x10] sm:$0xff] %vm645, %v854
        %863 = vst.msk [vmem:[%s353 + $0x18] sm:$0xff] %vm645, %v855
        %864 = vst.msk [vmem:[%s353 + $0x20] sm:$0xff] %vm645, %v856
        %865 = vst.msk [vmem:[%s353 + $0x28] sm:$0xff] %vm645, %v857
        %866 = vst.msk [vmem:[%s353 + $0x30] sm:$0xff] %vm645, %v858
        %867 = vst.msk [vmem:[%s353 + $0x38] sm:$0xff] %vm645, %v859
        %v868 = vsel %vm645, %v852, -inf
        %869 = vmax.xlane.f32.xlu0 %v868
        %v870 = vpop.xlane.xlu0 %869
        %v871 = vsel %vm645, %v853, -inf
        %872 = vmax.xlane.f32.xlu0 %v871
        %v873 = vpop.xlane.xlu0 %872
        %v874 = vsel %vm645, %v854, -inf
        %875 = vmax.xlane.f32.xlu0 %v874
        %v876 = vpop.xlane.xlu0 %875
        %v877 = vsel %vm645, %v855, -inf
        %878 = vmax.xlane.f32.xlu0 %v877
        %v879 = vpop.xlane.xlu0 %878
        %v880 = vsel %vm645, %v856, -inf
        %881 = vmax.xlane.f32.xlu0 %v880
        %v882 = vpop.xlane.xlu0 %881
        %v883 = vsel %vm645, %v857, -inf
        %884 = vmax.xlane.f32.xlu0 %v883
        %v885 = vpop.xlane.xlu0 %884
        %v886 = vsel %vm645, %v858, -inf
        %887 = vmax.xlane.f32.xlu0 %v886
        %v888 = vpop.xlane.xlu0 %887
        %v889 = vsel %vm645, %v859, -inf
        %890 = vmax.xlane.f32.xlu0 %v889
        %v891 = vpop.xlane.xlu0 %890
        %v892 = vsel %vm645, %v852, 0.0
        %893 = vadd.xlane.f32.xlu0 %v892
        %v894 = vpop.xlane.xlu0 %893
        %v895 = vsel %vm645, %v853, 0.0
        %896 = vadd.xlane.f32.xlu0 %v895
        %v897 = vpop.xlane.xlu0 %896
        %v898 = vsel %vm645, %v854, 0.0
        %899 = vadd.xlane.f32.xlu0 %v898
        %v900 = vpop.xlane.xlu0 %899
        %v901 = vsel %vm645, %v855, 0.0
        %902 = vadd.xlane.f32.xlu0 %v901
        %v903 = vpop.xlane.xlu0 %902
        %v904 = vsel %vm645, %v856, 0.0
        %905 = vadd.xlane.f32.xlu0 %v904
        %v906 = vpop.xlane.xlu0 %905
        %v907 = vsel %vm645, %v857, 0.0
        %908 = vadd.xlane.f32.xlu0 %v907
        %v909 = vpop.xlane.xlu0 %908
        %v910 = vsel %vm645, %v858, 0.0
        %911 = vadd.xlane.f32.xlu0 %v910
        %v912 = vpop.xlane.xlu0 %911
        %v913 = vsel %vm645, %v859, 0.0
        %914 = vadd.xlane.f32.xlu0 %v913
        %v915 = vpop.xlane.xlu0 %914
        %v916 = vrcp.pop 32.0
        %v917 = vmul.f32 32.0, %v916
        %v918 = vsub.f32 1.0, %v917
        %v919 = vmul.f32 %v916, %v918
        %v920 = vadd.f32 %v916, %v919
        %vm921 = vweird.f32 %v916
        %v922 = vsel %vm921, %v916, %v920
        %v923 = vmul.f32 %v894, %v922
        %v924 = vmul.f32 %v897, %v922
        %v925 = vmul.f32 %v900, %v922
        %v926 = vmul.f32 %v903, %v922
        %v927 = vmul.f32 %v906, %v922
        %v928 = vmul.f32 %v909, %v922
        %v929 = vmul.f32 %v912, %v922
        %v930 = vmul.f32 %v915, %v922
        %vm931 = vcmask 113664
        %932 = vst.msk [vmem:[#allocation2] sm:$0xff] %vm931, 0.0
        %vm933 = vcmask 111616
        %934 = vst.msk [vmem:[#allocation2 + $0x8] sm:$0x3f] %vm933, 0.0
        %935 = vst.msk [vmem:[#allocation2 + $0x10] sm:$0xff] %vm931, 0.0
        %936 = vst.msk [vmem:[#allocation2 + $0x18] sm:$0x3f] %vm933, 0.0
        %v945 = vlaneseq
        %v946 = vand.u32 %v945, 127
        %v947 = vadd.s32 %v946, 4294967293
        %v948 = vperm.slane %v870, %v947
        %v949 = vperm.slane %v873, %v947
        %v950 = vperm.slane %v876, %v947
        %v951 = vperm.slane %v879, %v947
        %v952 = vperm.slane %v882, %v947
        %v953 = vperm.slane %v885, %v947
        %v954 = vperm.slane %v888, %v947
        %v955 = vperm.slane %v891, %v947
        %vm956 = vcmask 1041409
        %v957 = vsel %vm956, %v949, %v948
        %vm958 = vcmask 1042434
        %v959 = vsel %vm958, %v950, %v957
        %vm960 = vcmask 1043459
        %v961 = vsel %vm960, %v951, %v959
        %vm962 = vcmask 1044484
        %v963 = vsel %vm962, %v952, %v961
        %vm964 = vcmask 1045509
        %v965 = vsel %vm964, %v953, %v963
        %vm966 = vcmask 1046534
        %v967 = vsel %vm966, %v954, %v965
        %vm968 = vcmask 1047559
        %v969 = vsel %vm968, %v955, %v967
        %vm971 = vcmask 89112
        %972 = vst.msk [vmem:[#allocation2 + $0x3] sm:$0xff] %vm971, %v969
        %v981 = vperm.slane %v923, %v947
        %v982 = vperm.slane %v924, %v947
        %v983 = vperm.slane %v925, %v947
        %v984 = vperm.slane %v926, %v947
        %v985 = vperm.slane %v927, %v947
        %v986 = vperm.slane %v928, %v947
        %v987 = vperm.slane %v929, %v947
        %v988 = vperm.slane %v930, %v947
        %v989 = vsel %vm956, %v982, %v981
        %v990 = vsel %vm958, %v983, %v989
        %v991 = vsel %vm960, %v984, %v990
        %v992 = vsel %vm962, %v985, %v991
        %v993 = vsel %vm964, %v986, %v992
        %v994 = vsel %vm966, %v987, %v993
        %v995 = vsel %vm968, %v988, %v994
        %s997 = scalar_lea.vmem [#allocation2], 16
        %998 = vst.msk [vmem:[%s997 + $0x3] sm:$0xff] %vm971, %v995
        %v999 = vld [vmem:[#allocation2] sm:$0xff]
        %s1000 = sld [smem:[#allocation3]]
        %v1001 = vstv %s1000
        %v1002 = vmul.f32 %v999, %v1001
        %v1003 = vadd.f32 %v1002, 0.0
        %s1004 = sld [smem:[#allocation3 + $0x1]]
        %v1005 = vstv %s1004
        %v1006 = vmul.f32 %v999, %v1005
        %1008 = vrot.lane.b32.xlu0 %v1006, 127
        %v1009 = vpop.permute.xlu0 %1008
        %v1011 = vadd.f32 %v1003, %v1009
        %s1012 = sld [smem:[#allocation3 + $0x2]]
        %v1013 = vstv %s1012
        %v1014 = vmul.f32 %v999, %v1013
        %1016 = vrot.lane.b32.xlu0 %v1014, 126
        %v1017 = vpop.permute.xlu0 %1016
        %v1019 = vadd.f32 %v1011, %v1017
        %s1020 = sld [smem:[#allocation3 + $0x3]]
        %v1021 = vstv %s1020
        %v1022 = vmul.f32 %v999, %v1021
        %1024 = vrot.lane.b32.xlu0 %v1022, 125
        %v1025 = vpop.permute.xlu0 %1024
        %v1027 = vadd.f32 %v1019, %v1025
        %s1028 = sld [smem:[#allocation3 + $0x4]]
        %v1029 = vstv %s1028
        %v1030 = vmul.f32 %v999, %v1029
        %1032 = vrot.lane.b32.xlu0 %v1030, 124
        %v1033 = vpop.permute.xlu0 %1032
        %v1035 = vadd.f32 %v1027, %v1033
        %s1036 = sld [smem:[#allocation3 + $0x5]]
        %v1037 = vstv %s1036
        %v1038 = vmul.f32 %v999, %v1037
        %1040 = vrot.lane.b32.xlu0 %v1038, 123
        %v1041 = vpop.permute.xlu0 %1040
        %v1043 = vadd.f32 %v1035, %v1041
        %s1044 = sld [smem:[#allocation3 + $0x6]]
        %v1045 = vstv %s1044
        %v1046 = vmul.f32 %v999, %v1045
        %1048 = vrot.lane.b32.xlu0 %v1046, 122
        %v1049 = vpop.permute.xlu0 %1048
        %v1051 = vadd.f32 %v1043, %v1049
        %v1052 = vld [vmem:[#allocation2 + $0x1] sm:$0xff]
        %s1053 = sld [smem:[#allocation3 + $0x7]]
        %v1054 = vstv %s1053
        %v1055 = vmul.f32 %v1052, %v1054
        %v1056 = vadd.f32 %v1051, %v1055
        %s1057 = sld [smem:[#allocation3 + $0x8]]
        %v1058 = vstv %s1057
        %v1059 = vmul.f32 %v1052, %v1058
        %1061 = vrot.lane.b32.xlu0 %v1059, 127
        %v1062 = vpop.permute.xlu0 %1061
        %v1064 = vadd.f32 %v1056, %v1062
        %s1065 = sld [smem:[#allocation3 + $0x9]]
        %v1066 = vstv %s1065
        %v1067 = vmul.f32 %v1052, %v1066
        %1069 = vrot.lane.b32.xlu0 %v1067, 126
        %v1070 = vpop.permute.xlu0 %1069
        %v1072 = vadd.f32 %v1064, %v1070
        %s1073 = sld [smem:[#allocation3 + $0xa]]
        %v1074 = vstv %s1073
        %v1075 = vmul.f32 %v1052, %v1074
        %1077 = vrot.lane.b32.xlu0 %v1075, 125
        %v1078 = vpop.permute.xlu0 %1077
        %v1080 = vadd.f32 %v1072, %v1078
        %s1081 = sld [smem:[#allocation3 + $0xb]]
        %v1082 = vstv %s1081
        %v1083 = vmul.f32 %v1052, %v1082
        %1085 = vrot.lane.b32.xlu0 %v1083, 124
        %v1086 = vpop.permute.xlu0 %1085
        %v1088 = vadd.f32 %v1080, %v1086
        %s1089 = sld [smem:[#allocation3 + $0xc]]
        %v1090 = vstv %s1089
        %v1091 = vmul.f32 %v1052, %v1090
        %1093 = vrot.lane.b32.xlu0 %v1091, 123
        %v1094 = vpop.permute.xlu0 %1093
        %v1096 = vadd.f32 %v1088, %v1094
        %s1097 = sld [smem:[#allocation3 + $0xd]]
        %v1098 = vstv %s1097
        %v1099 = vmul.f32 %v1052, %v1098
        %1101 = vrot.lane.b32.xlu0 %v1099, 122
        %v1102 = vpop.permute.xlu0 %1101
        %v1104 = vadd.f32 %v1096, %v1102
        %v1105 = vld [vmem:[#allocation2 + $0x2] sm:$0xff]
        %s1106 = sld [smem:[#allocation3 + $0xe]]
        %v1107 = vstv %s1106
        %v1108 = vmul.f32 %v1105, %v1107
        %v1109 = vadd.f32 %v1104, %v1108
        %s1110 = sld [smem:[#allocation3 + $0xf]]
        %v1111 = vstv %s1110
        %v1112 = vmul.f32 %v1105, %v1111
        %1114 = vrot.lane.b32.xlu0 %v1112, 127
        %v1115 = vpop.permute.xlu0 %1114
        %v1117 = vadd.f32 %v1109, %v1115
        %s1118 = sld [smem:[#allocation3 + $0x10]]
        %v1119 = vstv %s1118
        %v1120 = vmul.f32 %v1105, %v1119
        %1122 = vrot.lane.b32.xlu0 %v1120, 126
        %v1123 = vpop.permute.xlu0 %1122
        %v1125 = vadd.f32 %v1117, %v1123
        %s1126 = sld [smem:[#allocation3 + $0x11]]
        %v1127 = vstv %s1126
        %v1128 = vmul.f32 %v1105, %v1127
        %1130 = vrot.lane.b32.xlu0 %v1128, 125
        %v1131 = vpop.permute.xlu0 %1130
        %v1133 = vadd.f32 %v1125, %v1131
        %s1134 = sld [smem:[#allocation3 + $0x12]]
        %v1135 = vstv %s1134
        %v1136 = vmul.f32 %v1105, %v1135
        %1138 = vrot.lane.b32.xlu0 %v1136, 124
        %v1139 = vpop.permute.xlu0 %1138
        %v1141 = vadd.f32 %v1133, %v1139
        %s1142 = sld [smem:[#allocation3 + $0x13]]
        %v1143 = vstv %s1142
        %v1144 = vmul.f32 %v1105, %v1143
        %1146 = vrot.lane.b32.xlu0 %v1144, 123
        %v1147 = vpop.permute.xlu0 %1146
        %v1149 = vadd.f32 %v1141, %v1147
        %s1150 = sld [smem:[#allocation3 + $0x14]]
        %v1151 = vstv %s1150
        %v1152 = vmul.f32 %v1105, %v1151
        %1154 = vrot.lane.b32.xlu0 %v1152, 122
        %v1155 = vpop.permute.xlu0 %1154
        %v1157 = vadd.f32 %v1149, %v1155
        %v1158 = vld [vmem:[#allocation2 + $0x3] sm:$0xff]
        %s1159 = sld [smem:[#allocation3 + $0x15]]
        %v1160 = vstv %s1159
        %v1161 = vmul.f32 %v1158, %v1160
        %v1162 = vadd.f32 %v1157, %v1161
        %s1163 = sld [smem:[#allocation3 + $0x16]]
        %v1164 = vstv %s1163
        %v1165 = vmul.f32 %v1158, %v1164
        %1167 = vrot.lane.b32.xlu0 %v1165, 127
        %v1168 = vpop.permute.xlu0 %1167
        %v1170 = vadd.f32 %v1162, %v1168
        %s1171 = sld [smem:[#allocation3 + $0x17]]
        %v1172 = vstv %s1171
        %v1173 = vmul.f32 %v1158, %v1172
        %1175 = vrot.lane.b32.xlu0 %v1173, 126
        %v1176 = vpop.permute.xlu0 %1175
        %v1178 = vadd.f32 %v1170, %v1176
        %s1179 = sld [smem:[#allocation3 + $0x18]]
        %v1180 = vstv %s1179
        %v1181 = vmul.f32 %v1158, %v1180
        %1183 = vrot.lane.b32.xlu0 %v1181, 125
        %v1184 = vpop.permute.xlu0 %1183
        %v1186 = vadd.f32 %v1178, %v1184
        %s1187 = sld [smem:[#allocation3 + $0x19]]
        %v1188 = vstv %s1187
        %v1189 = vmul.f32 %v1158, %v1188
        %1191 = vrot.lane.b32.xlu0 %v1189, 124
        %v1192 = vpop.permute.xlu0 %1191
        %v1194 = vadd.f32 %v1186, %v1192
        %s1195 = sld [smem:[#allocation3 + $0x1a]]
        %v1196 = vstv %s1195
        %v1197 = vmul.f32 %v1158, %v1196
        %1199 = vrot.lane.b32.xlu0 %v1197, 123
        %v1200 = vpop.permute.xlu0 %1199
        %v1202 = vadd.f32 %v1194, %v1200
        %s1203 = sld [smem:[#allocation3 + $0x1b]]
        %v1204 = vstv %s1203
        %v1205 = vmul.f32 %v1158, %v1204
        %1207 = vrot.lane.b32.xlu0 %v1205, 122
        %v1208 = vpop.permute.xlu0 %1207
        %v1210 = vadd.f32 %v1202, %v1208
        %v1211 = vld [vmem:[#allocation2 + $0x4] sm:$0xff]
        %s1212 = sld [smem:[#allocation3 + $0x1c]]
        %v1213 = vstv %s1212
        %v1214 = vmul.f32 %v1211, %v1213
        %v1215 = vadd.f32 %v1210, %v1214
        %s1216 = sld [smem:[#allocation3 + $0x1d]]
        %v1217 = vstv %s1216
        %v1218 = vmul.f32 %v1211, %v1217
        %1220 = vrot.lane.b32.xlu0 %v1218, 127
        %v1221 = vpop.permute.xlu0 %1220
        %v1223 = vadd.f32 %v1215, %v1221
        %s1224 = sld [smem:[#allocation3 + $0x1e]]
        %v1225 = vstv %s1224
        %v1226 = vmul.f32 %v1211, %v1225
        %1228 = vrot.lane.b32.xlu0 %v1226, 126
        %v1229 = vpop.permute.xlu0 %1228
        %v1231 = vadd.f32 %v1223, %v1229
        %s1232 = sld [smem:[#allocation3 + $0x1f]]
        %v1233 = vstv %s1232
        %v1234 = vmul.f32 %v1211, %v1233
        %1236 = vrot.lane.b32.xlu0 %v1234, 125
        %v1237 = vpop.permute.xlu0 %1236
        %v1239 = vadd.f32 %v1231, %v1237
        %s1240 = sld [smem:[#allocation3 + $0x20]]
        %v1241 = vstv %s1240
        %v1242 = vmul.f32 %v1211, %v1241
        %1244 = vrot.lane.b32.xlu0 %v1242, 124
        %v1245 = vpop.permute.xlu0 %1244
        %v1247 = vadd.f32 %v1239, %v1245
        %s1248 = sld [smem:[#allocation3 + $0x21]]
        %v1249 = vstv %s1248
        %v1250 = vmul.f32 %v1211, %v1249
        %1252 = vrot.lane.b32.xlu0 %v1250, 123
        %v1253 = vpop.permute.xlu0 %1252
        %v1255 = vadd.f32 %v1247, %v1253
        %s1256 = sld [smem:[#allocation3 + $0x22]]
        %v1257 = vstv %s1256
        %v1258 = vmul.f32 %v1211, %v1257
        %1260 = vrot.lane.b32.xlu0 %v1258, 122
        %v1261 = vpop.permute.xlu0 %1260
        %v1263 = vadd.f32 %v1255, %v1261
        %v1264 = vld [vmem:[#allocation2 + $0x5] sm:$0xff]
        %s1265 = sld [smem:[#allocation3 + $0x23]]
        %v1266 = vstv %s1265
        %v1267 = vmul.f32 %v1264, %v1266
        %v1268 = vadd.f32 %v1263, %v1267
        %s1269 = sld [smem:[#allocation3 + $0x24]]
        %v1270 = vstv %s1269
        %v1271 = vmul.f32 %v1264, %v1270
        %1273 = vrot.lane.b32.xlu0 %v1271, 127
        %v1274 = vpop.permute.xlu0 %1273
        %v1276 = vadd.f32 %v1268, %v1274
        %s1277 = sld [smem:[#allocation3 + $0x25]]
        %v1278 = vstv %s1277
        %v1279 = vmul.f32 %v1264, %v1278
        %1281 = vrot.lane.b32.xlu0 %v1279, 126
        %v1282 = vpop.permute.xlu0 %1281
        %v1284 = vadd.f32 %v1276, %v1282
        %s1285 = sld [smem:[#allocation3 + $0x26]]
        %v1286 = vstv %s1285
        %v1287 = vmul.f32 %v1264, %v1286
        %1289 = vrot.lane.b32.xlu0 %v1287, 125
        %v1290 = vpop.permute.xlu0 %1289
        %v1292 = vadd.f32 %v1284, %v1290
        %s1293 = sld [smem:[#allocation3 + $0x27]]
        %v1294 = vstv %s1293
        %v1295 = vmul.f32 %v1264, %v1294
        %1297 = vrot.lane.b32.xlu0 %v1295, 124
        %v1298 = vpop.permute.xlu0 %1297
        %v1300 = vadd.f32 %v1292, %v1298
        %s1301 = sld [smem:[#allocation3 + $0x28]]
        %v1302 = vstv %s1301
        %v1303 = vmul.f32 %v1264, %v1302
        %1305 = vrot.lane.b32.xlu0 %v1303, 123
        %v1306 = vpop.permute.xlu0 %1305
        %v1308 = vadd.f32 %v1300, %v1306
        %s1309 = sld [smem:[#allocation3 + $0x29]]
        %v1310 = vstv %s1309
        %v1311 = vmul.f32 %v1264, %v1310
        %1313 = vrot.lane.b32.xlu0 %v1311, 122
        %v1314 = vpop.permute.xlu0 %1313
        %v1316 = vadd.f32 %v1308, %v1314
        %v1317 = vld [vmem:[#allocation2 + $0x6] sm:$0xff]
        %s1318 = sld [smem:[#allocation3 + $0x2a]]
        %v1319 = vstv %s1318
        %v1320 = vmul.f32 %v1317, %v1319
        %v1321 = vadd.f32 %v1316, %v1320
        %s1322 = sld [smem:[#allocation3 + $0x2b]]
        %v1323 = vstv %s1322
        %v1324 = vmul.f32 %v1317, %v1323
        %1326 = vrot.lane.b32.xlu0 %v1324, 127
        %v1327 = vpop.permute.xlu0 %1326
        %v1329 = vadd.f32 %v1321, %v1327
        %s1330 = sld [smem:[#allocation3 + $0x2c]]
        %v1331 = vstv %s1330
        %v1332 = vmul.f32 %v1317, %v1331
        %1334 = vrot.lane.b32.xlu0 %v1332, 126
        %v1335 = vpop.permute.xlu0 %1334
        %v1337 = vadd.f32 %v1329, %v1335
        %s1338 = sld [smem:[#allocation3 + $0x2d]]
        %v1339 = vstv %s1338
        %v1340 = vmul.f32 %v1317, %v1339
        %1342 = vrot.lane.b32.xlu0 %v1340, 125
        %v1343 = vpop.permute.xlu0 %1342
        %v1345 = vadd.f32 %v1337, %v1343
        %s1346 = sld [smem:[#allocation3 + $0x2e]]
        %v1347 = vstv %s1346
        %v1348 = vmul.f32 %v1317, %v1347
        %1350 = vrot.lane.b32.xlu0 %v1348, 124
        %v1351 = vpop.permute.xlu0 %1350
        %v1353 = vadd.f32 %v1345, %v1351
        %s1354 = sld [smem:[#allocation3 + $0x2f]]
        %v1355 = vstv %s1354
        %v1356 = vmul.f32 %v1317, %v1355
        %1358 = vrot.lane.b32.xlu0 %v1356, 123
        %v1359 = vpop.permute.xlu0 %1358
        %v1361 = vadd.f32 %v1353, %v1359
        %s1362 = sld [smem:[#allocation3 + $0x30]]
        %v1363 = vstv %s1362
        %v1364 = vmul.f32 %v1317, %v1363
        %1366 = vrot.lane.b32.xlu0 %v1364, 122
        %v1367 = vpop.permute.xlu0 %1366
        %v1369 = vadd.f32 %v1361, %v1367
        %v1370 = vld [vmem:[%s997] sm:$0xff]
        %s1371 = sld [smem:[#allocation3 + $0x80]]
        %v1372 = vstv %s1371
        %v1373 = vmul.f32 %v1370, %v1372
        %v1374 = vadd.f32 %v1369, %v1373
        %s1375 = sld [smem:[#allocation3 + $0x81]]
        %v1376 = vstv %s1375
        %v1377 = vmul.f32 %v1370, %v1376
        %1379 = vrot.lane.b32.xlu0 %v1377, 127
        %v1380 = vpop.permute.xlu0 %1379
        %v1382 = vadd.f32 %v1374, %v1380
        %s1383 = sld [smem:[#allocation3 + $0x82]]
        %v1384 = vstv %s1383
        %v1385 = vmul.f32 %v1370, %v1384
        %1387 = vrot.lane.b32.xlu0 %v1385, 126
        %v1388 = vpop.permute.xlu0 %1387
        %v1390 = vadd.f32 %v1382, %v1388
        %s1391 = sld [smem:[#allocation3 + $0x83]]
        %v1392 = vstv %s1391
        %v1393 = vmul.f32 %v1370, %v1392
        %1395 = vrot.lane.b32.xlu0 %v1393, 125
        %v1396 = vpop.permute.xlu0 %1395
        %v1398 = vadd.f32 %v1390, %v1396
        %s1399 = sld [smem:[#allocation3 + $0x84]]
        %v1400 = vstv %s1399
        %v1401 = vmul.f32 %v1370, %v1400
        %1403 = vrot.lane.b32.xlu0 %v1401, 124
        %v1404 = vpop.permute.xlu0 %1403
        %v1406 = vadd.f32 %v1398, %v1404
        %s1407 = sld [smem:[#allocation3 + $0x85]]
        %v1408 = vstv %s1407
        %v1409 = vmul.f32 %v1370, %v1408
        %1411 = vrot.lane.b32.xlu0 %v1409, 123
        %v1412 = vpop.permute.xlu0 %1411
        %v1414 = vadd.f32 %v1406, %v1412
        %s1415 = sld [smem:[#allocation3 + $0x86]]
        %v1416 = vstv %s1415
        %v1417 = vmul.f32 %v1370, %v1416
        %1419 = vrot.lane.b32.xlu0 %v1417, 122
        %v1420 = vpop.permute.xlu0 %1419
        %v1422 = vadd.f32 %v1414, %v1420
        %v1423 = vld [vmem:[%s997 + $0x1] sm:$0xff]
        %s1424 = sld [smem:[#allocation3 + $0x87]]
        %v1425 = vstv %s1424
        %v1426 = vmul.f32 %v1423, %v1425
        %v1427 = vadd.f32 %v1422, %v1426
        %s1428 = sld [smem:[#allocation3 + $0x88]]
        %v1429 = vstv %s1428
        %v1430 = vmul.f32 %v1423, %v1429
        %1432 = vrot.lane.b32.xlu0 %v1430, 127
        %v1433 = vpop.permute.xlu0 %1432
        %v1435 = vadd.f32 %v1427, %v1433
        %s1436 = sld [smem:[#allocation3 + $0x89]]
        %v1437 = vstv %s1436
        %v1438 = vmul.f32 %v1423, %v1437
        %1440 = vrot.lane.b32.xlu0 %v1438, 126
        %v1441 = vpop.permute.xlu0 %1440
        %v1443 = vadd.f32 %v1435, %v1441
        %s1444 = sld [smem:[#allocation3 + $0x8a]]
        %v1445 = vstv %s1444
        %v1446 = vmul.f32 %v1423, %v1445
        %1448 = vrot.lane.b32.xlu0 %v1446, 125
        %v1449 = vpop.permute.xlu0 %1448
        %v1451 = vadd.f32 %v1443, %v1449
        %s1452 = sld [smem:[#allocation3 + $0x8b]]
        %v1453 = vstv %s1452
        %v1454 = vmul.f32 %v1423, %v1453
        %1456 = vrot.lane.b32.xlu0 %v1454, 124
        %v1457 = vpop.permute.xlu0 %1456
        %v1459 = vadd.f32 %v1451, %v1457
        %s1460 = sld [smem:[#allocation3 + $0x8c]]
        %v1461 = vstv %s1460
        %v1462 = vmul.f32 %v1423, %v1461
        %1464 = vrot.lane.b32.xlu0 %v1462, 123
        %v1465 = vpop.permute.xlu0 %1464
        %v1467 = vadd.f32 %v1459, %v1465
        %s1468 = sld [smem:[#allocation3 + $0x8d]]
        %v1469 = vstv %s1468
        %v1470 = vmul.f32 %v1423, %v1469
        %1472 = vrot.lane.b32.xlu0 %v1470, 122
        %v1473 = vpop.permute.xlu0 %1472
        %v1475 = vadd.f32 %v1467, %v1473
        %v1476 = vld [vmem:[%s997 + $0x2] sm:$0xff]
        %s1477 = sld [smem:[#allocation3 + $0x8e]]
        %v1478 = vstv %s1477
        %v1479 = vmul.f32 %v1476, %v1478
        %v1480 = vadd.f32 %v1475, %v1479
        %s1481 = sld [smem:[#allocation3 + $0x8f]]
        %v1482 = vstv %s1481
        %v1483 = vmul.f32 %v1476, %v1482
        %1485 = vrot.lane.b32.xlu0 %v1483, 127
        %v1486 = vpop.permute.xlu0 %1485
        %v1488 = vadd.f32 %v1480, %v1486
        %s1489 = sld [smem:[#allocation3 + $0x90]]
        %v1490 = vstv %s1489
        %v1491 = vmul.f32 %v1476, %v1490
        %1493 = vrot.lane.b32.xlu0 %v1491, 126
        %v1494 = vpop.permute.xlu0 %1493
        %v1496 = vadd.f32 %v1488, %v1494
        %s1497 = sld [smem:[#allocation3 + $0x91]]
        %v1498 = vstv %s1497
        %v1499 = vmul.f32 %v1476, %v1498
        %1501 = vrot.lane.b32.xlu0 %v1499, 125
        %v1502 = vpop.permute.xlu0 %1501
        %v1504 = vadd.f32 %v1496, %v1502
        %s1505 = sld [smem:[#allocation3 + $0x92]]
        %v1506 = vstv %s1505
        %v1507 = vmul.f32 %v1476, %v1506
        %1509 = vrot.lane.b32.xlu0 %v1507, 124
        %v1510 = vpop.permute.xlu0 %1509
        %v1512 = vadd.f32 %v1504, %v1510
        %s1513 = sld [smem:[#allocation3 + $0x93]]
        %v1514 = vstv %s1513
        %v1515 = vmul.f32 %v1476, %v1514
        %1517 = vrot.lane.b32.xlu0 %v1515, 123
        %v1518 = vpop.permute.xlu0 %1517
        %v1520 = vadd.f32 %v1512, %v1518
        %s1521 = sld [smem:[#allocation3 + $0x94]]
        %v1522 = vstv %s1521
        %v1523 = vmul.f32 %v1476, %v1522
        %1525 = vrot.lane.b32.xlu0 %v1523, 122
        %v1526 = vpop.permute.xlu0 %1525
        %v1528 = vadd.f32 %v1520, %v1526
        %v1529 = vld [vmem:[%s997 + $0x3] sm:$0xff]
        %s1530 = sld [smem:[#allocation3 + $0x95]]
        %v1531 = vstv %s1530
        %v1532 = vmul.f32 %v1529, %v1531
        %v1533 = vadd.f32 %v1528, %v1532
        %s1534 = sld [smem:[#allocation3 + $0x96]]
        %v1535 = vstv %s1534
        %v1536 = vmul.f32 %v1529, %v1535
        %1538 = vrot.lane.b32.xlu0 %v1536, 127
        %v1539 = vpop.permute.xlu0 %1538
        %v1541 = vadd.f32 %v1533, %v1539
        %s1542 = sld [smem:[#allocation3 + $0x97]]
        %v1543 = vstv %s1542
        %v1544 = vmul.f32 %v1529, %v1543
        %1546 = vrot.lane.b32.xlu0 %v1544, 126
        %v1547 = vpop.permute.xlu0 %1546
        %v1549 = vadd.f32 %v1541, %v1547
        %s1550 = sld [smem:[#allocation3 + $0x98]]
        %v1551 = vstv %s1550
        %v1552 = vmul.f32 %v1529, %v1551
        %1554 = vrot.lane.b32.xlu0 %v1552, 125
        %v1555 = vpop.permute.xlu0 %1554
        %v1557 = vadd.f32 %v1549, %v1555
        %s1558 = sld [smem:[#allocation3 + $0x99]]
        %v1559 = vstv %s1558
        %v1560 = vmul.f32 %v1529, %v1559
        %1562 = vrot.lane.b32.xlu0 %v1560, 124
        %v1563 = vpop.permute.xlu0 %1562
        %v1565 = vadd.f32 %v1557, %v1563
        %s1566 = sld [smem:[#allocation3 + $0x9a]]
        %v1567 = vstv %s1566
        %v1568 = vmul.f32 %v1529, %v1567
        %1570 = vrot.lane.b32.xlu0 %v1568, 123
        %v1571 = vpop.permute.xlu0 %1570
        %v1573 = vadd.f32 %v1565, %v1571
        %s1574 = sld [smem:[#allocation3 + $0x9b]]
        %v1575 = vstv %s1574
        %v1576 = vmul.f32 %v1529, %v1575
        %1578 = vrot.lane.b32.xlu0 %v1576, 122
        %v1579 = vpop.permute.xlu0 %1578
        %v1581 = vadd.f32 %v1573, %v1579
        %v1582 = vld [vmem:[%s997 + $0x4] sm:$0xff]
        %s1583 = sld [smem:[#allocation3 + $0x9c]]
        %v1584 = vstv %s1583
        %v1585 = vmul.f32 %v1582, %v1584
        %v1586 = vadd.f32 %v1581, %v1585
        %s1587 = sld [smem:[#allocation3 + $0x9d]]
        %v1588 = vstv %s1587
        %v1589 = vmul.f32 %v1582, %v1588
        %1591 = vrot.lane.b32.xlu0 %v1589, 127
        %v1592 = vpop.permute.xlu0 %1591
        %v1594 = vadd.f32 %v1586, %v1592
        %s1595 = sld [smem:[#allocation3 + $0x9e]]
        %v1596 = vstv %s1595
        %v1597 = vmul.f32 %v1582, %v1596
        %1599 = vrot.lane.b32.xlu0 %v1597, 126
        %v1600 = vpop.permute.xlu0 %1599
        %v1602 = vadd.f32 %v1594, %v1600
        %s1603 = sld [smem:[#allocation3 + $0x9f]]
        %v1604 = vstv %s1603
        %v1605 = vmul.f32 %v1582, %v1604
        %1607 = vrot.lane.b32.xlu0 %v1605, 125
        %v1608 = vpop.permute.xlu0 %1607
        %v1610 = vadd.f32 %v1602, %v1608
        %s1611 = sld [smem:[#allocation3 + $0xa0]]
        %v1612 = vstv %s1611
        %v1613 = vmul.f32 %v1582, %v1612
        %1615 = vrot.lane.b32.xlu0 %v1613, 124
        %v1616 = vpop.permute.xlu0 %1615
        %v1618 = vadd.f32 %v1610, %v1616
        %s1619 = sld [smem:[#allocation3 + $0xa1]]
        %v1620 = vstv %s1619
        %v1621 = vmul.f32 %v1582, %v1620
        %1623 = vrot.lane.b32.xlu0 %v1621, 123
        %v1624 = vpop.permute.xlu0 %1623
        %v1626 = vadd.f32 %v1618, %v1624
        %s1627 = sld [smem:[#allocation3 + $0xa2]]
        %v1628 = vstv %s1627
        %v1629 = vmul.f32 %v1582, %v1628
        %1631 = vrot.lane.b32.xlu0 %v1629, 122
        %v1632 = vpop.permute.xlu0 %1631
        %v1634 = vadd.f32 %v1626, %v1632
        %v1635 = vld [vmem:[%s997 + $0x5] sm:$0xff]
        %s1636 = sld [smem:[#allocation3 + $0xa3]]
        %v1637 = vstv %s1636
        %v1638 = vmul.f32 %v1635, %v1637
        %v1639 = vadd.f32 %v1634, %v1638
        %s1640 = sld [smem:[#allocation3 + $0xa4]]
        %v1641 = vstv %s1640
        %v1642 = vmul.f32 %v1635, %v1641
        %1644 = vrot.lane.b32.xlu0 %v1642, 127
        %v1645 = vpop.permute.xlu0 %1644
        %v1647 = vadd.f32 %v1639, %v1645
        %s1648 = sld [smem:[#allocation3 + $0xa5]]
        %v1649 = vstv %s1648
        %v1650 = vmul.f32 %v1635, %v1649
        %1652 = vrot.lane.b32.xlu0 %v1650, 126
        %v1653 = vpop.permute.xlu0 %1652
        %v1655 = vadd.f32 %v1647, %v1653
        %s1656 = sld [smem:[#allocation3 + $0xa6]]
        %v1657 = vstv %s1656
        %v1658 = vmul.f32 %v1635, %v1657
        %1660 = vrot.lane.b32.xlu0 %v1658, 125
        %v1661 = vpop.permute.xlu0 %1660
        %v1663 = vadd.f32 %v1655, %v1661
        %s1664 = sld [smem:[#allocation3 + $0xa7]]
        %v1665 = vstv %s1664
        %v1666 = vmul.f32 %v1635, %v1665
        %1668 = vrot.lane.b32.xlu0 %v1666, 124
        %v1669 = vpop.permute.xlu0 %1668
        %v1671 = vadd.f32 %v1663, %v1669
        %s1672 = sld [smem:[#allocation3 + $0xa8]]
        %v1673 = vstv %s1672
        %v1674 = vmul.f32 %v1635, %v1673
        %1676 = vrot.lane.b32.xlu0 %v1674, 123
        %v1677 = vpop.permute.xlu0 %1676
        %v1679 = vadd.f32 %v1671, %v1677
        %s1680 = sld [smem:[#allocation3 + $0xa9]]
        %v1681 = vstv %s1680
        %v1682 = vmul.f32 %v1635, %v1681
        %1684 = vrot.lane.b32.xlu0 %v1682, 122
        %v1685 = vpop.permute.xlu0 %1684
        %v1687 = vadd.f32 %v1679, %v1685
        %v1688 = vld [vmem:[%s997 + $0x6] sm:$0xff]
        %s1689 = sld [smem:[#allocation3 + $0xaa]]
        %v1690 = vstv %s1689
        %v1691 = vmul.f32 %v1688, %v1690
        %v1692 = vadd.f32 %v1687, %v1691
        %s1693 = sld [smem:[#allocation3 + $0xab]]
        %v1694 = vstv %s1693
        %v1695 = vmul.f32 %v1688, %v1694
        %1697 = vrot.lane.b32.xlu0 %v1695, 127
        %v1698 = vpop.permute.xlu0 %1697
        %v1700 = vadd.f32 %v1692, %v1698
        %s1701 = sld [smem:[#allocation3 + $0xac]]
        %v1702 = vstv %s1701
        %v1703 = vmul.f32 %v1688, %v1702
        %1705 = vrot.lane.b32.xlu0 %v1703, 126
        %v1706 = vpop.permute.xlu0 %1705
        %v1708 = vadd.f32 %v1700, %v1706
        %s1709 = sld [smem:[#allocation3 + $0xad]]
        %v1710 = vstv %s1709
        %v1711 = vmul.f32 %v1688, %v1710
        %1713 = vrot.lane.b32.xlu0 %v1711, 125
        %v1714 = vpop.permute.xlu0 %1713
        %v1716 = vadd.f32 %v1708, %v1714
        %s1717 = sld [smem:[#allocation3 + $0xae]]
        %v1718 = vstv %s1717
        %v1719 = vmul.f32 %v1688, %v1718
        %1721 = vrot.lane.b32.xlu0 %v1719, 124
        %v1722 = vpop.permute.xlu0 %1721
        %v1724 = vadd.f32 %v1716, %v1722
        %s1725 = sld [smem:[#allocation3 + $0xaf]]
        %v1726 = vstv %s1725
        %v1727 = vmul.f32 %v1688, %v1726
        %1729 = vrot.lane.b32.xlu0 %v1727, 123
        %v1730 = vpop.permute.xlu0 %1729
        %v1732 = vadd.f32 %v1724, %v1730
        %s1733 = sld [smem:[#allocation3 + $0xb0]]
        %v1734 = vstv %s1733
        %v1735 = vmul.f32 %v1688, %v1734
        %1737 = vrot.lane.b32.xlu0 %v1735, 122
        %v1738 = vpop.permute.xlu0 %1737
        %v1740 = vadd.f32 %v1732, %v1738
        %vm1741 = vcmask 64512
        %1742 = vst.msk [vmem:[%s357] sm:$0xff] %vm1741, %v1740
        %p1743 = scmp.lt.s32.totalorder %s22, 1
        %s1744 = scalar_select %p1743, %s22, 1
        %s1745 = smul.addr %s1744, 8
        %s1746 = smul.addr %s1745, 8
        %s1747 = scalar_lea.vmem %s8, %s1746
        %p1748 = scmp.lt.s32.totalorder %s22, 1
        %s1749 = scalar_select %p1748, %s22, 1
        %s1750 = smul.addr %s1749, 8
        %s1751 = scalar_lea.vmem %s9, %s1750
        // Predicated region
        $region57: #{contracting_block_forward.6} parent=51 // pred_check
          %p1752 = pneg %p213
        $region58: #{contracting_block_forward.6} parent=51 // pred_check_branch
          %1754 = sbr.rel (%p1752) target = $region60
        $region59: #{contracting_block_forward.6} parent=51 // pred_region
          _
        $region60: #{contracting_block_forward.6} parent=51 // pred_fallthru
          _
        // Predicated region
        $region61: #{contracting_block_forward.6} parent=51 // pred_check
          %p1755 = pneg %p239
        $region62: #{contracting_block_forward.6} parent=51 // pred_check_branch
          %1757 = sbr.rel (%p1755) target = $region64
        $region63: #{contracting_block_forward.6} parent=51 // pred_region
          _
        $region64: #{contracting_block_forward.6} parent=51 // pred_fallthru
          _
      $region52: #{contracting_block_forward.6} parent=5 // pred_fallthru
        _
      %p1758 = scmp.le.s32.totalorder 2, %s17
      // Predicated region
      $region65: #{contracting_block_forward.6} parent=5 // pred_check
        %p1759 = pneg %p1758
      $region66: #{contracting_block_forward.6} parent=5 // pred_check_branch
        %1761 = sbr.rel (%p1759) target = $region68
      $region67: #{contracting_block_forward.6} parent=5 // pred_region
        %s1762 = ssub.s32 %s17, 2
        // Predicated region
        $region69: #{contracting_block_forward.6} parent=67 // pred_check
          %p1763 = pneg %p219
        $region70: #{contracting_block_forward.6} parent=67 // pred_check_branch
          %1765 = sbr.rel (%p1763) target = $region72
        $region71: #{contracting_block_forward.6} parent=67 // pred_region
          %p1766 = scmp.lt.s32.totalorder %s23, 1
          %s1767 = scalar_select %p1766, %s23, 1
          %s1768 = smul.addr %s1767, 8
          %s1769 = smul.addr %s1768, 8
          %s1770 = scalar_lea.vmem %s8, %s1769
        $region72: #{contracting_block_forward.6} parent=67 // pred_fallthru
          _
        // Predicated region
        $region73: #{contracting_block_forward.6} parent=67 // pred_check
          %p1771 = pneg %p245
        $region74: #{contracting_block_forward.6} parent=67 // pred_check_branch
          %1773 = sbr.rel (%p1771) target = $region76
        $region75: #{contracting_block_forward.6} parent=67 // pred_region
          %p1774 = scmp.lt.s32.totalorder %s23, 1
          %s1775 = scalar_select %p1774, %s23, 1
          %s1776 = smul.addr %s1775, 8
          %s1777 = scalar_lea.vmem %s9, %s1776
        $region76: #{contracting_block_forward.6} parent=67 // pred_fallthru
          _
      $region68: #{contracting_block_forward.6} parent=5 // pred_fallthru
        _
    $region6: #{contracting_block_forward.6} parent=1 // loop_footer
      %s21 = sadd.s32 1, %s17
    $region7: #{contracting_block_forward.6} parent=1 // loop_footer_branch
      %16 = sbr.rel target = $region3
    $region8: #{contracting_block_forward.6} parent=1 // loop_exit
      _
    %1778 = vsyncpa [#allocation4], 1
    %s1779 = scalar_lea.sflag [#allocation4], 1
    %1780 = vsyncpa %s1779, 1

// kernel: contracting_block_forward.4
$region0: #{contracting_block_forward.4}
  #allocation0 [shape = 'u32[]', space=smem, size = 0x4, offset = 0x4, fixed_abs, tag = 'smem constant byte address 0x4 - core index']
  #allocation1 [shape = 'u32[72,128]{1,0:T(1,128)}', space=vmem, size = 0x9000, scoped, tag = 'internal scratch']
  #allocation2 [shape = 'f32[18,18,16]{2,1,0:T(8,128)}', space=vmem, size = 0x36000, scoped, tag = 'scratch operand']
  #allocation3 [shape = 'bf16[256,144]{1,0:T(8,128)(2,1)}', space=vmem, size = 0x20000, scoped, tag = 'scratch operand']
  %s0 = inlined_call_operand.vmem [shape: f32[2,16,16,16], index: 0, kind: input, shape index: {}]
  %s1 = inlined_call_operand.vmem [shape: f32[1,16], index: 1, kind: input, shape index: {}]
  %s2 = inlined_call_operand.vmem [shape: f32[1,16], index: 2, kind: input, shape index: {}]
  %s3 = inlined_call_operand.vmem [shape: bf16[144,32], index: 3, kind: input, shape index: {}]
  %s4 = inlined_call_operand.vmem [shape: bf16[2,16,16,32], index: 4, kind: output, shape index: {0}]
  %s5 = inlined_call_operand.vmem [shape: f32[2,2,32], index: 5, kind: output, shape index: {1}]
  %6 = xla_tuple %s4, %s5
  %s7 = sld [smem:[#allocation0]]
  $region57: #{contracting_block_forward.4} parent=0
    _
  %s9 = ssub.s32 1, %s7
  %s10 = scalar_select 0, %s9, %s7
  loop: start=0, step=1, limit=4
  $region2: #{contracting_block_forward.4} parent=0 // loop_pre_header
    _
  $region3: #{contracting_block_forward.4} parent=0 // loop_header
    %s12 = sphi 0, %s16
    %p13 = scmp.ge.s32.totalorder %s12, 4
    %s22 = sphi 0, %s24
    %s25 = sphi 0, %s22
    %s26 = sphi 0, %s25
    %s42 = sphi 0, %s26
    %s46 = sphi 0, %s46
    %s48 = sphi 0, %s46
    %s49 = sphi 0, %s48
    %s63 = sphi 0, %s49
    %s67 = sphi 0, %s67
    %s69 = sphi 0, %s67
    %s70 = sphi 0, %s69
    %s84 = sphi 0, %s70
    %s88 = sphi 0, %s88
    %s90 = sphi 0, %s88
    %s91 = sphi 0, %s90
    %s105 = sphi 0, %s91
    %s111 = sphi 0, %s113
    %s114 = sphi 0, %s111
    %s115 = sphi 0, %s114
    %s131 = sphi 0, %s115
    %s137 = sphi 0, %s139
    %s140 = sphi 0, %s137
    %s141 = sphi 0, %s140
    %s157 = sphi 0, %s141
  $region4: #{contracting_block_forward.4} parent=0 // loop_header_branch
    %15 = sbr.rel (%p13) target = $region8
  $region5: #{contracting_block_forward.4} parent=0 // loop_body
    %s17 = ssub.s32 %s12, 1
    %s18 = ssub.s32 %s12, 2
    %s19 = sadd.s32 %s12, 1
    %s20 = ssub.s32 %s12, %s19
    %p21 = scmp.eq.s32.totalorder %s20, 0
    %s23 = sadd.s32 %s22, 1
    %s24 = scalar_select %p21, %s22, %s23
    %p27 = pneg %p21
    %p28 = scmp.eq.s32.totalorder %s12, 1
    %p29 = por %p27, %p28
    %p30 = scmp.ne.s32.totalorder %s22, %s25
    %p31 = scmp.eq.s32.totalorder %s12, 0
    %p32 = por %p30, %p31
    %p33 = scmp.ne.s32.totalorder %s22, %s25
    %p34 = scmp.eq.s32.totalorder %s17, 1
    %p35 = por %p33, %p34
    %p36 = scmp.ne.s32.totalorder %s25, %s26
    %p37 = scmp.eq.s32.totalorder %s17, 0
    %p38 = por %p36, %p37
    %p39 = scmp.ne.s32.totalorder %s25, %s26
    %p40 = scmp.eq.s32.totalorder %s18, 1
    %p41 = por %p39, %p40
    %p43 = scmp.ne.s32.totalorder %s26, %s42
    %p44 = scmp.eq.s32.totalorder %s18, 0
    %p45 = por %p43, %p44
    %s47 = sadd.s32 %s46, 1
    %p50 = scmp.eq.s32.totalorder %s12, 1
    %p51 = scmp.ne.s32.totalorder %s46, %s48
    %p52 = scmp.eq.s32.totalorder %s12, 0
    %p53 = por %p51, %p52
    %p54 = scmp.ne.s32.totalorder %s46, %s48
    %p55 = scmp.eq.s32.totalorder %s17, 1
    %p56 = por %p54, %p55
    %p57 = scmp.ne.s32.totalorder %s48, %s49
    %p58 = scmp.eq.s32.totalorder %s17, 0
    %p59 = por %p57, %p58
    %p60 = scmp.ne.s32.totalorder %s48, %s49
    %p61 = scmp.eq.s32.totalorder %s18, 1
    %p62 = por %p60, %p61
    %p64 = scmp.ne.s32.totalorder %s49, %s63
    %p65 = scmp.eq.s32.totalorder %s18, 0
    %p66 = por %p64, %p65
    %s68 = sadd.s32 %s67, 1
    %p71 = scmp.eq.s32.totalorder %s12, 1
    %p72 = scmp.ne.s32.totalorder %s67, %s69
    %p73 = scmp.eq.s32.totalorder %s12, 0
    %p74 = por %p72, %p73
    %p75 = scmp.ne.s32.totalorder %s67, %s69
    %p76 = scmp.eq.s32.totalorder %s17, 1
    %p77 = por %p75, %p76
    %p78 = scmp.ne.s32.totalorder %s69, %s70
    %p79 = scmp.eq.s32.totalorder %s17, 0
    %p80 = por %p78, %p79
    %p81 = scmp.ne.s32.totalorder %s69, %s70
    %p82 = scmp.eq.s32.totalorder %s18, 1
    %p83 = por %p81, %p82
    %p85 = scmp.ne.s32.totalorder %s70, %s84
    %p86 = scmp.eq.s32.totalorder %s18, 0
    %p87 = por %p85, %p86
    %s89 = sadd.s32 %s88, 1
    %p92 = scmp.eq.s32.totalorder %s12, 1
    %p93 = scmp.ne.s32.totalorder %s88, %s90
    %p94 = scmp.eq.s32.totalorder %s12, 0
    %p95 = por %p93, %p94
    %p96 = scmp.ne.s32.totalorder %s88, %s90
    %p97 = scmp.eq.s32.totalorder %s17, 1
    %p98 = por %p96, %p97
    %p99 = scmp.ne.s32.totalorder %s90, %s91
    %p100 = scmp.eq.s32.totalorder %s17, 0
    %p101 = por %p99, %p100
    %p102 = scmp.ne.s32.totalorder %s90, %s91
    %p103 = scmp.eq.s32.totalorder %s18, 1
    %p104 = por %p102, %p103
    %p106 = scmp.ne.s32.totalorder %s91, %s105
    %p107 = scmp.eq.s32.totalorder %s18, 0
    %p108 = por %p106, %p107
    %s109 = ssub.s32 %s12, %s19
    %p110 = scmp.eq.s32.totalorder %s109, 0
    %s112 = sadd.s32 %s111, 1
    %s113 = scalar_select %p110, %s111, %s112
    %p116 = pneg %p110
    %p117 = scmp.eq.s32.totalorder %s12, 1
    %p118 = por %p116, %p117
    %p119 = scmp.ne.s32.totalorder %s111, %s114
    %p120 = scmp.eq.s32.totalorder %s12, 0
    %p121 = por %p119, %p120
    %p122 = scmp.ne.s32.totalorder %s111, %s114
    %p123 = scmp.eq.s32.totalorder %s17, 1
    %p124 = por %p122, %p123
    %p125 = scmp.ne.s32.totalorder %s114, %s115
    %p126 = scmp.eq.s32.totalorder %s17, 0
    %p127 = por %p125, %p126
    %p128 = scmp.ne.s32.totalorder %s114, %s115
    %p129 = scmp.eq.s32.totalorder %s18, 1
    %p130 = por %p128, %p129
    %p132 = scmp.ne.s32.totalorder %s115, %s131
    %p133 = scmp.eq.s32.totalorder %s18, 0
    %p134 = por %p132, %p133
    %s135 = ssub.s32 %s12, %s19
    %p136 = scmp.eq.s32.totalorder %s135, 0
    %s138 = sadd.s32 %s137, 1
    %s139 = scalar_select %p136, %s137, %s138
    %p142 = pneg %p136
    %p143 = scmp.eq.s32.totalorder %s12, 1
    %p144 = por %p142, %p143
    %p145 = scmp.ne.s32.totalorder %s137, %s140
    %p146 = scmp.eq.s32.totalorder %s12, 0
    %p147 = por %p145, %p146
    %p148 = scmp.ne.s32.totalorder %s137, %s140
    %p149 = scmp.eq.s32.totalorder %s17, 1
    %p150 = por %p148, %p149
    %p151 = scmp.ne.s32.totalorder %s140, %s141
    %p152 = scmp.eq.s32.totalorder %s17, 0
    %p153 = por %p151, %p152
    %p154 = scmp.ne.s32.totalorder %s140, %s141
    %p155 = scmp.eq.s32.totalorder %s18, 1
    %p156 = por %p154, %p155
    %p158 = scmp.ne.s32.totalorder %s141, %s157
    %p159 = scmp.eq.s32.totalorder %s18, 0
    %p160 = por %p158, %p159
    %p161 = scmp.le.s32.totalorder 1, %s12
    %p162 = scmp.lt.s32.totalorder %s12, 3
    %p163 = pnand %p161, %p162
    %p164 = pneg %p163
    // Predicated region
    $region9: #{contracting_block_forward.4} parent=5 // pred_check
      _
    $region10: #{contracting_block_forward.4} parent=5 // pred_check_branch
      %166 = sbr.rel (%p163) target = $region12
    $region11: #{contracting_block_forward.4} parent=5 // pred_region
      %s167 = ssub.s32 %s12, 1
      // Predicated region
      $region13: #{contracting_block_forward.4} parent=11 // pred_check
        %p168 = pneg %p59
      $region14: #{contracting_block_forward.4} parent=11 // pred_check_branch
        %170 = sbr.rel (%p168) target = $region16
      $region15: #{contracting_block_forward.4} parent=11 // pred_region
        _
      $region16: #{contracting_block_forward.4} parent=11 // pred_fallthru
        _
      // Predicated region
      $region17: #{contracting_block_forward.4} parent=11 // pred_check
        %p171 = pneg %p80
      $region18: #{contracting_block_forward.4} parent=11 // pred_check_branch
        %173 = sbr.rel (%p171) target = $region20
      $region19: #{contracting_block_forward.4} parent=11 // pred_region
        _
      $region20: #{contracting_block_forward.4} parent=11 // pred_fallthru
        _
      // Predicated region
      $region21: #{contracting_block_forward.4} parent=11 // pred_check
        %p174 = pneg %p101
      $region22: #{contracting_block_forward.4} parent=11 // pred_check_branch
        %176 = sbr.rel (%p174) target = $region24
      $region23: #{contracting_block_forward.4} parent=11 // pred_region
        _
      $region24: #{contracting_block_forward.4} parent=11 // pred_fallthru
        _
    $region12: #{contracting_block_forward.4} parent=5 // pred_fallthru
      _
    %p177 = scmp.lt.s32.totalorder %s12, 2
    // Predicated region
    $region25: #{contracting_block_forward.4} parent=5 // pred_check
      %p178 = pneg %p177
    $region26: #{contracting_block_forward.4} parent=5 // pred_check_branch
      %180 = sbr.rel (%p178) target = $region28
    $region27: #{contracting_block_forward.4} parent=5 // pred_region
      // Predicated region
      $region29: #{contracting_block_forward.4} parent=27 // pred_check
        %p181 = pneg %p32
      $region30: #{contracting_block_forward.4} parent=27 // pred_check_branch
        %183 = sbr.rel (%p181) target = $region32
      $region31: #{contracting_block_forward.4} parent=27 // pred_region
        %p184 = scmp.lt.s32.totalorder %s12, 1
        %s185 = scalar_select %p184, %s12, 1
        %s186 = smul.addr %s185, 32
        %s187 = smul.addr %s186, 8
        %s188 = scalar_lea.vmem %s0, %s187
      $region32: #{contracting_block_forward.4} parent=27 // pred_fallthru
        _
    $region28: #{contracting_block_forward.4} parent=5 // pred_fallthru
      _
    %p189 = scmp.le.s32.totalorder 1, %s12
    %p190 = scmp.lt.s32.totalorder %s12, 3
    %p191 = pnand %p189, %p190
    %p192 = pneg %p191
    // Predicated region
    $region33: #{contracting_block_forward.4} parent=5 // pred_check
      _
    $region34: #{contracting_block_forward.4} parent=5 // pred_check_branch
      %194 = sbr.rel (%p191) target = $region36
    $region35: #{contracting_block_forward.4} parent=5 // pred_region
      %s195 = ssub.s32 %s12, 1
      %p196 = scmp.lt.s32.totalorder %s17, 1
      %s197 = scalar_select %p196, %s17, 1
      %s198 = smul.addr %s197, 32
      %s199 = smul.addr %s198, 8
      %s200 = scalar_lea.vmem %s0, %s199
      %p201 = pneg %p38
      %p202 = pneg %p35
      %p203 = pneg %p59
      %p204 = pneg %p56
      %p205 = pneg %p80
      %p206 = pneg %p77
      %p207 = pneg %p101
      %p208 = pneg %p98
      %p209 = pneg %p127
      %p210 = pneg %p124
      %p211 = scmp.lt.s32.totalorder %s17, 1
      %s212 = scalar_select %p211, %s17, 1
      %s213 = smul.addr %s212, 32
      %s214 = smul.addr %s213, 4
      %s215 = scalar_lea.vmem %s4, %s214
      %p216 = pneg %p153
      %p217 = pneg %p150
      %p218 = scmp.lt.s32.totalorder %s17, 1
      %s219 = scalar_select %p218, %s17, 1
      %s220 = smul.addr %s219, 2
      %s221 = scalar_lea.vmem %s5, %s220
      %p222 = scmp.lt.s32.totalorder %s17, 1
      %s223 = scalar_select %p222, %s17, 1
      %s224 = smul.addr %s223, 32
      %s225 = smul.addr %s224, 8
      %s226 = scalar_lea.vmem %s0, %s225
      %p227 = scmp.lt.s32.totalorder %s17, 1
      %s228 = scalar_select %p227, %s17, 1
      %s229 = smul.addr %s228, 32
      %s230 = smul.addr %s229, 4
      %s231 = scalar_lea.vmem %s4, %s230
      %p232 = scmp.lt.s32.totalorder %s17, 1
      %s233 = scalar_select %p232, %s17, 1
      %s234 = smul.addr %s233, 2
      %s235 = scalar_lea.vmem %s5, %s234
      %v237 = vld [vmem:[%s226] sm:$0xff]
      %v238 = vld [vmem:[%s226 + $0x8] sm:$0xff]
      %v239 = vld [vmem:[%s226 + $0x10] sm:$0xff]
      %v240 = vld [vmem:[%s226 + $0x18] sm:$0xff]
      %v241 = vld [vmem:[%s226 + $0x20] sm:$0xff]
      %v242 = vld [vmem:[%s226 + $0x28] sm:$0xff]
      %v243 = vld [vmem:[%s226 + $0x30] sm:$0xff]
      %v244 = vld [vmem:[%s226 + $0x38] sm:$0xff]
      %v245 = vld [vmem:[%s226 + $0x40] sm:$0xff]
      %v246 = vld [vmem:[%s226 + $0x48] sm:$0xff]
      %v247 = vld [vmem:[%s226 + $0x50] sm:$0xff]
      %v248 = vld [vmem:[%s226 + $0x58] sm:$0xff]
      %v249 = vld [vmem:[%s226 + $0x60] sm:$0xff]
      %v250 = vld [vmem:[%s226 + $0x68] sm:$0xff]
      %v251 = vld [vmem:[%s226 + $0x70] sm:$0xff]
      %v252 = vld [vmem:[%s226 + $0x78] sm:$0xff]
      %v253 = vld [vmem:[%s226 + $0x80] sm:$0xff]
      %v254 = vld [vmem:[%s226 + $0x88] sm:$0xff]
      %v255 = vld [vmem:[%s226 + $0x90] sm:$0xff]
      %v256 = vld [vmem:[%s226 + $0x98] sm:$0xff]
      %v257 = vld [vmem:[%s226 + $0xa0] sm:$0xff]
      %v258 = vld [vmem:[%s226 + $0xa8] sm:$0xff]
      %v259 = vld [vmem:[%s226 + $0xb0] sm:$0xff]
      %v260 = vld [vmem:[%s226 + $0xb8] sm:$0xff]
      %v261 = vld [vmem:[%s226 + $0xc0] sm:$0xff]
      %v262 = vld [vmem:[%s226 + $0xc8] sm:$0xff]
      %v263 = vld [vmem:[%s226 + $0xd0] sm:$0xff]
      %v264 = vld [vmem:[%s226 + $0xd8] sm:$0xff]
      %v265 = vld [vmem:[%s226 + $0xe0] sm:$0xff]
      %v266 = vld [vmem:[%s226 + $0xe8] sm:$0xff]
      %v267 = vld [vmem:[%s226 + $0xf0] sm:$0xff]
      %v268 = vld [vmem:[%s226 + $0xf8] sm:$0xff]
      %vm269 = vcmask 130048
      %270 = vst.msk [vmem:[#allocation2] sm:$0xff] %vm269, 0.0
      %271 = vst.msk [vmem:[#allocation2 + $0x8] sm:$0xff] %vm269, 0.0
      %vm272 = vcmask 123904
      %273 = vst.msk [vmem:[#allocation2 + $0x10] sm:$0x3] %vm272, 0.0
      %s274 = scalar_lea.vmem [#allocation2], 408
      %275 = vst.msk [vmem:[%s274] sm:$0xff] %vm269, 0.0
      %276 = vst.msk [vmem:[%s274 + $0x8] sm:$0xff] %vm269, 0.0
      %277 = vst.msk [vmem:[%s274 + $0x10] sm:$0x3] %vm272, 0.0
      %s278 = scalar_lea.vmem [#allocation2], 24
      %vm279 = vcmask 122880
      %280 = vst.msk [vmem:[%s278] sm:$0x1] %vm279, 0.0
      %281 = vst.msk [vmem:[%s278 + $0x18] sm:$0x1] %vm279, 0.0
      %282 = vst.msk [vmem:[%s278 + $0x30] sm:$0x1] %vm279, 0.0
      %283 = vst.msk [vmem:[%s278 + $0x48] sm:$0x1] %vm279, 0.0
      %284 = vst.msk [vmem:[%s278 + $0x60] sm:$0x1] %vm279, 0.0
      %285 = vst.msk [vmem:[%s278 + $0x78] sm:$0x1] %vm279, 0.0
      %286 = vst.msk [vmem:[%s278 + $0x90] sm:$0x1] %vm279, 0.0
      %287 = vst.msk [vmem:[%s278 + $0xa8] sm:$0x1] %vm279, 0.0
      %288 = vst.msk [vmem:[%s278 + $0xc0] sm:$0x1] %vm279, 0.0
      %289 = vst.msk [vmem:[%s278 + $0xd8] sm:$0x1] %vm279, 0.0
      %290 = vst.msk [vmem:[%s278 + $0xf0] sm:$0x1] %vm279, 0.0
      %291 = vst.msk [vmem:[%s278 + $0x108] sm:$0x1] %vm279, 0.0
      %292 = vst.msk [vmem:[%s278 + $0x120] sm:$0x1] %vm279, 0.0
      %293 = vst.msk [vmem:[%s278 + $0x138] sm:$0x1] %vm279, 0.0
      %294 = vst.msk [vmem:[%s278 + $0x150] sm:$0x1] %vm279, 0.0
      %295 = vst.msk [vmem:[%s278 + $0x168] sm:$0x1] %vm279, 0.0
      %296 = vst.msk [vmem:[%s278 + $0x11] sm:$0x1] %vm279, 0.0
      %297 = vst.msk [vmem:[%s278 + $0x29] sm:$0x1] %vm279, 0.0
      %298 = vst.msk [vmem:[%s278 + $0x41] sm:$0x1] %vm279, 0.0
      %299 = vst.msk [vmem:[%s278 + $0x59] sm:$0x1] %vm279, 0.0
      %300 = vst.msk [vmem:[%s278 + $0x71] sm:$0x1] %vm279, 0.0
      %301 = vst.msk [vmem:[%s278 + $0x89] sm:$0x1] %vm279, 0.0
      %302 = vst.msk [vmem:[%s278 + $0xa1] sm:$0x1] %vm279, 0.0
      %303 = vst.msk [vmem:[%s278 + $0xb9] sm:$0x1] %vm279, 0.0
      %304 = vst.msk [vmem:[%s278 + $0xd1] sm:$0x1] %vm279, 0.0
      %305 = vst.msk [vmem:[%s278 + $0xe9] sm:$0x1] %vm279, 0.0
      %306 = vst.msk [vmem:[%s278 + $0x101] sm:$0x1] %vm279, 0.0
      %307 = vst.msk [vmem:[%s278 + $0x119] sm:$0x1] %vm279, 0.0
      %308 = vst.msk [vmem:[%s278 + $0x131] sm:$0x1] %vm279, 0.0
      %309 = vst.msk [vmem:[%s278 + $0x149] sm:$0x1] %vm279, 0.0
      %310 = vst.msk [vmem:[%s278 + $0x161] sm:$0x1] %vm279, 0.0
      %311 = vst.msk [vmem:[%s278 + $0x179] sm:$0x1] %vm279, 0.0
      %312 = vst.msk [vmem:[%s278 + $0x1] sm:$0xff] %vm269, %v237
      %313 = vst.msk [vmem:[%s278 + $0x9] sm:$0xff] %vm269, %v238
      %314 = vst.msk [vmem:[%s278 + $0x19] sm:$0xff] %vm269, %v239
      %315 = vst.msk [vmem:[%s278 + $0x21] sm:$0xff] %vm269, %v240
      %316 = vst.msk [vmem:[%s278 + $0x31] sm:$0xff] %vm269, %v241
      %317 = vst.msk [vmem:[%s278 + $0x39] sm:$0xff] %vm269, %v242
      %318 = vst.msk [vmem:[%s278 + $0x49] sm:$0xff] %vm269, %v243
      %319 = vst.msk [vmem:[%s278 + $0x51] sm:$0xff] %vm269, %v244
      %320 = vst.msk [vmem:[%s278 + $0x61] sm:$0xff] %vm269, %v245
      %321 = vst.msk [vmem:[%s278 + $0x69] sm:$0xff] %vm269, %v246
      %322 = vst.msk [vmem:[%s278 + $0x79] sm:$0xff] %vm269, %v247
      %323 = vst.msk [vmem:[%s278 + $0x81] sm:$0xff] %vm269, %v248
      %324 = vst.msk [vmem:[%s278 + $0x91] sm:$0xff] %vm269, %v249
      %325 = vst.msk [vmem:[%s278 + $0x99] sm:$0xff] %vm269, %v250
      %326 = vst.msk [vmem:[%s278 + $0xa9] sm:$0xff] %vm269, %v251
      %327 = vst.msk [vmem:[%s278 + $0xb1] sm:$0xff] %vm269, %v252
      %328 = vst.msk [vmem:[%s278 + $0xc1] sm:$0xff] %vm269, %v253
      %329 = vst.msk [vmem:[%s278 + $0xc9] sm:$0xff] %vm269, %v254
      %330 = vst.msk [vmem:[%s278 + $0xd9] sm:$0xff] %vm269, %v255
      %331 = vst.msk [vmem:[%s278 + $0xe1] sm:$0xff] %vm269, %v256
      %332 = vst.msk [vmem:[%s278 + $0xf1] sm:$0xff] %vm269, %v257
      %333 = vst.msk [vmem:[%s278 + $0xf9] sm:$0xff] %vm269, %v258
      %334 = vst.msk [vmem:[%s278 + $0x109] sm:$0xff] %vm269, %v259
      %335 = vst.msk [vmem:[%s278 + $0x111] sm:$0xff] %vm269, %v260
      %336 = vst.msk [vmem:[%s278 + $0x121] sm:$0xff] %vm269, %v261
      %337 = vst.msk [vmem:[%s278 + $0x129] sm:$0xff] %vm269, %v262
      %338 = vst.msk [vmem:[%s278 + $0x139] sm:$0xff] %vm269, %v263
      %339 = vst.msk [vmem:[%s278 + $0x141] sm:$0xff] %vm269, %v264
      %340 = vst.msk [vmem:[%s278 + $0x151] sm:$0xff] %vm269, %v265
      %341 = vst.msk [vmem:[%s278 + $0x159] sm:$0xff] %vm269, %v266
      %342 = vst.msk [vmem:[%s278 + $0x169] sm:$0xff] %vm269, %v267
      %343 = vst.msk [vmem:[%s278 + $0x171] sm:$0xff] %vm269, %v268
      %v344 = vld [vmem:[#allocation2] sm:$0xff]
      %v345 = vld [vmem:[#allocation2 + $0x8] sm:$0xff]
      %v346 = vld [vmem:[#allocation2 + $0x18] sm:$0xff]
      %v347 = vld [vmem:[#allocation2 + $0x20] sm:$0xff]
      %v348 = vld [vmem:[#allocation2 + $0x30] sm:$0xff]
      %v349 = vld [vmem:[#allocation2 + $0x38] sm:$0xff]
      %v350 = vld [vmem:[#allocation2 + $0x48] sm:$0xff]
      %v351 = vld [vmem:[#allocation2 + $0x50] sm:$0xff]
      %v352 = vld [vmem:[#allocation2 + $0x60] sm:$0xff]
      %v353 = vld [vmem:[#allocation2 + $0x68] sm:$0xff]
      %v354 = vld [vmem:[#allocation2 + $0x78] sm:$0xff]
      %v355 = vld [vmem:[#allocation2 + $0x80] sm:$0xff]
      %v356 = vld [vmem:[#allocation2 + $0x90] sm:$0xff]
      %v357 = vld [vmem:[#allocation2 + $0x98] sm:$0xff]
      %v358 = vld [vmem:[#allocation2 + $0xa8] sm:$0xff]
      %v359 = vld [vmem:[#allocation2 + $0xb0] sm:$0xff]
      %v360 = vld [vmem:[#allocation2 + $0xc0] sm:$0xff]
      %v361 = vld [vmem:[#allocation2 + $0xc8] sm:$0xff]
      %v362 = vld [vmem:[#allocation2 + $0xd8] sm:$0xff]
      %v363 = vld [vmem:[#allocation2 + $0xe0] sm:$0xff]
      %v364 = vld [vmem:[#allocation2 + $0xf0] sm:$0xff]
      %v365 = vld [vmem:[#allocation2 + $0xf8] sm:$0xff]
      %v366 = vld [vmem:[#allocation2 + $0x108] sm:$0xff]
      %v367 = vld [vmem:[#allocation2 + $0x110] sm:$0xff]
      %v368 = vld [vmem:[#allocation2 + $0x120] sm:$0xff]
      %v369 = vld [vmem:[#allocation2 + $0x128] sm:$0xff]
      %v370 = vld [vmem:[#allocation2 + $0x138] sm:$0xff]
      %v371 = vld [vmem:[#allocation2 + $0x140] sm:$0xff]
      %v372 = vld [vmem:[#allocation2 + $0x150] sm:$0xff]
      %v373 = vld [vmem:[#allocation2 + $0x158] sm:$0xff]
      %v374 = vld [vmem:[#allocation2 + $0x168] sm:$0xff]
      %v375 = vld [vmem:[#allocation2 + $0x170] sm:$0xff]
      %v376 = vpack.c.bf16 %v344, %v344
      %v377 = vpack.c.bf16 %v345, %v345
      %v378 = vpack.c.bf16 %v346, %v346
      %v379 = vpack.c.bf16 %v347, %v347
      %v380 = vpack.c.bf16 %v348, %v348
      %v381 = vpack.c.bf16 %v349, %v349
      %v382 = vpack.c.bf16 %v350, %v350
      %v383 = vpack.c.bf16 %v351, %v351
      %v384 = vpack.c.bf16 %v352, %v352
      %v385 = vpack.c.bf16 %v353, %v353
      %v386 = vpack.c.bf16 %v354, %v354
      %v387 = vpack.c.bf16 %v355, %v355
      %v388 = vpack.c.bf16 %v356, %v356
      %v389 = vpack.c.bf16 %v357, %v357
      %v390 = vpack.c.bf16 %v358, %v358
      %v391 = vpack.c.bf16 %v359, %v359
      %v392 = vpack.c.bf16 %v360, %v360
      %v393 = vpack.c.bf16 %v361, %v361
      %v394 = vpack.c.bf16 %v362, %v362
      %v395 = vpack.c.bf16 %v363, %v363
      %v396 = vpack.c.bf16 %v364, %v364
      %v397 = vpack.c.bf16 %v365, %v365
      %v398 = vpack.c.bf16 %v366, %v366
      %v399 = vpack.c.bf16 %v367, %v367
      %v400 = vpack.c.bf16 %v368, %v368
      %v401 = vpack.c.bf16 %v369, %v369
      %v402 = vpack.c.bf16 %v370, %v370
      %v403 = vpack.c.bf16 %v371, %v371
      %v404 = vpack.c.bf16 %v372, %v372
      %v405 = vpack.c.bf16 %v373, %v373
      %v406 = vpack.c.bf16 %v374, %v374
      %v407 = vpack.c.bf16 %v375, %v375
      %vm408 = vcmask 125952
      %409 = vst.msk [vmem:[#allocation3] sm:$0xf] %vm408, %v376
      %410 = vst.msk [vmem:[#allocation3 + $0x8] sm:$0xf] %vm408, %v377
      %411 = vst.msk [vmem:[#allocation3 + $0x10] sm:$0xf] %vm408, %v378
      %412 = vst.msk [vmem:[#allocation3 + $0x18] sm:$0xf] %vm408, %v379
      %413 = vst.msk [vmem:[#allocation3 + $0x20] sm:$0xf] %vm408, %v380
      %414 = vst.msk [vmem:[#allocation3 + $0x28] sm:$0xf] %vm408, %v381
      %415 = vst.msk [vmem:[#allocation3 + $0x30] sm:$0xf] %vm408, %v382
      %416 = vst.msk [vmem:[#allocation3 + $0x38] sm:$0xf] %vm408, %v383
      %417 = vst.msk [vmem:[#allocation3 + $0x40] sm:$0xf] %vm408, %v384
      %418 = vst.msk [vmem:[#allocation3 + $0x48] sm:$0xf] %vm408, %v385
      %419 = vst.msk [vmem:[#allocation3 + $0x50] sm:$0xf] %vm408, %v386
      %420 = vst.msk [vmem:[#allocation3 + $0x58] sm:$0xf] %vm408, %v387
      %421 = vst.msk [vmem:[#allocation3 + $0x60] sm:$0xf] %vm408, %v388
      %422 = vst.msk [vmem:[#allocation3 + $0x68] sm:$0xf] %vm408, %v389
      %423 = vst.msk [vmem:[#allocation3 + $0x70] sm:$0xf] %vm408, %v390
      %424 = vst.msk [vmem:[#allocation3 + $0x78] sm:$0xf] %vm408, %v391
      %425 = vst.msk [vmem:[#allocation3 + $0x80] sm:$0xf] %vm408, %v392
      %426 = vst.msk [vmem:[#allocation3 + $0x88] sm:$0xf] %vm408, %v393
      %427 = vst.msk [vmem:[#allocation3 + $0x90] sm:$0xf] %vm408, %v394
      %428 = vst.msk [vmem:[#allocation3 + $0x98] sm:$0xf] %vm408, %v395
      %429 = vst.msk [vmem:[#allocation3 + $0xa0] sm:$0xf] %vm408, %v396
      %430 = vst.msk [vmem:[#allocation3 + $0xa8] sm:$0xf] %vm408, %v397
      %431 = vst.msk [vmem:[#allocation3 + $0xb0] sm:$0xf] %vm408, %v398
      %432 = vst.msk [vmem:[#allocation3 + $0xb8] sm:$0xf] %vm408, %v399
      %433 = vst.msk [vmem:[#allocation3 + $0xc0] sm:$0xf] %vm408, %v400
      %434 = vst.msk [vmem:[#allocation3 + $0xc8] sm:$0xf] %vm408, %v401
      %435 = vst.msk [vmem:[#allocation3 + $0xd0] sm:$0xf] %vm408, %v402
      %436 = vst.msk [vmem:[#allocation3 + $0xd8] sm:$0xf] %vm408, %v403
      %437 = vst.msk [vmem:[#allocation3 + $0xe0] sm:$0xf] %vm408, %v404
      %438 = vst.msk [vmem:[#allocation3 + $0xe8] sm:$0xf] %vm408, %v405
      %439 = vst.msk [vmem:[#allocation3 + $0xf0] sm:$0xf] %vm408, %v406
      %440 = vst.msk [vmem:[#allocation3 + $0xf8] sm:$0xf] %vm408, %v407
      %v441 = vld [vmem:[#allocation2 + $0x1] sm:$0xff]
      %v442 = vld [vmem:[#allocation2 + $0x9] sm:$0xff]
      %v443 = vld [vmem:[#allocation2 + $0x19] sm:$0xff]
      %v444 = vld [vmem:[#allocation2 + $0x21] sm:$0xff]
      %v445 = vld [vmem:[#allocation2 + $0x31] sm:$0xff]
      %v446 = vld [vmem:[#allocation2 + $0x39] sm:$0xff]
      %v447 = vld [vmem:[#allocation2 + $0x49] sm:$0xff]
      %v448 = vld [vmem:[#allocation2 + $0x51] sm:$0xff]
      %v449 = vld [vmem:[#allocation2 + $0x61] sm:$0xff]
      %v450 = vld [vmem:[#allocation2 + $0x69] sm:$0xff]
      %v451 = vld [vmem:[#allocation2 + $0x79] sm:$0xff]
      %v452 = vld [vmem:[#allocation2 + $0x81] sm:$0xff]
      %v453 = vld [vmem:[#allocation2 + $0x91] sm:$0xff]
      %v454 = vld [vmem:[#allocation2 + $0x99] sm:$0xff]
      %v455 = vld [vmem:[#allocation2 + $0xa9] sm:$0xff]
      %v456 = vld [vmem:[#allocation2 + $0xb1] sm:$0xff]
      %v457 = vld [vmem:[#allocation2 + $0xc1] sm:$0xff]
      %v458 = vld [vmem:[#allocation2 + $0xc9] sm:$0xff]
      %v459 = vld [vmem:[#allocation2 + $0xd9] sm:$0xff]
      %v460 = vld [vmem:[#allocation2 + $0xe1] sm:$0xff]
      %v461 = vld [vmem:[#allocation2 + $0xf1] sm:$0xff]
      %v462 = vld [vmem:[#allocation2 + $0xf9] sm:$0xff]
      %v463 = vld [vmem:[#allocation2 + $0x109] sm:$0xff]
      %v464 = vld [vmem:[#allocation2 + $0x111] sm:$0xff]
      %v465 = vld [vmem:[#allocation2 + $0x121] sm:$0xff]
      %v466 = vld [vmem:[#allocation2 + $0x129] sm:$0xff]
      %v467 = vld [vmem:[#allocation2 + $0x139] sm:$0xff]
      %v468 = vld [vmem:[#allocation2 + $0x141] sm:$0xff]
      %v469 = vld [vmem:[#allocation2 + $0x151] sm:$0xff]
      %v470 = vld [vmem:[#allocation2 + $0x159] sm:$0xff]
      %v471 = vld [vmem:[#allocation2 + $0x169] sm:$0xff]
      %v472 = vld [vmem:[#allocation2 + $0x171] sm:$0xff]
      %v473 = vpack.c.bf16 %v441, %v441
      %v474 = vpack.c.bf16 %v442, %v442
      %v475 = vpack.c.bf16 %v443, %v443
      %v476 = vpack.c.bf16 %v444, %v444
      %v477 = vpack.c.bf16 %v445, %v445
      %v478 = vpack.c.bf16 %v446, %v446
      %v479 = vpack.c.bf16 %v447, %v447
      %v480 = vpack.c.bf16 %v448, %v448
      %v481 = vpack.c.bf16 %v449, %v449
      %v482 = vpack.c.bf16 %v450, %v450
      %v483 = vpack.c.bf16 %v451, %v451
      %v484 = vpack.c.bf16 %v452, %v452
      %v485 = vpack.c.bf16 %v453, %v453
      %v486 = vpack.c.bf16 %v454, %v454
      %v487 = vpack.c.bf16 %v455, %v455
      %v488 = vpack.c.bf16 %v456, %v456
      %v489 = vpack.c.bf16 %v457, %v457
      %v490 = vpack.c.bf16 %v458, %v458
      %v491 = vpack.c.bf16 %v459, %v459
      %v492 = vpack.c.bf16 %v460, %v460
      %v493 = vpack.c.bf16 %v461, %v461
      %v494 = vpack.c.bf16 %v462, %v462
      %v495 = vpack.c.bf16 %v463, %v463
      %v496 = vpack.c.bf16 %v464, %v464
      %v497 = vpack.c.bf16 %v465, %v465
      %v498 = vpack.c.bf16 %v466, %v466
      %v499 = vpack.c.bf16 %v467, %v467
      %v500 = vpack.c.bf16 %v468, %v468
      %v501 = vpack.c.bf16 %v469, %v469
      %v502 = vpack.c.bf16 %v470, %v470
      %v503 = vpack.c.bf16 %v471, %v471
      %v504 = vpack.c.bf16 %v472, %v472
      %537 = vrot.lane.b32.xlu0 %v473, 16
      %v538 = vpop.permute.xlu0 %537
      %539 = vrot.lane.b32.xlu0 %v474, 16
      %v540 = vpop.permute.xlu0 %539
      %541 = vrot.lane.b32.xlu0 %v475, 16
      %v542 = vpop.permute.xlu0 %541
      %543 = vrot.lane.b32.xlu0 %v476, 16
      %v544 = vpop.permute.xlu0 %543
      %545 = vrot.lane.b32.xlu0 %v477, 16
      %v546 = vpop.permute.xlu0 %545
      %547 = vrot.lane.b32.xlu0 %v478, 16
      %v548 = vpop.permute.xlu0 %547
      %549 = vrot.lane.b32.xlu0 %v479, 16
      %v550 = vpop.permute.xlu0 %549
      %551 = vrot.lane.b32.xlu0 %v480, 16
      %v552 = vpop.permute.xlu0 %551
      %553 = vrot.lane.b32.xlu0 %v481, 16
      %v554 = vpop.permute.xlu0 %553
      %555 = vrot.lane.b32.xlu0 %v482, 16
      %v556 = vpop.permute.xlu0 %555
      %557 = vrot.lane.b32.xlu0 %v483, 16
      %v558 = vpop.permute.xlu0 %557
      %559 = vrot.lane.b32.xlu0 %v484, 16
      %v560 = vpop.permute.xlu0 %559
      %561 = vrot.lane.b32.xlu0 %v485, 16
      %v562 = vpop.permute.xlu0 %561
      %563 = vrot.lane.b32.xlu0 %v486, 16
      %v564 = vpop.permute.xlu0 %563
      %565 = vrot.lane.b32.xlu0 %v487, 16
      %v566 = vpop.permute.xlu0 %565
      %567 = vrot.lane.b32.xlu0 %v488, 16
      %v568 = vpop.permute.xlu0 %567
      %569 = vrot.lane.b32.xlu0 %v489, 16
      %v570 = vpop.permute.xlu0 %569
      %571 = vrot.lane.b32.xlu0 %v490, 16
      %v572 = vpop.permute.xlu0 %571
      %573 = vrot.lane.b32.xlu0 %v491, 16
      %v574 = vpop.permute.xlu0 %573
      %575 = vrot.lane.b32.xlu0 %v492, 16
      %v576 = vpop.permute.xlu0 %575
      %577 = vrot.lane.b32.xlu0 %v493, 16
      %v578 = vpop.permute.xlu0 %577
      %579 = vrot.lane.b32.xlu0 %v494, 16
      %v580 = vpop.permute.xlu0 %579
      %581 = vrot.lane.b32.xlu0 %v495, 16
      %v582 = vpop.permute.xlu0 %581
      %583 = vrot.lane.b32.xlu0 %v496, 16
      %v584 = vpop.permute.xlu0 %583
      %585 = vrot.lane.b32.xlu0 %v497, 16
      %v586 = vpop.permute.xlu0 %585
      %587 = vrot.lane.b32.xlu0 %v498, 16
      %v588 = vpop.permute.xlu0 %587
      %589 = vrot.lane.b32.xlu0 %v499, 16
      %v590 = vpop.permute.xlu0 %589
      %591 = vrot.lane.b32.xlu0 %v500, 16
      %v592 = vpop.permute.xlu0 %591
      %593 = vrot.lane.b32.xlu0 %v501, 16
      %v594 = vpop.permute.xlu0 %593
      %595 = vrot.lane.b32.xlu0 %v502, 16
      %v596 = vpop.permute.xlu0 %595
      %597 = vrot.lane.b32.xlu0 %v503, 16
      %v598 = vpop.permute.xlu0 %597
      %599 = vrot.lane.b32.xlu0 %v504, 16
      %v600 = vpop.permute.xlu0 %599
      %vm633 = vcmask 257152
      %634 = vst.msk [vmem:[#allocation3] sm:$0xf] %vm633, %v538
      %635 = vst.msk [vmem:[#allocation3 + $0x8] sm:$0xf] %vm633, %v540
      %636 = vst.msk [vmem:[#allocation3 + $0x10] sm:$0xf] %vm633, %v542
      %637 = vst.msk [vmem:[#allocation3 + $0x18] sm:$0xf] %vm633, %v544
      %638 = vst.msk [vmem:[#allocation3 + $0x20] sm:$0xf] %vm633, %v546
      %639 = vst.msk [vmem:[#allocation3 + $0x28] sm:$0xf] %vm633, %v548
      %640 = vst.msk [vmem:[#allocation3 + $0x30] sm:$0xf] %vm633, %v550
      %641 = vst.msk [vmem:[#allocation3 + $0x38] sm:$0xf] %vm633, %v552
      %642 = vst.msk [vmem:[#allocation3 + $0x40] sm:$0xf] %vm633, %v554
      %643 = vst.msk [vmem:[#allocation3 + $0x48] sm:$0xf] %vm633, %v556
      %644 = vst.msk [vmem:[#allocation3 + $0x50] sm:$0xf] %vm633, %v558
      %645 = vst.msk [vmem:[#allocation3 + $0x58] sm:$0xf] %vm633, %v560
      %646 = vst.msk [vmem:[#allocation3 + $0x60] sm:$0xf] %vm633, %v562
      %647 = vst.msk [vmem:[#allocation3 + $0x68] sm:$0xf] %vm633, %v564
      %648 = vst.msk [vmem:[#allocation3 + $0x70] sm:$0xf] %vm633, %v566
      %649 = vst.msk [vmem:[#allocation3 + $0x78] sm:$0xf] %vm633, %v568
      %650 = vst.msk [vmem:[#allocation3 + $0x80] sm:$0xf] %vm633, %v570
      %651 = vst.msk [vmem:[#allocation3 + $0x88] sm:$0xf] %vm633, %v572
      %652 = vst.msk [vmem:[#allocation3 + $0x90] sm:$0xf] %vm633, %v574
      %653 = vst.msk [vmem:[#allocation3 + $0x98] sm:$0xf] %vm633, %v576
      %654 = vst.msk [vmem:[#allocation3 + $0xa0] sm:$0xf] %vm633, %v578
      %655 = vst.msk [vmem:[#allocation3 + $0xa8] sm:$0xf] %vm633, %v580
      %656 = vst.msk [vmem:[#allocation3 + $0xb0] sm:$0xf] %vm633, %v582
      %657 = vst.msk [vmem:[#allocation3 + $0xb8] sm:$0xf] %vm633, %v584
      %658 = vst.msk [vmem:[#allocation3 + $0xc0] sm:$0xf] %vm633, %v586
      %659 = vst.msk [vmem:[#allocation3 + $0xc8] sm:$0xf] %vm633, %v588
      %660 = vst.msk [vmem:[#allocation3 + $0xd0] sm:$0xf] %vm633, %v590
      %661 = vst.msk [vmem:[#allocation3 + $0xd8] sm:$0xf] %vm633, %v592
      %662 = vst.msk [vmem:[#allocation3 + $0xe0] sm:$0xf] %vm633, %v594
      %663 = vst.msk [vmem:[#allocation3 + $0xe8] sm:$0xf] %vm633, %v596
      %664 = vst.msk [vmem:[#allocation3 + $0xf0] sm:$0xf] %vm633, %v598
      %665 = vst.msk [vmem:[#allocation3 + $0xf8] sm:$0xf] %vm633, %v600
      %v666 = vld [vmem:[#allocation2 + $0x2] sm:$0xff]
      %v667 = vld [vmem:[#allocation2 + $0xa] sm:$0xff]
      %v668 = vld [vmem:[#allocation2 + $0x1a] sm:$0xff]
      %v669 = vld [vmem:[#allocation2 + $0x22] sm:$0xff]
      %v670 = vld [vmem:[#allocation2 + $0x32] sm:$0xff]
      %v671 = vld [vmem:[#allocation2 + $0x3a] sm:$0xff]
      %v672 = vld [vmem:[#allocation2 + $0x4a] sm:$0xff]
      %v673 = vld [vmem:[#allocation2 + $0x52] sm:$0xff]
      %v674 = vld [vmem:[#allocation2 + $0x62] sm:$0xff]
      %v675 = vld [vmem:[#allocation2 + $0x6a] sm:$0xff]
      %v676 = vld [vmem:[#allocation2 + $0x7a] sm:$0xff]
      %v677 = vld [vmem:[#allocation2 + $0x82] sm:$0xff]
      %v678 = vld [vmem:[#allocation2 + $0x92] sm:$0xff]
      %v679 = vld [vmem:[#allocation2 + $0x9a] sm:$0xff]
      %v680 = vld [vmem:[#allocation2 + $0xaa] sm:$0xff]
      %v681 = vld [vmem:[#allocation2 + $0xb2] sm:$0xff]
      %v682 = vld [vmem:[#allocation2 + $0xc2] sm:$0xff]
      %v683 = vld [vmem:[#allocation2 + $0xca] sm:$0xff]
      %v684 = vld [vmem:[#allocation2 + $0xda] sm:$0xff]
      %v685 = vld [vmem:[#allocation2 + $0xe2] sm:$0xff]
      %v686 = vld [vmem:[#allocation2 + $0xf2] sm:$0xff]
      %v687 = vld [vmem:[#allocation2 + $0xfa] sm:$0xff]
      %v688 = vld [vmem:[#allocation2 + $0x10a] sm:$0xff]
      %v689 = vld [vmem:[#allocation2 + $0x112] sm:$0xff]
      %v690 = vld [vmem:[#allocation2 + $0x122] sm:$0xff]
      %v691 = vld [vmem:[#allocation2 + $0x12a] sm:$0xff]
      %v692 = vld [vmem:[#allocation2 + $0x13a] sm:$0xff]
      %v693 = vld [vmem:[#allocation2 + $0x142] sm:$0xff]
      %v694 = vld [vmem:[#allocation2 + $0x152] sm:$0xff]
      %v695 = vld [vmem:[#allocation2 + $0x15a] sm:$0xff]
      %v696 = vld [vmem:[#allocation2 + $0x16a] sm:$0xff]
      %v697 = vld [vmem:[#allocation2 + $0x172] sm:$0xff]
      %v698 = vpack.c.bf16 %v666, %v666
      %v699 = vpack.c.bf16 %v667, %v667
      %v700 = vpack.c.bf16 %v668, %v668
      %v701 = vpack.c.bf16 %v669, %v669
      %v702 = vpack.c.bf16 %v670, %v670
      %v703 = vpack.c.bf16 %v671, %v671
      %v704 = vpack.c.bf16 %v672, %v672
      %v705 = vpack.c.bf16 %v673, %v673
      %v706 = vpack.c.bf16 %v674, %v674
      %v707 = vpack.c.bf16 %v675, %v675
      %v708 = vpack.c.bf16 %v676, %v676
      %v709 = vpack.c.bf16 %v677, %v677
      %v710 = vpack.c.bf16 %v678, %v678
      %v711 = vpack.c.bf16 %v679, %v679
      %v712 = vpack.c.bf16 %v680, %v680
      %v713 = vpack.c.bf16 %v681, %v681
      %v714 = vpack.c.bf16 %v682, %v682
      %v715 = vpack.c.bf16 %v683, %v683
      %v716 = vpack.c.bf16 %v684, %v684
      %v717 = vpack.c.bf16 %v685, %v685
      %v718 = vpack.c.bf16 %v686, %v686
      %v719 = vpack.c.bf16 %v687, %v687
      %v720 = vpack.c.bf16 %v688, %v688
      %v721 = vpack.c.bf16 %v689, %v689
      %v722 = vpack.c.bf16 %v690, %v690
      %v723 = vpack.c.bf16 %v691, %v691
      %v724 = vpack.c.bf16 %v692, %v692
      %v725 = vpack.c.bf16 %v693, %v693
      %v726 = vpack.c.bf16 %v694, %v694
      %v727 = vpack.c.bf16 %v695, %v695
      %v728 = vpack.c.bf16 %v696, %v696
      %v729 = vpack.c.bf16 %v697, %v697
      %762 = vrot.lane.b32.xlu0 %v698, 32
      %v763 = vpop.permute.xlu0 %762
      %764 = vrot.lane.b32.xlu0 %v699, 32
      %v765 = vpop.permute.xlu0 %764
      %766 = vrot.lane.b32.xlu0 %v700, 32
      %v767 = vpop.permute.xlu0 %766
      %768 = vrot.lane.b32.xlu0 %v701, 32
      %v769 = vpop.permute.xlu0 %768
      %770 = vrot.lane.b32.xlu0 %v702, 32
      %v771 = vpop.permute.xlu0 %770
      %772 = vrot.lane.b32.xlu0 %v703, 32
      %v773 = vpop.permute.xlu0 %772
      %774 = vrot.lane.b32.xlu0 %v704, 32
      %v775 = vpop.permute.xlu0 %774
      %776 = vrot.lane.b32.xlu0 %v705, 32
      %v777 = vpop.permute.xlu0 %776
      %778 = vrot.lane.b32.xlu0 %v706, 32
      %v779 = vpop.permute.xlu0 %778
      %780 = vrot.lane.b32.xlu0 %v707, 32
      %v781 = vpop.permute.xlu0 %780
      %782 = vrot.lane.b32.xlu0 %v708, 32
      %v783 = vpop.permute.xlu0 %782
      %784 = vrot.lane.b32.xlu0 %v709, 32
      %v785 = vpop.permute.xlu0 %784
      %786 = vrot.lane.b32.xlu0 %v710, 32
      %v787 = vpop.permute.xlu0 %786
      %788 = vrot.lane.b32.xlu0 %v711, 32
      %v789 = vpop.permute.xlu0 %788
      %790 = vrot.lane.b32.xlu0 %v712, 32
      %v791 = vpop.permute.xlu0 %790
      %792 = vrot.lane.b32.xlu0 %v713, 32
      %v793 = vpop.permute.xlu0 %792
      %794 = vrot.lane.b32.xlu0 %v714, 32
      %v795 = vpop.permute.xlu0 %794
      %796 = vrot.lane.b32.xlu0 %v715, 32
      %v797 = vpop.permute.xlu0 %796
      %798 = vrot.lane.b32.xlu0 %v716, 32
      %v799 = vpop.permute.xlu0 %798
      %800 = vrot.lane.b32.xlu0 %v717, 32
      %v801 = vpop.permute.xlu0 %800
      %802 = vrot.lane.b32.xlu0 %v718, 32
      %v803 = vpop.permute.xlu0 %802
      %804 = vrot.lane.b32.xlu0 %v719, 32
      %v805 = vpop.permute.xlu0 %804
      %806 = vrot.lane.b32.xlu0 %v720, 32
      %v807 = vpop.permute.xlu0 %806
      %808 = vrot.lane.b32.xlu0 %v721, 32
      %v809 = vpop.permute.xlu0 %808
      %810 = vrot.lane.b32.xlu0 %v722, 32
      %v811 = vpop.permute.xlu0 %810
      %812 = vrot.lane.b32.xlu0 %v723, 32
      %v813 = vpop.permute.xlu0 %812
      %814 = vrot.lane.b32.xlu0 %v724, 32
      %v815 = vpop.permute.xlu0 %814
      %816 = vrot.lane.b32.xlu0 %v725, 32
      %v817 = vpop.permute.xlu0 %816
      %818 = vrot.lane.b32.xlu0 %v726, 32
      %v819 = vpop.permute.xlu0 %818
      %820 = vrot.lane.b32.xlu0 %v727, 32
      %v821 = vpop.permute.xlu0 %820
      %822 = vrot.lane.b32.xlu0 %v728, 32
      %v823 = vpop.permute.xlu0 %822
      %824 = vrot.lane.b32.xlu0 %v729, 32
      %v825 = vpop.permute.xlu0 %824
      %vm858 = vcmask 388352
      %859 = vst.msk [vmem:[#allocation3] sm:$0xf] %vm858, %v763
      %860 = vst.msk [vmem:[#allocation3 + $0x8] sm:$0xf] %vm858, %v765
      %861 = vst.msk [vmem:[#allocation3 + $0x10] sm:$0xf] %vm858, %v767
      %862 = vst.msk [vmem:[#allocation3 + $0x18] sm:$0xf] %vm858, %v769
      %863 = vst.msk [vmem:[#allocation3 + $0x20] sm:$0xf] %vm858, %v771
      %864 = vst.msk [vmem:[#allocation3 + $0x28] sm:$0xf] %vm858, %v773
      %865 = vst.msk [vmem:[#allocation3 + $0x30] sm:$0xf] %vm858, %v775
      %866 = vst.msk [vmem:[#allocation3 + $0x38] sm:$0xf] %vm858, %v777
      %867 = vst.msk [vmem:[#allocation3 + $0x40] sm:$0xf] %vm858, %v779
      %868 = vst.msk [vmem:[#allocation3 + $0x48] sm:$0xf] %vm858, %v781
      %869 = vst.msk [vmem:[#allocation3 + $0x50] sm:$0xf] %vm858, %v783
      %870 = vst.msk [vmem:[#allocation3 + $0x58] sm:$0xf] %vm858, %v785
      %871 = vst.msk [vmem:[#allocation3 + $0x60] sm:$0xf] %vm858, %v787
      %872 = vst.msk [vmem:[#allocation3 + $0x68] sm:$0xf] %vm858, %v789
      %873 = vst.msk [vmem:[#allocation3 + $0x70] sm:$0xf] %vm858, %v791
      %874 = vst.msk [vmem:[#allocation3 + $0x78] sm:$0xf] %vm858, %v793
      %875 = vst.msk [vmem:[#allocation3 + $0x80] sm:$0xf] %vm858, %v795
      %876 = vst.msk [vmem:[#allocation3 + $0x88] sm:$0xf] %vm858, %v797
      %877 = vst.msk [vmem:[#allocation3 + $0x90] sm:$0xf] %vm858, %v799
      %878 = vst.msk [vmem:[#allocation3 + $0x98] sm:$0xf] %vm858, %v801
      %879 = vst.msk [vmem:[#allocation3 + $0xa0] sm:$0xf] %vm858, %v803
      %880 = vst.msk [vmem:[#allocation3 + $0xa8] sm:$0xf] %vm858, %v805
      %881 = vst.msk [vmem:[#allocation3 + $0xb0] sm:$0xf] %vm858, %v807
      %882 = vst.msk [vmem:[#allocation3 + $0xb8] sm:$0xf] %vm858, %v809
      %883 = vst.msk [vmem:[#allocation3 + $0xc0] sm:$0xf] %vm858, %v811
      %884 = vst.msk [vmem:[#allocation3 + $0xc8] sm:$0xf] %vm858, %v813
      %885 = vst.msk [vmem:[#allocation3 + $0xd0] sm:$0xf] %vm858, %v815
      %886 = vst.msk [vmem:[#allocation3 + $0xd8] sm:$0xf] %vm858, %v817
      %887 = vst.msk [vmem:[#allocation3 + $0xe0] sm:$0xf] %vm858, %v819
      %888 = vst.msk [vmem:[#allocation3 + $0xe8] sm:$0xf] %vm858, %v821
      %889 = vst.msk [vmem:[#allocation3 + $0xf0] sm:$0xf] %vm858, %v823
      %890 = vst.msk [vmem:[#allocation3 + $0xf8] sm:$0xf] %vm858, %v825
      %v891 = vld [vmem:[%s278] sm:$0xff]
      %v892 = vld [vmem:[%s278 + $0x8] sm:$0xff]
      %v893 = vld [vmem:[%s278 + $0x18] sm:$0xff]
      %v894 = vld [vmem:[%s278 + $0x20] sm:$0xff]
      %v895 = vld [vmem:[%s278 + $0x30] sm:$0xff]
      %v896 = vld [vmem:[%s278 + $0x38] sm:$0xff]
      %v897 = vld [vmem:[%s278 + $0x48] sm:$0xff]
      %v898 = vld [vmem:[%s278 + $0x50] sm:$0xff]
      %v899 = vld [vmem:[%s278 + $0x60] sm:$0xff]
      %v900 = vld [vmem:[%s278 + $0x68] sm:$0xff]
      %v901 = vld [vmem:[%s278 + $0x78] sm:$0xff]
      %v902 = vld [vmem:[%s278 + $0x80] sm:$0xff]
      %v903 = vld [vmem:[%s278 + $0x90] sm:$0xff]
      %v904 = vld [vmem:[%s278 + $0x98] sm:$0xff]
      %v905 = vld [vmem:[%s278 + $0xa8] sm:$0xff]
      %v906 = vld [vmem:[%s278 + $0xb0] sm:$0xff]
      %v907 = vld [vmem:[%s278 + $0xc0] sm:$0xff]
      %v908 = vld [vmem:[%s278 + $0xc8] sm:$0xff]
      %v909 = vld [vmem:[%s278 + $0xd8] sm:$0xff]
      %v910 = vld [vmem:[%s278 + $0xe0] sm:$0xff]
      %v911 = vld [vmem:[%s278 + $0xf0] sm:$0xff]
      %v912 = vld [vmem:[%s278 + $0xf8] sm:$0xff]
      %v913 = vld [vmem:[%s278 + $0x108] sm:$0xff]
      %v914 = vld [vmem:[%s278 + $0x110] sm:$0xff]
      %v915 = vld [vmem:[%s278 + $0x120] sm:$0xff]
      %v916 = vld [vmem:[%s278 + $0x128] sm:$0xff]
      %v917 = vld [vmem:[%s278 + $0x138] sm:$0xff]
      %v918 = vld [vmem:[%s278 + $0x140] sm:$0xff]
      %v919 = vld [vmem:[%s278 + $0x150] sm:$0xff]
      %v920 = vld [vmem:[%s278 + $0x158] sm:$0xff]
      %v921 = vld [vmem:[%s278 + $0x168] sm:$0xff]
      %v922 = vld [vmem:[%s278 + $0x170] sm:$0xff]
      %v923 = vpack.c.bf16 %v891, %v891
      %v924 = vpack.c.bf16 %v892, %v892
      %v925 = vpack.c.bf16 %v893, %v893
      %v926 = vpack.c.bf16 %v894, %v894
      %v927 = vpack.c.bf16 %v895, %v895
      %v928 = vpack.c.bf16 %v896, %v896
      %v929 = vpack.c.bf16 %v897, %v897
      %v930 = vpack.c.bf16 %v898, %v898
      %v931 = vpack.c.bf16 %v899, %v899
      %v932 = vpack.c.bf16 %v900, %v900
      %v933 = vpack.c.bf16 %v901, %v901
      %v934 = vpack.c.bf16 %v902, %v902
      %v935 = vpack.c.bf16 %v903, %v903
      %v936 = vpack.c.bf16 %v904, %v904
      %v937 = vpack.c.bf16 %v905, %v905
      %v938 = vpack.c.bf16 %v906, %v906
      %v939 = vpack.c.bf16 %v907, %v907
      %v940 = vpack.c.bf16 %v908, %v908
      %v941 = vpack.c.bf16 %v909, %v909
      %v942 = vpack.c.bf16 %v910, %v910
      %v943 = vpack.c.bf16 %v911, %v911
      %v944 = vpack.c.bf16 %v912, %v912
      %v945 = vpack.c.bf16 %v913, %v913
      %v946 = vpack.c.bf16 %v914, %v914
      %v947 = vpack.c.bf16 %v915, %v915
      %v948 = vpack.c.bf16 %v916, %v916
      %v949 = vpack.c.bf16 %v917, %v917
      %v950 = vpack.c.bf16 %v918, %v918
      %v951 = vpack.c.bf16 %v919, %v919
      %v952 = vpack.c.bf16 %v920, %v920
      %v953 = vpack.c.bf16 %v921, %v921
      %v954 = vpack.c.bf16 %v922, %v922
      %987 = vrot.lane.b32.xlu0 %v923, 48
      %v988 = vpop.permute.xlu0 %987
      %989 = vrot.lane.b32.xlu0 %v924, 48
      %v990 = vpop.permute.xlu0 %989
      %991 = vrot.lane.b32.xlu0 %v925, 48
      %v992 = vpop.permute.xlu0 %991
      %993 = vrot.lane.b32.xlu0 %v926, 48
      %v994 = vpop.permute.xlu0 %993
      %995 = vrot.lane.b32.xlu0 %v927, 48
      %v996 = vpop.permute.xlu0 %995
      %997 = vrot.lane.b32.xlu0 %v928, 48
      %v998 = vpop.permute.xlu0 %997
      %999 = vrot.lane.b32.xlu0 %v929, 48
      %v1000 = vpop.permute.xlu0 %999
      %1001 = vrot.lane.b32.xlu0 %v930, 48
      %v1002 = vpop.permute.xlu0 %1001
      %1003 = vrot.lane.b32.xlu0 %v931, 48
      %v1004 = vpop.permute.xlu0 %1003
      %1005 = vrot.lane.b32.xlu0 %v932, 48
      %v1006 = vpop.permute.xlu0 %1005
      %1007 = vrot.lane.b32.xlu0 %v933, 48
      %v1008 = vpop.permute.xlu0 %1007
      %1009 = vrot.lane.b32.xlu0 %v934, 48
      %v1010 = vpop.permute.xlu0 %1009
      %1011 = vrot.lane.b32.xlu0 %v935, 48
      %v1012 = vpop.permute.xlu0 %1011
      %1013 = vrot.lane.b32.xlu0 %v936, 48
      %v1014 = vpop.permute.xlu0 %1013
      %1015 = vrot.lane.b32.xlu0 %v937, 48
      %v1016 = vpop.permute.xlu0 %1015
      %1017 = vrot.lane.b32.xlu0 %v938, 48
      %v1018 = vpop.permute.xlu0 %1017
      %1019 = vrot.lane.b32.xlu0 %v939, 48
      %v1020 = vpop.permute.xlu0 %1019
      %1021 = vrot.lane.b32.xlu0 %v940, 48
      %v1022 = vpop.permute.xlu0 %1021
      %1023 = vrot.lane.b32.xlu0 %v941, 48
      %v1024 = vpop.permute.xlu0 %1023
      %1025 = vrot.lane.b32.xlu0 %v942, 48
      %v1026 = vpop.permute.xlu0 %1025
      %1027 = vrot.lane.b32.xlu0 %v943, 48
      %v1028 = vpop.permute.xlu0 %1027
      %1029 = vrot.lane.b32.xlu0 %v944, 48
      %v1030 = vpop.permute.xlu0 %1029
      %1031 = vrot.lane.b32.xlu0 %v945, 48
      %v1032 = vpop.permute.xlu0 %1031
      %1033 = vrot.lane.b32.xlu0 %v946, 48
      %v1034 = vpop.permute.xlu0 %1033
      %1035 = vrot.lane.b32.xlu0 %v947, 48
      %v1036 = vpop.permute.xlu0 %1035
      %1037 = vrot.lane.b32.xlu0 %v948, 48
      %v1038 = vpop.permute.xlu0 %1037
      %1039 = vrot.lane.b32.xlu0 %v949, 48
      %v1040 = vpop.permute.xlu0 %1039
      %1041 = vrot.lane.b32.xlu0 %v950, 48
      %v1042 = vpop.permute.xlu0 %1041
      %1043 = vrot.lane.b32.xlu0 %v951, 48
      %v1044 = vpop.permute.xlu0 %1043
      %1045 = vrot.lane.b32.xlu0 %v952, 48
      %v1046 = vpop.permute.xlu0 %1045
      %1047 = vrot.lane.b32.xlu0 %v953, 48
      %v1048 = vpop.permute.xlu0 %1047
      %1049 = vrot.lane.b32.xlu0 %v954, 48
      %v1050 = vpop.permute.xlu0 %1049
      %vm1083 = vcmask 519552
      %1084 = vst.msk [vmem:[#allocation3] sm:$0xf] %vm1083, %v988
      %1085 = vst.msk [vmem:[#allocation3 + $0x8] sm:$0xf] %vm1083, %v990
      %1086 = vst.msk [vmem:[#allocation3 + $0x10] sm:$0xf] %vm1083, %v992
      %1087 = vst.msk [vmem:[#allocation3 + $0x18] sm:$0xf] %vm1083, %v994
      %1088 = vst.msk [vmem:[#allocation3 + $0x20] sm:$0xf] %vm1083, %v996
      %1089 = vst.msk [vmem:[#allocation3 + $0x28] sm:$0xf] %vm1083, %v998
      %1090 = vst.msk [vmem:[#allocation3 + $0x30] sm:$0xf] %vm1083, %v1000
      %1091 = vst.msk [vmem:[#allocation3 + $0x38] sm:$0xf] %vm1083, %v1002
      %1092 = vst.msk [vmem:[#allocation3 + $0x40] sm:$0xf] %vm1083, %v1004
      %1093 = vst.msk [vmem:[#allocation3 + $0x48] sm:$0xf] %vm1083, %v1006
      %1094 = vst.msk [vmem:[#allocation3 + $0x50] sm:$0xf] %vm1083, %v1008
      %1095 = vst.msk [vmem:[#allocation3 + $0x58] sm:$0xf] %vm1083, %v1010
      %1096 = vst.msk [vmem:[#allocation3 + $0x60] sm:$0xf] %vm1083, %v1012
      %1097 = vst.msk [vmem:[#allocation3 + $0x68] sm:$0xf] %vm1083, %v1014
      %1098 = vst.msk [vmem:[#allocation3 + $0x70] sm:$0xf] %vm1083, %v1016
      %1099 = vst.msk [vmem:[#allocation3 + $0x78] sm:$0xf] %vm1083, %v1018
      %1100 = vst.msk [vmem:[#allocation3 + $0x80] sm:$0xf] %vm1083, %v1020
      %1101 = vst.msk [vmem:[#allocation3 + $0x88] sm:$0xf] %vm1083, %v1022
      %1102 = vst.msk [vmem:[#allocation3 + $0x90] sm:$0xf] %vm1083, %v1024
      %1103 = vst.msk [vmem:[#allocation3 + $0x98] sm:$0xf] %vm1083, %v1026
      %1104 = vst.msk [vmem:[#allocation3 + $0xa0] sm:$0xf] %vm1083, %v1028
      %1105 = vst.msk [vmem:[#allocation3 + $0xa8] sm:$0xf] %vm1083, %v1030
      %1106 = vst.msk [vmem:[#allocation3 + $0xb0] sm:$0xf] %vm1083, %v1032
      %1107 = vst.msk [vmem:[#allocation3 + $0xb8] sm:$0xf] %vm1083, %v1034
      %1108 = vst.msk [vmem:[#allocation3 + $0xc0] sm:$0xf] %vm1083, %v1036
      %1109 = vst.msk [vmem:[#allocation3 + $0xc8] sm:$0xf] %vm1083, %v1038
      %1110 = vst.msk [vmem:[#allocation3 + $0xd0] sm:$0xf] %vm1083, %v1040
      %1111 = vst.msk [vmem:[#allocation3 + $0xd8] sm:$0xf] %vm1083, %v1042
      %1112 = vst.msk [vmem:[#allocation3 + $0xe0] sm:$0xf] %vm1083, %v1044
      %1113 = vst.msk [vmem:[#allocation3 + $0xe8] sm:$0xf] %vm1083, %v1046
      %1114 = vst.msk [vmem:[#allocation3 + $0xf0] sm:$0xf] %vm1083, %v1048
      %1115 = vst.msk [vmem:[#allocation3 + $0xf8] sm:$0xf] %vm1083, %v1050
      %v1116 = vld [vmem:[%s278 + $0x1] sm:$0xff]
      %v1117 = vld [vmem:[%s278 + $0x9] sm:$0xff]
      %v1118 = vld [vmem:[%s278 + $0x19] sm:$0xff]
      %v1119 = vld [vmem:[%s278 + $0x21] sm:$0xff]
      %v1120 = vld [vmem:[%s278 + $0x31] sm:$0xff]
      %v1121 = vld [vmem:[%s278 + $0x39] sm:$0xff]
      %v1122 = vld [vmem:[%s278 + $0x49] sm:$0xff]
      %v1123 = vld [vmem:[%s278 + $0x51] sm:$0xff]
      %v1124 = vld [vmem:[%s278 + $0x61] sm:$0xff]
      %v1125 = vld [vmem:[%s278 + $0x69] sm:$0xff]
      %v1126 = vld [vmem:[%s278 + $0x79] sm:$0xff]
      %v1127 = vld [vmem:[%s278 + $0x81] sm:$0xff]
      %v1128 = vld [vmem:[%s278 + $0x91] sm:$0xff]
      %v1129 = vld [vmem:[%s278 + $0x99] sm:$0xff]
      %v1130 = vld [vmem:[%s278 + $0xa9] sm:$0xff]
      %v1131 = vld [vmem:[%s278 + $0xb1] sm:$0xff]
      %v1132 = vld [vmem:[%s278 + $0xc1] sm:$0xff]
      %v1133 = vld [vmem:[%s278 + $0xc9] sm:$0xff]
      %v1134 = vld [vmem:[%s278 + $0xd9] sm:$0xff]
      %v1135 = vld [vmem:[%s278 + $0xe1] sm:$0xff]
      %v1136 = vld [vmem:[%s278 + $0xf1] sm:$0xff]
      %v1137 = vld [vmem:[%s278 + $0xf9] sm:$0xff]
      %v1138 = vld [vmem:[%s278 + $0x109] sm:$0xff]
      %v1139 = vld [vmem:[%s278 + $0x111] sm:$0xff]
      %v1140 = vld [vmem:[%s278 + $0x121] sm:$0xff]
      %v1141 = vld [vmem:[%s278 + $0x129] sm:$0xff]
      %v1142 = vld [vmem:[%s278 + $0x139] sm:$0xff]
      %v1143 = vld [vmem:[%s278 + $0x141] sm:$0xff]
      %v1144 = vld [vmem:[%s278 + $0x151] sm:$0xff]
      %v1145 = vld [vmem:[%s278 + $0x159] sm:$0xff]
      %v1146 = vld [vmem:[%s278 + $0x169] sm:$0xff]
      %v1147 = vld [vmem:[%s278 + $0x171] sm:$0xff]
      %v1148 = vpack.c.bf16 %v1116, %v1116
      %v1149 = vpack.c.bf16 %v1117, %v1117
      %v1150 = vpack.c.bf16 %v1118, %v1118
      %v1151 = vpack.c.bf16 %v1119, %v1119
      %v1152 = vpack.c.bf16 %v1120, %v1120
      %v1153 = vpack.c.bf16 %v1121, %v1121
      %v1154 = vpack.c.bf16 %v1122, %v1122
      %v1155 = vpack.c.bf16 %v1123, %v1123
      %v1156 = vpack.c.bf16 %v1124, %v1124
      %v1157 = vpack.c.bf16 %v1125, %v1125
      %v1158 = vpack.c.bf16 %v1126, %v1126
      %v1159 = vpack.c.bf16 %v1127, %v1127
      %v1160 = vpack.c.bf16 %v1128, %v1128
      %v1161 = vpack.c.bf16 %v1129, %v1129
      %v1162 = vpack.c.bf16 %v1130, %v1130
      %v1163 = vpack.c.bf16 %v1131, %v1131
      %v1164 = vpack.c.bf16 %v1132, %v1132
      %v1165 = vpack.c.bf16 %v1133, %v1133
      %v1166 = vpack.c.bf16 %v1134, %v1134
      %v1167 = vpack.c.bf16 %v1135, %v1135
      %v1168 = vpack.c.bf16 %v1136, %v1136
      %v1169 = vpack.c.bf16 %v1137, %v1137
      %v1170 = vpack.c.bf16 %v1138, %v1138
      %v1171 = vpack.c.bf16 %v1139, %v1139
      %v1172 = vpack.c.bf16 %v1140, %v1140
      %v1173 = vpack.c.bf16 %v1141, %v1141
      %v1174 = vpack.c.bf16 %v1142, %v1142
      %v1175 = vpack.c.bf16 %v1143, %v1143
      %v1176 = vpack.c.bf16 %v1144, %v1144
      %v1177 = vpack.c.bf16 %v1145, %v1145
      %v1178 = vpack.c.bf16 %v1146, %v1146
      %v1179 = vpack.c.bf16 %v1147, %v1147
      %1212 = vrot.lane.b32.xlu0 %v1148, 64
      %v1213 = vpop.permute.xlu0 %1212
      %1214 = vrot.lane.b32.xlu0 %v1149, 64
      %v1215 = vpop.permute.xlu0 %1214
      %1216 = vrot.lane.b32.xlu0 %v1150, 64
      %v1217 = vpop.permute.xlu0 %1216
      %1218 = vrot.lane.b32.xlu0 %v1151, 64
      %v1219 = vpop.permute.xlu0 %1218
      %1220 = vrot.lane.b32.xlu0 %v1152, 64
      %v1221 = vpop.permute.xlu0 %1220
      %1222 = vrot.lane.b32.xlu0 %v1153, 64
      %v1223 = vpop.permute.xlu0 %1222
      %1224 = vrot.lane.b32.xlu0 %v1154, 64
      %v1225 = vpop.permute.xlu0 %1224
      %1226 = vrot.lane.b32.xlu0 %v1155, 64
      %v1227 = vpop.permute.xlu0 %1226
      %1228 = vrot.lane.b32.xlu0 %v1156, 64
      %v1229 = vpop.permute.xlu0 %1228
      %1230 = vrot.lane.b32.xlu0 %v1157, 64
      %v1231 = vpop.permute.xlu0 %1230
      %1232 = vrot.lane.b32.xlu0 %v1158, 64
      %v1233 = vpop.permute.xlu0 %1232
      %1234 = vrot.lane.b32.xlu0 %v1159, 64
      %v1235 = vpop.permute.xlu0 %1234
      %1236 = vrot.lane.b32.xlu0 %v1160, 64
      %v1237 = vpop.permute.xlu0 %1236
      %1238 = vrot.lane.b32.xlu0 %v1161, 64
      %v1239 = vpop.permute.xlu0 %1238
      %1240 = vrot.lane.b32.xlu0 %v1162, 64
      %v1241 = vpop.permute.xlu0 %1240
      %1242 = vrot.lane.b32.xlu0 %v1163, 64
      %v1243 = vpop.permute.xlu0 %1242
      %1244 = vrot.lane.b32.xlu0 %v1164, 64
      %v1245 = vpop.permute.xlu0 %1244
      %1246 = vrot.lane.b32.xlu0 %v1165, 64
      %v1247 = vpop.permute.xlu0 %1246
      %1248 = vrot.lane.b32.xlu0 %v1166, 64
      %v1249 = vpop.permute.xlu0 %1248
      %1250 = vrot.lane.b32.xlu0 %v1167, 64
      %v1251 = vpop.permute.xlu0 %1250
      %1252 = vrot.lane.b32.xlu0 %v1168, 64
      %v1253 = vpop.permute.xlu0 %1252
      %1254 = vrot.lane.b32.xlu0 %v1169, 64
      %v1255 = vpop.permute.xlu0 %1254
      %1256 = vrot.lane.b32.xlu0 %v1170, 64
      %v1257 = vpop.permute.xlu0 %1256
      %1258 = vrot.lane.b32.xlu0 %v1171, 64
      %v1259 = vpop.permute.xlu0 %1258
      %1260 = vrot.lane.b32.xlu0 %v1172, 64
      %v1261 = vpop.permute.xlu0 %1260
      %1262 = vrot.lane.b32.xlu0 %v1173, 64
      %v1263 = vpop.permute.xlu0 %1262
      %1264 = vrot.lane.b32.xlu0 %v1174, 64
      %v1265 = vpop.permute.xlu0 %1264
      %1266 = vrot.lane.b32.xlu0 %v1175, 64
      %v1267 = vpop.permute.xlu0 %1266
      %1268 = vrot.lane.b32.xlu0 %v1176, 64
      %v1269 = vpop.permute.xlu0 %1268
      %1270 = vrot.lane.b32.xlu0 %v1177, 64
      %v1271 = vpop.permute.xlu0 %1270
      %1272 = vrot.lane.b32.xlu0 %v1178, 64
      %v1273 = vpop.permute.xlu0 %1272
      %1274 = vrot.lane.b32.xlu0 %v1179, 64
      %v1275 = vpop.permute.xlu0 %1274
      %vm1308 = vcmask 650752
      %1309 = vst.msk [vmem:[#allocation3] sm:$0xf] %vm1308, %v1213
      %1310 = vst.msk [vmem:[#allocation3 + $0x8] sm:$0xf] %vm1308, %v1215
      %1311 = vst.msk [vmem:[#allocation3 + $0x10] sm:$0xf] %vm1308, %v1217
      %1312 = vst.msk [vmem:[#allocation3 + $0x18] sm:$0xf] %vm1308, %v1219
      %1313 = vst.msk [vmem:[#allocation3 + $0x20] sm:$0xf] %vm1308, %v1221
      %1314 = vst.msk [vmem:[#allocation3 + $0x28] sm:$0xf] %vm1308, %v1223
      %1315 = vst.msk [vmem:[#allocation3 + $0x30] sm:$0xf] %vm1308, %v1225
      %1316 = vst.msk [vmem:[#allocation3 + $0x38] sm:$0xf] %vm1308, %v1227
      %1317 = vst.msk [vmem:[#allocation3 + $0x40] sm:$0xf] %vm1308, %v1229
      %1318 = vst.msk [vmem:[#allocation3 + $0x48] sm:$0xf] %vm1308, %v1231
      %1319 = vst.msk [vmem:[#allocation3 + $0x50] sm:$0xf] %vm1308, %v1233
      %1320 = vst.msk [vmem:[#allocation3 + $0x58] sm:$0xf] %vm1308, %v1235
      %1321 = vst.msk [vmem:[#allocation3 + $0x60] sm:$0xf] %vm1308, %v1237
      %1322 = vst.msk [vmem:[#allocation3 + $0x68] sm:$0xf] %vm1308, %v1239
      %1323 = vst.msk [vmem:[#allocation3 + $0x70] sm:$0xf] %vm1308, %v1241
      %1324 = vst.msk [vmem:[#allocation3 + $0x78] sm:$0xf] %vm1308, %v1243
      %1325 = vst.msk [vmem:[#allocation3 + $0x80] sm:$0xf] %vm1308, %v1245
      %1326 = vst.msk [vmem:[#allocation3 + $0x88] sm:$0xf] %vm1308, %v1247
      %1327 = vst.msk [vmem:[#allocation3 + $0x90] sm:$0xf] %vm1308, %v1249
      %1328 = vst.msk [vmem:[#allocation3 + $0x98] sm:$0xf] %vm1308, %v1251
      %1329 = vst.msk [vmem:[#allocation3 + $0xa0] sm:$0xf] %vm1308, %v1253
      %1330 = vst.msk [vmem:[#allocation3 + $0xa8] sm:$0xf] %vm1308, %v1255
      %1331 = vst.msk [vmem:[#allocation3 + $0xb0] sm:$0xf] %vm1308, %v1257
      %1332 = vst.msk [vmem:[#allocation3 + $0xb8] sm:$0xf] %vm1308, %v1259
      %1333 = vst.msk [vmem:[#allocation3 + $0xc0] sm:$0xf] %vm1308, %v1261
      %1334 = vst.msk [vmem:[#allocation3 + $0xc8] sm:$0xf] %vm1308, %v1263
      %1335 = vst.msk [vmem:[#allocation3 + $0xd0] sm:$0xf] %vm1308, %v1265
      %1336 = vst.msk [vmem:[#allocation3 + $0xd8] sm:$0xf] %vm1308, %v1267
      %1337 = vst.msk [vmem:[#allocation3 + $0xe0] sm:$0xf] %vm1308, %v1269
      %1338 = vst.msk [vmem:[#allocation3 + $0xe8] sm:$0xf] %vm1308, %v1271
      %1339 = vst.msk [vmem:[#allocation3 + $0xf0] sm:$0xf] %vm1308, %v1273
      %1340 = vst.msk [vmem:[#allocation3 + $0xf8] sm:$0xf] %vm1308, %v1275
      %v1341 = vld [vmem:[%s278 + $0x2] sm:$0xff]
      %v1342 = vld [vmem:[%s278 + $0xa] sm:$0xff]
      %v1343 = vld [vmem:[%s278 + $0x1a] sm:$0xff]
      %v1344 = vld [vmem:[%s278 + $0x22] sm:$0xff]
      %v1345 = vld [vmem:[%s278 + $0x32] sm:$0xff]
      %v1346 = vld [vmem:[%s278 + $0x3a] sm:$0xff]
      %v1347 = vld [vmem:[%s278 + $0x4a] sm:$0xff]
      %v1348 = vld [vmem:[%s278 + $0x52] sm:$0xff]
      %v1349 = vld [vmem:[%s278 + $0x62] sm:$0xff]
      %v1350 = vld [vmem:[%s278 + $0x6a] sm:$0xff]
      %v1351 = vld [vmem:[%s278 + $0x7a] sm:$0xff]
      %v1352 = vld [vmem:[%s278 + $0x82] sm:$0xff]
      %v1353 = vld [vmem:[%s278 + $0x92] sm:$0xff]
      %v1354 = vld [vmem:[%s278 + $0x9a] sm:$0xff]
      %v1355 = vld [vmem:[%s278 + $0xaa] sm:$0xff]
      %v1356 = vld [vmem:[%s278 + $0xb2] sm:$0xff]
      %v1357 = vld [vmem:[%s278 + $0xc2] sm:$0xff]
      %v1358 = vld [vmem:[%s278 + $0xca] sm:$0xff]
      %v1359 = vld [vmem:[%s278 + $0xda] sm:$0xff]
      %v1360 = vld [vmem:[%s278 + $0xe2] sm:$0xff]
      %v1361 = vld [vmem:[%s278 + $0xf2] sm:$0xff]
      %v1362 = vld [vmem:[%s278 + $0xfa] sm:$0xff]
      %v1363 = vld [vmem:[%s278 + $0x10a] sm:$0xff]
      %v1364 = vld [vmem:[%s278 + $0x112] sm:$0xff]
      %v1365 = vld [vmem:[%s278 + $0x122] sm:$0xff]
      %v1366 = vld [vmem:[%s278 + $0x12a] sm:$0xff]
      %v1367 = vld [vmem:[%s278 + $0x13a] sm:$0xff]
      %v1368 = vld [vmem:[%s278 + $0x142] sm:$0xff]
      %v1369 = vld [vmem:[%s278 + $0x152] sm:$0xff]
      %v1370 = vld [vmem:[%s278 + $0x15a] sm:$0xff]
      %v1371 = vld [vmem:[%s278 + $0x16a] sm:$0xff]
      %v1372 = vld [vmem:[%s278 + $0x172] sm:$0xff]
      %v1373 = vpack.c.bf16 %v1341, %v1341
      %v1374 = vpack.c.bf16 %v1342, %v1342
      %v1375 = vpack.c.bf16 %v1343, %v1343
      %v1376 = vpack.c.bf16 %v1344, %v1344
      %v1377 = vpack.c.bf16 %v1345, %v1345
      %v1378 = vpack.c.bf16 %v1346, %v1346
      %v1379 = vpack.c.bf16 %v1347, %v1347
      %v1380 = vpack.c.bf16 %v1348, %v1348
      %v1381 = vpack.c.bf16 %v1349, %v1349
      %v1382 = vpack.c.bf16 %v1350, %v1350
      %v1383 = vpack.c.bf16 %v1351, %v1351
      %v1384 = vpack.c.bf16 %v1352, %v1352
      %v1385 = vpack.c.bf16 %v1353, %v1353
      %v1386 = vpack.c.bf16 %v1354, %v1354
      %v1387 = vpack.c.bf16 %v1355, %v1355
      %v1388 = vpack.c.bf16 %v1356, %v1356
      %v1389 = vpack.c.bf16 %v1357, %v1357
      %v1390 = vpack.c.bf16 %v1358, %v1358
      %v1391 = vpack.c.bf16 %v1359, %v1359
      %v1392 = vpack.c.bf16 %v1360, %v1360
      %v1393 = vpack.c.bf16 %v1361, %v1361
      %v1394 = vpack.c.bf16 %v1362, %v1362
      %v1395 = vpack.c.bf16 %v1363, %v1363
      %v1396 = vpack.c.bf16 %v1364, %v1364
      %v1397 = vpack.c.bf16 %v1365, %v1365
      %v1398 = vpack.c.bf16 %v1366, %v1366
      %v1399 = vpack.c.bf16 %v1367, %v1367
      %v1400 = vpack.c.bf16 %v1368, %v1368
      %v1401 = vpack.c.bf16 %v1369, %v1369
      %v1402 = vpack.c.bf16 %v1370, %v1370
      %v1403 = vpack.c.bf16 %v1371, %v1371
      %v1404 = vpack.c.bf16 %v1372, %v1372
      %1437 = vrot.lane.b32.xlu0 %v1373, 80
      %v1438 = vpop.permute.xlu0 %1437
      %1439 = vrot.lane.b32.xlu0 %v1374, 80
      %v1440 = vpop.permute.xlu0 %1439
      %1441 = vrot.lane.b32.xlu0 %v1375, 80
      %v1442 = vpop.permute.xlu0 %1441
      %1443 = vrot.lane.b32.xlu0 %v1376, 80
      %v1444 = vpop.permute.xlu0 %1443
      %1445 = vrot.lane.b32.xlu0 %v1377, 80
      %v1446 = vpop.permute.xlu0 %1445
      %1447 = vrot.lane.b32.xlu0 %v1378, 80
      %v1448 = vpop.permute.xlu0 %1447
      %1449 = vrot.lane.b32.xlu0 %v1379, 80
      %v1450 = vpop.permute.xlu0 %1449
      %1451 = vrot.lane.b32.xlu0 %v1380, 80
      %v1452 = vpop.permute.xlu0 %1451
      %1453 = vrot.lane.b32.xlu0 %v1381, 80
      %v1454 = vpop.permute.xlu0 %1453
      %1455 = vrot.lane.b32.xlu0 %v1382, 80
      %v1456 = vpop.permute.xlu0 %1455
      %1457 = vrot.lane.b32.xlu0 %v1383, 80
      %v1458 = vpop.permute.xlu0 %1457
      %1459 = vrot.lane.b32.xlu0 %v1384, 80
      %v1460 = vpop.permute.xlu0 %1459
      %1461 = vrot.lane.b32.xlu0 %v1385, 80
      %v1462 = vpop.permute.xlu0 %1461
      %1463 = vrot.lane.b32.xlu0 %v1386, 80
      %v1464 = vpop.permute.xlu0 %1463
      %1465 = vrot.lane.b32.xlu0 %v1387, 80
      %v1466 = vpop.permute.xlu0 %1465
      %1467 = vrot.lane.b32.xlu0 %v1388, 80
      %v1468 = vpop.permute.xlu0 %1467
      %1469 = vrot.lane.b32.xlu0 %v1389, 80
      %v1470 = vpop.permute.xlu0 %1469
      %1471 = vrot.lane.b32.xlu0 %v1390, 80
      %v1472 = vpop.permute.xlu0 %1471
      %1473 = vrot.lane.b32.xlu0 %v1391, 80
      %v1474 = vpop.permute.xlu0 %1473
      %1475 = vrot.lane.b32.xlu0 %v1392, 80
      %v1476 = vpop.permute.xlu0 %1475
      %1477 = vrot.lane.b32.xlu0 %v1393, 80
      %v1478 = vpop.permute.xlu0 %1477
      %1479 = vrot.lane.b32.xlu0 %v1394, 80
      %v1480 = vpop.permute.xlu0 %1479
      %1481 = vrot.lane.b32.xlu0 %v1395, 80
      %v1482 = vpop.permute.xlu0 %1481
      %1483 = vrot.lane.b32.xlu0 %v1396, 80
      %v1484 = vpop.permute.xlu0 %1483
      %1485 = vrot.lane.b32.xlu0 %v1397, 80
      %v1486 = vpop.permute.xlu0 %1485
      %1487 = vrot.lane.b32.xlu0 %v1398, 80
      %v1488 = vpop.permute.xlu0 %1487
      %1489 = vrot.lane.b32.xlu0 %v1399, 80
      %v1490 = vpop.permute.xlu0 %1489
      %1491 = vrot.lane.b32.xlu0 %v1400, 80
      %v1492 = vpop.permute.xlu0 %1491
      %1493 = vrot.lane.b32.xlu0 %v1401, 80
      %v1494 = vpop.permute.xlu0 %1493
      %1495 = vrot.lane.b32.xlu0 %v1402, 80
      %v1496 = vpop.permute.xlu0 %1495
      %1497 = vrot.lane.b32.xlu0 %v1403, 80
      %v1498 = vpop.permute.xlu0 %1497
      %1499 = vrot.lane.b32.xlu0 %v1404, 80
      %v1500 = vpop.permute.xlu0 %1499
      %vm1533 = vcmask 781952
      %1534 = vst.msk [vmem:[#allocation3] sm:$0xf] %vm1533, %v1438
      %1535 = vst.msk [vmem:[#allocation3 + $0x8] sm:$0xf] %vm1533, %v1440
      %1536 = vst.msk [vmem:[#allocation3 + $0x10] sm:$0xf] %vm1533, %v1442
      %1537 = vst.msk [vmem:[#allocation3 + $0x18] sm:$0xf] %vm1533, %v1444
      %1538 = vst.msk [vmem:[#allocation3 + $0x20] sm:$0xf] %vm1533, %v1446
      %1539 = vst.msk [vmem:[#allocation3 + $0x28] sm:$0xf] %vm1533, %v1448
      %1540 = vst.msk [vmem:[#allocation3 + $0x30] sm:$0xf] %vm1533, %v1450
      %1541 = vst.msk [vmem:[#allocation3 + $0x38] sm:$0xf] %vm1533, %v1452
      %1542 = vst.msk [vmem:[#allocation3 + $0x40] sm:$0xf] %vm1533, %v1454
      %1543 = vst.msk [vmem:[#allocation3 + $0x48] sm:$0xf] %vm1533, %v1456
      %1544 = vst.msk [vmem:[#allocation3 + $0x50] sm:$0xf] %vm1533, %v1458
      %1545 = vst.msk [vmem:[#allocation3 + $0x58] sm:$0xf] %vm1533, %v1460
      %1546 = vst.msk [vmem:[#allocation3 + $0x60] sm:$0xf] %vm1533, %v1462
      %1547 = vst.msk [vmem:[#allocation3 + $0x68] sm:$0xf] %vm1533, %v1464
      %1548 = vst.msk [vmem:[#allocation3 + $0x70] sm:$0xf] %vm1533, %v1466
      %1549 = vst.msk [vmem:[#allocation3 + $0x78] sm:$0xf] %vm1533, %v1468
      %1550 = vst.msk [vmem:[#allocation3 + $0x80] sm:$0xf] %vm1533, %v1470
      %1551 = vst.msk [vmem:[#allocation3 + $0x88] sm:$0xf] %vm1533, %v1472
      %1552 = vst.msk [vmem:[#allocation3 + $0x90] sm:$0xf] %vm1533, %v1474
      %1553 = vst.msk [vmem:[#allocation3 + $0x98] sm:$0xf] %vm1533, %v1476
      %1554 = vst.msk [vmem:[#allocation3 + $0xa0] sm:$0xf] %vm1533, %v1478
      %1555 = vst.msk [vmem:[#allocation3 + $0xa8] sm:$0xf] %vm1533, %v1480
      %1556 = vst.msk [vmem:[#allocation3 + $0xb0] sm:$0xf] %vm1533, %v1482
      %1557 = vst.msk [vmem:[#allocation3 + $0xb8] sm:$0xf] %vm1533, %v1484
      %1558 = vst.msk [vmem:[#allocation3 + $0xc0] sm:$0xf] %vm1533, %v1486
      %1559 = vst.msk [vmem:[#allocation3 + $0xc8] sm:$0xf] %vm1533, %v1488
      %1560 = vst.msk [vmem:[#allocation3 + $0xd0] sm:$0xf] %vm1533, %v1490
      %1561 = vst.msk [vmem:[#allocation3 + $0xd8] sm:$0xf] %vm1533, %v1492
      %1562 = vst.msk [vmem:[#allocation3 + $0xe0] sm:$0xf] %vm1533, %v1494
      %1563 = vst.msk [vmem:[#allocation3 + $0xe8] sm:$0xf] %vm1533, %v1496
      %1564 = vst.msk [vmem:[#allocation3 + $0xf0] sm:$0xf] %vm1533, %v1498
      %1565 = vst.msk [vmem:[#allocation3 + $0xf8] sm:$0xf] %vm1533, %v1500
      %s1566 = scalar_lea.vmem [#allocation2], 48
      %v1567 = vld [vmem:[%s1566] sm:$0xff]
      %v1568 = vld [vmem:[%s1566 + $0x8] sm:$0xff]
      %v1569 = vld [vmem:[%s1566 + $0x18] sm:$0xff]
      %v1570 = vld [vmem:[%s1566 + $0x20] sm:$0xff]
      %v1571 = vld [vmem:[%s1566 + $0x30] sm:$0xff]
      %v1572 = vld [vmem:[%s1566 + $0x38] sm:$0xff]
      %v1573 = vld [vmem:[%s1566 + $0x48] sm:$0xff]
      %v1574 = vld [vmem:[%s1566 + $0x50] sm:$0xff]
      %v1575 = vld [vmem:[%s1566 + $0x60] sm:$0xff]
      %v1576 = vld [vmem:[%s1566 + $0x68] sm:$0xff]
      %v1577 = vld [vmem:[%s1566 + $0x78] sm:$0xff]
      %v1578 = vld [vmem:[%s1566 + $0x80] sm:$0xff]
      %v1579 = vld [vmem:[%s1566 + $0x90] sm:$0xff]
      %v1580 = vld [vmem:[%s1566 + $0x98] sm:$0xff]
      %v1581 = vld [vmem:[%s1566 + $0xa8] sm:$0xff]
      %v1582 = vld [vmem:[%s1566 + $0xb0] sm:$0xff]
      %v1583 = vld [vmem:[%s1566 + $0xc0] sm:$0xff]
      %v1584 = vld [vmem:[%s1566 + $0xc8] sm:$0xff]
      %v1585 = vld [vmem:[%s1566 + $0xd8] sm:$0xff]
      %v1586 = vld [vmem:[%s1566 + $0xe0] sm:$0xff]
      %v1587 = vld [vmem:[%s1566 + $0xf0] sm:$0xff]
      %v1588 = vld [vmem:[%s1566 + $0xf8] sm:$0xff]
      %v1589 = vld [vmem:[%s1566 + $0x108] sm:$0xff]
      %v1590 = vld [vmem:[%s1566 + $0x110] sm:$0xff]
      %v1591 = vld [vmem:[%s1566 + $0x120] sm:$0xff]
      %v1592 = vld [vmem:[%s1566 + $0x128] sm:$0xff]
      %v1593 = vld [vmem:[%s1566 + $0x138] sm:$0xff]
      %v1594 = vld [vmem:[%s1566 + $0x140] sm:$0xff]
      %v1595 = vld [vmem:[%s1566 + $0x150] sm:$0xff]
      %v1596 = vld [vmem:[%s1566 + $0x158] sm:$0xff]
      %v1597 = vld [vmem:[%s1566 + $0x168] sm:$0xff]
      %v1598 = vld [vmem:[%s1566 + $0x170] sm:$0xff]
      %v1599 = vpack.c.bf16 %v1567, %v1567
      %v1600 = vpack.c.bf16 %v1568, %v1568
      %v1601 = vpack.c.bf16 %v1569, %v1569
      %v1602 = vpack.c.bf16 %v1570, %v1570
      %v1603 = vpack.c.bf16 %v1571, %v1571
      %v1604 = vpack.c.bf16 %v1572, %v1572
      %v1605 = vpack.c.bf16 %v1573, %v1573
      %v1606 = vpack.c.bf16 %v1574, %v1574
      %v1607 = vpack.c.bf16 %v1575, %v1575
      %v1608 = vpack.c.bf16 %v1576, %v1576
      %v1609 = vpack.c.bf16 %v1577, %v1577
      %v1610 = vpack.c.bf16 %v1578, %v1578
      %v1611 = vpack.c.bf16 %v1579, %v1579
      %v1612 = vpack.c.bf16 %v1580, %v1580
      %v1613 = vpack.c.bf16 %v1581, %v1581
      %v1614 = vpack.c.bf16 %v1582, %v1582
      %v1615 = vpack.c.bf16 %v1583, %v1583
      %v1616 = vpack.c.bf16 %v1584, %v1584
      %v1617 = vpack.c.bf16 %v1585, %v1585
      %v1618 = vpack.c.bf16 %v1586, %v1586
      %v1619 = vpack.c.bf16 %v1587, %v1587
      %v1620 = vpack.c.bf16 %v1588, %v1588
      %v1621 = vpack.c.bf16 %v1589, %v1589
      %v1622 = vpack.c.bf16 %v1590, %v1590
      %v1623 = vpack.c.bf16 %v1591, %v1591
      %v1624 = vpack.c.bf16 %v1592, %v1592
      %v1625 = vpack.c.bf16 %v1593, %v1593
      %v1626 = vpack.c.bf16 %v1594, %v1594
      %v1627 = vpack.c.bf16 %v1595, %v1595
      %v1628 = vpack.c.bf16 %v1596, %v1596
      %v1629 = vpack.c.bf16 %v1597, %v1597
      %v1630 = vpack.c.bf16 %v1598, %v1598
      %1663 = vrot.lane.b32.xlu0 %v1599, 96
      %v1664 = vpop.permute.xlu0 %1663
      %1665 = vrot.lane.b32.xlu0 %v1600, 96
      %v1666 = vpop.permute.xlu0 %1665
      %1667 = vrot.lane.b32.xlu0 %v1601, 96
      %v1668 = vpop.permute.xlu0 %1667
      %1669 = vrot.lane.b32.xlu0 %v1602, 96
      %v1670 = vpop.permute.xlu0 %1669
      %1671 = vrot.lane.b32.xlu0 %v1603, 96
      %v1672 = vpop.permute.xlu0 %1671
      %1673 = vrot.lane.b32.xlu0 %v1604, 96
      %v1674 = vpop.permute.xlu0 %1673
      %1675 = vrot.lane.b32.xlu0 %v1605, 96
      %v1676 = vpop.permute.xlu0 %1675
      %1677 = vrot.lane.b32.xlu0 %v1606, 96
      %v1678 = vpop.permute.xlu0 %1677
      %1679 = vrot.lane.b32.xlu0 %v1607, 96
      %v1680 = vpop.permute.xlu0 %1679
      %1681 = vrot.lane.b32.xlu0 %v1608, 96
      %v1682 = vpop.permute.xlu0 %1681
      %1683 = vrot.lane.b32.xlu0 %v1609, 96
      %v1684 = vpop.permute.xlu0 %1683
      %1685 = vrot.lane.b32.xlu0 %v1610, 96
      %v1686 = vpop.permute.xlu0 %1685
      %1687 = vrot.lane.b32.xlu0 %v1611, 96
      %v1688 = vpop.permute.xlu0 %1687
      %1689 = vrot.lane.b32.xlu0 %v1612, 96
      %v1690 = vpop.permute.xlu0 %1689
      %1691 = vrot.lane.b32.xlu0 %v1613, 96
      %v1692 = vpop.permute.xlu0 %1691
      %1693 = vrot.lane.b32.xlu0 %v1614, 96
      %v1694 = vpop.permute.xlu0 %1693
      %1695 = vrot.lane.b32.xlu0 %v1615, 96
      %v1696 = vpop.permute.xlu0 %1695
      %1697 = vrot.lane.b32.xlu0 %v1616, 96
      %v1698 = vpop.permute.xlu0 %1697
      %1699 = vrot.lane.b32.xlu0 %v1617, 96
      %v1700 = vpop.permute.xlu0 %1699
      %1701 = vrot.lane.b32.xlu0 %v1618, 96
      %v1702 = vpop.permute.xlu0 %1701
      %1703 = vrot.lane.b32.xlu0 %v1619, 96
      %v1704 = vpop.permute.xlu0 %1703
      %1705 = vrot.lane.b32.xlu0 %v1620, 96
      %v1706 = vpop.permute.xlu0 %1705
      %1707 = vrot.lane.b32.xlu0 %v1621, 96
      %v1708 = vpop.permute.xlu0 %1707
      %1709 = vrot.lane.b32.xlu0 %v1622, 96
      %v1710 = vpop.permute.xlu0 %1709
      %1711 = vrot.lane.b32.xlu0 %v1623, 96
      %v1712 = vpop.permute.xlu0 %1711
      %1713 = vrot.lane.b32.xlu0 %v1624, 96
      %v1714 = vpop.permute.xlu0 %1713
      %1715 = vrot.lane.b32.xlu0 %v1625, 96
      %v1716 = vpop.permute.xlu0 %1715
      %1717 = vrot.lane.b32.xlu0 %v1626, 96
      %v1718 = vpop.permute.xlu0 %1717
      %1719 = vrot.lane.b32.xlu0 %v1627, 96
      %v1720 = vpop.permute.xlu0 %1719
      %1721 = vrot.lane.b32.xlu0 %v1628, 96
      %v1722 = vpop.permute.xlu0 %1721
      %1723 = vrot.lane.b32.xlu0 %v1629, 96
      %v1724 = vpop.permute.xlu0 %1723
      %1725 = vrot.lane.b32.xlu0 %v1630, 96
      %v1726 = vpop.permute.xlu0 %1725
      %vm1759 = vcmask 913152
      %1760 = vst.msk [vmem:[#allocation3] sm:$0xf] %vm1759, %v1664
      %1761 = vst.msk [vmem:[#allocation3 + $0x8] sm:$0xf] %vm1759, %v1666
      %1762 = vst.msk [vmem:[#allocation3 + $0x10] sm:$0xf] %vm1759, %v1668
      %1763 = vst.msk [vmem:[#allocation3 + $0x18] sm:$0xf] %vm1759, %v1670
      %1764 = vst.msk [vmem:[#allocation3 + $0x20] sm:$0xf] %vm1759, %v1672
      %1765 = vst.msk [vmem:[#allocation3 + $0x28] sm:$0xf] %vm1759, %v1674
      %1766 = vst.msk [vmem:[#allocation3 + $0x30] sm:$0xf] %vm1759, %v1676
      %1767 = vst.msk [vmem:[#allocation3 + $0x38] sm:$0xf] %vm1759, %v1678
      %1768 = vst.msk [vmem:[#allocation3 + $0x40] sm:$0xf] %vm1759, %v1680
      %1769 = vst.msk [vmem:[#allocation3 + $0x48] sm:$0xf] %vm1759, %v1682
      %1770 = vst.msk [vmem:[#allocation3 + $0x50] sm:$0xf] %vm1759, %v1684
      %1771 = vst.msk [vmem:[#allocation3 + $0x58] sm:$0xf] %vm1759, %v1686
      %1772 = vst.msk [vmem:[#allocation3 + $0x60] sm:$0xf] %vm1759, %v1688
      %1773 = vst.msk [vmem:[#allocation3 + $0x68] sm:$0xf] %vm1759, %v1690
      %1774 = vst.msk [vmem:[#allocation3 + $0x70] sm:$0xf] %vm1759, %v1692
      %1775 = vst.msk [vmem:[#allocation3 + $0x78] sm:$0xf] %vm1759, %v1694
      %1776 = vst.msk [vmem:[#allocation3 + $0x80] sm:$0xf] %vm1759, %v1696
      %1777 = vst.msk [vmem:[#allocation3 + $0x88] sm:$0xf] %vm1759, %v1698
      %1778 = vst.msk [vmem:[#allocation3 + $0x90] sm:$0xf] %vm1759, %v1700
      %1779 = vst.msk [vmem:[#allocation3 + $0x98] sm:$0xf] %vm1759, %v1702
      %1780 = vst.msk [vmem:[#allocation3 + $0xa0] sm:$0xf] %vm1759, %v1704
      %1781 = vst.msk [vmem:[#allocation3 + $0xa8] sm:$0xf] %vm1759, %v1706
      %1782 = vst.msk [vmem:[#allocation3 + $0xb0] sm:$0xf] %vm1759, %v1708
      %1783 = vst.msk [vmem:[#allocation3 + $0xb8] sm:$0xf] %vm1759, %v1710
      %1784 = vst.msk [vmem:[#allocation3 + $0xc0] sm:$0xf] %vm1759, %v1712
      %1785 = vst.msk [vmem:[#allocation3 + $0xc8] sm:$0xf] %vm1759, %v1714
      %1786 = vst.msk [vmem:[#allocation3 + $0xd0] sm:$0xf] %vm1759, %v1716
      %1787 = vst.msk [vmem:[#allocation3 + $0xd8] sm:$0xf] %vm1759, %v1718
      %1788 = vst.msk [vmem:[#allocation3 + $0xe0] sm:$0xf] %vm1759, %v1720
      %1789 = vst.msk [vmem:[#allocation3 + $0xe8] sm:$0xf] %vm1759, %v1722
      %1790 = vst.msk [vmem:[#allocation3 + $0xf0] sm:$0xf] %vm1759, %v1724
      %1791 = vst.msk [vmem:[#allocation3 + $0xf8] sm:$0xf] %vm1759, %v1726
      %v1792 = vld [vmem:[%s1566 + $0x1] sm:$0xff]
      %v1793 = vld [vmem:[%s1566 + $0x9] sm:$0xff]
      %v1794 = vld [vmem:[%s1566 + $0x19] sm:$0xff]
      %v1795 = vld [vmem:[%s1566 + $0x21] sm:$0xff]
      %v1796 = vld [vmem:[%s1566 + $0x31] sm:$0xff]
      %v1797 = vld [vmem:[%s1566 + $0x39] sm:$0xff]
      %v1798 = vld [vmem:[%s1566 + $0x49] sm:$0xff]
      %v1799 = vld [vmem:[%s1566 + $0x51] sm:$0xff]
      %v1800 = vld [vmem:[%s1566 + $0x61] sm:$0xff]
      %v1801 = vld [vmem:[%s1566 + $0x69] sm:$0xff]
      %v1802 = vld [vmem:[%s1566 + $0x79] sm:$0xff]
      %v1803 = vld [vmem:[%s1566 + $0x81] sm:$0xff]
      %v1804 = vld [vmem:[%s1566 + $0x91] sm:$0xff]
      %v1805 = vld [vmem:[%s1566 + $0x99] sm:$0xff]
      %v1806 = vld [vmem:[%s1566 + $0xa9] sm:$0xff]
      %v1807 = vld [vmem:[%s1566 + $0xb1] sm:$0xff]
      %v1808 = vld [vmem:[%s1566 + $0xc1] sm:$0xff]
      %v1809 = vld [vmem:[%s1566 + $0xc9] sm:$0xff]
      %v1810 = vld [vmem:[%s1566 + $0xd9] sm:$0xff]
      %v1811 = vld [vmem:[%s1566 + $0xe1] sm:$0xff]
      %v1812 = vld [vmem:[%s1566 + $0xf1] sm:$0xff]
      %v1813 = vld [vmem:[%s1566 + $0xf9] sm:$0xff]
      %v1814 = vld [vmem:[%s1566 + $0x109] sm:$0xff]
      %v1815 = vld [vmem:[%s1566 + $0x111] sm:$0xff]
      %v1816 = vld [vmem:[%s1566 + $0x121] sm:$0xff]
      %v1817 = vld [vmem:[%s1566 + $0x129] sm:$0xff]
      %v1818 = vld [vmem:[%s1566 + $0x139] sm:$0xff]
      %v1819 = vld [vmem:[%s1566 + $0x141] sm:$0xff]
      %v1820 = vld [vmem:[%s1566 + $0x151] sm:$0xff]
      %v1821 = vld [vmem:[%s1566 + $0x159] sm:$0xff]
      %v1822 = vld [vmem:[%s1566 + $0x169] sm:$0xff]
      %v1823 = vld [vmem:[%s1566 + $0x171] sm:$0xff]
      %v1824 = vpack.c.bf16 %v1792, %v1792
      %v1825 = vpack.c.bf16 %v1793, %v1793
      %v1826 = vpack.c.bf16 %v1794, %v1794
      %v1827 = vpack.c.bf16 %v1795, %v1795
      %v1828 = vpack.c.bf16 %v1796, %v1796
      %v1829 = vpack.c.bf16 %v1797, %v1797
      %v1830 = vpack.c.bf16 %v1798, %v1798
      %v1831 = vpack.c.bf16 %v1799, %v1799
      %v1832 = vpack.c.bf16 %v1800, %v1800
      %v1833 = vpack.c.bf16 %v1801, %v1801
      %v1834 = vpack.c.bf16 %v1802, %v1802
      %v1835 = vpack.c.bf16 %v1803, %v1803
      %v1836 = vpack.c.bf16 %v1804, %v1804
      %v1837 = vpack.c.bf16 %v1805, %v1805
      %v1838 = vpack.c.bf16 %v1806, %v1806
      %v1839 = vpack.c.bf16 %v1807, %v1807
      %v1840 = vpack.c.bf16 %v1808, %v1808
      %v1841 = vpack.c.bf16 %v1809, %v1809
      %v1842 = vpack.c.bf16 %v1810, %v1810
      %v1843 = vpack.c.bf16 %v1811, %v1811
      %v1844 = vpack.c.bf16 %v1812, %v1812
      %v1845 = vpack.c.bf16 %v1813, %v1813
      %v1846 = vpack.c.bf16 %v1814, %v1814
      %v1847 = vpack.c.bf16 %v1815, %v1815
      %v1848 = vpack.c.bf16 %v1816, %v1816
      %v1849 = vpack.c.bf16 %v1817, %v1817
      %v1850 = vpack.c.bf16 %v1818, %v1818
      %v1851 = vpack.c.bf16 %v1819, %v1819
      %v1852 = vpack.c.bf16 %v1820, %v1820
      %v1853 = vpack.c.bf16 %v1821, %v1821
      %v1854 = vpack.c.bf16 %v1822, %v1822
      %v1855 = vpack.c.bf16 %v1823, %v1823
      %1888 = vrot.lane.b32.xlu0 %v1824, 112
      %v1889 = vpop.permute.xlu0 %1888
      %1890 = vrot.lane.b32.xlu0 %v1825, 112
      %v1891 = vpop.permute.xlu0 %1890
      %1892 = vrot.lane.b32.xlu0 %v1826, 112
      %v1893 = vpop.permute.xlu0 %1892
      %1894 = vrot.lane.b32.xlu0 %v1827, 112
      %v1895 = vpop.permute.xlu0 %1894
      %1896 = vrot.lane.b32.xlu0 %v1828, 112
      %v1897 = vpop.permute.xlu0 %1896
      %1898 = vrot.lane.b32.xlu0 %v1829, 112
      %v1899 = vpop.permute.xlu0 %1898
      %1900 = vrot.lane.b32.xlu0 %v1830, 112
      %v1901 = vpop.permute.xlu0 %1900
      %1902 = vrot.lane.b32.xlu0 %v1831, 112
      %v1903 = vpop.permute.xlu0 %1902
      %1904 = vrot.lane.b32.xlu0 %v1832, 112
      %v1905 = vpop.permute.xlu0 %1904
      %1906 = vrot.lane.b32.xlu0 %v1833, 112
      %v1907 = vpop.permute.xlu0 %1906
      %1908 = vrot.lane.b32.xlu0 %v1834, 112
      %v1909 = vpop.permute.xlu0 %1908
      %1910 = vrot.lane.b32.xlu0 %v1835, 112
      %v1911 = vpop.permute.xlu0 %1910
      %1912 = vrot.lane.b32.xlu0 %v1836, 112
      %v1913 = vpop.permute.xlu0 %1912
      %1914 = vrot.lane.b32.xlu0 %v1837, 112
      %v1915 = vpop.permute.xlu0 %1914
      %1916 = vrot.lane.b32.xlu0 %v1838, 112
      %v1917 = vpop.permute.xlu0 %1916
      %1918 = vrot.lane.b32.xlu0 %v1839, 112
      %v1919 = vpop.permute.xlu0 %1918
      %1920 = vrot.lane.b32.xlu0 %v1840, 112
      %v1921 = vpop.permute.xlu0 %1920
      %1922 = vrot.lane.b32.xlu0 %v1841, 112
      %v1923 = vpop.permute.xlu0 %1922
      %1924 = vrot.lane.b32.xlu0 %v1842, 112
      %v1925 = vpop.permute.xlu0 %1924
      %1926 = vrot.lane.b32.xlu0 %v1843, 112
      %v1927 = vpop.permute.xlu0 %1926
      %1928 = vrot.lane.b32.xlu0 %v1844, 112
      %v1929 = vpop.permute.xlu0 %1928
      %1930 = vrot.lane.b32.xlu0 %v1845, 112
      %v1931 = vpop.permute.xlu0 %1930
      %1932 = vrot.lane.b32.xlu0 %v1846, 112
      %v1933 = vpop.permute.xlu0 %1932
      %1934 = vrot.lane.b32.xlu0 %v1847, 112
      %v1935 = vpop.permute.xlu0 %1934
      %1936 = vrot.lane.b32.xlu0 %v1848, 112
      %v1937 = vpop.permute.xlu0 %1936
      %1938 = vrot.lane.b32.xlu0 %v1849, 112
      %v1939 = vpop.permute.xlu0 %1938
      %1940 = vrot.lane.b32.xlu0 %v1850, 112
      %v1941 = vpop.permute.xlu0 %1940
      %1942 = vrot.lane.b32.xlu0 %v1851, 112
      %v1943 = vpop.permute.xlu0 %1942
      %1944 = vrot.lane.b32.xlu0 %v1852, 112
      %v1945 = vpop.permute.xlu0 %1944
      %1946 = vrot.lane.b32.xlu0 %v1853, 112
      %v1947 = vpop.permute.xlu0 %1946
      %1948 = vrot.lane.b32.xlu0 %v1854, 112
      %v1949 = vpop.permute.xlu0 %1948
      %1950 = vrot.lane.b32.xlu0 %v1855, 112
      %v1951 = vpop.permute.xlu0 %1950
      %vm1984 = vcmask 1044352
      %1985 = vst.msk [vmem:[#allocation3] sm:$0xf] %vm1984, %v1889
      %1986 = vst.msk [vmem:[#allocation3 + $0x8] sm:$0xf] %vm1984, %v1891
      %1987 = vst.msk [vmem:[#allocation3 + $0x10] sm:$0xf] %vm1984, %v1893
      %1988 = vst.msk [vmem:[#allocation3 + $0x18] sm:$0xf] %vm1984, %v1895
      %1989 = vst.msk [vmem:[#allocation3 + $0x20] sm:$0xf] %vm1984, %v1897
      %1990 = vst.msk [vmem:[#allocation3 + $0x28] sm:$0xf] %vm1984, %v1899
      %1991 = vst.msk [vmem:[#allocation3 + $0x30] sm:$0xf] %vm1984, %v1901
      %1992 = vst.msk [vmem:[#allocation3 + $0x38] sm:$0xf] %vm1984, %v1903
      %1993 = vst.msk [vmem:[#allocation3 + $0x40] sm:$0xf] %vm1984, %v1905
      %1994 = vst.msk [vmem:[#allocation3 + $0x48] sm:$0xf] %vm1984, %v1907
      %1995 = vst.msk [vmem:[#allocation3 + $0x50] sm:$0xf] %vm1984, %v1909
      %1996 = vst.msk [vmem:[#allocation3 + $0x58] sm:$0xf] %vm1984, %v1911
      %1997 = vst.msk [vmem:[#allocation3 + $0x60] sm:$0xf] %vm1984, %v1913
      %1998 = vst.msk [vmem:[#allocation3 + $0x68] sm:$0xf] %vm1984, %v1915
      %1999 = vst.msk [vmem:[#allocation3 + $0x70] sm:$0xf] %vm1984, %v1917
      %2000 = vst.msk [vmem:[#allocation3 + $0x78] sm:$0xf] %vm1984, %v1919
      %2001 = vst.msk [vmem:[#allocation3 + $0x80] sm:$0xf] %vm1984, %v1921
      %2002 = vst.msk [vmem:[#allocation3 + $0x88] sm:$0xf] %vm1984, %v1923
      %2003 = vst.msk [vmem:[#allocation3 + $0x90] sm:$0xf] %vm1984, %v1925
      %2004 = vst.msk [vmem:[#allocation3 + $0x98] sm:$0xf] %vm1984, %v1927
      %2005 = vst.msk [vmem:[#allocation3 + $0xa0] sm:$0xf] %vm1984, %v1929
      %2006 = vst.msk [vmem:[#allocation3 + $0xa8] sm:$0xf] %vm1984, %v1931
      %2007 = vst.msk [vmem:[#allocation3 + $0xb0] sm:$0xf] %vm1984, %v1933
      %2008 = vst.msk [vmem:[#allocation3 + $0xb8] sm:$0xf] %vm1984, %v1935
      %2009 = vst.msk [vmem:[#allocation3 + $0xc0] sm:$0xf] %vm1984, %v1937
      %2010 = vst.msk [vmem:[#allocation3 + $0xc8] sm:$0xf] %vm1984, %v1939
      %2011 = vst.msk [vmem:[#allocation3 + $0xd0] sm:$0xf] %vm1984, %v1941
      %2012 = vst.msk [vmem:[#allocation3 + $0xd8] sm:$0xf] %vm1984, %v1943
      %2013 = vst.msk [vmem:[#allocation3 + $0xe0] sm:$0xf] %vm1984, %v1945
      %2014 = vst.msk [vmem:[#allocation3 + $0xe8] sm:$0xf] %vm1984, %v1947
      %2015 = vst.msk [vmem:[#allocation3 + $0xf0] sm:$0xf] %vm1984, %v1949
      %2016 = vst.msk [vmem:[#allocation3 + $0xf8] sm:$0xf] %vm1984, %v1951
      %v2017 = vld [vmem:[%s1566 + $0x2] sm:$0xff]
      %v2018 = vld [vmem:[%s1566 + $0xa] sm:$0xff]
      %v2019 = vld [vmem:[%s1566 + $0x1a] sm:$0xff]
      %v2020 = vld [vmem:[%s1566 + $0x22] sm:$0xff]
      %v2021 = vld [vmem:[%s1566 + $0x32] sm:$0xff]
      %v2022 = vld [vmem:[%s1566 + $0x3a] sm:$0xff]
      %v2023 = vld [vmem:[%s1566 + $0x4a] sm:$0xff]
      %v2024 = vld [vmem:[%s1566 + $0x52] sm:$0xff]
      %v2025 = vld [vmem:[%s1566 + $0x62] sm:$0xff]
      %v2026 = vld [vmem:[%s1566 + $0x6a] sm:$0xff]
      %v2027 = vld [vmem:[%s1566 + $0x7a] sm:$0xff]
      %v2028 = vld [vmem:[%s1566 + $0x82] sm:$0xff]
      %v2029 = vld [vmem:[%s1566 + $0x92] sm:$0xff]
      %v2030 = vld [vmem:[%s1566 + $0x9a] sm:$0xff]
      %v2031 = vld [vmem:[%s1566 + $0xaa] sm:$0xff]
      %v2032 = vld [vmem:[%s1566 + $0xb2] sm:$0xff]
      %v2033 = vld [vmem:[%s1566 + $0xc2] sm:$0xff]
      %v2034 = vld [vmem:[%s1566 + $0xca] sm:$0xff]
      %v2035 = vld [vmem:[%s1566 + $0xda] sm:$0xff]
      %v2036 = vld [vmem:[%s1566 + $0xe2] sm:$0xff]
      %v2037 = vld [vmem:[%s1566 + $0xf2] sm:$0xff]
      %v2038 = vld [vmem:[%s1566 + $0xfa] sm:$0xff]
      %v2039 = vld [vmem:[%s1566 + $0x10a] sm:$0xff]
      %v2040 = vld [vmem:[%s1566 + $0x112] sm:$0xff]
      %v2041 = vld [vmem:[%s1566 + $0x122] sm:$0xff]
      %v2042 = vld [vmem:[%s1566 + $0x12a] sm:$0xff]
      %v2043 = vld [vmem:[%s1566 + $0x13a] sm:$0xff]
      %v2044 = vld [vmem:[%s1566 + $0x142] sm:$0xff]
      %v2045 = vld [vmem:[%s1566 + $0x152] sm:$0xff]
      %v2046 = vld [vmem:[%s1566 + $0x15a] sm:$0xff]
      %v2047 = vld [vmem:[%s1566 + $0x16a] sm:$0xff]
      %v2048 = vld [vmem:[%s1566 + $0x172] sm:$0xff]
      %v2049 = vpack.c.bf16 %v2017, %v2017
      %v2050 = vpack.c.bf16 %v2018, %v2018
      %v2051 = vpack.c.bf16 %v2019, %v2019
      %v2052 = vpack.c.bf16 %v2020, %v2020
      %v2053 = vpack.c.bf16 %v2021, %v2021
      %v2054 = vpack.c.bf16 %v2022, %v2022
      %v2055 = vpack.c.bf16 %v2023, %v2023
      %v2056 = vpack.c.bf16 %v2024, %v2024
      %v2057 = vpack.c.bf16 %v2025, %v2025
      %v2058 = vpack.c.bf16 %v2026, %v2026
      %v2059 = vpack.c.bf16 %v2027, %v2027
      %v2060 = vpack.c.bf16 %v2028, %v2028
      %v2061 = vpack.c.bf16 %v2029, %v2029
      %v2062 = vpack.c.bf16 %v2030, %v2030
      %v2063 = vpack.c.bf16 %v2031, %v2031
      %v2064 = vpack.c.bf16 %v2032, %v2032
      %v2065 = vpack.c.bf16 %v2033, %v2033
      %v2066 = vpack.c.bf16 %v2034, %v2034
      %v2067 = vpack.c.bf16 %v2035, %v2035
      %v2068 = vpack.c.bf16 %v2036, %v2036
      %v2069 = vpack.c.bf16 %v2037, %v2037
      %v2070 = vpack.c.bf16 %v2038, %v2038
      %v2071 = vpack.c.bf16 %v2039, %v2039
      %v2072 = vpack.c.bf16 %v2040, %v2040
      %v2073 = vpack.c.bf16 %v2041, %v2041
      %v2074 = vpack.c.bf16 %v2042, %v2042
      %v2075 = vpack.c.bf16 %v2043, %v2043
      %v2076 = vpack.c.bf16 %v2044, %v2044
      %v2077 = vpack.c.bf16 %v2045, %v2045
      %v2078 = vpack.c.bf16 %v2046, %v2046
      %v2079 = vpack.c.bf16 %v2047, %v2047
      %v2080 = vpack.c.bf16 %v2048, %v2048
      %2081 = vst.msk [vmem:[#allocation3 + $0x4] sm:$0xf] %vm408, %v2049
      %2082 = vst.msk [vmem:[#allocation3 + $0xc] sm:$0xf] %vm408, %v2050
      %2083 = vst.msk [vmem:[#allocation3 + $0x14] sm:$0xf] %vm408, %v2051
      %2084 = vst.msk [vmem:[#allocation3 + $0x1c] sm:$0xf] %vm408, %v2052
      %2085 = vst.msk [vmem:[#allocation3 + $0x24] sm:$0xf] %vm408, %v2053
      %2086 = vst.msk [vmem:[#allocation3 + $0x2c] sm:$0xf] %vm408, %v2054
      %2087 = vst.msk [vmem:[#allocation3 + $0x34] sm:$0xf] %vm408, %v2055
      %2088 = vst.msk [vmem:[#allocation3 + $0x3c] sm:$0xf] %vm408, %v2056
      %2089 = vst.msk [vmem:[#allocation3 + $0x44] sm:$0xf] %vm408, %v2057
      %2090 = vst.msk [vmem:[#allocation3 + $0x4c] sm:$0xf] %vm408, %v2058
      %2091 = vst.msk [vmem:[#allocation3 + $0x54] sm:$0xf] %vm408, %v2059
      %2092 = vst.msk [vmem:[#allocation3 + $0x5c] sm:$0xf] %vm408, %v2060
      %2093 = vst.msk [vmem:[#allocation3 + $0x64] sm:$0xf] %vm408, %v2061
      %2094 = vst.msk [vmem:[#allocation3 + $0x6c] sm:$0xf] %vm408, %v2062
      %2095 = vst.msk [vmem:[#allocation3 + $0x74] sm:$0xf] %vm408, %v2063
      %2096 = vst.msk [vmem:[#allocation3 + $0x7c] sm:$0xf] %vm408, %v2064
      %2097 = vst.msk [vmem:[#allocation3 + $0x84] sm:$0xf] %vm408, %v2065
      %2098 = vst.msk [vmem:[#allocation3 + $0x8c] sm:$0xf] %vm408, %v2066
      %2099 = vst.msk [vmem:[#allocation3 + $0x94] sm:$0xf] %vm408, %v2067
      %2100 = vst.msk [vmem:[#allocation3 + $0x9c] sm:$0xf] %vm408, %v2068
      %2101 = vst.msk [vmem:[#allocation3 + $0xa4] sm:$0xf] %vm408, %v2069
      %2102 = vst.msk [vmem:[#allocation3 + $0xac] sm:$0xf] %vm408, %v2070
      %2103 = vst.msk [vmem:[#allocation3 + $0xb4] sm:$0xf] %vm408, %v2071
      %2104 = vst.msk [vmem:[#allocation3 + $0xbc] sm:$0xf] %vm408, %v2072
      %2105 = vst.msk [vmem:[#allocation3 + $0xc4] sm:$0xf] %vm408, %v2073
      %2106 = vst.msk [vmem:[#allocation3 + $0xcc] sm:$0xf] %vm408, %v2074
      %2107 = vst.msk [vmem:[#allocation3 + $0xd4] sm:$0xf] %vm408, %v2075
      %2108 = vst.msk [vmem:[#allocation3 + $0xdc] sm:$0xf] %vm408, %v2076
      %2109 = vst.msk [vmem:[#allocation3 + $0xe4] sm:$0xf] %vm408, %v2077
      %2110 = vst.msk [vmem:[#allocation3 + $0xec] sm:$0xf] %vm408, %v2078
      %2111 = vst.msk [vmem:[#allocation3 + $0xf4] sm:$0xf] %vm408, %v2079
      %2112 = vst.msk [vmem:[#allocation3 + $0xfc] sm:$0xf] %vm408, %v2080
      %v2113 = vld [vmem:[#allocation3] sm:$0xff]
      %v2114 = vld [vmem:[#allocation3 + $0x8] sm:$0xff]
      %v2115 = vld [vmem:[#allocation3 + $0x10] sm:$0xff]
      %v2116 = vld [vmem:[#allocation3 + $0x18] sm:$0xff]
      %v2117 = vld [vmem:[#allocation3 + $0x20] sm:$0xff]
      %v2118 = vld [vmem:[#allocation3 + $0x28] sm:$0xff]
      %v2119 = vld [vmem:[#allocation3 + $0x30] sm:$0xff]
      %v2120 = vld [vmem:[#allocation3 + $0x38] sm:$0xff]
      %v2121 = vld [vmem:[#allocation3 + $0x40] sm:$0xff]
      %v2122 = vld [vmem:[#allocation3 + $0x48] sm:$0xff]
      %v2123 = vld [vmem:[#allocation3 + $0x50] sm:$0xff]
      %v2124 = vld [vmem:[#allocation3 + $0x58] sm:$0xff]
      %v2125 = vld [vmem:[#allocation3 + $0x60] sm:$0xff]
      %v2126 = vld [vmem:[#allocation3 + $0x68] sm:$0xff]
      %v2127 = vld [vmem:[#allocation3 + $0x70] sm:$0xff]
      %v2128 = vld [vmem:[#allocation3 + $0x78] sm:$0xff]
      %v2129 = vld [vmem:[#allocation3 + $0x80] sm:$0xff]
      %v2130 = vld [vmem:[#allocation3 + $0x88] sm:$0xff]
      %v2131 = vld [vmem:[#allocation3 + $0x90] sm:$0xff]
      %v2132 = vld [vmem:[#allocation3 + $0x98] sm:$0xff]
      %v2133 = vld [vmem:[#allocation3 + $0xa0] sm:$0xff]
      %v2134 = vld [vmem:[#allocation3 + $0xa8] sm:$0xff]
      %v2135 = vld [vmem:[#allocation3 + $0xb0] sm:$0xff]
      %v2136 = vld [vmem:[#allocation3 + $0xb8] sm:$0xff]
      %v2137 = vld [vmem:[#allocation3 + $0xc0] sm:$0xff]
      %v2138 = vld [vmem:[#allocation3 + $0xc8] sm:$0xff]
      %v2139 = vld [vmem:[#allocation3 + $0xd0] sm:$0xff]
      %v2140 = vld [vmem:[#allocation3 + $0xd8] sm:$0xff]
      %v2141 = vld [vmem:[#allocation3 + $0xe0] sm:$0xff]
      %v2142 = vld [vmem:[#allocation3 + $0xe8] sm:$0xff]
      %v2143 = vld [vmem:[#allocation3 + $0xf0] sm:$0xff]
      %v2144 = vld [vmem:[#allocation3 + $0xf8] sm:$0xff]
      %v2145 = vld [vmem:[%s3] sm:$0xf]
      %v2146 = vld [vmem:[%s3 + $0x4] sm:$0xf]
      %v2147 = vld [vmem:[%s3 + $0x8] sm:$0xf]
      %v2148 = vld [vmem:[%s3 + $0xc] sm:$0xf]
      %v2149 = vld [vmem:[%s3 + $0x10] sm:$0xf]
      %v2150 = vld [vmem:[%s3 + $0x14] sm:$0xf]
      %v2151 = vld [vmem:[%s3 + $0x18] sm:$0xf]
      %v2152 = vld [vmem:[%s3 + $0x1c] sm:$0xf]
      %v2153 = vld [vmem:[%s3 + $0x20] sm:$0xf]
      %v2154 = vld [vmem:[%s3 + $0x24] sm:$0xf]
      %v2155 = vld [vmem:[%s3 + $0x28] sm:$0xf]
      %v2156 = vld [vmem:[%s3 + $0x2c] sm:$0xf]
      %v2157 = vld [vmem:[%s3 + $0x30] sm:$0xf]
      %v2158 = vld [vmem:[%s3 + $0x34] sm:$0xf]
      %v2159 = vld [vmem:[%s3 + $0x38] sm:$0xf]
      %v2160 = vld [vmem:[%s3 + $0x3c] sm:$0xf]
      %v2161 = vld [vmem:[%s3 + $0x40] sm:$0xf]
      %v2162 = vld [vmem:[%s3 + $0x44] sm:$0xf]
      %v2195 = vunpack.c.l.b16 %v2113
      %v2196 = vunpack.c.h.b16 %v2113
      %v2197 = vunpack.c.l.b16 %v2114
      %v2198 = vunpack.c.h.b16 %v2114
      %v2199 = vunpack.c.l.b16 %v2115
      %v2200 = vunpack.c.h.b16 %v2115
      %v2201 = vunpack.c.l.b16 %v2116
      %v2202 = vunpack.c.h.b16 %v2116
      %v2203 = vunpack.c.l.b16 %v2117
      %v2204 = vunpack.c.h.b16 %v2117
      %v2205 = vunpack.c.l.b16 %v2118
      %v2206 = vunpack.c.h.b16 %v2118
      %v2207 = vunpack.c.l.b16 %v2119
      %v2208 = vunpack.c.h.b16 %v2119
      %v2209 = vunpack.c.l.b16 %v2120
      %v2210 = vunpack.c.h.b16 %v2120
      %v2211 = vunpack.c.l.b16 %v2121
      %v2212 = vunpack.c.h.b16 %v2121
      %v2213 = vunpack.c.l.b16 %v2122
      %v2214 = vunpack.c.h.b16 %v2122
      %v2215 = vunpack.c.l.b16 %v2123
      %v2216 = vunpack.c.h.b16 %v2123
      %v2217 = vunpack.c.l.b16 %v2124
      %v2218 = vunpack.c.h.b16 %v2124
      %v2219 = vunpack.c.l.b16 %v2125
      %v2220 = vunpack.c.h.b16 %v2125
      %v2221 = vunpack.c.l.b16 %v2126
      %v2222 = vunpack.c.h.b16 %v2126
      %v2223 = vunpack.c.l.b16 %v2127
      %v2224 = vunpack.c.h.b16 %v2127
      %v2225 = vunpack.c.l.b16 %v2128
      %v2226 = vunpack.c.h.b16 %v2128
      %v2227 = vunpack.c.l.b16 %v2129
      %v2228 = vunpack.c.h.b16 %v2129
      %v2229 = vunpack.c.l.b16 %v2130
      %v2230 = vunpack.c.h.b16 %v2130
      %v2231 = vunpack.c.l.b16 %v2131
      %v2232 = vunpack.c.h.b16 %v2131
      %v2233 = vunpack.c.l.b16 %v2132
      %v2234 = vunpack.c.h.b16 %v2132
      %v2235 = vunpack.c.l.b16 %v2133
      %v2236 = vunpack.c.h.b16 %v2133
      %v2237 = vunpack.c.l.b16 %v2134
      %v2238 = vunpack.c.h.b16 %v2134
      %v2239 = vunpack.c.l.b16 %v2135
      %v2240 = vunpack.c.h.b16 %v2135
      %v2241 = vunpack.c.l.b16 %v2136
      %v2242 = vunpack.c.h.b16 %v2136
      %v2243 = vunpack.c.l.b16 %v2137
      %v2244 = vunpack.c.h.b16 %v2137
      %v2245 = vunpack.c.l.b16 %v2138
      %v2246 = vunpack.c.h.b16 %v2138
      %v2247 = vunpack.c.l.b16 %v2139
      %v2248 = vunpack.c.h.b16 %v2139
      %v2249 = vunpack.c.l.b16 %v2140
      %v2250 = vunpack.c.h.b16 %v2140
      %v2251 = vunpack.c.l.b16 %v2141
      %v2252 = vunpack.c.h.b16 %v2141
      %v2253 = vunpack.c.l.b16 %v2142
      %v2254 = vunpack.c.h.b16 %v2142
      %v2255 = vunpack.c.l.b16 %v2143
      %v2256 = vunpack.c.h.b16 %v2143
      %v2257 = vunpack.c.l.b16 %v2144
      %v2258 = vunpack.c.h.b16 %v2144
      %v2259 = vpack.c.b16 %v2197, %v2195
      %v2260 = vpack.c.b16 %v2198, %v2196
      %v2261 = vpack.c.b16 %v2201, %v2199
      %v2262 = vpack.c.b16 %v2202, %v2200
      %v2263 = vpack.c.b16 %v2205, %v2203
      %v2264 = vpack.c.b16 %v2206, %v2204
      %v2265 = vpack.c.b16 %v2209, %v2207
      %v2266 = vpack.c.b16 %v2210, %v2208
      %v2267 = vpack.c.b16 %v2213, %v2211
      %v2268 = vpack.c.b16 %v2214, %v2212
      %v2269 = vpack.c.b16 %v2217, %v2215
      %v2270 = vpack.c.b16 %v2218, %v2216
      %v2271 = vpack.c.b16 %v2221, %v2219
      %v2272 = vpack.c.b16 %v2222, %v2220
      %v2273 = vpack.c.b16 %v2225, %v2223
      %v2274 = vpack.c.b16 %v2226, %v2224
      %v2275 = vpack.c.b16 %v2229, %v2227
      %v2276 = vpack.c.b16 %v2230, %v2228
      %v2277 = vpack.c.b16 %v2233, %v2231
      %v2278 = vpack.c.b16 %v2234, %v2232
      %v2279 = vpack.c.b16 %v2237, %v2235
      %v2280 = vpack.c.b16 %v2238, %v2236
      %v2281 = vpack.c.b16 %v2241, %v2239
      %v2282 = vpack.c.b16 %v2242, %v2240
      %v2283 = vpack.c.b16 %v2245, %v2243
      %v2284 = vpack.c.b16 %v2246, %v2244
      %v2285 = vpack.c.b16 %v2249, %v2247
      %v2286 = vpack.c.b16 %v2250, %v2248
      %v2287 = vpack.c.b16 %v2253, %v2251
      %v2288 = vpack.c.b16 %v2254, %v2252
      %v2289 = vpack.c.b16 %v2257, %v2255
      %v2290 = vpack.c.b16 %v2258, %v2256
      %v2325 = vunpack.c.l.b16 %v2145
      %v2326 = vunpack.c.l.b16 %v2146
      %v2327 = vunpack.c.l.b16 %v2147
      %v2328 = vunpack.c.l.b16 %v2148
      %v2329 = vunpack.c.l.b16 %v2149
      %v2330 = vunpack.c.l.b16 %v2150
      %v2331 = vunpack.c.l.b16 %v2151
      %v2332 = vunpack.c.l.b16 %v2152
      %v2333 = vunpack.c.l.b16 %v2153
      %v2334 = vunpack.c.l.b16 %v2154
      %v2335 = vunpack.c.l.b16 %v2155
      %v2336 = vunpack.c.l.b16 %v2156
      %v2337 = vunpack.c.l.b16 %v2157
      %v2338 = vunpack.c.l.b16 %v2158
      %v2339 = vunpack.c.l.b16 %v2159
      %v2340 = vunpack.c.l.b16 %v2160
      %v2341 = vunpack.c.l.b16 %v2161
      %v2342 = vunpack.c.l.b16 %v2162
      %v2343 = vpack.c.b16 %v2326, %v2325
      %v2344 = vpack.c.b16 %v2328, %v2327
      %v2345 = vpack.c.b16 %v2330, %v2329
      %v2346 = vpack.c.b16 %v2332, %v2331
      %v2347 = vpack.c.b16 %v2334, %v2333
      %v2348 = vpack.c.b16 %v2336, %v2335
      %v2349 = vpack.c.b16 %v2338, %v2337
      %v2350 = vpack.c.b16 %v2340, %v2339
      %v2351 = vpack.c.b16 %v2342, %v2341
      %v2362 = vsel %vm269, %v2260, 0
      %v2365 = vsel %vm269, %v2262, 0
      %v2368 = vsel %vm269, %v2264, 0
      %v2371 = vsel %vm269, %v2266, 0
      %v2374 = vsel %vm269, %v2268, 0
      %v2377 = vsel %vm269, %v2270, 0
      %v2380 = vsel %vm269, %v2272, 0
      %v2383 = vsel %vm269, %v2274, 0
      %v2386 = vsel %vm269, %v2276, 0
      %v2389 = vsel %vm269, %v2278, 0
      %v2392 = vsel %vm269, %v2280, 0
      %v2395 = vsel %vm269, %v2282, 0
      %v2398 = vsel %vm269, %v2284, 0
      %v2401 = vsel %vm269, %v2286, 0
      %v2404 = vsel %vm269, %v2288, 0
      %v2407 = vsel %vm269, %v2290, 0
      %2409 = vmatpush.bf16.msra.mxu0 %v2350
      %2410 = vmatpush.bf16.msra.mxu0 %v2349
      %2411 = vmatpush.bf16.msra.mxu0 %v2348
      %2412 = vmatpush.bf16.msra.mxu0 %v2347
      %2413 = vmatpush.bf16.msra.mxu0 %v2346
      %2414 = vmatpush.bf16.msra.mxu0 %v2345
      %2415 = vmatpush.bf16.msra.mxu0 %v2344
      %2416 = vmatpush.bf16.msra.mxu0 %v2343
      %2417 = vmatmul.bf16.gmra.mxu0 %v2259
      %v2418 = vpop.f32.mrf.mxu0
      %v2419 = vadd.f32 0.0, %v2418
      %v2420 = vpop.f32.mrf.mxu0
      %v2421 = vadd.f32 0.0, %v2420
      %2422 = vmatmul.bf16.gmra.mxu0 %v2261
      %v2423 = vpop.f32.mrf.mxu0
      %v2424 = vadd.f32 0.0, %v2423
      %v2425 = vpop.f32.mrf.mxu0
      %v2426 = vadd.f32 0.0, %v2425
      %2427 = vmatmul.bf16.gmra.mxu0 %v2263
      %v2428 = vpop.f32.mrf.mxu0
      %v2429 = vadd.f32 0.0, %v2428
      %v2430 = vpop.f32.mrf.mxu0
      %v2431 = vadd.f32 0.0, %v2430
      %2432 = vmatmul.bf16.gmra.mxu0 %v2265
      %v2433 = vpop.f32.mrf.mxu0
      %v2434 = vadd.f32 0.0, %v2433
      %v2435 = vpop.f32.mrf.mxu0
      %v2436 = vadd.f32 0.0, %v2435
      %2437 = vmatmul.bf16.gmra.mxu0 %v2267
      %v2438 = vpop.f32.mrf.mxu0
      %v2439 = vadd.f32 0.0, %v2438
      %v2440 = vpop.f32.mrf.mxu0
      %v2441 = vadd.f32 0.0, %v2440
      %2442 = vmatmul.bf16.gmra.mxu0 %v2269
      %v2443 = vpop.f32.mrf.mxu0
      %v2444 = vadd.f32 0.0, %v2443
      %v2445 = vpop.f32.mrf.mxu0
      %v2446 = vadd.f32 0.0, %v2445
      %2447 = vmatmul.bf16.gmra.mxu0 %v2271
      %v2448 = vpop.f32.mrf.mxu0
      %v2449 = vadd.f32 0.0, %v2448
      %v2450 = vpop.f32.mrf.mxu0
      %v2451 = vadd.f32 0.0, %v2450
      %2452 = vmatmul.bf16.gmra.mxu0 %v2273
      %v2453 = vpop.f32.mrf.mxu0
      %v2454 = vadd.f32 0.0, %v2453
      %v2455 = vpop.f32.mrf.mxu0
      %v2456 = vadd.f32 0.0, %v2455
      %2457 = vmatmul.bf16.gmra.mxu0 %v2275
      %v2458 = vpop.f32.mrf.mxu0
      %v2459 = vadd.f32 0.0, %v2458
      %v2460 = vpop.f32.mrf.mxu0
      %v2461 = vadd.f32 0.0, %v2460
      %2462 = vmatmul.bf16.gmra.mxu0 %v2277
      %v2463 = vpop.f32.mrf.mxu0
      %v2464 = vadd.f32 0.0, %v2463
      %v2465 = vpop.f32.mrf.mxu0
      %v2466 = vadd.f32 0.0, %v2465
      %2467 = vmatmul.bf16.gmra.mxu0 %v2279
      %v2468 = vpop.f32.mrf.mxu0
      %v2469 = vadd.f32 0.0, %v2468
      %v2470 = vpop.f32.mrf.mxu0
      %v2471 = vadd.f32 0.0, %v2470
      %2472 = vmatmul.bf16.gmra.mxu0 %v2281
      %v2473 = vpop.f32.mrf.mxu0
      %v2474 = vadd.f32 0.0, %v2473
      %v2475 = vpop.f32.mrf.mxu0
      %v2476 = vadd.f32 0.0, %v2475
      %2477 = vmatmul.bf16.gmra.mxu0 %v2283
      %v2478 = vpop.f32.mrf.mxu0
      %v2479 = vadd.f32 0.0, %v2478
      %v2480 = vpop.f32.mrf.mxu0
      %v2481 = vadd.f32 0.0, %v2480
      %2482 = vmatmul.bf16.gmra.mxu0 %v2285
      %v2483 = vpop.f32.mrf.mxu0
      %v2484 = vadd.f32 0.0, %v2483
      %v2485 = vpop.f32.mrf.mxu0
      %v2486 = vadd.f32 0.0, %v2485
      %2487 = vmatmul.bf16.gmra.mxu0 %v2287
      %v2488 = vpop.f32.mrf.mxu0
      %v2489 = vadd.f32 0.0, %v2488
      %v2490 = vpop.f32.mrf.mxu0
      %v2491 = vadd.f32 0.0, %v2490
      %2492 = vmatmul.bf16.gmra.mxu0 %v2289
      %v2493 = vpop.f32.mrf.mxu0
      %v2494 = vadd.f32 0.0, %v2493
      %v2495 = vpop.f32.mrf.mxu0
      %v2496 = vadd.f32 0.0, %v2495
      %2497 = vdwg.mxu0
      %2498 = vmatpush.bf16.msra.mxu0 0
      %2499 = vmatpush.bf16.msra.mxu0 0
      %2500 = vmatpush.bf16.msra.mxu0 0
      %2501 = vmatpush.bf16.msra.mxu0 0
      %2502 = vmatpush.bf16.msra.mxu0 0
      %2503 = vmatpush.bf16.msra.mxu0 0
      %2504 = vmatpush.bf16.msra.mxu0 0
      %2505 = vmatpush.bf16.msra.mxu0 %v2351
      %2506 = vmatmul.bf16.gmra.mxu0 %v2362
      %v2507 = vpop.f32.mrf.mxu0
      %v2508 = vadd.f32 %v2419, %v2507
      %v2509 = vpop.f32.mrf.mxu0
      %v2510 = vadd.f32 %v2421, %v2509
      %2511 = vmatmul.bf16.gmra.mxu0 %v2365
      %v2512 = vpop.f32.mrf.mxu0
      %v2513 = vadd.f32 %v2424, %v2512
      %v2514 = vpop.f32.mrf.mxu0
      %v2515 = vadd.f32 %v2426, %v2514
      %2516 = vmatmul.bf16.gmra.mxu0 %v2368
      %v2517 = vpop.f32.mrf.mxu0
      %v2518 = vadd.f32 %v2429, %v2517
      %v2519 = vpop.f32.mrf.mxu0
      %v2520 = vadd.f32 %v2431, %v2519
      %2521 = vmatmul.bf16.gmra.mxu0 %v2371
      %v2522 = vpop.f32.mrf.mxu0
      %v2523 = vadd.f32 %v2434, %v2522
      %v2524 = vpop.f32.mrf.mxu0
      %v2525 = vadd.f32 %v2436, %v2524
      %2526 = vmatmul.bf16.gmra.mxu0 %v2374
      %v2527 = vpop.f32.mrf.mxu0
      %v2528 = vadd.f32 %v2439, %v2527
      %v2529 = vpop.f32.mrf.mxu0
      %v2530 = vadd.f32 %v2441, %v2529
      %2531 = vmatmul.bf16.gmra.mxu0 %v2377
      %v2532 = vpop.f32.mrf.mxu0
      %v2533 = vadd.f32 %v2444, %v2532
      %v2534 = vpop.f32.mrf.mxu0
      %v2535 = vadd.f32 %v2446, %v2534
      %2536 = vmatmul.bf16.gmra.mxu0 %v2380
      %v2537 = vpop.f32.mrf.mxu0
      %v2538 = vadd.f32 %v2449, %v2537
      %v2539 = vpop.f32.mrf.mxu0
      %v2540 = vadd.f32 %v2451, %v2539
      %2541 = vmatmul.bf16.gmra.mxu0 %v2383
      %v2542 = vpop.f32.mrf.mxu0
      %v2543 = vadd.f32 %v2454, %v2542
      %v2544 = vpop.f32.mrf.mxu0
      %v2545 = vadd.f32 %v2456, %v2544
      %2546 = vmatmul.bf16.gmra.mxu0 %v2386
      %v2547 = vpop.f32.mrf.mxu0
      %v2548 = vadd.f32 %v2459, %v2547
      %v2549 = vpop.f32.mrf.mxu0
      %v2550 = vadd.f32 %v2461, %v2549
      %2551 = vmatmul.bf16.gmra.mxu0 %v2389
      %v2552 = vpop.f32.mrf.mxu0
      %v2553 = vadd.f32 %v2464, %v2552
      %v2554 = vpop.f32.mrf.mxu0
      %v2555 = vadd.f32 %v2466, %v2554
      %2556 = vmatmul.bf16.gmra.mxu0 %v2392
      %v2557 = vpop.f32.mrf.mxu0
      %v2558 = vadd.f32 %v2469, %v2557
      %v2559 = vpop.f32.mrf.mxu0
      %v2560 = vadd.f32 %v2471, %v2559
      %2561 = vmatmul.bf16.gmra.mxu0 %v2395
      %v2562 = vpop.f32.mrf.mxu0
      %v2563 = vadd.f32 %v2474, %v2562
      %v2564 = vpop.f32.mrf.mxu0
      %v2565 = vadd.f32 %v2476, %v2564
      %2566 = vmatmul.bf16.gmra.mxu0 %v2398
      %v2567 = vpop.f32.mrf.mxu0
      %v2568 = vadd.f32 %v2479, %v2567
      %v2569 = vpop.f32.mrf.mxu0
      %v2570 = vadd.f32 %v2481, %v2569
      %2571 = vmatmul.bf16.gmra.mxu0 %v2401
      %v2572 = vpop.f32.mrf.mxu0
      %v2573 = vadd.f32 %v2484, %v2572
      %v2574 = vpop.f32.mrf.mxu0
      %v2575 = vadd.f32 %v2486, %v2574
      %2576 = vmatmul.bf16.gmra.mxu0 %v2404
      %v2577 = vpop.f32.mrf.mxu0
      %v2578 = vadd.f32 %v2489, %v2577
      %v2579 = vpop.f32.mrf.mxu0
      %v2580 = vadd.f32 %v2491, %v2579
      %2581 = vmatmul.bf16.gmra.mxu0 %v2407
      %v2582 = vpop.f32.mrf.mxu0
      %v2583 = vadd.f32 %v2494, %v2582
      %v2584 = vpop.f32.mrf.mxu0
      %v2585 = vadd.f32 %v2496, %v2584
      %2586 = vdwg.mxu0
      %vm2587 = vcmask 261120
      %v2588 = vsel %vm2587, %v2508, 0.0
      %v2589 = vsel %vm2587, %v2510, 0.0
      %v2590 = vadd.f32 %v2588, %v2589
      %v2591 = vsel %vm2587, %v2513, 0.0
      %v2592 = vadd.f32 %v2590, %v2591
      %v2593 = vsel %vm2587, %v2515, 0.0
      %v2594 = vadd.f32 %v2592, %v2593
      %v2595 = vsel %vm2587, %v2518, 0.0
      %v2596 = vadd.f32 %v2594, %v2595
      %v2597 = vsel %vm2587, %v2520, 0.0
      %v2598 = vadd.f32 %v2596, %v2597
      %v2599 = vsel %vm2587, %v2523, 0.0
      %v2600 = vadd.f32 %v2598, %v2599
      %v2601 = vsel %vm2587, %v2525, 0.0
      %v2602 = vadd.f32 %v2600, %v2601
      %v2603 = vsel %vm2587, %v2528, 0.0
      %v2604 = vadd.f32 %v2602, %v2603
      %v2605 = vsel %vm2587, %v2530, 0.0
      %v2606 = vadd.f32 %v2604, %v2605
      %v2607 = vsel %vm2587, %v2533, 0.0
      %v2608 = vadd.f32 %v2606, %v2607
      %v2609 = vsel %vm2587, %v2535, 0.0
      %v2610 = vadd.f32 %v2608, %v2609
      %v2611 = vsel %vm2587, %v2538, 0.0
      %v2612 = vadd.f32 %v2610, %v2611
      %v2613 = vsel %vm2587, %v2540, 0.0
      %v2614 = vadd.f32 %v2612, %v2613
      %v2615 = vsel %vm2587, %v2543, 0.0
      %v2616 = vadd.f32 %v2614, %v2615
      %v2617 = vsel %vm2587, %v2545, 0.0
      %v2618 = vadd.f32 %v2616, %v2617
      %v2619 = vsel %vm2587, %v2548, 0.0
      %v2620 = vadd.f32 %v2618, %v2619
      %v2621 = vsel %vm2587, %v2550, 0.0
      %v2622 = vadd.f32 %v2620, %v2621
      %v2623 = vsel %vm2587, %v2553, 0.0
      %v2624 = vadd.f32 %v2622, %v2623
      %v2625 = vsel %vm2587, %v2555, 0.0
      %v2626 = vadd.f32 %v2624, %v2625
      %v2627 = vsel %vm2587, %v2558, 0.0
      %v2628 = vadd.f32 %v2626, %v2627
      %v2629 = vsel %vm2587, %v2560, 0.0
      %v2630 = vadd.f32 %v2628, %v2629
      %v2631 = vsel %vm2587, %v2563, 0.0
      %v2632 = vadd.f32 %v2630, %v2631
      %v2633 = vsel %vm2587, %v2565, 0.0
      %v2634 = vadd.f32 %v2632, %v2633
      %v2635 = vsel %vm2587, %v2568, 0.0
      %v2636 = vadd.f32 %v2634, %v2635
      %v2637 = vsel %vm2587, %v2570, 0.0
      %v2638 = vadd.f32 %v2636, %v2637
      %v2639 = vsel %vm2587, %v2573, 0.0
      %v2640 = vadd.f32 %v2638, %v2639
      %v2641 = vsel %vm2587, %v2575, 0.0
      %v2642 = vadd.f32 %v2640, %v2641
      %v2643 = vsel %vm2587, %v2578, 0.0
      %v2644 = vadd.f32 %v2642, %v2643
      %v2645 = vsel %vm2587, %v2580, 0.0
      %v2646 = vadd.f32 %v2644, %v2645
      %v2647 = vsel %vm2587, %v2583, 0.0
      %v2648 = vadd.f32 %v2646, %v2647
      %v2649 = vsel %vm2587, %v2585, 0.0
      %v2650 = vadd.f32 %v2648, %v2649
      %v2651 = vrot.slane %v2650, 4
      %v2652 = vadd.f32 %v2650, %v2651
      %v2653 = vrot.slane %v2652, 2
      %v2654 = vadd.f32 %v2652, %v2653
      %v2655 = vrot.slane %v2654, 1
      %v2656 = vadd.f32 %v2654, %v2655
      %v2657 = vmul.f32 %v2508, %v2508
      %v2658 = vmul.f32 %v2510, %v2510
      %v2659 = vmul.f32 %v2513, %v2513
      %v2660 = vmul.f32 %v2515, %v2515
      %v2661 = vmul.f32 %v2518, %v2518
      %v2662 = vmul.f32 %v2520, %v2520
      %v2663 = vmul.f32 %v2523, %v2523
      %v2664 = vmul.f32 %v2525, %v2525
      %v2665 = vmul.f32 %v2528, %v2528
      %v2666 = vmul.f32 %v2530, %v2530
      %v2667 = vmul.f32 %v2533, %v2533
      %v2668 = vmul.f32 %v2535, %v2535
      %v2669 = vmul.f32 %v2538, %v2538
      %v2670 = vmul.f32 %v2540, %v2540
      %v2671 = vmul.f32 %v2543, %v2543
      %v2672 = vmul.f32 %v2545, %v2545
      %v2673 = vmul.f32 %v2548, %v2548
      %v2674 = vmul.f32 %v2550, %v2550
      %v2675 = vmul.f32 %v2553, %v2553
      %v2676 = vmul.f32 %v2555, %v2555
      %v2677 = vmul.f32 %v2558, %v2558
      %v2678 = vmul.f32 %v2560, %v2560
      %v2679 = vmul.f32 %v2563, %v2563
      %v2680 = vmul.f32 %v2565, %v2565
      %v2681 = vmul.f32 %v2568, %v2568
      %v2682 = vmul.f32 %v2570, %v2570
      %v2683 = vmul.f32 %v2573, %v2573
      %v2684 = vmul.f32 %v2575, %v2575
      %v2685 = vmul.f32 %v2578, %v2578
      %v2686 = vmul.f32 %v2580, %v2580
      %v2687 = vmul.f32 %v2583, %v2583
      %v2688 = vmul.f32 %v2585, %v2585
      %v2689 = vsel %vm2587, %v2657, 0.0
      %v2690 = vsel %vm2587, %v2658, 0.0
      %v2691 = vadd.f32 %v2689, %v2690
      %v2692 = vsel %vm2587, %v2659, 0.0
      %v2693 = vadd.f32 %v2691, %v2692
      %v2694 = vsel %vm2587, %v2660, 0.0
      %v2695 = vadd.f32 %v2693, %v2694
      %v2696 = vsel %vm2587, %v2661, 0.0
      %v2697 = vadd.f32 %v2695, %v2696
      %v2698 = vsel %vm2587, %v2662, 0.0
      %v2699 = vadd.f32 %v2697, %v2698
      %v2700 = vsel %vm2587, %v2663, 0.0
      %v2701 = vadd.f32 %v2699, %v2700
      %v2702 = vsel %vm2587, %v2664, 0.0
      %v2703 = vadd.f32 %v2701, %v2702
      %v2704 = vsel %vm2587, %v2665, 0.0
      %v2705 = vadd.f32 %v2703, %v2704
      %v2706 = vsel %vm2587, %v2666, 0.0
      %v2707 = vadd.f32 %v2705, %v2706
      %v2708 = vsel %vm2587, %v2667, 0.0
      %v2709 = vadd.f32 %v2707, %v2708
      %v2710 = vsel %vm2587, %v2668, 0.0
      %v2711 = vadd.f32 %v2709, %v2710
      %v2712 = vsel %vm2587, %v2669, 0.0
      %v2713 = vadd.f32 %v2711, %v2712
      %v2714 = vsel %vm2587, %v2670, 0.0
      %v2715 = vadd.f32 %v2713, %v2714
      %v2716 = vsel %vm2587, %v2671, 0.0
      %v2717 = vadd.f32 %v2715, %v2716
      %v2718 = vsel %vm2587, %v2672, 0.0
      %v2719 = vadd.f32 %v2717, %v2718
      %v2720 = vsel %vm2587, %v2673, 0.0
      %v2721 = vadd.f32 %v2719, %v2720
      %v2722 = vsel %vm2587, %v2674, 0.0
      %v2723 = vadd.f32 %v2721, %v2722
      %v2724 = vsel %vm2587, %v2675, 0.0
      %v2725 = vadd.f32 %v2723, %v2724
      %v2726 = vsel %vm2587, %v2676, 0.0
      %v2727 = vadd.f32 %v2725, %v2726
      %v2728 = vsel %vm2587, %v2677, 0.0
      %v2729 = vadd.f32 %v2727, %v2728
      %v2730 = vsel %vm2587, %v2678, 0.0
      %v2731 = vadd.f32 %v2729, %v2730
      %v2732 = vsel %vm2587, %v2679, 0.0
      %v2733 = vadd.f32 %v2731, %v2732
      %v2734 = vsel %vm2587, %v2680, 0.0
      %v2735 = vadd.f32 %v2733, %v2734
      %v2736 = vsel %vm2587, %v2681, 0.0
      %v2737 = vadd.f32 %v2735, %v2736
      %v2738 = vsel %vm2587, %v2682, 0.0
      %v2739 = vadd.f32 %v2737, %v2738
      %v2740 = vsel %vm2587, %v2683, 0.0
      %v2741 = vadd.f32 %v2739, %v2740
      %v2742 = vsel %vm2587, %v2684, 0.0
      %v2743 = vadd.f32 %v2741, %v2742
      %v2744 = vsel %vm2587, %v2685, 0.0
      %v2745 = vadd.f32 %v2743, %v2744
      %v2746 = vsel %vm2587, %v2686, 0.0
      %v2747 = vadd.f32 %v2745, %v2746
      %v2748 = vsel %vm2587, %v2687, 0.0
      %v2749 = vadd.f32 %v2747, %v2748
      %v2750 = vsel %vm2587, %v2688, 0.0
      %v2751 = vadd.f32 %v2749, %v2750
      %v2752 = vrot.slane %v2751, 4
      %v2753 = vadd.f32 %v2751, %v2752
      %v2754 = vrot.slane %v2753, 2
      %v2755 = vadd.f32 %v2753, %v2754
      %v2756 = vrot.slane %v2755, 1
      %v2757 = vadd.f32 %v2755, %v2756
      %vm2758 = vcmask 1040384
      %v2759 = vsel %vm2758, %v2656, %v2757
      %vm2760 = vcmask 254976
      %2761 = vst.msk [vmem:[%s235] sm:$0x3] %vm2760, %v2759
      %v2762 = vpack.c.bf16 %v2508, %v2508
      %v2763 = vpack.c.bf16 %v2510, %v2510
      %v2764 = vpack.c.bf16 %v2513, %v2513
      %v2765 = vpack.c.bf16 %v2515, %v2515
      %v2766 = vpack.c.bf16 %v2518, %v2518
      %v2767 = vpack.c.bf16 %v2520, %v2520
      %v2768 = vpack.c.bf16 %v2523, %v2523
      %v2769 = vpack.c.bf16 %v2525, %v2525
      %v2770 = vpack.c.bf16 %v2528, %v2528
      %v2771 = vpack.c.bf16 %v2530, %v2530
      %v2772 = vpack.c.bf16 %v2533, %v2533
      %v2773 = vpack.c.bf16 %v2535, %v2535
      %v2774 = vpack.c.bf16 %v2538, %v2538
      %v2775 = vpack.c.bf16 %v2540, %v2540
      %v2776 = vpack.c.bf16 %v2543, %v2543
      %v2777 = vpack.c.bf16 %v2545, %v2545
      %v2778 = vpack.c.bf16 %v2548, %v2548
      %v2779 = vpack.c.bf16 %v2550, %v2550
      %v2780 = vpack.c.bf16 %v2553, %v2553
      %v2781 = vpack.c.bf16 %v2555, %v2555
      %v2782 = vpack.c.bf16 %v2558, %v2558
      %v2783 = vpack.c.bf16 %v2560, %v2560
      %v2784 = vpack.c.bf16 %v2563, %v2563
      %v2785 = vpack.c.bf16 %v2565, %v2565
      %v2786 = vpack.c.bf16 %v2568, %v2568
      %v2787 = vpack.c.bf16 %v2570, %v2570
      %v2788 = vpack.c.bf16 %v2573, %v2573
      %v2789 = vpack.c.bf16 %v2575, %v2575
      %v2790 = vpack.c.bf16 %v2578, %v2578
      %v2791 = vpack.c.bf16 %v2580, %v2580
      %v2792 = vpack.c.bf16 %v2583, %v2583
      %v2793 = vpack.c.bf16 %v2585, %v2585
      %vm2794 = vcmask 257024
      %2795 = vst.msk [vmem:[%s231] sm:$0xf] %vm2794, %v2762
      %2796 = vst.msk [vmem:[%s231 + $0x4] sm:$0xf] %vm2794, %v2763
      %2797 = vst.msk [vmem:[%s231 + $0x8] sm:$0xf] %vm2794, %v2764
      %2798 = vst.msk [vmem:[%s231 + $0xc] sm:$0xf] %vm2794, %v2765
      %2799 = vst.msk [vmem:[%s231 + $0x10] sm:$0xf] %vm2794, %v2766
      %2800 = vst.msk [vmem:[%s231 + $0x14] sm:$0xf] %vm2794, %v2767
      %2801 = vst.msk [vmem:[%s231 + $0x18] sm:$0xf] %vm2794, %v2768
      %2802 = vst.msk [vmem:[%s231 + $0x1c] sm:$0xf] %vm2794, %v2769
      %2803 = vst.msk [vmem:[%s231 + $0x20] sm:$0xf] %vm2794, %v2770
      %2804 = vst.msk [vmem:[%s231 + $0x24] sm:$0xf] %vm2794, %v2771
      %2805 = vst.msk [vmem:[%s231 + $0x28] sm:$0xf] %vm2794, %v2772
      %2806 = vst.msk [vmem:[%s231 + $0x2c] sm:$0xf] %vm2794, %v2773
      %2807 = vst.msk [vmem:[%s231 + $0x30] sm:$0xf] %vm2794, %v2774
      %2808 = vst.msk [vmem:[%s231 + $0x34] sm:$0xf] %vm2794, %v2775
      %2809 = vst.msk [vmem:[%s231 + $0x38] sm:$0xf] %vm2794, %v2776
      %2810 = vst.msk [vmem:[%s231 + $0x3c] sm:$0xf] %vm2794, %v2777
      %2811 = vst.msk [vmem:[%s231 + $0x40] sm:$0xf] %vm2794, %v2778
      %2812 = vst.msk [vmem:[%s231 + $0x44] sm:$0xf] %vm2794, %v2779
      %2813 = vst.msk [vmem:[%s231 + $0x48] sm:$0xf] %vm2794, %v2780
      %2814 = vst.msk [vmem:[%s231 + $0x4c] sm:$0xf] %vm2794, %v2781
      %2815 = vst.msk [vmem:[%s231 + $0x50] sm:$0xf] %vm2794, %v2782
      %2816 = vst.msk [vmem:[%s231 + $0x54] sm:$0xf] %vm2794, %v2783
      %2817 = vst.msk [vmem:[%s231 + $0x58] sm:$0xf] %vm2794, %v2784
      %2818 = vst.msk [vmem:[%s231 + $0x5c] sm:$0xf] %vm2794, %v2785
      %2819 = vst.msk [vmem:[%s231 + $0x60] sm:$0xf] %vm2794, %v2786
      %2820 = vst.msk [vmem:[%s231 + $0x64] sm:$0xf] %vm2794, %v2787
      %2821 = vst.msk [vmem:[%s231 + $0x68] sm:$0xf] %vm2794, %v2788
      %2822 = vst.msk [vmem:[%s231 + $0x6c] sm:$0xf] %vm2794, %v2789
      %2823 = vst.msk [vmem:[%s231 + $0x70] sm:$0xf] %vm2794, %v2790
      %2824 = vst.msk [vmem:[%s231 + $0x74] sm:$0xf] %vm2794, %v2791
      %2825 = vst.msk [vmem:[%s231 + $0x78] sm:$0xf] %vm2794, %v2792
      %2826 = vst.msk [vmem:[%s231 + $0x7c] sm:$0xf] %vm2794, %v2793
      %p2827 = scmp.lt.s32.totalorder %s17, 1
      %s2828 = scalar_select %p2827, %s17, 1
      %s2829 = smul.addr %s2828, 32
      %s2830 = smul.addr %s2829, 4
      %s2831 = scalar_lea.vmem %s4, %s2830
      %p2832 = scmp.lt.s32.totalorder %s17, 1
      %s2833 = scalar_select %p2832, %s17, 1
      %s2834 = smul.addr %s2833, 2
      %s2835 = scalar_lea.vmem %s5, %s2834
      // Predicated region
      $region37: #{contracting_block_forward.4} parent=35 // pred_check
        %p2836 = pneg %p124
      $region38: #{contracting_block_forward.4} parent=35 // pred_check_branch
        %2838 = sbr.rel (%p2836) target = $region40
      $region39: #{contracting_block_forward.4} parent=35 // pred_region
        _
      $region40: #{contracting_block_forward.4} parent=35 // pred_fallthru
        _
      // Predicated region
      $region41: #{contracting_block_forward.4} parent=35 // pred_check
        %p2839 = pneg %p150
      $region42: #{contracting_block_forward.4} parent=35 // pred_check_branch
        %2841 = sbr.rel (%p2839) target = $region44
      $region43: #{contracting_block_forward.4} parent=35 // pred_region
        _
      $region44: #{contracting_block_forward.4} parent=35 // pred_fallthru
        _
    $region36: #{contracting_block_forward.4} parent=5 // pred_fallthru
      _
    %p2842 = scmp.le.s32.totalorder 2, %s12
    // Predicated region
    $region45: #{contracting_block_forward.4} parent=5 // pred_check
      %p2843 = pneg %p2842
    $region46: #{contracting_block_forward.4} parent=5 // pred_check_branch
      %2845 = sbr.rel (%p2843) target = $region48
    $region47: #{contracting_block_forward.4} parent=5 // pred_region
      %s2846 = ssub.s32 %s12, 2
      // Predicated region
      $region49: #{contracting_block_forward.4} parent=47 // pred_check
        %p2847 = pneg %p130
      $region50: #{contracting_block_forward.4} parent=47 // pred_check_branch
        %2849 = sbr.rel (%p2847) target = $region52
      $region51: #{contracting_block_forward.4} parent=47 // pred_region
        %p2850 = scmp.lt.s32.totalorder %s18, 1
        %s2851 = scalar_select %p2850, %s18, 1
        %s2852 = smul.addr %s2851, 32
        %s2853 = smul.addr %s2852, 4
        %s2854 = scalar_lea.vmem %s4, %s2853
      $region52: #{contracting_block_forward.4} parent=47 // pred_fallthru
        _
      // Predicated region
      $region53: #{contracting_block_forward.4} parent=47 // pred_check
        %p2855 = pneg %p156
      $region54: #{contracting_block_forward.4} parent=47 // pred_check_branch
        %2857 = sbr.rel (%p2855) target = $region56
      $region55: #{contracting_block_forward.4} parent=47 // pred_region
        %p2858 = scmp.lt.s32.totalorder %s18, 1
        %s2859 = scalar_select %p2858, %s18, 1
        %s2860 = smul.addr %s2859, 2
        %s2861 = scalar_lea.vmem %s5, %s2860
      $region56: #{contracting_block_forward.4} parent=47 // pred_fallthru
        _
    $region48: #{contracting_block_forward.4} parent=5 // pred_fallthru
      _
  $region6: #{contracting_block_forward.4} parent=0 // loop_footer
    %s16 = sadd.s32 1, %s12
  $region7: #{contracting_block_forward.4} parent=0 // loop_footer_branch
    %11 = sbr.rel target = $region3
  $region8: #{contracting_block_forward.4} parent=0 // loop_exit
    _

// kernel: contracting_block_forward.5
$region0: #{contracting_block_forward.5}
  #allocation0 [shape = 'u32[]', space=smem, size = 0x4, offset = 0x4, fixed_abs, tag = 'smem constant byte address 0x4 - core index']
  #allocation1 [shape = 'u32[72,128]{1,0:T(1,128)}', space=vmem, size = 0x9000, scoped, tag = 'internal scratch']
  #allocation2 [shape = 'f32[18,18,32]{2,1,0:T(8,128)}', space=vmem, size = 0x36000, scoped, tag = 'scratch operand']
  #allocation3 [shape = 'bf16[256,288]{1,0:T(8,128)(2,1)}', space=vmem, size = 0x30000, scoped, tag = 'scratch operand']
  %s0 = inlined_call_operand.vmem [shape: bf16[2,16,16,32], index: 0, kind: input, shape index: {}]
  %s1 = inlined_call_operand.vmem [shape: f32[1,32], index: 1, kind: input, shape index: {}]
  %s2 = inlined_call_operand.vmem [shape: f32[1,32], index: 2, kind: input, shape index: {}]
  %s3 = inlined_call_operand.vmem [shape: bf16[288,32], index: 3, kind: input, shape index: {}]
  %s4 = inlined_call_operand.vmem [shape: bf16[2,16,16,32], index: 4, kind: output, shape index: {0}]
  %s5 = inlined_call_operand.vmem [shape: f32[2,2,32], index: 5, kind: output, shape index: {1}]
  %6 = xla_tuple %s4, %s5
  %s7 = sld [smem:[#allocation0]]
  $region57: #{contracting_block_forward.5} parent=0
    _
  %s9 = ssub.s32 1, %s7
  %s10 = scalar_select 0, %s9, %s7
  loop: start=0, step=1, limit=4
  $region2: #{contracting_block_forward.5} parent=0 // loop_pre_header
    _
  $region3: #{contracting_block_forward.5} parent=0 // loop_header
    %s12 = sphi 0, %s16
    %p13 = scmp.ge.s32.totalorder %s12, 4
    %s22 = sphi 0, %s24
    %s25 = sphi 0, %s22
    %s26 = sphi 0, %s25
    %s42 = sphi 0, %s26
    %s46 = sphi 0, %s46
    %s48 = sphi 0, %s46
    %s49 = sphi 0, %s48
    %s63 = sphi 0, %s49
    %s67 = sphi 0, %s67
    %s69 = sphi 0, %s67
    %s70 = sphi 0, %s69
    %s84 = sphi 0, %s70
    %s88 = sphi 0, %s88
    %s90 = sphi 0, %s88
    %s91 = sphi 0, %s90
    %s105 = sphi 0, %s91
    %s111 = sphi 0, %s113
    %s114 = sphi 0, %s111
    %s115 = sphi 0, %s114
    %s131 = sphi 0, %s115
    %s137 = sphi 0, %s139
    %s140 = sphi 0, %s137
    %s141 = sphi 0, %s140
    %s157 = sphi 0, %s141
  $region4: #{contracting_block_forward.5} parent=0 // loop_header_branch
    %15 = sbr.rel (%p13) target = $region8
  $region5: #{contracting_block_forward.5} parent=0 // loop_body
    %s17 = ssub.s32 %s12, 1
    %s18 = ssub.s32 %s12, 2
    %s19 = sadd.s32 %s12, 1
    %s20 = ssub.s32 %s12, %s19
    %p21 = scmp.eq.s32.totalorder %s20, 0
    %s23 = sadd.s32 %s22, 1
    %s24 = scalar_select %p21, %s22, %s23
    %p27 = pneg %p21
    %p28 = scmp.eq.s32.totalorder %s12, 1
    %p29 = por %p27, %p28
    %p30 = scmp.ne.s32.totalorder %s22, %s25
    %p31 = scmp.eq.s32.totalorder %s12, 0
    %p32 = por %p30, %p31
    %p33 = scmp.ne.s32.totalorder %s22, %s25
    %p34 = scmp.eq.s32.totalorder %s17, 1
    %p35 = por %p33, %p34
    %p36 = scmp.ne.s32.totalorder %s25, %s26
    %p37 = scmp.eq.s32.totalorder %s17, 0
    %p38 = por %p36, %p37
    %p39 = scmp.ne.s32.totalorder %s25, %s26
    %p40 = scmp.eq.s32.totalorder %s18, 1
    %p41 = por %p39, %p40
    %p43 = scmp.ne.s32.totalorder %s26, %s42
    %p44 = scmp.eq.s32.totalorder %s18, 0
    %p45 = por %p43, %p44
    %s47 = sadd.s32 %s46, 1
    %p50 = scmp.eq.s32.totalorder %s12, 1
    %p51 = scmp.ne.s32.totalorder %s46, %s48
    %p52 = scmp.eq.s32.totalorder %s12, 0
    %p53 = por %p51, %p52
    %p54 = scmp.ne.s32.totalorder %s46, %s48
    %p55 = scmp.eq.s32.totalorder %s17, 1
    %p56 = por %p54, %p55
    %p57 = scmp.ne.s32.totalorder %s48, %s49
    %p58 = scmp.eq.s32.totalorder %s17, 0
    %p59 = por %p57, %p58
    %p60 = scmp.ne.s32.totalorder %s48, %s49
    %p61 = scmp.eq.s32.totalorder %s18, 1
    %p62 = por %p60, %p61
    %p64 = scmp.ne.s32.totalorder %s49, %s63
    %p65 = scmp.eq.s32.totalorder %s18, 0
    %p66 = por %p64, %p65
    %s68 = sadd.s32 %s67, 1
    %p71 = scmp.eq.s32.totalorder %s12, 1
    %p72 = scmp.ne.s32.totalorder %s67, %s69
    %p73 = scmp.eq.s32.totalorder %s12, 0
    %p74 = por %p72, %p73
    %p75 = scmp.ne.s32.totalorder %s67, %s69
    %p76 = scmp.eq.s32.totalorder %s17, 1
    %p77 = por %p75, %p76
    %p78 = scmp.ne.s32.totalorder %s69, %s70
    %p79 = scmp.eq.s32.totalorder %s17, 0
    %p80 = por %p78, %p79
    %p81 = scmp.ne.s32.totalorder %s69, %s70
    %p82 = scmp.eq.s32.totalorder %s18, 1
    %p83 = por %p81, %p82
    %p85 = scmp.ne.s32.totalorder %s70, %s84
    %p86 = scmp.eq.s32.totalorder %s18, 0
    %p87 = por %p85, %p86
    %s89 = sadd.s32 %s88, 1
    %p92 = scmp.eq.s32.totalorder %s12, 1
    %p93 = scmp.ne.s32.totalorder %s88, %s90
    %p94 = scmp.eq.s32.totalorder %s12, 0
    %p95 = por %p93, %p94
    %p96 = scmp.ne.s32.totalorder %s88, %s90
    %p97 = scmp.eq.s32.totalorder %s17, 1
    %p98 = por %p96, %p97
    %p99 = scmp.ne.s32.totalorder %s90, %s91
    %p100 = scmp.eq.s32.totalorder %s17, 0
    %p101 = por %p99, %p100
    %p102 = scmp.ne.s32.totalorder %s90, %s91
    %p103 = scmp.eq.s32.totalorder %s18, 1
    %p104 = por %p102, %p103
    %p106 = scmp.ne.s32.totalorder %s91, %s105
    %p107 = scmp.eq.s32.totalorder %s18, 0
    %p108 = por %p106, %p107
    %s109 = ssub.s32 %s12, %s19
    %p110 = scmp.eq.s32.totalorder %s109, 0
    %s112 = sadd.s32 %s111, 1
    %s113 = scalar_select %p110, %s111, %s112
    %p116 = pneg %p110
    %p117 = scmp.eq.s32.totalorder %s12, 1
    %p118 = por %p116, %p117
    %p119 = scmp.ne.s32.totalorder %s111, %s114
    %p120 = scmp.eq.s32.totalorder %s12, 0
    %p121 = por %p119, %p120
    %p122 = scmp.ne.s32.totalorder %s111, %s114
    %p123 = scmp.eq.s32.totalorder %s17, 1
    %p124 = por %p122, %p123
    %p125 = scmp.ne.s32.totalorder %s114, %s115
    %p126 = scmp.eq.s32.totalorder %s17, 0
    %p127 = por %p125, %p126
    %p128 = scmp.ne.s32.totalorder %s114, %s115
    %p129 = scmp.eq.s32.totalorder %s18, 1
    %p130 = por %p128, %p129
    %p132 = scmp.ne.s32.totalorder %s115, %s131
    %p133 = scmp.eq.s32.totalorder %s18, 0
    %p134 = por %p132, %p133
    %s135 = ssub.s32 %s12, %s19
    %p136 = scmp.eq.s32.totalorder %s135, 0
    %s138 = sadd.s32 %s137, 1
    %s139 = scalar_select %p136, %s137, %s138
    %p142 = pneg %p136
    %p143 = scmp.eq.s32.totalorder %s12, 1
    %p144 = por %p142, %p143
    %p145 = scmp.ne.s32.totalorder %s137, %s140
    %p146 = scmp.eq.s32.totalorder %s12, 0
    %p147 = por %p145, %p146
    %p148 = scmp.ne.s32.totalorder %s137, %s140
    %p149 = scmp.eq.s32.totalorder %s17, 1
    %p150 = por %p148, %p149
    %p151 = scmp.ne.s32.totalorder %s140, %s141
    %p152 = scmp.eq.s32.totalorder %s17, 0
    %p153 = por %p151, %p152
    %p154 = scmp.ne.s32.totalorder %s140, %s141
    %p155 = scmp.eq.s32.totalorder %s18, 1
    %p156 = por %p154, %p155
    %p158 = scmp.ne.s32.totalorder %s141, %s157
    %p159 = scmp.eq.s32.totalorder %s18, 0
    %p160 = por %p158, %p159
    %p161 = scmp.le.s32.totalorder 1, %s12
    %p162 = scmp.lt.s32.totalorder %s12, 3
    %p163 = pnand %p161, %p162
    %p164 = pneg %p163
    // Predicated region
    $region9: #{contracting_block_forward.5} parent=5 // pred_check
      _
    $region10: #{contracting_block_forward.5} parent=5 // pred_check_branch
      %166 = sbr.rel (%p163) target = $region12
    $region11: #{contracting_block_forward.5} parent=5 // pred_region
      %s167 = ssub.s32 %s12, 1
      // Predicated region
      $region13: #{contracting_block_forward.5} parent=11 // pred_check
        %p168 = pneg %p59
      $region14: #{contracting_block_forward.5} parent=11 // pred_check_branch
        %170 = sbr.rel (%p168) target = $region16
      $region15: #{contracting_block_forward.5} parent=11 // pred_region
        _
      $region16: #{contracting_block_forward.5} parent=11 // pred_fallthru
        _
      // Predicated region
      $region17: #{contracting_block_forward.5} parent=11 // pred_check
        %p171 = pneg %p80
      $region18: #{contracting_block_forward.5} parent=11 // pred_check_branch
        %173 = sbr.rel (%p171) target = $region20
      $region19: #{contracting_block_forward.5} parent=11 // pred_region
        _
      $region20: #{contracting_block_forward.5} parent=11 // pred_fallthru
        _
      // Predicated region
      $region21: #{contracting_block_forward.5} parent=11 // pred_check
        %p174 = pneg %p101
      $region22: #{contracting_block_forward.5} parent=11 // pred_check_branch
        %176 = sbr.rel (%p174) target = $region24
      $region23: #{contracting_block_forward.5} parent=11 // pred_region
        _
      $region24: #{contracting_block_forward.5} parent=11 // pred_fallthru
        _
    $region12: #{contracting_block_forward.5} parent=5 // pred_fallthru
      _
    %p177 = scmp.lt.s32.totalorder %s12, 2
    // Predicated region
    $region25: #{contracting_block_forward.5} parent=5 // pred_check
      %p178 = pneg %p177
    $region26: #{contracting_block_forward.5} parent=5 // pred_check_branch
      %180 = sbr.rel (%p178) target = $region28
    $region27: #{contracting_block_forward.5} parent=5 // pred_region
      // Predicated region
      $region29: #{contracting_block_forward.5} parent=27 // pred_check
        %p181 = pneg %p32
      $region30: #{contracting_block_forward.5} parent=27 // pred_check_branch
        %183 = sbr.rel (%p181) target = $region32
      $region31: #{contracting_block_forward.5} parent=27 // pred_region
        %p184 = scmp.lt.s32.totalorder %s12, 1
        %s185 = scalar_select %p184, %s12, 1
        %s186 = smul.addr %s185, 32
        %s187 = smul.addr %s186, 4
        %s188 = scalar_lea.vmem %s0, %s187
      $region32: #{contracting_block_forward.5} parent=27 // pred_fallthru
        _
    $region28: #{contracting_block_forward.5} parent=5 // pred_fallthru
      _
    %p189 = scmp.le.s32.totalorder 1, %s12
    %p190 = scmp.lt.s32.totalorder %s12, 3
    %p191 = pnand %p189, %p190
    %p192 = pneg %p191
    // Predicated region
    $region33: #{contracting_block_forward.5} parent=5 // pred_check
      _
    $region34: #{contracting_block_forward.5} parent=5 // pred_check_branch
      %194 = sbr.rel (%p191) target = $region36
    $region35: #{contracting_block_forward.5} parent=5 // pred_region
      %s195 = ssub.s32 %s12, 1
      %p196 = scmp.lt.s32.totalorder %s17, 1
      %s197 = scalar_select %p196, %s17, 1
      %s198 = smul.addr %s197, 32
      %s199 = smul.addr %s198, 4
      %s200 = scalar_lea.vmem %s0, %s199
      %p201 = pneg %p38
      %p202 = pneg %p35
      %p203 = pneg %p59
      %p204 = pneg %p56
      %p205 = pneg %p80
      %p206 = pneg %p77
      %p207 = pneg %p101
      %p208 = pneg %p98
      %p209 = pneg %p127
      %p210 = pneg %p124
      %p211 = scmp.lt.s32.totalorder %s17, 1
      %s212 = scalar_select %p211, %s17, 1
      %s213 = smul.addr %s212, 32
      %s214 = smul.addr %s213, 4
      %s215 = scalar_lea.vmem %s4, %s214
      %p216 = pneg %p153
      %p217 = pneg %p150
      %p218 = scmp.lt.s32.totalorder %s17, 1
      %s219 = scalar_select %p218, %s17, 1
      %s220 = smul.addr %s219, 2
      %s221 = scalar_lea.vmem %s5, %s220
      %p222 = scmp.lt.s32.totalorder %s17, 1
      %s223 = scalar_select %p222, %s17, 1
      %s224 = smul.addr %s223, 32
      %s225 = smul.addr %s224, 4
      %s226 = scalar_lea.vmem %s0, %s225
      %p227 = scmp.lt.s32.totalorder %s17, 1
      %s228 = scalar_select %p227, %s17, 1
      %s229 = smul.addr %s228, 32
      %s230 = smul.addr %s229, 4
      %s231 = scalar_lea.vmem %s4, %s230
      %p232 = scmp.lt.s32.totalorder %s17, 1
      %s233 = scalar_select %p232, %s17, 1
      %s234 = smul.addr %s233, 2
      %s235 = scalar_lea.vmem %s5, %s234
      %v237 = vld [vmem:[%s226] sm:$0xf]
      %v238 = vld [vmem:[%s226 + $0x4] sm:$0xf]
      %v239 = vld [vmem:[%s226 + $0x8] sm:$0xf]
      %v240 = vld [vmem:[%s226 + $0xc] sm:$0xf]
      %v241 = vld [vmem:[%s226 + $0x10] sm:$0xf]
      %v242 = vld [vmem:[%s226 + $0x14] sm:$0xf]
      %v243 = vld [vmem:[%s226 + $0x18] sm:$0xf]
      %v244 = vld [vmem:[%s226 + $0x1c] sm:$0xf]
      %v245 = vld [vmem:[%s226 + $0x20] sm:$0xf]
      %v246 = vld [vmem:[%s226 + $0x24] sm:$0xf]
      %v247 = vld [vmem:[%s226 + $0x28] sm:$0xf]
      %v248 = vld [vmem:[%s226 + $0x2c] sm:$0xf]
      %v249 = vld [vmem:[%s226 + $0x30] sm:$0xf]
      %v250 = vld [vmem:[%s226 + $0x34] sm:$0xf]
      %v251 = vld [vmem:[%s226 + $0x38] sm:$0xf]
      %v252 = vld [vmem:[%s226 + $0x3c] sm:$0xf]
      %v253 = vld [vmem:[%s226 + $0x40] sm:$0xf]
      %v254 = vld [vmem:[%s226 + $0x44] sm:$0xf]
      %v255 = vld [vmem:[%s226 + $0x48] sm:$0xf]
      %v256 = vld [vmem:[%s226 + $0x4c] sm:$0xf]
      %v257 = vld [vmem:[%s226 + $0x50] sm:$0xf]
      %v258 = vld [vmem:[%s226 + $0x54] sm:$0xf]
      %v259 = vld [vmem:[%s226 + $0x58] sm:$0xf]
      %v260 = vld [vmem:[%s226 + $0x5c] sm:$0xf]
      %v261 = vld [vmem:[%s226 + $0x60] sm:$0xf]
      %v262 = vld [vmem:[%s226 + $0x64] sm:$0xf]
      %v263 = vld [vmem:[%s226 + $0x68] sm:$0xf]
      %v264 = vld [vmem:[%s226 + $0x6c] sm:$0xf]
      %v265 = vld [vmem:[%s226 + $0x70] sm:$0xf]
      %v266 = vld [vmem:[%s226 + $0x74] sm:$0xf]
      %v267 = vld [vmem:[%s226 + $0x78] sm:$0xf]
      %v268 = vld [vmem:[%s226 + $0x7c] sm:$0xf]
      %v269 = vunpack.c.l.bf16 %v237
      %v270 = vunpack.c.l.bf16 %v238
      %v271 = vunpack.c.l.bf16 %v239
      %v272 = vunpack.c.l.bf16 %v240
      %v273 = vunpack.c.l.bf16 %v241
      %v274 = vunpack.c.l.bf16 %v242
      %v275 = vunpack.c.l.bf16 %v243
      %v276 = vunpack.c.l.bf16 %v244
      %v277 = vunpack.c.l.bf16 %v245
      %v278 = vunpack.c.l.bf16 %v246
      %v279 = vunpack.c.l.bf16 %v247
      %v280 = vunpack.c.l.bf16 %v248
      %v281 = vunpack.c.l.bf16 %v249
      %v282 = vunpack.c.l.bf16 %v250
      %v283 = vunpack.c.l.bf16 %v251
      %v284 = vunpack.c.l.bf16 %v252
      %v285 = vunpack.c.l.bf16 %v253
      %v286 = vunpack.c.l.bf16 %v254
      %v287 = vunpack.c.l.bf16 %v255
      %v288 = vunpack.c.l.bf16 %v256
      %v289 = vunpack.c.l.bf16 %v257
      %v290 = vunpack.c.l.bf16 %v258
      %v291 = vunpack.c.l.bf16 %v259
      %v292 = vunpack.c.l.bf16 %v260
      %v293 = vunpack.c.l.bf16 %v261
      %v294 = vunpack.c.l.bf16 %v262
      %v295 = vunpack.c.l.bf16 %v263
      %v296 = vunpack.c.l.bf16 %v264
      %v297 = vunpack.c.l.bf16 %v265
      %v298 = vunpack.c.l.bf16 %v266
      %v299 = vunpack.c.l.bf16 %v267
      %v300 = vunpack.c.l.bf16 %v268
      %v301 = vld [vmem:[%s1] sm:$0x1]
      %v303 = vperm.slane %v301, 0
      %v305 = vmul.f32 %v269, %v303
      %v306 = vmul.f32 %v270, %v303
      %v307 = vmul.f32 %v271, %v303
      %v308 = vmul.f32 %v272, %v303
      %v309 = vmul.f32 %v273, %v303
      %v310 = vmul.f32 %v274, %v303
      %v311 = vmul.f32 %v275, %v303
      %v312 = vmul.f32 %v276, %v303
      %v313 = vmul.f32 %v277, %v303
      %v314 = vmul.f32 %v278, %v303
      %v315 = vmul.f32 %v279, %v303
      %v316 = vmul.f32 %v280, %v303
      %v317 = vmul.f32 %v281, %v303
      %v318 = vmul.f32 %v282, %v303
      %v319 = vmul.f32 %v283, %v303
      %v320 = vmul.f32 %v284, %v303
      %v321 = vmul.f32 %v285, %v303
      %v322 = vmul.f32 %v286, %v303
      %v323 = vmul.f32 %v287, %v303
      %v324 = vmul.f32 %v288, %v303
      %v325 = vmul.f32 %v289, %v303
      %v326 = vmul.f32 %v290, %v303
      %v327 = vmul.f32 %v291, %v303
      %v328 = vmul.f32 %v292, %v303
      %v329 = vmul.f32 %v293, %v303
      %v330 = vmul.f32 %v294, %v303
      %v331 = vmul.f32 %v295, %v303
      %v332 = vmul.f32 %v296, %v303
      %v333 = vmul.f32 %v297, %v303
      %v334 = vmul.f32 %v298, %v303
      %v335 = vmul.f32 %v299, %v303
      %v336 = vmul.f32 %v300, %v303
      %v337 = vld [vmem:[%s2] sm:$0x1]
      %v339 = vperm.slane %v337, 0
      %v341 = vadd.f32 %v305, %v339
      %v342 = vadd.f32 %v306, %v339
      %v343 = vadd.f32 %v307, %v339
      %v344 = vadd.f32 %v308, %v339
      %v345 = vadd.f32 %v309, %v339
      %v346 = vadd.f32 %v310, %v339
      %v347 = vadd.f32 %v311, %v339
      %v348 = vadd.f32 %v312, %v339
      %v349 = vadd.f32 %v313, %v339
      %v350 = vadd.f32 %v314, %v339
      %v351 = vadd.f32 %v315, %v339
      %v352 = vadd.f32 %v316, %v339
      %v353 = vadd.f32 %v317, %v339
      %v354 = vadd.f32 %v318, %v339
      %v355 = vadd.f32 %v319, %v339
      %v356 = vadd.f32 %v320, %v339
      %v357 = vadd.f32 %v321, %v339
      %v358 = vadd.f32 %v322, %v339
      %v359 = vadd.f32 %v323, %v339
      %v360 = vadd.f32 %v324, %v339
      %v361 = vadd.f32 %v325, %v339
      %v362 = vadd.f32 %v326, %v339
      %v363 = vadd.f32 %v327, %v339
      %v364 = vadd.f32 %v328, %v339
      %v365 = vadd.f32 %v329, %v339
      %v366 = vadd.f32 %v330, %v339
      %v367 = vadd.f32 %v331, %v339
      %v368 = vadd.f32 %v332, %v339
      %v369 = vadd.f32 %v333, %v339
      %v370 = vadd.f32 %v334, %v339
      %v371 = vadd.f32 %v335, %v339
      %v372 = vadd.f32 %v336, %v339
      %vm373 = vcmp.ge.f32.partialorder %v341, 0.0
      %vm374 = vcmp.ge.f32.partialorder %v342, 0.0
      %vm375 = vcmp.ge.f32.partialorder %v343, 0.0
      %vm376 = vcmp.ge.f32.partialorder %v344, 0.0
      %vm377 = vcmp.ge.f32.partialorder %v345, 0.0
      %vm378 = vcmp.ge.f32.partialorder %v346, 0.0
      %vm379 = vcmp.ge.f32.partialorder %v347, 0.0
      %vm380 = vcmp.ge.f32.partialorder %v348, 0.0
      %vm381 = vcmp.ge.f32.partialorder %v349, 0.0
      %vm382 = vcmp.ge.f32.partialorder %v350, 0.0
      %vm383 = vcmp.ge.f32.partialorder %v351, 0.0
      %vm384 = vcmp.ge.f32.partialorder %v352, 0.0
      %vm385 = vcmp.ge.f32.partialorder %v353, 0.0
      %vm386 = vcmp.ge.f32.partialorder %v354, 0.0
      %vm387 = vcmp.ge.f32.partialorder %v355, 0.0
      %vm388 = vcmp.ge.f32.partialorder %v356, 0.0
      %vm389 = vcmp.ge.f32.partialorder %v357, 0.0
      %vm390 = vcmp.ge.f32.partialorder %v358, 0.0
      %vm391 = vcmp.ge.f32.partialorder %v359, 0.0
      %vm392 = vcmp.ge.f32.partialorder %v360, 0.0
      %vm393 = vcmp.ge.f32.partialorder %v361, 0.0
      %vm394 = vcmp.ge.f32.partialorder %v362, 0.0
      %vm395 = vcmp.ge.f32.partialorder %v363, 0.0
      %vm396 = vcmp.ge.f32.partialorder %v364, 0.0
      %vm397 = vcmp.ge.f32.partialorder %v365, 0.0
      %vm398 = vcmp.ge.f32.partialorder %v366, 0.0
      %vm399 = vcmp.ge.f32.partialorder %v367, 0.0
      %vm400 = vcmp.ge.f32.partialorder %v368, 0.0
      %vm401 = vcmp.ge.f32.partialorder %v369, 0.0
      %vm402 = vcmp.ge.f32.partialorder %v370, 0.0
      %vm403 = vcmp.ge.f32.partialorder %v371, 0.0
      %vm404 = vcmp.ge.f32.partialorder %v372, 0.0
      %v405 = vmul.f32 %v341, 0.2
      %v406 = vmul.f32 %v342, 0.2
      %v407 = vmul.f32 %v343, 0.2
      %v408 = vmul.f32 %v344, 0.2
      %v409 = vmul.f32 %v345, 0.2
      %v410 = vmul.f32 %v346, 0.2
      %v411 = vmul.f32 %v347, 0.2
      %v412 = vmul.f32 %v348, 0.2
      %v413 = vmul.f32 %v349, 0.2
      %v414 = vmul.f32 %v350, 0.2
      %v415 = vmul.f32 %v351, 0.2
      %v416 = vmul.f32 %v352, 0.2
      %v417 = vmul.f32 %v353, 0.2
      %v418 = vmul.f32 %v354, 0.2
      %v419 = vmul.f32 %v355, 0.2
      %v420 = vmul.f32 %v356, 0.2
      %v421 = vmul.f32 %v357, 0.2
      %v422 = vmul.f32 %v358, 0.2
      %v423 = vmul.f32 %v359, 0.2
      %v424 = vmul.f32 %v360, 0.2
      %v425 = vmul.f32 %v361, 0.2
      %v426 = vmul.f32 %v362, 0.2
      %v427 = vmul.f32 %v363, 0.2
      %v428 = vmul.f32 %v364, 0.2
      %v429 = vmul.f32 %v365, 0.2
      %v430 = vmul.f32 %v366, 0.2
      %v431 = vmul.f32 %v367, 0.2
      %v432 = vmul.f32 %v368, 0.2
      %v433 = vmul.f32 %v369, 0.2
      %v434 = vmul.f32 %v370, 0.2
      %v435 = vmul.f32 %v371, 0.2
      %v436 = vmul.f32 %v372, 0.2
      %v437 = vsel %vm373, %v341, %v405
      %v438 = vsel %vm374, %v342, %v406
      %v439 = vsel %vm375, %v343, %v407
      %v440 = vsel %vm376, %v344, %v408
      %v441 = vsel %vm377, %v345, %v409
      %v442 = vsel %vm378, %v346, %v410
      %v443 = vsel %vm379, %v347, %v411
      %v444 = vsel %vm380, %v348, %v412
      %v445 = vsel %vm381, %v349, %v413
      %v446 = vsel %vm382, %v350, %v414
      %v447 = vsel %vm383, %v351, %v415
      %v448 = vsel %vm384, %v352, %v416
      %v449 = vsel %vm385, %v353, %v417
      %v450 = vsel %vm386, %v354, %v418
      %v451 = vsel %vm387, %v355, %v419
      %v452 = vsel %vm388, %v356, %v420
      %v453 = vsel %vm389, %v357, %v421
      %v454 = vsel %vm390, %v358, %v422
      %v455 = vsel %vm391, %v359, %v423
      %v456 = vsel %vm392, %v360, %v424
      %v457 = vsel %vm393, %v361, %v425
      %v458 = vsel %vm394, %v362, %v426
      %v459 = vsel %vm395, %v363, %v427
      %v460 = vsel %vm396, %v364, %v428
      %v461 = vsel %vm397, %v365, %v429
      %v462 = vsel %vm398, %v366, %v430
      %v463 = vsel %vm399, %v367, %v431
      %v464 = vsel %vm400, %v368, %v432
      %v465 = vsel %vm401, %v369, %v433
      %v466 = vsel %vm402, %v370, %v434
      %v467 = vsel %vm403, %v371, %v435
      %v468 = vsel %vm404, %v372, %v436
      %vm469 = vcmask 261120
      %470 = vst.msk [vmem:[#allocation2] sm:$0xff] %vm469, 0.0
      %471 = vst.msk [vmem:[#allocation2 + $0x8] sm:$0xff] %vm469, 0.0
      %vm472 = vcmask 254976
      %473 = vst.msk [vmem:[#allocation2 + $0x10] sm:$0x3] %vm472, 0.0
      %s474 = scalar_lea.vmem [#allocation2], 408
      %475 = vst.msk [vmem:[%s474] sm:$0xff] %vm469, 0.0
      %476 = vst.msk [vmem:[%s474 + $0x8] sm:$0xff] %vm469, 0.0
      %477 = vst.msk [vmem:[%s474 + $0x10] sm:$0x3] %vm472, 0.0
      %s478 = scalar_lea.vmem [#allocation2], 24
      %vm479 = vcmask 253952
      %480 = vst.msk [vmem:[%s478] sm:$0x1] %vm479, 0.0
      %481 = vst.msk [vmem:[%s478 + $0x18] sm:$0x1] %vm479, 0.0
      %482 = vst.msk [vmem:[%s478 + $0x30] sm:$0x1] %vm479, 0.0
      %483 = vst.msk [vmem:[%s478 + $0x48] sm:$0x1] %vm479, 0.0
      %484 = vst.msk [vmem:[%s478 + $0x60] sm:$0x1] %vm479, 0.0
      %485 = vst.msk [vmem:[%s478 + $0x78] sm:$0x1] %vm479, 0.0
      %486 = vst.msk [vmem:[%s478 + $0x90] sm:$0x1] %vm479, 0.0
      %487 = vst.msk [vmem:[%s478 + $0xa8] sm:$0x1] %vm479, 0.0
      %488 = vst.msk [vmem:[%s478 + $0xc0] sm:$0x1] %vm479, 0.0
      %489 = vst.msk [vmem:[%s478 + $0xd8] sm:$0x1] %vm479, 0.0
      %490 = vst.msk [vmem:[%s478 + $0xf0] sm:$0x1] %vm479, 0.0
      %491 = vst.msk [vmem:[%s478 + $0x108] sm:$0x1] %vm479, 0.0
      %492 = vst.msk [vmem:[%s478 + $0x120] sm:$0x1] %vm479, 0.0
      %493 = vst.msk [vmem:[%s478 + $0x138] sm:$0x1] %vm479, 0.0
      %494 = vst.msk [vmem:[%s478 + $0x150] sm:$0x1] %vm479, 0.0
      %495 = vst.msk [vmem:[%s478 + $0x168] sm:$0x1] %vm479, 0.0
      %496 = vst.msk [vmem:[%s478 + $0x11] sm:$0x1] %vm479, 0.0
      %497 = vst.msk [vmem:[%s478 + $0x29] sm:$0x1] %vm479, 0.0
      %498 = vst.msk [vmem:[%s478 + $0x41] sm:$0x1] %vm479, 0.0
      %499 = vst.msk [vmem:[%s478 + $0x59] sm:$0x1] %vm479, 0.0
      %500 = vst.msk [vmem:[%s478 + $0x71] sm:$0x1] %vm479, 0.0
      %501 = vst.msk [vmem:[%s478 + $0x89] sm:$0x1] %vm479, 0.0
      %502 = vst.msk [vmem:[%s478 + $0xa1] sm:$0x1] %vm479, 0.0
      %503 = vst.msk [vmem:[%s478 + $0xb9] sm:$0x1] %vm479, 0.0
      %504 = vst.msk [vmem:[%s478 + $0xd1] sm:$0x1] %vm479, 0.0
      %505 = vst.msk [vmem:[%s478 + $0xe9] sm:$0x1] %vm479, 0.0
      %506 = vst.msk [vmem:[%s478 + $0x101] sm:$0x1] %vm479, 0.0
      %507 = vst.msk [vmem:[%s478 + $0x119] sm:$0x1] %vm479, 0.0
      %508 = vst.msk [vmem:[%s478 + $0x131] sm:$0x1] %vm479, 0.0
      %509 = vst.msk [vmem:[%s478 + $0x149] sm:$0x1] %vm479, 0.0
      %510 = vst.msk [vmem:[%s478 + $0x161] sm:$0x1] %vm479, 0.0
      %511 = vst.msk [vmem:[%s478 + $0x179] sm:$0x1] %vm479, 0.0
      %512 = vst.msk [vmem:[%s478 + $0x1] sm:$0xff] %vm469, %v437
      %513 = vst.msk [vmem:[%s478 + $0x9] sm:$0xff] %vm469, %v438
      %514 = vst.msk [vmem:[%s478 + $0x19] sm:$0xff] %vm469, %v439
      %515 = vst.msk [vmem:[%s478 + $0x21] sm:$0xff] %vm469, %v440
      %516 = vst.msk [vmem:[%s478 + $0x31] sm:$0xff] %vm469, %v441
      %517 = vst.msk [vmem:[%s478 + $0x39] sm:$0xff] %vm469, %v442
      %518 = vst.msk [vmem:[%s478 + $0x49] sm:$0xff] %vm469, %v443
      %519 = vst.msk [vmem:[%s478 + $0x51] sm:$0xff] %vm469, %v444
      %520 = vst.msk [vmem:[%s478 + $0x61] sm:$0xff] %vm469, %v445
      %521 = vst.msk [vmem:[%s478 + $0x69] sm:$0xff] %vm469, %v446
      %522 = vst.msk [vmem:[%s478 + $0x79] sm:$0xff] %vm469, %v447
      %523 = vst.msk [vmem:[%s478 + $0x81] sm:$0xff] %vm469, %v448
      %524 = vst.msk [vmem:[%s478 + $0x91] sm:$0xff] %vm469, %v449
      %525 = vst.msk [vmem:[%s478 + $0x99] sm:$0xff] %vm469, %v450
      %526 = vst.msk [vmem:[%s478 + $0xa9] sm:$0xff] %vm469, %v451
      %527 = vst.msk [vmem:[%s478 + $0xb1] sm:$0xff] %vm469, %v452
      %528 = vst.msk [vmem:[%s478 + $0xc1] sm:$0xff] %vm469, %v453
      %529 = vst.msk [vmem:[%s478 + $0xc9] sm:$0xff] %vm469, %v454
      %530 = vst.msk [vmem:[%s478 + $0xd9] sm:$0xff] %vm469, %v455
      %531 = vst.msk [vmem:[%s478 + $0xe1] sm:$0xff] %vm469, %v456
      %532 = vst.msk [vmem:[%s478 + $0xf1] sm:$0xff] %vm469, %v457
      %533 = vst.msk [vmem:[%s478 + $0xf9] sm:$0xff] %vm469, %v458
      %534 = vst.msk [vmem:[%s478 + $0x109] sm:$0xff] %vm469, %v459
      %535 = vst.msk [vmem:[%s478 + $0x111] sm:$0xff] %vm469, %v460
      %536 = vst.msk [vmem:[%s478 + $0x121] sm:$0xff] %vm469, %v461
      %537 = vst.msk [vmem:[%s478 + $0x129] sm:$0xff] %vm469, %v462
      %538 = vst.msk [vmem:[%s478 + $0x139] sm:$0xff] %vm469, %v463
      %539 = vst.msk [vmem:[%s478 + $0x141] sm:$0xff] %vm469, %v464
      %540 = vst.msk [vmem:[%s478 + $0x151] sm:$0xff] %vm469, %v465
      %541 = vst.msk [vmem:[%s478 + $0x159] sm:$0xff] %vm469, %v466
      %542 = vst.msk [vmem:[%s478 + $0x169] sm:$0xff] %vm469, %v467
      %543 = vst.msk [vmem:[%s478 + $0x171] sm:$0xff] %vm469, %v468
      %v544 = vld [vmem:[#allocation2] sm:$0xff]
      %v545 = vld [vmem:[#allocation2 + $0x8] sm:$0xff]
      %v546 = vld [vmem:[#allocation2 + $0x18] sm:$0xff]
      %v547 = vld [vmem:[#allocation2 + $0x20] sm:$0xff]
      %v548 = vld [vmem:[#allocation2 + $0x30] sm:$0xff]
      %v549 = vld [vmem:[#allocation2 + $0x38] sm:$0xff]
      %v550 = vld [vmem:[#allocation2 + $0x48] sm:$0xff]
      %v551 = vld [vmem:[#allocation2 + $0x50] sm:$0xff]
      %v552 = vld [vmem:[#allocation2 + $0x60] sm:$0xff]
      %v553 = vld [vmem:[#allocation2 + $0x68] sm:$0xff]
      %v554 = vld [vmem:[#allocation2 + $0x78] sm:$0xff]
      %v555 = vld [vmem:[#allocation2 + $0x80] sm:$0xff]
      %v556 = vld [vmem:[#allocation2 + $0x90] sm:$0xff]
      %v557 = vld [vmem:[#allocation2 + $0x98] sm:$0xff]
      %v558 = vld [vmem:[#allocation2 + $0xa8] sm:$0xff]
      %v559 = vld [vmem:[#allocation2 + $0xb0] sm:$0xff]
      %v560 = vld [vmem:[#allocation2 + $0xc0] sm:$0xff]
      %v561 = vld [vmem:[#allocation2 + $0xc8] sm:$0xff]
      %v562 = vld [vmem:[#allocation2 + $0xd8] sm:$0xff]
      %v563 = vld [vmem:[#allocation2 + $0xe0] sm:$0xff]
      %v564 = vld [vmem:[#allocation2 + $0xf0] sm:$0xff]
      %v565 = vld [vmem:[#allocation2 + $0xf8] sm:$0xff]
      %v566 = vld [vmem:[#allocation2 + $0x108] sm:$0xff]
      %v567 = vld [vmem:[#allocation2 + $0x110] sm:$0xff]
      %v568 = vld [vmem:[#allocation2 + $0x120] sm:$0xff]
      %v569 = vld [vmem:[#allocation2 + $0x128] sm:$0xff]
      %v570 = vld [vmem:[#allocation2 + $0x138] sm:$0xff]
      %v571 = vld [vmem:[#allocation2 + $0x140] sm:$0xff]
      %v572 = vld [vmem:[#allocation2 + $0x150] sm:$0xff]
      %v573 = vld [vmem:[#allocation2 + $0x158] sm:$0xff]
      %v574 = vld [vmem:[#allocation2 + $0x168] sm:$0xff]
      %v575 = vld [vmem:[#allocation2 + $0x170] sm:$0xff]
      %v576 = vpack.c.bf16 %v544, %v544
      %v577 = vpack.c.bf16 %v545, %v545
      %v578 = vpack.c.bf16 %v546, %v546
      %v579 = vpack.c.bf16 %v547, %v547
      %v580 = vpack.c.bf16 %v548, %v548
      %v581 = vpack.c.bf16 %v549, %v549
      %v582 = vpack.c.bf16 %v550, %v550
      %v583 = vpack.c.bf16 %v551, %v551
      %v584 = vpack.c.bf16 %v552, %v552
      %v585 = vpack.c.bf16 %v553, %v553
      %v586 = vpack.c.bf16 %v554, %v554
      %v587 = vpack.c.bf16 %v555, %v555
      %v588 = vpack.c.bf16 %v556, %v556
      %v589 = vpack.c.bf16 %v557, %v557
      %v590 = vpack.c.bf16 %v558, %v558
      %v591 = vpack.c.bf16 %v559, %v559
      %v592 = vpack.c.bf16 %v560, %v560
      %v593 = vpack.c.bf16 %v561, %v561
      %v594 = vpack.c.bf16 %v562, %v562
      %v595 = vpack.c.bf16 %v563, %v563
      %v596 = vpack.c.bf16 %v564, %v564
      %v597 = vpack.c.bf16 %v565, %v565
      %v598 = vpack.c.bf16 %v566, %v566
      %v599 = vpack.c.bf16 %v567, %v567
      %v600 = vpack.c.bf16 %v568, %v568
      %v601 = vpack.c.bf16 %v569, %v569
      %v602 = vpack.c.bf16 %v570, %v570
      %v603 = vpack.c.bf16 %v571, %v571
      %v604 = vpack.c.bf16 %v572, %v572
      %v605 = vpack.c.bf16 %v573, %v573
      %v606 = vpack.c.bf16 %v574, %v574
      %v607 = vpack.c.bf16 %v575, %v575
      %vm608 = vcmask 257024
      %609 = vst.msk [vmem:[#allocation3] sm:$0xf] %vm608, %v576
      %610 = vst.msk [vmem:[#allocation3 + $0xc] sm:$0xf] %vm608, %v577
      %611 = vst.msk [vmem:[#allocation3 + $0x18] sm:$0xf] %vm608, %v578
      %612 = vst.msk [vmem:[#allocation3 + $0x24] sm:$0xf] %vm608, %v579
      %613 = vst.msk [vmem:[#allocation3 + $0x30] sm:$0xf] %vm608, %v580
      %614 = vst.msk [vmem:[#allocation3 + $0x3c] sm:$0xf] %vm608, %v581
      %615 = vst.msk [vmem:[#allocation3 + $0x48] sm:$0xf] %vm608, %v582
      %616 = vst.msk [vmem:[#allocation3 + $0x54] sm:$0xf] %vm608, %v583
      %617 = vst.msk [vmem:[#allocation3 + $0x60] sm:$0xf] %vm608, %v584
      %618 = vst.msk [vmem:[#allocation3 + $0x6c] sm:$0xf] %vm608, %v585
      %619 = vst.msk [vmem:[#allocation3 + $0x78] sm:$0xf] %vm608, %v586
      %620 = vst.msk [vmem:[#allocation3 + $0x84] sm:$0xf] %vm608, %v587
      %621 = vst.msk [vmem:[#allocation3 + $0x90] sm:$0xf] %vm608, %v588
      %622 = vst.msk [vmem:[#allocation3 + $0x9c] sm:$0xf] %vm608, %v589
      %623 = vst.msk [vmem:[#allocation3 + $0xa8] sm:$0xf] %vm608, %v590
      %624 = vst.msk [vmem:[#allocation3 + $0xb4] sm:$0xf] %vm608, %v591
      %625 = vst.msk [vmem:[#allocation3 + $0xc0] sm:$0xf] %vm608, %v592
      %626 = vst.msk [vmem:[#allocation3 + $0xcc] sm:$0xf] %vm608, %v593
      %627 = vst.msk [vmem:[#allocation3 + $0xd8] sm:$0xf] %vm608, %v594
      %628 = vst.msk [vmem:[#allocation3 + $0xe4] sm:$0xf] %vm608, %v595
      %629 = vst.msk [vmem:[#allocation3 + $0xf0] sm:$0xf] %vm608, %v596
      %630 = vst.msk [vmem:[#allocation3 + $0xfc] sm:$0xf] %vm608, %v597
      %631 = vst.msk [vmem:[#allocation3 + $0x108] sm:$0xf] %vm608, %v598
      %632 = vst.msk [vmem:[#allocation3 + $0x114] sm:$0xf] %vm608, %v599
      %633 = vst.msk [vmem:[#allocation3 + $0x120] sm:$0xf] %vm608, %v600
      %634 = vst.msk [vmem:[#allocation3 + $0x12c] sm:$0xf] %vm608, %v601
      %635 = vst.msk [vmem:[#allocation3 + $0x138] sm:$0xf] %vm608, %v602
      %636 = vst.msk [vmem:[#allocation3 + $0x144] sm:$0xf] %vm608, %v603
      %637 = vst.msk [vmem:[#allocation3 + $0x150] sm:$0xf] %vm608, %v604
      %638 = vst.msk [vmem:[#allocation3 + $0x15c] sm:$0xf] %vm608, %v605
      %639 = vst.msk [vmem:[#allocation3 + $0x168] sm:$0xf] %vm608, %v606
      %640 = vst.msk [vmem:[#allocation3 + $0x174] sm:$0xf] %vm608, %v607
      %v641 = vld [vmem:[#allocation2 + $0x1] sm:$0xff]
      %v642 = vld [vmem:[#allocation2 + $0x9] sm:$0xff]
      %v643 = vld [vmem:[#allocation2 + $0x19] sm:$0xff]
      %v644 = vld [vmem:[#allocation2 + $0x21] sm:$0xff]
      %v645 = vld [vmem:[#allocation2 + $0x31] sm:$0xff]
      %v646 = vld [vmem:[#allocation2 + $0x39] sm:$0xff]
      %v647 = vld [vmem:[#allocation2 + $0x49] sm:$0xff]
      %v648 = vld [vmem:[#allocation2 + $0x51] sm:$0xff]
      %v649 = vld [vmem:[#allocation2 + $0x61] sm:$0xff]
      %v650 = vld [vmem:[#allocation2 + $0x69] sm:$0xff]
      %v651 = vld [vmem:[#allocation2 + $0x79] sm:$0xff]
      %v652 = vld [vmem:[#allocation2 + $0x81] sm:$0xff]
      %v653 = vld [vmem:[#allocation2 + $0x91] sm:$0xff]
      %v654 = vld [vmem:[#allocation2 + $0x99] sm:$0xff]
      %v655 = vld [vmem:[#allocation2 + $0xa9] sm:$0xff]
      %v656 = vld [vmem:[#allocation2 + $0xb1] sm:$0xff]
      %v657 = vld [vmem:[#allocation2 + $0xc1] sm:$0xff]
      %v658 = vld [vmem:[#allocation2 + $0xc9] sm:$0xff]
      %v659 = vld [vmem:[#allocation2 + $0xd9] sm:$0xff]
      %v660 = vld [vmem:[#allocation2 + $0xe1] sm:$0xff]
      %v661 = vld [vmem:[#allocation2 + $0xf1] sm:$0xff]
      %v662 = vld [vmem:[#allocation2 + $0xf9] sm:$0xff]
      %v663 = vld [vmem:[#allocation2 + $0x109] sm:$0xff]
      %v664 = vld [vmem:[#allocation2 + $0x111] sm:$0xff]
      %v665 = vld [vmem:[#allocation2 + $0x121] sm:$0xff]
      %v666 = vld [vmem:[#allocation2 + $0x129] sm:$0xff]
      %v667 = vld [vmem:[#allocation2 + $0x139] sm:$0xff]
      %v668 = vld [vmem:[#allocation2 + $0x141] sm:$0xff]
      %v669 = vld [vmem:[#allocation2 + $0x151] sm:$0xff]
      %v670 = vld [vmem:[#allocation2 + $0x159] sm:$0xff]
      %v671 = vld [vmem:[#allocation2 + $0x169] sm:$0xff]
      %v672 = vld [vmem:[#allocation2 + $0x171] sm:$0xff]
      %v673 = vpack.c.bf16 %v641, %v641
      %v674 = vpack.c.bf16 %v642, %v642
      %v675 = vpack.c.bf16 %v643, %v643
      %v676 = vpack.c.bf16 %v644, %v644
      %v677 = vpack.c.bf16 %v645, %v645
      %v678 = vpack.c.bf16 %v646, %v646
      %v679 = vpack.c.bf16 %v647, %v647
      %v680 = vpack.c.bf16 %v648, %v648
      %v681 = vpack.c.bf16 %v649, %v649
      %v682 = vpack.c.bf16 %v650, %v650
      %v683 = vpack.c.bf16 %v651, %v651
      %v684 = vpack.c.bf16 %v652, %v652
      %v685 = vpack.c.bf16 %v653, %v653
      %v686 = vpack.c.bf16 %v654, %v654
      %v687 = vpack.c.bf16 %v655, %v655
      %v688 = vpack.c.bf16 %v656, %v656
      %v689 = vpack.c.bf16 %v657, %v657
      %v690 = vpack.c.bf16 %v658, %v658
      %v691 = vpack.c.bf16 %v659, %v659
      %v692 = vpack.c.bf16 %v660, %v660
      %v693 = vpack.c.bf16 %v661, %v661
      %v694 = vpack.c.bf16 %v662, %v662
      %v695 = vpack.c.bf16 %v663, %v663
      %v696 = vpack.c.bf16 %v664, %v664
      %v697 = vpack.c.bf16 %v665, %v665
      %v698 = vpack.c.bf16 %v666, %v666
      %v699 = vpack.c.bf16 %v667, %v667
      %v700 = vpack.c.bf16 %v668, %v668
      %v701 = vpack.c.bf16 %v669, %v669
      %v702 = vpack.c.bf16 %v670, %v670
      %v703 = vpack.c.bf16 %v671, %v671
      %v704 = vpack.c.bf16 %v672, %v672
      %737 = vrot.lane.b32.xlu0 %v673, 32
      %v738 = vpop.permute.xlu0 %737
      %739 = vrot.lane.b32.xlu0 %v674, 32
      %v740 = vpop.permute.xlu0 %739
      %741 = vrot.lane.b32.xlu0 %v675, 32
      %v742 = vpop.permute.xlu0 %741
      %743 = vrot.lane.b32.xlu0 %v676, 32
      %v744 = vpop.permute.xlu0 %743
      %745 = vrot.lane.b32.xlu0 %v677, 32
      %v746 = vpop.permute.xlu0 %745
      %747 = vrot.lane.b32.xlu0 %v678, 32
      %v748 = vpop.permute.xlu0 %747
      %749 = vrot.lane.b32.xlu0 %v679, 32
      %v750 = vpop.permute.xlu0 %749
      %751 = vrot.lane.b32.xlu0 %v680, 32
      %v752 = vpop.permute.xlu0 %751
      %753 = vrot.lane.b32.xlu0 %v681, 32
      %v754 = vpop.permute.xlu0 %753
      %755 = vrot.lane.b32.xlu0 %v682, 32
      %v756 = vpop.permute.xlu0 %755
      %757 = vrot.lane.b32.xlu0 %v683, 32
      %v758 = vpop.permute.xlu0 %757
      %759 = vrot.lane.b32.xlu0 %v684, 32
      %v760 = vpop.permute.xlu0 %759
      %761 = vrot.lane.b32.xlu0 %v685, 32
      %v762 = vpop.permute.xlu0 %761
      %763 = vrot.lane.b32.xlu0 %v686, 32
      %v764 = vpop.permute.xlu0 %763
      %765 = vrot.lane.b32.xlu0 %v687, 32
      %v766 = vpop.permute.xlu0 %765
      %767 = vrot.lane.b32.xlu0 %v688, 32
      %v768 = vpop.permute.xlu0 %767
      %769 = vrot.lane.b32.xlu0 %v689, 32
      %v770 = vpop.permute.xlu0 %769
      %771 = vrot.lane.b32.xlu0 %v690, 32
      %v772 = vpop.permute.xlu0 %771
      %773 = vrot.lane.b32.xlu0 %v691, 32
      %v774 = vpop.permute.xlu0 %773
      %775 = vrot.lane.b32.xlu0 %v692, 32
      %v776 = vpop.permute.xlu0 %775
      %777 = vrot.lane.b32.xlu0 %v693, 32
      %v778 = vpop.permute.xlu0 %777
      %779 = vrot.lane.b32.xlu0 %v694, 32
      %v780 = vpop.permute.xlu0 %779
      %781 = vrot.lane.b32.xlu0 %v695, 32
      %v782 = vpop.permute.xlu0 %781
      %783 = vrot.lane.b32.xlu0 %v696, 32
      %v784 = vpop.permute.xlu0 %783
      %785 = vrot.lane.b32.xlu0 %v697, 32
      %v786 = vpop.permute.xlu0 %785
      %787 = vrot.lane.b32.xlu0 %v698, 32
      %v788 = vpop.permute.xlu0 %787
      %789 = vrot.lane.b32.xlu0 %v699, 32
      %v790 = vpop.permute.xlu0 %789
      %791 = vrot.lane.b32.xlu0 %v700, 32
      %v792 = vpop.permute.xlu0 %791
      %793 = vrot.lane.b32.xlu0 %v701, 32
      %v794 = vpop.permute.xlu0 %793
      %795 = vrot.lane.b32.xlu0 %v702, 32
      %v796 = vpop.permute.xlu0 %795
      %797 = vrot.lane.b32.xlu0 %v703, 32
      %v798 = vpop.permute.xlu0 %797
      %799 = vrot.lane.b32.xlu0 %v704, 32
      %v800 = vpop.permute.xlu0 %799
      %vm833 = vcmask 519424
      %834 = vst.msk [vmem:[#allocation3] sm:$0xf] %vm833, %v738
      %835 = vst.msk [vmem:[#allocation3 + $0xc] sm:$0xf] %vm833, %v740
      %836 = vst.msk [vmem:[#allocation3 + $0x18] sm:$0xf] %vm833, %v742
      %837 = vst.msk [vmem:[#allocation3 + $0x24] sm:$0xf] %vm833, %v744
      %838 = vst.msk [vmem:[#allocation3 + $0x30] sm:$0xf] %vm833, %v746
      %839 = vst.msk [vmem:[#allocation3 + $0x3c] sm:$0xf] %vm833, %v748
      %840 = vst.msk [vmem:[#allocation3 + $0x48] sm:$0xf] %vm833, %v750
      %841 = vst.msk [vmem:[#allocation3 + $0x54] sm:$0xf] %vm833, %v752
      %842 = vst.msk [vmem:[#allocation3 + $0x60] sm:$0xf] %vm833, %v754
      %843 = vst.msk [vmem:[#allocation3 + $0x6c] sm:$0xf] %vm833, %v756
      %844 = vst.msk [vmem:[#allocation3 + $0x78] sm:$0xf] %vm833, %v758
      %845 = vst.msk [vmem:[#allocation3 + $0x84] sm:$0xf] %vm833, %v760
      %846 = vst.msk [vmem:[#allocation3 + $0x90] sm:$0xf] %vm833, %v762
      %847 = vst.msk [vmem:[#allocation3 + $0x9c] sm:$0xf] %vm833, %v764
      %848 = vst.msk [vmem:[#allocation3 + $0xa8] sm:$0xf] %vm833, %v766
      %849 = vst.msk [vmem:[#allocation3 + $0xb4] sm:$0xf] %vm833, %v768
      %850 = vst.msk [vmem:[#allocation3 + $0xc0] sm:$0xf] %vm833, %v770
      %851 = vst.msk [vmem:[#allocation3 + $0xcc] sm:$0xf] %vm833, %v772
      %852 = vst.msk [vmem:[#allocation3 + $0xd8] sm:$0xf] %vm833, %v774
      %853 = vst.msk [vmem:[#allocation3 + $0xe4] sm:$0xf] %vm833, %v776
      %854 = vst.msk [vmem:[#allocation3 + $0xf0] sm:$0xf] %vm833, %v778
      %855 = vst.msk [vmem:[#allocation3 + $0xfc] sm:$0xf] %vm833, %v780
      %856 = vst.msk [vmem:[#allocation3 + $0x108] sm:$0xf] %vm833, %v782
      %857 = vst.msk [vmem:[#allocation3 + $0x114] sm:$0xf] %vm833, %v784
      %858 = vst.msk [vmem:[#allocation3 + $0x120] sm:$0xf] %vm833, %v786
      %859 = vst.msk [vmem:[#allocation3 + $0x12c] sm:$0xf] %vm833, %v788
      %860 = vst.msk [vmem:[#allocation3 + $0x138] sm:$0xf] %vm833, %v790
      %861 = vst.msk [vmem:[#allocation3 + $0x144] sm:$0xf] %vm833, %v792
      %862 = vst.msk [vmem:[#allocation3 + $0x150] sm:$0xf] %vm833, %v794
      %863 = vst.msk [vmem:[#allocation3 + $0x15c] sm:$0xf] %vm833, %v796
      %864 = vst.msk [vmem:[#allocation3 + $0x168] sm:$0xf] %vm833, %v798
      %865 = vst.msk [vmem:[#allocation3 + $0x174] sm:$0xf] %vm833, %v800
      %v866 = vld [vmem:[#allocation2 + $0x2] sm:$0xff]
      %v867 = vld [vmem:[#allocation2 + $0xa] sm:$0xff]
      %v868 = vld [vmem:[#allocation2 + $0x1a] sm:$0xff]
      %v869 = vld [vmem:[#allocation2 + $0x22] sm:$0xff]
      %v870 = vld [vmem:[#allocation2 + $0x32] sm:$0xff]
      %v871 = vld [vmem:[#allocation2 + $0x3a] sm:$0xff]
      %v872 = vld [vmem:[#allocation2 + $0x4a] sm:$0xff]
      %v873 = vld [vmem:[#allocation2 + $0x52] sm:$0xff]
      %v874 = vld [vmem:[#allocation2 + $0x62] sm:$0xff]
      %v875 = vld [vmem:[#allocation2 + $0x6a] sm:$0xff]
      %v876 = vld [vmem:[#allocation2 + $0x7a] sm:$0xff]
      %v877 = vld [vmem:[#allocation2 + $0x82] sm:$0xff]
      %v878 = vld [vmem:[#allocation2 + $0x92] sm:$0xff]
      %v879 = vld [vmem:[#allocation2 + $0x9a] sm:$0xff]
      %v880 = vld [vmem:[#allocation2 + $0xaa] sm:$0xff]
      %v881 = vld [vmem:[#allocation2 + $0xb2] sm:$0xff]
      %v882 = vld [vmem:[#allocation2 + $0xc2] sm:$0xff]
      %v883 = vld [vmem:[#allocation2 + $0xca] sm:$0xff]
      %v884 = vld [vmem:[#allocation2 + $0xda] sm:$0xff]
      %v885 = vld [vmem:[#allocation2 + $0xe2] sm:$0xff]
      %v886 = vld [vmem:[#allocation2 + $0xf2] sm:$0xff]
      %v887 = vld [vmem:[#allocation2 + $0xfa] sm:$0xff]
      %v888 = vld [vmem:[#allocation2 + $0x10a] sm:$0xff]
      %v889 = vld [vmem:[#allocation2 + $0x112] sm:$0xff]
      %v890 = vld [vmem:[#allocation2 + $0x122] sm:$0xff]
      %v891 = vld [vmem:[#allocation2 + $0x12a] sm:$0xff]
      %v892 = vld [vmem:[#allocation2 + $0x13a] sm:$0xff]
      %v893 = vld [vmem:[#allocation2 + $0x142] sm:$0xff]
      %v894 = vld [vmem:[#allocation2 + $0x152] sm:$0xff]
      %v895 = vld [vmem:[#allocation2 + $0x15a] sm:$0xff]
      %v896 = vld [vmem:[#allocation2 + $0x16a] sm:$0xff]
      %v897 = vld [vmem:[#allocation2 + $0x172] sm:$0xff]
      %v898 = vpack.c.bf16 %v866, %v866
      %v899 = vpack.c.bf16 %v867, %v867
      %v900 = vpack.c.bf16 %v868, %v868
      %v901 = vpack.c.bf16 %v869, %v869
      %v902 = vpack.c.bf16 %v870, %v870
      %v903 = vpack.c.bf16 %v871, %v871
      %v904 = vpack.c.bf16 %v872, %v872
      %v905 = vpack.c.bf16 %v873, %v873
      %v906 = vpack.c.bf16 %v874, %v874
      %v907 = vpack.c.bf16 %v875, %v875
      %v908 = vpack.c.bf16 %v876, %v876
      %v909 = vpack.c.bf16 %v877, %v877
      %v910 = vpack.c.bf16 %v878, %v878
      %v911 = vpack.c.bf16 %v879, %v879
      %v912 = vpack.c.bf16 %v880, %v880
      %v913 = vpack.c.bf16 %v881, %v881
      %v914 = vpack.c.bf16 %v882, %v882
      %v915 = vpack.c.bf16 %v883, %v883
      %v916 = vpack.c.bf16 %v884, %v884
      %v917 = vpack.c.bf16 %v885, %v885
      %v918 = vpack.c.bf16 %v886, %v886
      %v919 = vpack.c.bf16 %v887, %v887
      %v920 = vpack.c.bf16 %v888, %v888
      %v921 = vpack.c.bf16 %v889, %v889
      %v922 = vpack.c.bf16 %v890, %v890
      %v923 = vpack.c.bf16 %v891, %v891
      %v924 = vpack.c.bf16 %v892, %v892
      %v925 = vpack.c.bf16 %v893, %v893
      %v926 = vpack.c.bf16 %v894, %v894
      %v927 = vpack.c.bf16 %v895, %v895
      %v928 = vpack.c.bf16 %v896, %v896
      %v929 = vpack.c.bf16 %v897, %v897
      %962 = vrot.lane.b32.xlu0 %v898, 64
      %v963 = vpop.permute.xlu0 %962
      %964 = vrot.lane.b32.xlu0 %v899, 64
      %v965 = vpop.permute.xlu0 %964
      %966 = vrot.lane.b32.xlu0 %v900, 64
      %v967 = vpop.permute.xlu0 %966
      %968 = vrot.lane.b32.xlu0 %v901, 64
      %v969 = vpop.permute.xlu0 %968
      %970 = vrot.lane.b32.xlu0 %v902, 64
      %v971 = vpop.permute.xlu0 %970
      %972 = vrot.lane.b32.xlu0 %v903, 64
      %v973 = vpop.permute.xlu0 %972
      %974 = vrot.lane.b32.xlu0 %v904, 64
      %v975 = vpop.permute.xlu0 %974
      %976 = vrot.lane.b32.xlu0 %v905, 64
      %v977 = vpop.permute.xlu0 %976
      %978 = vrot.lane.b32.xlu0 %v906, 64
      %v979 = vpop.permute.xlu0 %978
      %980 = vrot.lane.b32.xlu0 %v907, 64
      %v981 = vpop.permute.xlu0 %980
      %982 = vrot.lane.b32.xlu0 %v908, 64
      %v983 = vpop.permute.xlu0 %982
      %984 = vrot.lane.b32.xlu0 %v909, 64
      %v985 = vpop.permute.xlu0 %984
      %986 = vrot.lane.b32.xlu0 %v910, 64
      %v987 = vpop.permute.xlu0 %986
      %988 = vrot.lane.b32.xlu0 %v911, 64
      %v989 = vpop.permute.xlu0 %988
      %990 = vrot.lane.b32.xlu0 %v912, 64
      %v991 = vpop.permute.xlu0 %990
      %992 = vrot.lane.b32.xlu0 %v913, 64
      %v993 = vpop.permute.xlu0 %992
      %994 = vrot.lane.b32.xlu0 %v914, 64
      %v995 = vpop.permute.xlu0 %994
      %996 = vrot.lane.b32.xlu0 %v915, 64
      %v997 = vpop.permute.xlu0 %996
      %998 = vrot.lane.b32.xlu0 %v916, 64
      %v999 = vpop.permute.xlu0 %998
      %1000 = vrot.lane.b32.xlu0 %v917, 64
      %v1001 = vpop.permute.xlu0 %1000
      %1002 = vrot.lane.b32.xlu0 %v918, 64
      %v1003 = vpop.permute.xlu0 %1002
      %1004 = vrot.lane.b32.xlu0 %v919, 64
      %v1005 = vpop.permute.xlu0 %1004
      %1006 = vrot.lane.b32.xlu0 %v920, 64
      %v1007 = vpop.permute.xlu0 %1006
      %1008 = vrot.lane.b32.xlu0 %v921, 64
      %v1009 = vpop.permute.xlu0 %1008
      %1010 = vrot.lane.b32.xlu0 %v922, 64
      %v1011 = vpop.permute.xlu0 %1010
      %1012 = vrot.lane.b32.xlu0 %v923, 64
      %v1013 = vpop.permute.xlu0 %1012
      %1014 = vrot.lane.b32.xlu0 %v924, 64
      %v1015 = vpop.permute.xlu0 %1014
      %1016 = vrot.lane.b32.xlu0 %v925, 64
      %v1017 = vpop.permute.xlu0 %1016
      %1018 = vrot.lane.b32.xlu0 %v926, 64
      %v1019 = vpop.permute.xlu0 %1018
      %1020 = vrot.lane.b32.xlu0 %v927, 64
      %v1021 = vpop.permute.xlu0 %1020
      %1022 = vrot.lane.b32.xlu0 %v928, 64
      %v1023 = vpop.permute.xlu0 %1022
      %1024 = vrot.lane.b32.xlu0 %v929, 64
      %v1025 = vpop.permute.xlu0 %1024
      %vm1058 = vcmask 781824
      %1059 = vst.msk [vmem:[#allocation3] sm:$0xf] %vm1058, %v963
      %1060 = vst.msk [vmem:[#allocation3 + $0xc] sm:$0xf] %vm1058, %v965
      %1061 = vst.msk [vmem:[#allocation3 + $0x18] sm:$0xf] %vm1058, %v967
      %1062 = vst.msk [vmem:[#allocation3 + $0x24] sm:$0xf] %vm1058, %v969
      %1063 = vst.msk [vmem:[#allocation3 + $0x30] sm:$0xf] %vm1058, %v971
      %1064 = vst.msk [vmem:[#allocation3 + $0x3c] sm:$0xf] %vm1058, %v973
      %1065 = vst.msk [vmem:[#allocation3 + $0x48] sm:$0xf] %vm1058, %v975
      %1066 = vst.msk [vmem:[#allocation3 + $0x54] sm:$0xf] %vm1058, %v977
      %1067 = vst.msk [vmem:[#allocation3 + $0x60] sm:$0xf] %vm1058, %v979
      %1068 = vst.msk [vmem:[#allocation3 + $0x6c] sm:$0xf] %vm1058, %v981
      %1069 = vst.msk [vmem:[#allocation3 + $0x78] sm:$0xf] %vm1058, %v983
      %1070 = vst.msk [vmem:[#allocation3 + $0x84] sm:$0xf] %vm1058, %v985
      %1071 = vst.msk [vmem:[#allocation3 + $0x90] sm:$0xf] %vm1058, %v987
      %1072 = vst.msk [vmem:[#allocation3 + $0x9c] sm:$0xf] %vm1058, %v989
      %1073 = vst.msk [vmem:[#allocation3 + $0xa8] sm:$0xf] %vm1058, %v991
      %1074 = vst.msk [vmem:[#allocation3 + $0xb4] sm:$0xf] %vm1058, %v993
      %1075 = vst.msk [vmem:[#allocation3 + $0xc0] sm:$0xf] %vm1058, %v995
      %1076 = vst.msk [vmem:[#allocation3 + $0xcc] sm:$0xf] %vm1058, %v997
      %1077 = vst.msk [vmem:[#allocation3 + $0xd8] sm:$0xf] %vm1058, %v999
      %1078 = vst.msk [vmem:[#allocation3 + $0xe4] sm:$0xf] %vm1058, %v1001
      %1079 = vst.msk [vmem:[#allocation3 + $0xf0] sm:$0xf] %vm1058, %v1003
      %1080 = vst.msk [vmem:[#allocation3 + $0xfc] sm:$0xf] %vm1058, %v1005
      %1081 = vst.msk [vmem:[#allocation3 + $0x108] sm:$0xf] %vm1058, %v1007
      %1082 = vst.msk [vmem:[#allocation3 + $0x114] sm:$0xf] %vm1058, %v1009
      %1083 = vst.msk [vmem:[#allocation3 + $0x120] sm:$0xf] %vm1058, %v1011
      %1084 = vst.msk [vmem:[#allocation3 + $0x12c] sm:$0xf] %vm1058, %v1013
      %1085 = vst.msk [vmem:[#allocation3 + $0x138] sm:$0xf] %vm1058, %v1015
      %1086 = vst.msk [vmem:[#allocation3 + $0x144] sm:$0xf] %vm1058, %v1017
      %1087 = vst.msk [vmem:[#allocation3 + $0x150] sm:$0xf] %vm1058, %v1019
      %1088 = vst.msk [vmem:[#allocation3 + $0x15c] sm:$0xf] %vm1058, %v1021
      %1089 = vst.msk [vmem:[#allocation3 + $0x168] sm:$0xf] %vm1058, %v1023
      %1090 = vst.msk [vmem:[#allocation3 + $0x174] sm:$0xf] %vm1058, %v1025
      %v1091 = vld [vmem:[%s478] sm:$0xff]
      %v1092 = vld [vmem:[%s478 + $0x8] sm:$0xff]
      %v1093 = vld [vmem:[%s478 + $0x18] sm:$0xff]
      %v1094 = vld [vmem:[%s478 + $0x20] sm:$0xff]
      %v1095 = vld [vmem:[%s478 + $0x30] sm:$0xff]
      %v1096 = vld [vmem:[%s478 + $0x38] sm:$0xff]
      %v1097 = vld [vmem:[%s478 + $0x48] sm:$0xff]
      %v1098 = vld [vmem:[%s478 + $0x50] sm:$0xff]
      %v1099 = vld [vmem:[%s478 + $0x60] sm:$0xff]
      %v1100 = vld [vmem:[%s478 + $0x68] sm:$0xff]
      %v1101 = vld [vmem:[%s478 + $0x78] sm:$0xff]
      %v1102 = vld [vmem:[%s478 + $0x80] sm:$0xff]
      %v1103 = vld [vmem:[%s478 + $0x90] sm:$0xff]
      %v1104 = vld [vmem:[%s478 + $0x98] sm:$0xff]
      %v1105 = vld [vmem:[%s478 + $0xa8] sm:$0xff]
      %v1106 = vld [vmem:[%s478 + $0xb0] sm:$0xff]
      %v1107 = vld [vmem:[%s478 + $0xc0] sm:$0xff]
      %v1108 = vld [vmem:[%s478 + $0xc8] sm:$0xff]
      %v1109 = vld [vmem:[%s478 + $0xd8] sm:$0xff]
      %v1110 = vld [vmem:[%s478 + $0xe0] sm:$0xff]
      %v1111 = vld [vmem:[%s478 + $0xf0] sm:$0xff]
      %v1112 = vld [vmem:[%s478 + $0xf8] sm:$0xff]
      %v1113 = vld [vmem:[%s478 + $0x108] sm:$0xff]
      %v1114 = vld [vmem:[%s478 + $0x110] sm:$0xff]
      %v1115 = vld [vmem:[%s478 + $0x120] sm:$0xff]
      %v1116 = vld [vmem:[%s478 + $0x128] sm:$0xff]
      %v1117 = vld [vmem:[%s478 + $0x138] sm:$0xff]
      %v1118 = vld [vmem:[%s478 + $0x140] sm:$0xff]
      %v1119 = vld [vmem:[%s478 + $0x150] sm:$0xff]
      %v1120 = vld [vmem:[%s478 + $0x158] sm:$0xff]
      %v1121 = vld [vmem:[%s478 + $0x168] sm:$0xff]
      %v1122 = vld [vmem:[%s478 + $0x170] sm:$0xff]
      %v1123 = vpack.c.bf16 %v1091, %v1091
      %v1124 = vpack.c.bf16 %v1092, %v1092
      %v1125 = vpack.c.bf16 %v1093, %v1093
      %v1126 = vpack.c.bf16 %v1094, %v1094
      %v1127 = vpack.c.bf16 %v1095, %v1095
      %v1128 = vpack.c.bf16 %v1096, %v1096
      %v1129 = vpack.c.bf16 %v1097, %v1097
      %v1130 = vpack.c.bf16 %v1098, %v1098
      %v1131 = vpack.c.bf16 %v1099, %v1099
      %v1132 = vpack.c.bf16 %v1100, %v1100
      %v1133 = vpack.c.bf16 %v1101, %v1101
      %v1134 = vpack.c.bf16 %v1102, %v1102
      %v1135 = vpack.c.bf16 %v1103, %v1103
      %v1136 = vpack.c.bf16 %v1104, %v1104
      %v1137 = vpack.c.bf16 %v1105, %v1105
      %v1138 = vpack.c.bf16 %v1106, %v1106
      %v1139 = vpack.c.bf16 %v1107, %v1107
      %v1140 = vpack.c.bf16 %v1108, %v1108
      %v1141 = vpack.c.bf16 %v1109, %v1109
      %v1142 = vpack.c.bf16 %v1110, %v1110
      %v1143 = vpack.c.bf16 %v1111, %v1111
      %v1144 = vpack.c.bf16 %v1112, %v1112
      %v1145 = vpack.c.bf16 %v1113, %v1113
      %v1146 = vpack.c.bf16 %v1114, %v1114
      %v1147 = vpack.c.bf16 %v1115, %v1115
      %v1148 = vpack.c.bf16 %v1116, %v1116
      %v1149 = vpack.c.bf16 %v1117, %v1117
      %v1150 = vpack.c.bf16 %v1118, %v1118
      %v1151 = vpack.c.bf16 %v1119, %v1119
      %v1152 = vpack.c.bf16 %v1120, %v1120
      %v1153 = vpack.c.bf16 %v1121, %v1121
      %v1154 = vpack.c.bf16 %v1122, %v1122
      %1187 = vrot.lane.b32.xlu0 %v1123, 96
      %v1188 = vpop.permute.xlu0 %1187
      %1189 = vrot.lane.b32.xlu0 %v1124, 96
      %v1190 = vpop.permute.xlu0 %1189
      %1191 = vrot.lane.b32.xlu0 %v1125, 96
      %v1192 = vpop.permute.xlu0 %1191
      %1193 = vrot.lane.b32.xlu0 %v1126, 96
      %v1194 = vpop.permute.xlu0 %1193
      %1195 = vrot.lane.b32.xlu0 %v1127, 96
      %v1196 = vpop.permute.xlu0 %1195
      %1197 = vrot.lane.b32.xlu0 %v1128, 96
      %v1198 = vpop.permute.xlu0 %1197
      %1199 = vrot.lane.b32.xlu0 %v1129, 96
      %v1200 = vpop.permute.xlu0 %1199
      %1201 = vrot.lane.b32.xlu0 %v1130, 96
      %v1202 = vpop.permute.xlu0 %1201
      %1203 = vrot.lane.b32.xlu0 %v1131, 96
      %v1204 = vpop.permute.xlu0 %1203
      %1205 = vrot.lane.b32.xlu0 %v1132, 96
      %v1206 = vpop.permute.xlu0 %1205
      %1207 = vrot.lane.b32.xlu0 %v1133, 96
      %v1208 = vpop.permute.xlu0 %1207
      %1209 = vrot.lane.b32.xlu0 %v1134, 96
      %v1210 = vpop.permute.xlu0 %1209
      %1211 = vrot.lane.b32.xlu0 %v1135, 96
      %v1212 = vpop.permute.xlu0 %1211
      %1213 = vrot.lane.b32.xlu0 %v1136, 96
      %v1214 = vpop.permute.xlu0 %1213
      %1215 = vrot.lane.b32.xlu0 %v1137, 96
      %v1216 = vpop.permute.xlu0 %1215
      %1217 = vrot.lane.b32.xlu0 %v1138, 96
      %v1218 = vpop.permute.xlu0 %1217
      %1219 = vrot.lane.b32.xlu0 %v1139, 96
      %v1220 = vpop.permute.xlu0 %1219
      %1221 = vrot.lane.b32.xlu0 %v1140, 96
      %v1222 = vpop.permute.xlu0 %1221
      %1223 = vrot.lane.b32.xlu0 %v1141, 96
      %v1224 = vpop.permute.xlu0 %1223
      %1225 = vrot.lane.b32.xlu0 %v1142, 96
      %v1226 = vpop.permute.xlu0 %1225
      %1227 = vrot.lane.b32.xlu0 %v1143, 96
      %v1228 = vpop.permute.xlu0 %1227
      %1229 = vrot.lane.b32.xlu0 %v1144, 96
      %v1230 = vpop.permute.xlu0 %1229
      %1231 = vrot.lane.b32.xlu0 %v1145, 96
      %v1232 = vpop.permute.xlu0 %1231
      %1233 = vrot.lane.b32.xlu0 %v1146, 96
      %v1234 = vpop.permute.xlu0 %1233
      %1235 = vrot.lane.b32.xlu0 %v1147, 96
      %v1236 = vpop.permute.xlu0 %1235
      %1237 = vrot.lane.b32.xlu0 %v1148, 96
      %v1238 = vpop.permute.xlu0 %1237
      %1239 = vrot.lane.b32.xlu0 %v1149, 96
      %v1240 = vpop.permute.xlu0 %1239
      %1241 = vrot.lane.b32.xlu0 %v1150, 96
      %v1242 = vpop.permute.xlu0 %1241
      %1243 = vrot.lane.b32.xlu0 %v1151, 96
      %v1244 = vpop.permute.xlu0 %1243
      %1245 = vrot.lane.b32.xlu0 %v1152, 96
      %v1246 = vpop.permute.xlu0 %1245
      %1247 = vrot.lane.b32.xlu0 %v1153, 96
      %v1248 = vpop.permute.xlu0 %1247
      %1249 = vrot.lane.b32.xlu0 %v1154, 96
      %v1250 = vpop.permute.xlu0 %1249
      %vm1283 = vcmask 1044224
      %1284 = vst.msk [vmem:[#allocation3] sm:$0xf] %vm1283, %v1188
      %1285 = vst.msk [vmem:[#allocation3 + $0xc] sm:$0xf] %vm1283, %v1190
      %1286 = vst.msk [vmem:[#allocation3 + $0x18] sm:$0xf] %vm1283, %v1192
      %1287 = vst.msk [vmem:[#allocation3 + $0x24] sm:$0xf] %vm1283, %v1194
      %1288 = vst.msk [vmem:[#allocation3 + $0x30] sm:$0xf] %vm1283, %v1196
      %1289 = vst.msk [vmem:[#allocation3 + $0x3c] sm:$0xf] %vm1283, %v1198
      %1290 = vst.msk [vmem:[#allocation3 + $0x48] sm:$0xf] %vm1283, %v1200
      %1291 = vst.msk [vmem:[#allocation3 + $0x54] sm:$0xf] %vm1283, %v1202
      %1292 = vst.msk [vmem:[#allocation3 + $0x60] sm:$0xf] %vm1283, %v1204
      %1293 = vst.msk [vmem:[#allocation3 + $0x6c] sm:$0xf] %vm1283, %v1206
      %1294 = vst.msk [vmem:[#allocation3 + $0x78] sm:$0xf] %vm1283, %v1208
      %1295 = vst.msk [vmem:[#allocation3 + $0x84] sm:$0xf] %vm1283, %v1210
      %1296 = vst.msk [vmem:[#allocation3 + $0x90] sm:$0xf] %vm1283, %v1212
      %1297 = vst.msk [vmem:[#allocation3 + $0x9c] sm:$0xf] %vm1283, %v1214
      %1298 = vst.msk [vmem:[#allocation3 + $0xa8] sm:$0xf] %vm1283, %v1216
      %1299 = vst.msk [vmem:[#allocation3 + $0xb4] sm:$0xf] %vm1283, %v1218
      %1300 = vst.msk [vmem:[#allocation3 + $0xc0] sm:$0xf] %vm1283, %v1220
      %1301 = vst.msk [vmem:[#allocation3 + $0xcc] sm:$0xf] %vm1283, %v1222
      %1302 = vst.msk [vmem:[#allocation3 + $0xd8] sm:$0xf] %vm1283, %v1224
      %1303 = vst.msk [vmem:[#allocation3 + $0xe4] sm:$0xf] %vm1283, %v1226
      %1304 = vst.msk [vmem:[#allocation3 + $0xf0] sm:$0xf] %vm1283, %v1228
      %1305 = vst.msk [vmem:[#allocation3 + $0xfc] sm:$0xf] %vm1283, %v1230
      %1306 = vst.msk [vmem:[#allocation3 + $0x108] sm:$0xf] %vm1283, %v1232
      %1307 = vst.msk [vmem:[#allocation3 + $0x114] sm:$0xf] %vm1283, %v1234
      %1308 = vst.msk [vmem:[#allocation3 + $0x120] sm:$0xf] %vm1283, %v1236
      %1309 = vst.msk [vmem:[#allocation3 + $0x12c] sm:$0xf] %vm1283, %v1238
      %1310 = vst.msk [vmem:[#allocation3 + $0x138] sm:$0xf] %vm1283, %v1240
      %1311 = vst.msk [vmem:[#allocation3 + $0x144] sm:$0xf] %vm1283, %v1242
      %1312 = vst.msk [vmem:[#allocation3 + $0x150] sm:$0xf] %vm1283, %v1244
      %1313 = vst.msk [vmem:[#allocation3 + $0x15c] sm:$0xf] %vm1283, %v1246
      %1314 = vst.msk [vmem:[#allocation3 + $0x168] sm:$0xf] %vm1283, %v1248
      %1315 = vst.msk [vmem:[#allocation3 + $0x174] sm:$0xf] %vm1283, %v1250
      %v1316 = vld [vmem:[%s478 + $0x1] sm:$0xff]
      %v1317 = vld [vmem:[%s478 + $0x9] sm:$0xff]
      %v1318 = vld [vmem:[%s478 + $0x19] sm:$0xff]
      %v1319 = vld [vmem:[%s478 + $0x21] sm:$0xff]
      %v1320 = vld [vmem:[%s478 + $0x31] sm:$0xff]
      %v1321 = vld [vmem:[%s478 + $0x39] sm:$0xff]
      %v1322 = vld [vmem:[%s478 + $0x49] sm:$0xff]
      %v1323 = vld [vmem:[%s478 + $0x51] sm:$0xff]
      %v1324 = vld [vmem:[%s478 + $0x61] sm:$0xff]
      %v1325 = vld [vmem:[%s478 + $0x69] sm:$0xff]
      %v1326 = vld [vmem:[%s478 + $0x79] sm:$0xff]
      %v1327 = vld [vmem:[%s478 + $0x81] sm:$0xff]
      %v1328 = vld [vmem:[%s478 + $0x91] sm:$0xff]
      %v1329 = vld [vmem:[%s478 + $0x99] sm:$0xff]
      %v1330 = vld [vmem:[%s478 + $0xa9] sm:$0xff]
      %v1331 = vld [vmem:[%s478 + $0xb1] sm:$0xff]
      %v1332 = vld [vmem:[%s478 + $0xc1] sm:$0xff]
      %v1333 = vld [vmem:[%s478 + $0xc9] sm:$0xff]
      %v1334 = vld [vmem:[%s478 + $0xd9] sm:$0xff]
      %v1335 = vld [vmem:[%s478 + $0xe1] sm:$0xff]
      %v1336 = vld [vmem:[%s478 + $0xf1] sm:$0xff]
      %v1337 = vld [vmem:[%s478 + $0xf9] sm:$0xff]
      %v1338 = vld [vmem:[%s478 + $0x109] sm:$0xff]
      %v1339 = vld [vmem:[%s478 + $0x111] sm:$0xff]
      %v1340 = vld [vmem:[%s478 + $0x121] sm:$0xff]
      %v1341 = vld [vmem:[%s478 + $0x129] sm:$0xff]
      %v1342 = vld [vmem:[%s478 + $0x139] sm:$0xff]
      %v1343 = vld [vmem:[%s478 + $0x141] sm:$0xff]
      %v1344 = vld [vmem:[%s478 + $0x151] sm:$0xff]
      %v1345 = vld [vmem:[%s478 + $0x159] sm:$0xff]
      %v1346 = vld [vmem:[%s478 + $0x169] sm:$0xff]
      %v1347 = vld [vmem:[%s478 + $0x171] sm:$0xff]
      %v1348 = vpack.c.bf16 %v1316, %v1316
      %v1349 = vpack.c.bf16 %v1317, %v1317
      %v1350 = vpack.c.bf16 %v1318, %v1318
      %v1351 = vpack.c.bf16 %v1319, %v1319
      %v1352 = vpack.c.bf16 %v1320, %v1320
      %v1353 = vpack.c.bf16 %v1321, %v1321
      %v1354 = vpack.c.bf16 %v1322, %v1322
      %v1355 = vpack.c.bf16 %v1323, %v1323
      %v1356 = vpack.c.bf16 %v1324, %v1324
      %v1357 = vpack.c.bf16 %v1325, %v1325
      %v1358 = vpack.c.bf16 %v1326, %v1326
      %v1359 = vpack.c.bf16 %v1327, %v1327
      %v1360 = vpack.c.bf16 %v1328, %v1328
      %v1361 = vpack.c.bf16 %v1329, %v1329
      %v1362 = vpack.c.bf16 %v1330, %v1330
      %v1363 = vpack.c.bf16 %v1331, %v1331
      %v1364 = vpack.c.bf16 %v1332, %v1332
      %v1365 = vpack.c.bf16 %v1333, %v1333
      %v1366 = vpack.c.bf16 %v1334, %v1334
      %v1367 = vpack.c.bf16 %v1335, %v1335
      %v1368 = vpack.c.bf16 %v1336, %v1336
      %v1369 = vpack.c.bf16 %v1337, %v1337
      %v1370 = vpack.c.bf16 %v1338, %v1338
      %v1371 = vpack.c.bf16 %v1339, %v1339
      %v1372 = vpack.c.bf16 %v1340, %v1340
      %v1373 = vpack.c.bf16 %v1341, %v1341
      %v1374 = vpack.c.bf16 %v1342, %v1342
      %v1375 = vpack.c.bf16 %v1343, %v1343
      %v1376 = vpack.c.bf16 %v1344, %v1344
      %v1377 = vpack.c.bf16 %v1345, %v1345
      %v1378 = vpack.c.bf16 %v1346, %v1346
      %v1379 = vpack.c.bf16 %v1347, %v1347
      %1380 = vst.msk [vmem:[#allocation3 + $0x4] sm:$0xf] %vm608, %v1348
      %1381 = vst.msk [vmem:[#allocation3 + $0x10] sm:$0xf] %vm608, %v1349
      %1382 = vst.msk [vmem:[#allocation3 + $0x1c] sm:$0xf] %vm608, %v1350
      %1383 = vst.msk [vmem:[#allocation3 + $0x28] sm:$0xf] %vm608, %v1351
      %1384 = vst.msk [vmem:[#allocation3 + $0x34] sm:$0xf] %vm608, %v1352
      %1385 = vst.msk [vmem:[#allocation3 + $0x40] sm:$0xf] %vm608, %v1353
      %1386 = vst.msk [vmem:[#allocation3 + $0x4c] sm:$0xf] %vm608, %v1354
      %1387 = vst.msk [vmem:[#allocation3 + $0x58] sm:$0xf] %vm608, %v1355
      %1388 = vst.msk [vmem:[#allocation3 + $0x64] sm:$0xf] %vm608, %v1356
      %1389 = vst.msk [vmem:[#allocation3 + $0x70] sm:$0xf] %vm608, %v1357
      %1390 = vst.msk [vmem:[#allocation3 + $0x7c] sm:$0xf] %vm608, %v1358
      %1391 = vst.msk [vmem:[#allocation3 + $0x88] sm:$0xf] %vm608, %v1359
      %1392 = vst.msk [vmem:[#allocation3 + $0x94] sm:$0xf] %vm608, %v1360
      %1393 = vst.msk [vmem:[#allocation3 + $0xa0] sm:$0xf] %vm608, %v1361
      %1394 = vst.msk [vmem:[#allocation3 + $0xac] sm:$0xf] %vm608, %v1362
      %1395 = vst.msk [vmem:[#allocation3 + $0xb8] sm:$0xf] %vm608, %v1363
      %1396 = vst.msk [vmem:[#allocation3 + $0xc4] sm:$0xf] %vm608, %v1364
      %1397 = vst.msk [vmem:[#allocation3 + $0xd0] sm:$0xf] %vm608, %v1365
      %1398 = vst.msk [vmem:[#allocation3 + $0xdc] sm:$0xf] %vm608, %v1366
      %1399 = vst.msk [vmem:[#allocation3 + $0xe8] sm:$0xf] %vm608, %v1367
      %1400 = vst.msk [vmem:[#allocation3 + $0xf4] sm:$0xf] %vm608, %v1368
      %1401 = vst.msk [vmem:[#allocation3 + $0x100] sm:$0xf] %vm608, %v1369
      %1402 = vst.msk [vmem:[#allocation3 + $0x10c] sm:$0xf] %vm608, %v1370
      %1403 = vst.msk [vmem:[#allocation3 + $0x118] sm:$0xf] %vm608, %v1371
      %1404 = vst.msk [vmem:[#allocation3 + $0x124] sm:$0xf] %vm608, %v1372
      %1405 = vst.msk [vmem:[#allocation3 + $0x130] sm:$0xf] %vm608, %v1373
      %1406 = vst.msk [vmem:[#allocation3 + $0x13c] sm:$0xf] %vm608, %v1374
      %1407 = vst.msk [vmem:[#allocation3 + $0x148] sm:$0xf] %vm608, %v1375
      %1408 = vst.msk [vmem:[#allocation3 + $0x154] sm:$0xf] %vm608, %v1376
      %1409 = vst.msk [vmem:[#allocation3 + $0x160] sm:$0xf] %vm608, %v1377
      %1410 = vst.msk [vmem:[#allocation3 + $0x16c] sm:$0xf] %vm608, %v1378
      %1411 = vst.msk [vmem:[#allocation3 + $0x178] sm:$0xf] %vm608, %v1379
      %v1412 = vld [vmem:[%s478 + $0x2] sm:$0xff]
      %v1413 = vld [vmem:[%s478 + $0xa] sm:$0xff]
      %v1414 = vld [vmem:[%s478 + $0x1a] sm:$0xff]
      %v1415 = vld [vmem:[%s478 + $0x22] sm:$0xff]
      %v1416 = vld [vmem:[%s478 + $0x32] sm:$0xff]
      %v1417 = vld [vmem:[%s478 + $0x3a] sm:$0xff]
      %v1418 = vld [vmem:[%s478 + $0x4a] sm:$0xff]
      %v1419 = vld [vmem:[%s478 + $0x52] sm:$0xff]
      %v1420 = vld [vmem:[%s478 + $0x62] sm:$0xff]
      %v1421 = vld [vmem:[%s478 + $0x6a] sm:$0xff]
      %v1422 = vld [vmem:[%s478 + $0x7a] sm:$0xff]
      %v1423 = vld [vmem:[%s478 + $0x82] sm:$0xff]
      %v1424 = vld [vmem:[%s478 + $0x92] sm:$0xff]
      %v1425 = vld [vmem:[%s478 + $0x9a] sm:$0xff]
      %v1426 = vld [vmem:[%s478 + $0xaa] sm:$0xff]
      %v1427 = vld [vmem:[%s478 + $0xb2] sm:$0xff]
      %v1428 = vld [vmem:[%s478 + $0xc2] sm:$0xff]
      %v1429 = vld [vmem:[%s478 + $0xca] sm:$0xff]
      %v1430 = vld [vmem:[%s478 + $0xda] sm:$0xff]
      %v1431 = vld [vmem:[%s478 + $0xe2] sm:$0xff]
      %v1432 = vld [vmem:[%s478 + $0xf2] sm:$0xff]
      %v1433 = vld [vmem:[%s478 + $0xfa] sm:$0xff]
      %v1434 = vld [vmem:[%s478 + $0x10a] sm:$0xff]
      %v1435 = vld [vmem:[%s478 + $0x112] sm:$0xff]
      %v1436 = vld [vmem:[%s478 + $0x122] sm:$0xff]
      %v1437 = vld [vmem:[%s478 + $0x12a] sm:$0xff]
      %v1438 = vld [vmem:[%s478 + $0x13a] sm:$0xff]
      %v1439 = vld [vmem:[%s478 + $0x142] sm:$0xff]
      %v1440 = vld [vmem:[%s478 + $0x152] sm:$0xff]
      %v1441 = vld [vmem:[%s478 + $0x15a] sm:$0xff]
      %v1442 = vld [vmem:[%s478 + $0x16a] sm:$0xff]
      %v1443 = vld [vmem:[%s478 + $0x172] sm:$0xff]
      %v1444 = vpack.c.bf16 %v1412, %v1412
      %v1445 = vpack.c.bf16 %v1413, %v1413
      %v1446 = vpack.c.bf16 %v1414, %v1414
      %v1447 = vpack.c.bf16 %v1415, %v1415
      %v1448 = vpack.c.bf16 %v1416, %v1416
      %v1449 = vpack.c.bf16 %v1417, %v1417
      %v1450 = vpack.c.bf16 %v1418, %v1418
      %v1451 = vpack.c.bf16 %v1419, %v1419
      %v1452 = vpack.c.bf16 %v1420, %v1420
      %v1453 = vpack.c.bf16 %v1421, %v1421
      %v1454 = vpack.c.bf16 %v1422, %v1422
      %v1455 = vpack.c.bf16 %v1423, %v1423
      %v1456 = vpack.c.bf16 %v1424, %v1424
      %v1457 = vpack.c.bf16 %v1425, %v1425
      %v1458 = vpack.c.bf16 %v1426, %v1426
      %v1459 = vpack.c.bf16 %v1427, %v1427
      %v1460 = vpack.c.bf16 %v1428, %v1428
      %v1461 = vpack.c.bf16 %v1429, %v1429
      %v1462 = vpack.c.bf16 %v1430, %v1430
      %v1463 = vpack.c.bf16 %v1431, %v1431
      %v1464 = vpack.c.bf16 %v1432, %v1432
      %v1465 = vpack.c.bf16 %v1433, %v1433
      %v1466 = vpack.c.bf16 %v1434, %v1434
      %v1467 = vpack.c.bf16 %v1435, %v1435
      %v1468 = vpack.c.bf16 %v1436, %v1436
      %v1469 = vpack.c.bf16 %v1437, %v1437
      %v1470 = vpack.c.bf16 %v1438, %v1438
      %v1471 = vpack.c.bf16 %v1439, %v1439
      %v1472 = vpack.c.bf16 %v1440, %v1440
      %v1473 = vpack.c.bf16 %v1441, %v1441
      %v1474 = vpack.c.bf16 %v1442, %v1442
      %v1475 = vpack.c.bf16 %v1443, %v1443
      %1508 = vrot.lane.b32.xlu0 %v1444, 32
      %v1509 = vpop.permute.xlu0 %1508
      %1510 = vrot.lane.b32.xlu0 %v1445, 32
      %v1511 = vpop.permute.xlu0 %1510
      %1512 = vrot.lane.b32.xlu0 %v1446, 32
      %v1513 = vpop.permute.xlu0 %1512
      %1514 = vrot.lane.b32.xlu0 %v1447, 32
      %v1515 = vpop.permute.xlu0 %1514
      %1516 = vrot.lane.b32.xlu0 %v1448, 32
      %v1517 = vpop.permute.xlu0 %1516
      %1518 = vrot.lane.b32.xlu0 %v1449, 32
      %v1519 = vpop.permute.xlu0 %1518
      %1520 = vrot.lane.b32.xlu0 %v1450, 32
      %v1521 = vpop.permute.xlu0 %1520
      %1522 = vrot.lane.b32.xlu0 %v1451, 32
      %v1523 = vpop.permute.xlu0 %1522
      %1524 = vrot.lane.b32.xlu0 %v1452, 32
      %v1525 = vpop.permute.xlu0 %1524
      %1526 = vrot.lane.b32.xlu0 %v1453, 32
      %v1527 = vpop.permute.xlu0 %1526
      %1528 = vrot.lane.b32.xlu0 %v1454, 32
      %v1529 = vpop.permute.xlu0 %1528
      %1530 = vrot.lane.b32.xlu0 %v1455, 32
      %v1531 = vpop.permute.xlu0 %1530
      %1532 = vrot.lane.b32.xlu0 %v1456, 32
      %v1533 = vpop.permute.xlu0 %1532
      %1534 = vrot.lane.b32.xlu0 %v1457, 32
      %v1535 = vpop.permute.xlu0 %1534
      %1536 = vrot.lane.b32.xlu0 %v1458, 32
      %v1537 = vpop.permute.xlu0 %1536
      %1538 = vrot.lane.b32.xlu0 %v1459, 32
      %v1539 = vpop.permute.xlu0 %1538
      %1540 = vrot.lane.b32.xlu0 %v1460, 32
      %v1541 = vpop.permute.xlu0 %1540
      %1542 = vrot.lane.b32.xlu0 %v1461, 32
      %v1543 = vpop.permute.xlu0 %1542
      %1544 = vrot.lane.b32.xlu0 %v1462, 32
      %v1545 = vpop.permute.xlu0 %1544
      %1546 = vrot.lane.b32.xlu0 %v1463, 32
      %v1547 = vpop.permute.xlu0 %1546
      %1548 = vrot.lane.b32.xlu0 %v1464, 32
      %v1549 = vpop.permute.xlu0 %1548
      %1550 = vrot.lane.b32.xlu0 %v1465, 32
      %v1551 = vpop.permute.xlu0 %1550
      %1552 = vrot.lane.b32.xlu0 %v1466, 32
      %v1553 = vpop.permute.xlu0 %1552
      %1554 = vrot.lane.b32.xlu0 %v1467, 32
      %v1555 = vpop.permute.xlu0 %1554
      %1556 = vrot.lane.b32.xlu0 %v1468, 32
      %v1557 = vpop.permute.xlu0 %1556
      %1558 = vrot.lane.b32.xlu0 %v1469, 32
      %v1559 = vpop.permute.xlu0 %1558
      %1560 = vrot.lane.b32.xlu0 %v1470, 32
      %v1561 = vpop.permute.xlu0 %1560
      %1562 = vrot.lane.b32.xlu0 %v1471, 32
      %v1563 = vpop.permute.xlu0 %1562
      %1564 = vrot.lane.b32.xlu0 %v1472, 32
      %v1565 = vpop.permute.xlu0 %1564
      %1566 = vrot.lane.b32.xlu0 %v1473, 32
      %v1567 = vpop.permute.xlu0 %1566
      %1568 = vrot.lane.b32.xlu0 %v1474, 32
      %v1569 = vpop.permute.xlu0 %1568
      %1570 = vrot.lane.b32.xlu0 %v1475, 32
      %v1571 = vpop.permute.xlu0 %1570
      %1604 = vst.msk [vmem:[#allocation3 + $0x4] sm:$0xf] %vm833, %v1509
      %1605 = vst.msk [vmem:[#allocation3 + $0x10] sm:$0xf] %vm833, %v1511
      %1606 = vst.msk [vmem:[#allocation3 + $0x1c] sm:$0xf] %vm833, %v1513
      %1607 = vst.msk [vmem:[#allocation3 + $0x28] sm:$0xf] %vm833, %v1515
      %1608 = vst.msk [vmem:[#allocation3 + $0x34] sm:$0xf] %vm833, %v1517
      %1609 = vst.msk [vmem:[#allocation3 + $0x40] sm:$0xf] %vm833, %v1519
      %1610 = vst.msk [vmem:[#allocation3 + $0x4c] sm:$0xf] %vm833, %v1521
      %1611 = vst.msk [vmem:[#allocation3 + $0x58] sm:$0xf] %vm833, %v1523
      %1612 = vst.msk [vmem:[#allocation3 + $0x64] sm:$0xf] %vm833, %v1525
      %1613 = vst.msk [vmem:[#allocation3 + $0x70] sm:$0xf] %vm833, %v1527
      %1614 = vst.msk [vmem:[#allocation3 + $0x7c] sm:$0xf] %vm833, %v1529
      %1615 = vst.msk [vmem:[#allocation3 + $0x88] sm:$0xf] %vm833, %v1531
      %1616 = vst.msk [vmem:[#allocation3 + $0x94] sm:$0xf] %vm833, %v1533
      %1617 = vst.msk [vmem:[#allocation3 + $0xa0] sm:$0xf] %vm833, %v1535
      %1618 = vst.msk [vmem:[#allocation3 + $0xac] sm:$0xf] %vm833, %v1537
      %1619 = vst.msk [vmem:[#allocation3 + $0xb8] sm:$0xf] %vm833, %v1539
      %1620 = vst.msk [vmem:[#allocation3 + $0xc4] sm:$0xf] %vm833, %v1541
      %1621 = vst.msk [vmem:[#allocation3 + $0xd0] sm:$0xf] %vm833, %v1543
      %1622 = vst.msk [vmem:[#allocation3 + $0xdc] sm:$0xf] %vm833, %v1545
      %1623 = vst.msk [vmem:[#allocation3 + $0xe8] sm:$0xf] %vm833, %v1547
      %1624 = vst.msk [vmem:[#allocation3 + $0xf4] sm:$0xf] %vm833, %v1549
      %1625 = vst.msk [vmem:[#allocation3 + $0x100] sm:$0xf] %vm833, %v1551
      %1626 = vst.msk [vmem:[#allocation3 + $0x10c] sm:$0xf] %vm833, %v1553
      %1627 = vst.msk [vmem:[#allocation3 + $0x118] sm:$0xf] %vm833, %v1555
      %1628 = vst.msk [vmem:[#allocation3 + $0x124] sm:$0xf] %vm833, %v1557
      %1629 = vst.msk [vmem:[#allocation3 + $0x130] sm:$0xf] %vm833, %v1559
      %1630 = vst.msk [vmem:[#allocation3 + $0x13c] sm:$0xf] %vm833, %v1561
      %1631 = vst.msk [vmem:[#allocation3 + $0x148] sm:$0xf] %vm833, %v1563
      %1632 = vst.msk [vmem:[#allocation3 + $0x154] sm:$0xf] %vm833, %v1565
      %1633 = vst.msk [vmem:[#allocation3 + $0x160] sm:$0xf] %vm833, %v1567
      %1634 = vst.msk [vmem:[#allocation3 + $0x16c] sm:$0xf] %vm833, %v1569
      %1635 = vst.msk [vmem:[#allocation3 + $0x178] sm:$0xf] %vm833, %v1571
      %s1636 = scalar_lea.vmem [#allocation2], 48
      %v1637 = vld [vmem:[%s1636] sm:$0xff]
      %v1638 = vld [vmem:[%s1636 + $0x8] sm:$0xff]
      %v1639 = vld [vmem:[%s1636 + $0x18] sm:$0xff]
      %v1640 = vld [vmem:[%s1636 + $0x20] sm:$0xff]
      %v1641 = vld [vmem:[%s1636 + $0x30] sm:$0xff]
      %v1642 = vld [vmem:[%s1636 + $0x38] sm:$0xff]
      %v1643 = vld [vmem:[%s1636 + $0x48] sm:$0xff]
      %v1644 = vld [vmem:[%s1636 + $0x50] sm:$0xff]
      %v1645 = vld [vmem:[%s1636 + $0x60] sm:$0xff]
      %v1646 = vld [vmem:[%s1636 + $0x68] sm:$0xff]
      %v1647 = vld [vmem:[%s1636 + $0x78] sm:$0xff]
      %v1648 = vld [vmem:[%s1636 + $0x80] sm:$0xff]
      %v1649 = vld [vmem:[%s1636 + $0x90] sm:$0xff]
      %v1650 = vld [vmem:[%s1636 + $0x98] sm:$0xff]
      %v1651 = vld [vmem:[%s1636 + $0xa8] sm:$0xff]
      %v1652 = vld [vmem:[%s1636 + $0xb0] sm:$0xff]
      %v1653 = vld [vmem:[%s1636 + $0xc0] sm:$0xff]
      %v1654 = vld [vmem:[%s1636 + $0xc8] sm:$0xff]
      %v1655 = vld [vmem:[%s1636 + $0xd8] sm:$0xff]
      %v1656 = vld [vmem:[%s1636 + $0xe0] sm:$0xff]
      %v1657 = vld [vmem:[%s1636 + $0xf0] sm:$0xff]
      %v1658 = vld [vmem:[%s1636 + $0xf8] sm:$0xff]
      %v1659 = vld [vmem:[%s1636 + $0x108] sm:$0xff]
      %v1660 = vld [vmem:[%s1636 + $0x110] sm:$0xff]
      %v1661 = vld [vmem:[%s1636 + $0x120] sm:$0xff]
      %v1662 = vld [vmem:[%s1636 + $0x128] sm:$0xff]
      %v1663 = vld [vmem:[%s1636 + $0x138] sm:$0xff]
      %v1664 = vld [vmem:[%s1636 + $0x140] sm:$0xff]
      %v1665 = vld [vmem:[%s1636 + $0x150] sm:$0xff]
      %v1666 = vld [vmem:[%s1636 + $0x158] sm:$0xff]
      %v1667 = vld [vmem:[%s1636 + $0x168] sm:$0xff]
      %v1668 = vld [vmem:[%s1636 + $0x170] sm:$0xff]
      %v1669 = vpack.c.bf16 %v1637, %v1637
      %v1670 = vpack.c.bf16 %v1638, %v1638
      %v1671 = vpack.c.bf16 %v1639, %v1639
      %v1672 = vpack.c.bf16 %v1640, %v1640
      %v1673 = vpack.c.bf16 %v1641, %v1641
      %v1674 = vpack.c.bf16 %v1642, %v1642
      %v1675 = vpack.c.bf16 %v1643, %v1643
      %v1676 = vpack.c.bf16 %v1644, %v1644
      %v1677 = vpack.c.bf16 %v1645, %v1645
      %v1678 = vpack.c.bf16 %v1646, %v1646
      %v1679 = vpack.c.bf16 %v1647, %v1647
      %v1680 = vpack.c.bf16 %v1648, %v1648
      %v1681 = vpack.c.bf16 %v1649, %v1649
      %v1682 = vpack.c.bf16 %v1650, %v1650
      %v1683 = vpack.c.bf16 %v1651, %v1651
      %v1684 = vpack.c.bf16 %v1652, %v1652
      %v1685 = vpack.c.bf16 %v1653, %v1653
      %v1686 = vpack.c.bf16 %v1654, %v1654
      %v1687 = vpack.c.bf16 %v1655, %v1655
      %v1688 = vpack.c.bf16 %v1656, %v1656
      %v1689 = vpack.c.bf16 %v1657, %v1657
      %v1690 = vpack.c.bf16 %v1658, %v1658
      %v1691 = vpack.c.bf16 %v1659, %v1659
      %v1692 = vpack.c.bf16 %v1660, %v1660
      %v1693 = vpack.c.bf16 %v1661, %v1661
      %v1694 = vpack.c.bf16 %v1662, %v1662
      %v1695 = vpack.c.bf16 %v1663, %v1663
      %v1696 = vpack.c.bf16 %v1664, %v1664
      %v1697 = vpack.c.bf16 %v1665, %v1665
      %v1698 = vpack.c.bf16 %v1666, %v1666
      %v1699 = vpack.c.bf16 %v1667, %v1667
      %v1700 = vpack.c.bf16 %v1668, %v1668
      %1733 = vrot.lane.b32.xlu0 %v1669, 64
      %v1734 = vpop.permute.xlu0 %1733
      %1735 = vrot.lane.b32.xlu0 %v1670, 64
      %v1736 = vpop.permute.xlu0 %1735
      %1737 = vrot.lane.b32.xlu0 %v1671, 64
      %v1738 = vpop.permute.xlu0 %1737
      %1739 = vrot.lane.b32.xlu0 %v1672, 64
      %v1740 = vpop.permute.xlu0 %1739
      %1741 = vrot.lane.b32.xlu0 %v1673, 64
      %v1742 = vpop.permute.xlu0 %1741
      %1743 = vrot.lane.b32.xlu0 %v1674, 64
      %v1744 = vpop.permute.xlu0 %1743
      %1745 = vrot.lane.b32.xlu0 %v1675, 64
      %v1746 = vpop.permute.xlu0 %1745
      %1747 = vrot.lane.b32.xlu0 %v1676, 64
      %v1748 = vpop.permute.xlu0 %1747
      %1749 = vrot.lane.b32.xlu0 %v1677, 64
      %v1750 = vpop.permute.xlu0 %1749
      %1751 = vrot.lane.b32.xlu0 %v1678, 64
      %v1752 = vpop.permute.xlu0 %1751
      %1753 = vrot.lane.b32.xlu0 %v1679, 64
      %v1754 = vpop.permute.xlu0 %1753
      %1755 = vrot.lane.b32.xlu0 %v1680, 64
      %v1756 = vpop.permute.xlu0 %1755
      %1757 = vrot.lane.b32.xlu0 %v1681, 64
      %v1758 = vpop.permute.xlu0 %1757
      %1759 = vrot.lane.b32.xlu0 %v1682, 64
      %v1760 = vpop.permute.xlu0 %1759
      %1761 = vrot.lane.b32.xlu0 %v1683, 64
      %v1762 = vpop.permute.xlu0 %1761
      %1763 = vrot.lane.b32.xlu0 %v1684, 64
      %v1764 = vpop.permute.xlu0 %1763
      %1765 = vrot.lane.b32.xlu0 %v1685, 64
      %v1766 = vpop.permute.xlu0 %1765
      %1767 = vrot.lane.b32.xlu0 %v1686, 64
      %v1768 = vpop.permute.xlu0 %1767
      %1769 = vrot.lane.b32.xlu0 %v1687, 64
      %v1770 = vpop.permute.xlu0 %1769
      %1771 = vrot.lane.b32.xlu0 %v1688, 64
      %v1772 = vpop.permute.xlu0 %1771
      %1773 = vrot.lane.b32.xlu0 %v1689, 64
      %v1774 = vpop.permute.xlu0 %1773
      %1775 = vrot.lane.b32.xlu0 %v1690, 64
      %v1776 = vpop.permute.xlu0 %1775
      %1777 = vrot.lane.b32.xlu0 %v1691, 64
      %v1778 = vpop.permute.xlu0 %1777
      %1779 = vrot.lane.b32.xlu0 %v1692, 64
      %v1780 = vpop.permute.xlu0 %1779
      %1781 = vrot.lane.b32.xlu0 %v1693, 64
      %v1782 = vpop.permute.xlu0 %1781
      %1783 = vrot.lane.b32.xlu0 %v1694, 64
      %v1784 = vpop.permute.xlu0 %1783
      %1785 = vrot.lane.b32.xlu0 %v1695, 64
      %v1786 = vpop.permute.xlu0 %1785
      %1787 = vrot.lane.b32.xlu0 %v1696, 64
      %v1788 = vpop.permute.xlu0 %1787
      %1789 = vrot.lane.b32.xlu0 %v1697, 64
      %v1790 = vpop.permute.xlu0 %1789
      %1791 = vrot.lane.b32.xlu0 %v1698, 64
      %v1792 = vpop.permute.xlu0 %1791
      %1793 = vrot.lane.b32.xlu0 %v1699, 64
      %v1794 = vpop.permute.xlu0 %1793
      %1795 = vrot.lane.b32.xlu0 %v1700, 64
      %v1796 = vpop.permute.xlu0 %1795
      %1829 = vst.msk [vmem:[#allocation3 + $0x4] sm:$0xf] %vm1058, %v1734
      %1830 = vst.msk [vmem:[#allocation3 + $0x10] sm:$0xf] %vm1058, %v1736
      %1831 = vst.msk [vmem:[#allocation3 + $0x1c] sm:$0xf] %vm1058, %v1738
      %1832 = vst.msk [vmem:[#allocation3 + $0x28] sm:$0xf] %vm1058, %v1740
      %1833 = vst.msk [vmem:[#allocation3 + $0x34] sm:$0xf] %vm1058, %v1742
      %1834 = vst.msk [vmem:[#allocation3 + $0x40] sm:$0xf] %vm1058, %v1744
      %1835 = vst.msk [vmem:[#allocation3 + $0x4c] sm:$0xf] %vm1058, %v1746
      %1836 = vst.msk [vmem:[#allocation3 + $0x58] sm:$0xf] %vm1058, %v1748
      %1837 = vst.msk [vmem:[#allocation3 + $0x64] sm:$0xf] %vm1058, %v1750
      %1838 = vst.msk [vmem:[#allocation3 + $0x70] sm:$0xf] %vm1058, %v1752
      %1839 = vst.msk [vmem:[#allocation3 + $0x7c] sm:$0xf] %vm1058, %v1754
      %1840 = vst.msk [vmem:[#allocation3 + $0x88] sm:$0xf] %vm1058, %v1756
      %1841 = vst.msk [vmem:[#allocation3 + $0x94] sm:$0xf] %vm1058, %v1758
      %1842 = vst.msk [vmem:[#allocation3 + $0xa0] sm:$0xf] %vm1058, %v1760
      %1843 = vst.msk [vmem:[#allocation3 + $0xac] sm:$0xf] %vm1058, %v1762
      %1844 = vst.msk [vmem:[#allocation3 + $0xb8] sm:$0xf] %vm1058, %v1764
      %1845 = vst.msk [vmem:[#allocation3 + $0xc4] sm:$0xf] %vm1058, %v1766
      %1846 = vst.msk [vmem:[#allocation3 + $0xd0] sm:$0xf] %vm1058, %v1768
      %1847 = vst.msk [vmem:[#allocation3 + $0xdc] sm:$0xf] %vm1058, %v1770
      %1848 = vst.msk [vmem:[#allocation3 + $0xe8] sm:$0xf] %vm1058, %v1772
      %1849 = vst.msk [vmem:[#allocation3 + $0xf4] sm:$0xf] %vm1058, %v1774
      %1850 = vst.msk [vmem:[#allocation3 + $0x100] sm:$0xf] %vm1058, %v1776
      %1851 = vst.msk [vmem:[#allocation3 + $0x10c] sm:$0xf] %vm1058, %v1778
      %1852 = vst.msk [vmem:[#allocation3 + $0x118] sm:$0xf] %vm1058, %v1780
      %1853 = vst.msk [vmem:[#allocation3 + $0x124] sm:$0xf] %vm1058, %v1782
      %1854 = vst.msk [vmem:[#allocation3 + $0x130] sm:$0xf] %vm1058, %v1784
      %1855 = vst.msk [vmem:[#allocation3 + $0x13c] sm:$0xf] %vm1058, %v1786
      %1856 = vst.msk [vmem:[#allocation3 + $0x148] sm:$0xf] %vm1058, %v1788
      %1857 = vst.msk [vmem:[#allocation3 + $0x154] sm:$0xf] %vm1058, %v1790
      %1858 = vst.msk [vmem:[#allocation3 + $0x160] sm:$0xf] %vm1058, %v1792
      %1859 = vst.msk [vmem:[#allocation3 + $0x16c] sm:$0xf] %vm1058, %v1794
      %1860 = vst.msk [vmem:[#allocation3 + $0x178] sm:$0xf] %vm1058, %v1796
      %v1861 = vld [vmem:[%s1636 + $0x1] sm:$0xff]
      %v1862 = vld [vmem:[%s1636 + $0x9] sm:$0xff]
      %v1863 = vld [vmem:[%s1636 + $0x19] sm:$0xff]
      %v1864 = vld [vmem:[%s1636 + $0x21] sm:$0xff]
      %v1865 = vld [vmem:[%s1636 + $0x31] sm:$0xff]
      %v1866 = vld [vmem:[%s1636 + $0x39] sm:$0xff]
      %v1867 = vld [vmem:[%s1636 + $0x49] sm:$0xff]
      %v1868 = vld [vmem:[%s1636 + $0x51] sm:$0xff]
      %v1869 = vld [vmem:[%s1636 + $0x61] sm:$0xff]
      %v1870 = vld [vmem:[%s1636 + $0x69] sm:$0xff]
      %v1871 = vld [vmem:[%s1636 + $0x79] sm:$0xff]
      %v1872 = vld [vmem:[%s1636 + $0x81] sm:$0xff]
      %v1873 = vld [vmem:[%s1636 + $0x91] sm:$0xff]
      %v1874 = vld [vmem:[%s1636 + $0x99] sm:$0xff]
      %v1875 = vld [vmem:[%s1636 + $0xa9] sm:$0xff]
      %v1876 = vld [vmem:[%s1636 + $0xb1] sm:$0xff]
      %v1877 = vld [vmem:[%s1636 + $0xc1] sm:$0xff]
      %v1878 = vld [vmem:[%s1636 + $0xc9] sm:$0xff]
      %v1879 = vld [vmem:[%s1636 + $0xd9] sm:$0xff]
      %v1880 = vld [vmem:[%s1636 + $0xe1] sm:$0xff]
      %v1881 = vld [vmem:[%s1636 + $0xf1] sm:$0xff]
      %v1882 = vld [vmem:[%s1636 + $0xf9] sm:$0xff]
      %v1883 = vld [vmem:[%s1636 + $0x109] sm:$0xff]
      %v1884 = vld [vmem:[%s1636 + $0x111] sm:$0xff]
      %v1885 = vld [vmem:[%s1636 + $0x121] sm:$0xff]
      %v1886 = vld [vmem:[%s1636 + $0x129] sm:$0xff]
      %v1887 = vld [vmem:[%s1636 + $0x139] sm:$0xff]
      %v1888 = vld [vmem:[%s1636 + $0x141] sm:$0xff]
      %v1889 = vld [vmem:[%s1636 + $0x151] sm:$0xff]
      %v1890 = vld [vmem:[%s1636 + $0x159] sm:$0xff]
      %v1891 = vld [vmem:[%s1636 + $0x169] sm:$0xff]
      %v1892 = vld [vmem:[%s1636 + $0x171] sm:$0xff]
      %v1893 = vpack.c.bf16 %v1861, %v1861
      %v1894 = vpack.c.bf16 %v1862, %v1862
      %v1895 = vpack.c.bf16 %v1863, %v1863
      %v1896 = vpack.c.bf16 %v1864, %v1864
      %v1897 = vpack.c.bf16 %v1865, %v1865
      %v1898 = vpack.c.bf16 %v1866, %v1866
      %v1899 = vpack.c.bf16 %v1867, %v1867
      %v1900 = vpack.c.bf16 %v1868, %v1868
      %v1901 = vpack.c.bf16 %v1869, %v1869
      %v1902 = vpack.c.bf16 %v1870, %v1870
      %v1903 = vpack.c.bf16 %v1871, %v1871
      %v1904 = vpack.c.bf16 %v1872, %v1872
      %v1905 = vpack.c.bf16 %v1873, %v1873
      %v1906 = vpack.c.bf16 %v1874, %v1874
      %v1907 = vpack.c.bf16 %v1875, %v1875
      %v1908 = vpack.c.bf16 %v1876, %v1876
      %v1909 = vpack.c.bf16 %v1877, %v1877
      %v1910 = vpack.c.bf16 %v1878, %v1878
      %v1911 = vpack.c.bf16 %v1879, %v1879
      %v1912 = vpack.c.bf16 %v1880, %v1880
      %v1913 = vpack.c.bf16 %v1881, %v1881
      %v1914 = vpack.c.bf16 %v1882, %v1882
      %v1915 = vpack.c.bf16 %v1883, %v1883
      %v1916 = vpack.c.bf16 %v1884, %v1884
      %v1917 = vpack.c.bf16 %v1885, %v1885
      %v1918 = vpack.c.bf16 %v1886, %v1886
      %v1919 = vpack.c.bf16 %v1887, %v1887
      %v1920 = vpack.c.bf16 %v1888, %v1888
      %v1921 = vpack.c.bf16 %v1889, %v1889
      %v1922 = vpack.c.bf16 %v1890, %v1890
      %v1923 = vpack.c.bf16 %v1891, %v1891
      %v1924 = vpack.c.bf16 %v1892, %v1892
      %1957 = vrot.lane.b32.xlu0 %v1893, 96
      %v1958 = vpop.permute.xlu0 %1957
      %1959 = vrot.lane.b32.xlu0 %v1894, 96
      %v1960 = vpop.permute.xlu0 %1959
      %1961 = vrot.lane.b32.xlu0 %v1895, 96
      %v1962 = vpop.permute.xlu0 %1961
      %1963 = vrot.lane.b32.xlu0 %v1896, 96
      %v1964 = vpop.permute.xlu0 %1963
      %1965 = vrot.lane.b32.xlu0 %v1897, 96
      %v1966 = vpop.permute.xlu0 %1965
      %1967 = vrot.lane.b32.xlu0 %v1898, 96
      %v1968 = vpop.permute.xlu0 %1967
      %1969 = vrot.lane.b32.xlu0 %v1899, 96
      %v1970 = vpop.permute.xlu0 %1969
      %1971 = vrot.lane.b32.xlu0 %v1900, 96
      %v1972 = vpop.permute.xlu0 %1971
      %1973 = vrot.lane.b32.xlu0 %v1901, 96
      %v1974 = vpop.permute.xlu0 %1973
      %1975 = vrot.lane.b32.xlu0 %v1902, 96
      %v1976 = vpop.permute.xlu0 %1975
      %1977 = vrot.lane.b32.xlu0 %v1903, 96
      %v1978 = vpop.permute.xlu0 %1977
      %1979 = vrot.lane.b32.xlu0 %v1904, 96
      %v1980 = vpop.permute.xlu0 %1979
      %1981 = vrot.lane.b32.xlu0 %v1905, 96
      %v1982 = vpop.permute.xlu0 %1981
      %1983 = vrot.lane.b32.xlu0 %v1906, 96
      %v1984 = vpop.permute.xlu0 %1983
      %1985 = vrot.lane.b32.xlu0 %v1907, 96
      %v1986 = vpop.permute.xlu0 %1985
      %1987 = vrot.lane.b32.xlu0 %v1908, 96
      %v1988 = vpop.permute.xlu0 %1987
      %1989 = vrot.lane.b32.xlu0 %v1909, 96
      %v1990 = vpop.permute.xlu0 %1989
      %1991 = vrot.lane.b32.xlu0 %v1910, 96
      %v1992 = vpop.permute.xlu0 %1991
      %1993 = vrot.lane.b32.xlu0 %v1911, 96
      %v1994 = vpop.permute.xlu0 %1993
      %1995 = vrot.lane.b32.xlu0 %v1912, 96
      %v1996 = vpop.permute.xlu0 %1995
      %1997 = vrot.lane.b32.xlu0 %v1913, 96
      %v1998 = vpop.permute.xlu0 %1997
      %1999 = vrot.lane.b32.xlu0 %v1914, 96
      %v2000 = vpop.permute.xlu0 %1999
      %2001 = vrot.lane.b32.xlu0 %v1915, 96
      %v2002 = vpop.permute.xlu0 %2001
      %2003 = vrot.lane.b32.xlu0 %v1916, 96
      %v2004 = vpop.permute.xlu0 %2003
      %2005 = vrot.lane.b32.xlu0 %v1917, 96
      %v2006 = vpop.permute.xlu0 %2005
      %2007 = vrot.lane.b32.xlu0 %v1918, 96
      %v2008 = vpop.permute.xlu0 %2007
      %2009 = vrot.lane.b32.xlu0 %v1919, 96
      %v2010 = vpop.permute.xlu0 %2009
      %2011 = vrot.lane.b32.xlu0 %v1920, 96
      %v2012 = vpop.permute.xlu0 %2011
      %2013 = vrot.lane.b32.xlu0 %v1921, 96
      %v2014 = vpop.permute.xlu0 %2013
      %2015 = vrot.lane.b32.xlu0 %v1922, 96
      %v2016 = vpop.permute.xlu0 %2015
      %2017 = vrot.lane.b32.xlu0 %v1923, 96
      %v2018 = vpop.permute.xlu0 %2017
      %2019 = vrot.lane.b32.xlu0 %v1924, 96
      %v2020 = vpop.permute.xlu0 %2019
      %2053 = vst.msk [vmem:[#allocation3 + $0x4] sm:$0xf] %vm1283, %v1958
      %2054 = vst.msk [vmem:[#allocation3 + $0x10] sm:$0xf] %vm1283, %v1960
      %2055 = vst.msk [vmem:[#allocation3 + $0x1c] sm:$0xf] %vm1283, %v1962
      %2056 = vst.msk [vmem:[#allocation3 + $0x28] sm:$0xf] %vm1283, %v1964
      %2057 = vst.msk [vmem:[#allocation3 + $0x34] sm:$0xf] %vm1283, %v1966
      %2058 = vst.msk [vmem:[#allocation3 + $0x40] sm:$0xf] %vm1283, %v1968
      %2059 = vst.msk [vmem:[#allocation3 + $0x4c] sm:$0xf] %vm1283, %v1970
      %2060 = vst.msk [vmem:[#allocation3 + $0x58] sm:$0xf] %vm1283, %v1972
      %2061 = vst.msk [vmem:[#allocation3 + $0x64] sm:$0xf] %vm1283, %v1974
      %2062 = vst.msk [vmem:[#allocation3 + $0x70] sm:$0xf] %vm1283, %v1976
      %2063 = vst.msk [vmem:[#allocation3 + $0x7c] sm:$0xf] %vm1283, %v1978
      %2064 = vst.msk [vmem:[#allocation3 + $0x88] sm:$0xf] %vm1283, %v1980
      %2065 = vst.msk [vmem:[#allocation3 + $0x94] sm:$0xf] %vm1283, %v1982
      %2066 = vst.msk [vmem:[#allocation3 + $0xa0] sm:$0xf] %vm1283, %v1984
      %2067 = vst.msk [vmem:[#allocation3 + $0xac] sm:$0xf] %vm1283, %v1986
      %2068 = vst.msk [vmem:[#allocation3 + $0xb8] sm:$0xf] %vm1283, %v1988
      %2069 = vst.msk [vmem:[#allocation3 + $0xc4] sm:$0xf] %vm1283, %v1990
      %2070 = vst.msk [vmem:[#allocation3 + $0xd0] sm:$0xf] %vm1283, %v1992
      %2071 = vst.msk [vmem:[#allocation3 + $0xdc] sm:$0xf] %vm1283, %v1994
      %2072 = vst.msk [vmem:[#allocation3 + $0xe8] sm:$0xf] %vm1283, %v1996
      %2073 = vst.msk [vmem:[#allocation3 + $0xf4] sm:$0xf] %vm1283, %v1998
      %2074 = vst.msk [vmem:[#allocation3 + $0x100] sm:$0xf] %vm1283, %v2000
      %2075 = vst.msk [vmem:[#allocation3 + $0x10c] sm:$0xf] %vm1283, %v2002
      %2076 = vst.msk [vmem:[#allocation3 + $0x118] sm:$0xf] %vm1283, %v2004
      %2077 = vst.msk [vmem:[#allocation3 + $0x124] sm:$0xf] %vm1283, %v2006
      %2078 = vst.msk [vmem:[#allocation3 + $0x130] sm:$0xf] %vm1283, %v2008
      %2079 = vst.msk [vmem:[#allocation3 + $0x13c] sm:$0xf] %vm1283, %v2010
      %2080 = vst.msk [vmem:[#allocation3 + $0x148] sm:$0xf] %vm1283, %v2012
      %2081 = vst.msk [vmem:[#allocation3 + $0x154] sm:$0xf] %vm1283, %v2014
      %2082 = vst.msk [vmem:[#allocation3 + $0x160] sm:$0xf] %vm1283, %v2016
      %2083 = vst.msk [vmem:[#allocation3 + $0x16c] sm:$0xf] %vm1283, %v2018
      %2084 = vst.msk [vmem:[#allocation3 + $0x178] sm:$0xf] %vm1283, %v2020
      %v2085 = vld [vmem:[%s1636 + $0x2] sm:$0xff]
      %v2086 = vld [vmem:[%s1636 + $0xa] sm:$0xff]
      %v2087 = vld [vmem:[%s1636 + $0x1a] sm:$0xff]
      %v2088 = vld [vmem:[%s1636 + $0x22] sm:$0xff]
      %v2089 = vld [vmem:[%s1636 + $0x32] sm:$0xff]
      %v2090 = vld [vmem:[%s1636 + $0x3a] sm:$0xff]
      %v2091 = vld [vmem:[%s1636 + $0x4a] sm:$0xff]
      %v2092 = vld [vmem:[%s1636 + $0x52] sm:$0xff]
      %v2093 = vld [vmem:[%s1636 + $0x62] sm:$0xff]
      %v2094 = vld [vmem:[%s1636 + $0x6a] sm:$0xff]
      %v2095 = vld [vmem:[%s1636 + $0x7a] sm:$0xff]
      %v2096 = vld [vmem:[%s1636 + $0x82] sm:$0xff]
      %v2097 = vld [vmem:[%s1636 + $0x92] sm:$0xff]
      %v2098 = vld [vmem:[%s1636 + $0x9a] sm:$0xff]
      %v2099 = vld [vmem:[%s1636 + $0xaa] sm:$0xff]
      %v2100 = vld [vmem:[%s1636 + $0xb2] sm:$0xff]
      %v2101 = vld [vmem:[%s1636 + $0xc2] sm:$0xff]
      %v2102 = vld [vmem:[%s1636 + $0xca] sm:$0xff]
      %v2103 = vld [vmem:[%s1636 + $0xda] sm:$0xff]
      %v2104 = vld [vmem:[%s1636 + $0xe2] sm:$0xff]
      %v2105 = vld [vmem:[%s1636 + $0xf2] sm:$0xff]
      %v2106 = vld [vmem:[%s1636 + $0xfa] sm:$0xff]
      %v2107 = vld [vmem:[%s1636 + $0x10a] sm:$0xff]
      %v2108 = vld [vmem:[%s1636 + $0x112] sm:$0xff]
      %v2109 = vld [vmem:[%s1636 + $0x122] sm:$0xff]
      %v2110 = vld [vmem:[%s1636 + $0x12a] sm:$0xff]
      %v2111 = vld [vmem:[%s1636 + $0x13a] sm:$0xff]
      %v2112 = vld [vmem:[%s1636 + $0x142] sm:$0xff]
      %v2113 = vld [vmem:[%s1636 + $0x152] sm:$0xff]
      %v2114 = vld [vmem:[%s1636 + $0x15a] sm:$0xff]
      %v2115 = vld [vmem:[%s1636 + $0x16a] sm:$0xff]
      %v2116 = vld [vmem:[%s1636 + $0x172] sm:$0xff]
      %v2117 = vpack.c.bf16 %v2085, %v2085
      %v2118 = vpack.c.bf16 %v2086, %v2086
      %v2119 = vpack.c.bf16 %v2087, %v2087
      %v2120 = vpack.c.bf16 %v2088, %v2088
      %v2121 = vpack.c.bf16 %v2089, %v2089
      %v2122 = vpack.c.bf16 %v2090, %v2090
      %v2123 = vpack.c.bf16 %v2091, %v2091
      %v2124 = vpack.c.bf16 %v2092, %v2092
      %v2125 = vpack.c.bf16 %v2093, %v2093
      %v2126 = vpack.c.bf16 %v2094, %v2094
      %v2127 = vpack.c.bf16 %v2095, %v2095
      %v2128 = vpack.c.bf16 %v2096, %v2096
      %v2129 = vpack.c.bf16 %v2097, %v2097
      %v2130 = vpack.c.bf16 %v2098, %v2098
      %v2131 = vpack.c.bf16 %v2099, %v2099
      %v2132 = vpack.c.bf16 %v2100, %v2100
      %v2133 = vpack.c.bf16 %v2101, %v2101
      %v2134 = vpack.c.bf16 %v2102, %v2102
      %v2135 = vpack.c.bf16 %v2103, %v2103
      %v2136 = vpack.c.bf16 %v2104, %v2104
      %v2137 = vpack.c.bf16 %v2105, %v2105
      %v2138 = vpack.c.bf16 %v2106, %v2106
      %v2139 = vpack.c.bf16 %v2107, %v2107
      %v2140 = vpack.c.bf16 %v2108, %v2108
      %v2141 = vpack.c.bf16 %v2109, %v2109
      %v2142 = vpack.c.bf16 %v2110, %v2110
      %v2143 = vpack.c.bf16 %v2111, %v2111
      %v2144 = vpack.c.bf16 %v2112, %v2112
      %v2145 = vpack.c.bf16 %v2113, %v2113
      %v2146 = vpack.c.bf16 %v2114, %v2114
      %v2147 = vpack.c.bf16 %v2115, %v2115
      %v2148 = vpack.c.bf16 %v2116, %v2116
      %2149 = vst.msk [vmem:[#allocation3 + $0x8] sm:$0xf] %vm608, %v2117
      %2150 = vst.msk [vmem:[#allocation3 + $0x14] sm:$0xf] %vm608, %v2118
      %2151 = vst.msk [vmem:[#allocation3 + $0x20] sm:$0xf] %vm608, %v2119
      %2152 = vst.msk [vmem:[#allocation3 + $0x2c] sm:$0xf] %vm608, %v2120
      %2153 = vst.msk [vmem:[#allocation3 + $0x38] sm:$0xf] %vm608, %v2121
      %2154 = vst.msk [vmem:[#allocation3 + $0x44] sm:$0xf] %vm608, %v2122
      %2155 = vst.msk [vmem:[#allocation3 + $0x50] sm:$0xf] %vm608, %v2123
      %2156 = vst.msk [vmem:[#allocation3 + $0x5c] sm:$0xf] %vm608, %v2124
      %2157 = vst.msk [vmem:[#allocation3 + $0x68] sm:$0xf] %vm608, %v2125
      %2158 = vst.msk [vmem:[#allocation3 + $0x74] sm:$0xf] %vm608, %v2126
      %2159 = vst.msk [vmem:[#allocation3 + $0x80] sm:$0xf] %vm608, %v2127
      %2160 = vst.msk [vmem:[#allocation3 + $0x8c] sm:$0xf] %vm608, %v2128
      %2161 = vst.msk [vmem:[#allocation3 + $0x98] sm:$0xf] %vm608, %v2129
      %2162 = vst.msk [vmem:[#allocation3 + $0xa4] sm:$0xf] %vm608, %v2130
      %2163 = vst.msk [vmem:[#allocation3 + $0xb0] sm:$0xf] %vm608, %v2131
      %2164 = vst.msk [vmem:[#allocation3 + $0xbc] sm:$0xf] %vm608, %v2132
      %2165 = vst.msk [vmem:[#allocation3 + $0xc8] sm:$0xf] %vm608, %v2133
      %2166 = vst.msk [vmem:[#allocation3 + $0xd4] sm:$0xf] %vm608, %v2134
      %2167 = vst.msk [vmem:[#allocation3 + $0xe0] sm:$0xf] %vm608, %v2135
      %2168 = vst.msk [vmem:[#allocation3 + $0xec] sm:$0xf] %vm608, %v2136
      %2169 = vst.msk [vmem:[#allocation3 + $0xf8] sm:$0xf] %vm608, %v2137
      %2170 = vst.msk [vmem:[#allocation3 + $0x104] sm:$0xf] %vm608, %v2138
      %2171 = vst.msk [vmem:[#allocation3 + $0x110] sm:$0xf] %vm608, %v2139
      %2172 = vst.msk [vmem:[#allocation3 + $0x11c] sm:$0xf] %vm608, %v2140
      %2173 = vst.msk [vmem:[#allocation3 + $0x128] sm:$0xf] %vm608, %v2141
      %2174 = vst.msk [vmem:[#allocation3 + $0x134] sm:$0xf] %vm608, %v2142
      %2175 = vst.msk [vmem:[#allocation3 + $0x140] sm:$0xf] %vm608, %v2143
      %2176 = vst.msk [vmem:[#allocation3 + $0x14c] sm:$0xf] %vm608, %v2144
      %2177 = vst.msk [vmem:[#allocation3 + $0x158] sm:$0xf] %vm608, %v2145
      %2178 = vst.msk [vmem:[#allocation3 + $0x164] sm:$0xf] %vm608, %v2146
      %2179 = vst.msk [vmem:[#allocation3 + $0x170] sm:$0xf] %vm608, %v2147
      %2180 = vst.msk [vmem:[#allocation3 + $0x17c] sm:$0xf] %vm608, %v2148
      %v2181 = vld [vmem:[#allocation3] sm:$0xff]
      %v2182 = vld [vmem:[#allocation3 + $0x8] sm:$0xf]
      %v2183 = vld [vmem:[#allocation3 + $0xc] sm:$0xff]
      %v2184 = vld [vmem:[#allocation3 + $0x14] sm:$0xf]
      %v2185 = vld [vmem:[#allocation3 + $0x18] sm:$0xff]
      %v2186 = vld [vmem:[#allocation3 + $0x20] sm:$0xf]
      %v2187 = vld [vmem:[#allocation3 + $0x24] sm:$0xff]
      %v2188 = vld [vmem:[#allocation3 + $0x2c] sm:$0xf]
      %v2189 = vld [vmem:[#allocation3 + $0x30] sm:$0xff]
      %v2190 = vld [vmem:[#allocation3 + $0x38] sm:$0xf]
      %v2191 = vld [vmem:[#allocation3 + $0x3c] sm:$0xff]
      %v2192 = vld [vmem:[#allocation3 + $0x44] sm:$0xf]
      %v2193 = vld [vmem:[#allocation3 + $0x48] sm:$0xff]
      %v2194 = vld [vmem:[#allocation3 + $0x50] sm:$0xf]
      %v2195 = vld [vmem:[#allocation3 + $0x54] sm:$0xff]
      %v2196 = vld [vmem:[#allocation3 + $0x5c] sm:$0xf]
      %v2197 = vld [vmem:[#allocation3 + $0x60] sm:$0xff]
      %v2198 = vld [vmem:[#allocation3 + $0x68] sm:$0xf]
      %v2199 = vld [vmem:[#allocation3 + $0x6c] sm:$0xff]
      %v2200 = vld [vmem:[#allocation3 + $0x74] sm:$0xf]
      %v2201 = vld [vmem:[#allocation3 + $0x78] sm:$0xff]
      %v2202 = vld [vmem:[#allocation3 + $0x80] sm:$0xf]
      %v2203 = vld [vmem:[#allocation3 + $0x84] sm:$0xff]
      %v2204 = vld [vmem:[#allocation3 + $0x8c] sm:$0xf]
      %v2205 = vld [vmem:[#allocation3 + $0x90] sm:$0xff]
      %v2206 = vld [vmem:[#allocation3 + $0x98] sm:$0xf]
      %v2207 = vld [vmem:[#allocation3 + $0x9c] sm:$0xff]
      %v2208 = vld [vmem:[#allocation3 + $0xa4] sm:$0xf]
      %v2209 = vld [vmem:[#allocation3 + $0xa8] sm:$0xff]
      %v2210 = vld [vmem:[#allocation3 + $0xb0] sm:$0xf]
      %v2211 = vld [vmem:[#allocation3 + $0xb4] sm:$0xff]
      %v2212 = vld [vmem:[#allocation3 + $0xbc] sm:$0xf]
      %v2213 = vld [vmem:[#allocation3 + $0xc0] sm:$0xff]
      %v2214 = vld [vmem:[#allocation3 + $0xc8] sm:$0xf]
      %v2215 = vld [vmem:[#allocation3 + $0xcc] sm:$0xff]
      %v2216 = vld [vmem:[#allocation3 + $0xd4] sm:$0xf]
      %v2217 = vld [vmem:[#allocation3 + $0xd8] sm:$0xff]
      %v2218 = vld [vmem:[#allocation3 + $0xe0] sm:$0xf]
      %v2219 = vld [vmem:[#allocation3 + $0xe4] sm:$0xff]
      %v2220 = vld [vmem:[#allocation3 + $0xec] sm:$0xf]
      %v2221 = vld [vmem:[#allocation3 + $0xf0] sm:$0xff]
      %v2222 = vld [vmem:[#allocation3 + $0xf8] sm:$0xf]
      %v2223 = vld [vmem:[#allocation3 + $0xfc] sm:$0xff]
      %v2224 = vld [vmem:[#allocation3 + $0x104] sm:$0xf]
      %v2225 = vld [vmem:[#allocation3 + $0x108] sm:$0xff]
      %v2226 = vld [vmem:[#allocation3 + $0x110] sm:$0xf]
      %v2227 = vld [vmem:[#allocation3 + $0x114] sm:$0xff]
      %v2228 = vld [vmem:[#allocation3 + $0x11c] sm:$0xf]
      %v2229 = vld [vmem:[#allocation3 + $0x120] sm:$0xff]
      %v2230 = vld [vmem:[#allocation3 + $0x128] sm:$0xf]
      %v2231 = vld [vmem:[#allocation3 + $0x12c] sm:$0xff]
      %v2232 = vld [vmem:[#allocation3 + $0x134] sm:$0xf]
      %v2233 = vld [vmem:[#allocation3 + $0x138] sm:$0xff]
      %v2234 = vld [vmem:[#allocation3 + $0x140] sm:$0xf]
      %v2235 = vld [vmem:[#allocation3 + $0x144] sm:$0xff]
      %v2236 = vld [vmem:[#allocation3 + $0x14c] sm:$0xf]
      %v2237 = vld [vmem:[#allocation3 + $0x150] sm:$0xff]
      %v2238 = vld [vmem:[#allocation3 + $0x158] sm:$0xf]
      %v2239 = vld [vmem:[#allocation3 + $0x15c] sm:$0xff]
      %v2240 = vld [vmem:[#allocation3 + $0x164] sm:$0xf]
      %v2241 = vld [vmem:[#allocation3 + $0x168] sm:$0xff]
      %v2242 = vld [vmem:[#allocation3 + $0x170] sm:$0xf]
      %v2243 = vld [vmem:[#allocation3 + $0x174] sm:$0xff]
      %v2244 = vld [vmem:[#allocation3 + $0x17c] sm:$0xf]
      %v2245 = vld [vmem:[%s3] sm:$0xf]
      %v2246 = vld [vmem:[%s3 + $0x4] sm:$0xf]
      %v2247 = vld [vmem:[%s3 + $0x8] sm:$0xf]
      %v2248 = vld [vmem:[%s3 + $0xc] sm:$0xf]
      %v2249 = vld [vmem:[%s3 + $0x10] sm:$0xf]
      %v2250 = vld [vmem:[%s3 + $0x14] sm:$0xf]
      %v2251 = vld [vmem:[%s3 + $0x18] sm:$0xf]
      %v2252 = vld [vmem:[%s3 + $0x1c] sm:$0xf]
      %v2253 = vld [vmem:[%s3 + $0x20] sm:$0xf]
      %v2254 = vld [vmem:[%s3 + $0x24] sm:$0xf]
      %v2255 = vld [vmem:[%s3 + $0x28] sm:$0xf]
      %v2256 = vld [vmem:[%s3 + $0x2c] sm:$0xf]
      %v2257 = vld [vmem:[%s3 + $0x30] sm:$0xf]
      %v2258 = vld [vmem:[%s3 + $0x34] sm:$0xf]
      %v2259 = vld [vmem:[%s3 + $0x38] sm:$0xf]
      %v2260 = vld [vmem:[%s3 + $0x3c] sm:$0xf]
      %v2261 = vld [vmem:[%s3 + $0x40] sm:$0xf]
      %v2262 = vld [vmem:[%s3 + $0x44] sm:$0xf]
      %v2263 = vld [vmem:[%s3 + $0x48] sm:$0xf]
      %v2264 = vld [vmem:[%s3 + $0x4c] sm:$0xf]
      %v2265 = vld [vmem:[%s3 + $0x50] sm:$0xf]
      %v2266 = vld [vmem:[%s3 + $0x54] sm:$0xf]
      %v2267 = vld [vmem:[%s3 + $0x58] sm:$0xf]
      %v2268 = vld [vmem:[%s3 + $0x5c] sm:$0xf]
      %v2269 = vld [vmem:[%s3 + $0x60] sm:$0xf]
      %v2270 = vld [vmem:[%s3 + $0x64] sm:$0xf]
      %v2271 = vld [vmem:[%s3 + $0x68] sm:$0xf]
      %v2272 = vld [vmem:[%s3 + $0x6c] sm:$0xf]
      %v2273 = vld [vmem:[%s3 + $0x70] sm:$0xf]
      %v2274 = vld [vmem:[%s3 + $0x74] sm:$0xf]
      %v2275 = vld [vmem:[%s3 + $0x78] sm:$0xf]
      %v2276 = vld [vmem:[%s3 + $0x7c] sm:$0xf]
      %v2277 = vld [vmem:[%s3 + $0x80] sm:$0xf]
      %v2278 = vld [vmem:[%s3 + $0x84] sm:$0xf]
      %v2279 = vld [vmem:[%s3 + $0x88] sm:$0xf]
      %v2280 = vld [vmem:[%s3 + $0x8c] sm:$0xf]
      %v2345 = vunpack.c.l.b16 %v2181
      %v2346 = vunpack.c.h.b16 %v2181
      %v2347 = vunpack.c.l.b16 %v2182
      %v2348 = vunpack.c.l.b16 %v2183
      %v2349 = vunpack.c.h.b16 %v2183
      %v2350 = vunpack.c.l.b16 %v2184
      %v2351 = vunpack.c.l.b16 %v2185
      %v2352 = vunpack.c.h.b16 %v2185
      %v2353 = vunpack.c.l.b16 %v2186
      %v2354 = vunpack.c.l.b16 %v2187
      %v2355 = vunpack.c.h.b16 %v2187
      %v2356 = vunpack.c.l.b16 %v2188
      %v2357 = vunpack.c.l.b16 %v2189
      %v2358 = vunpack.c.h.b16 %v2189
      %v2359 = vunpack.c.l.b16 %v2190
      %v2360 = vunpack.c.l.b16 %v2191
      %v2361 = vunpack.c.h.b16 %v2191
      %v2362 = vunpack.c.l.b16 %v2192
      %v2363 = vunpack.c.l.b16 %v2193
      %v2364 = vunpack.c.h.b16 %v2193
      %v2365 = vunpack.c.l.b16 %v2194
      %v2366 = vunpack.c.l.b16 %v2195
      %v2367 = vunpack.c.h.b16 %v2195
      %v2368 = vunpack.c.l.b16 %v2196
      %v2369 = vunpack.c.l.b16 %v2197
      %v2370 = vunpack.c.h.b16 %v2197
      %v2371 = vunpack.c.l.b16 %v2198
      %v2372 = vunpack.c.l.b16 %v2199
      %v2373 = vunpack.c.h.b16 %v2199
      %v2374 = vunpack.c.l.b16 %v2200
      %v2375 = vunpack.c.l.b16 %v2201
      %v2376 = vunpack.c.h.b16 %v2201
      %v2377 = vunpack.c.l.b16 %v2202
      %v2378 = vunpack.c.l.b16 %v2203
      %v2379 = vunpack.c.h.b16 %v2203
      %v2380 = vunpack.c.l.b16 %v2204
      %v2381 = vunpack.c.l.b16 %v2205
      %v2382 = vunpack.c.h.b16 %v2205
      %v2383 = vunpack.c.l.b16 %v2206
      %v2384 = vunpack.c.l.b16 %v2207
      %v2385 = vunpack.c.h.b16 %v2207
      %v2386 = vunpack.c.l.b16 %v2208
      %v2387 = vunpack.c.l.b16 %v2209
      %v2388 = vunpack.c.h.b16 %v2209
      %v2389 = vunpack.c.l.b16 %v2210
      %v2390 = vunpack.c.l.b16 %v2211
      %v2391 = vunpack.c.h.b16 %v2211
      %v2392 = vunpack.c.l.b16 %v2212
      %v2393 = vunpack.c.l.b16 %v2213
      %v2394 = vunpack.c.h.b16 %v2213
      %v2395 = vunpack.c.l.b16 %v2214
      %v2396 = vunpack.c.l.b16 %v2215
      %v2397 = vunpack.c.h.b16 %v2215
      %v2398 = vunpack.c.l.b16 %v2216
      %v2399 = vunpack.c.l.b16 %v2217
      %v2400 = vunpack.c.h.b16 %v2217
      %v2401 = vunpack.c.l.b16 %v2218
      %v2402 = vunpack.c.l.b16 %v2219
      %v2403 = vunpack.c.h.b16 %v2219
      %v2404 = vunpack.c.l.b16 %v2220
      %v2405 = vunpack.c.l.b16 %v2221
      %v2406 = vunpack.c.h.b16 %v2221
      %v2407 = vunpack.c.l.b16 %v2222
      %v2408 = vunpack.c.l.b16 %v2223
      %v2409 = vunpack.c.h.b16 %v2223
      %v2410 = vunpack.c.l.b16 %v2224
      %v2411 = vunpack.c.l.b16 %v2225
      %v2412 = vunpack.c.h.b16 %v2225
      %v2413 = vunpack.c.l.b16 %v2226
      %v2414 = vunpack.c.l.b16 %v2227
      %v2415 = vunpack.c.h.b16 %v2227
      %v2416 = vunpack.c.l.b16 %v2228
      %v2417 = vunpack.c.l.b16 %v2229
      %v2418 = vunpack.c.h.b16 %v2229
      %v2419 = vunpack.c.l.b16 %v2230
      %v2420 = vunpack.c.l.b16 %v2231
      %v2421 = vunpack.c.h.b16 %v2231
      %v2422 = vunpack.c.l.b16 %v2232
      %v2423 = vunpack.c.l.b16 %v2233
      %v2424 = vunpack.c.h.b16 %v2233
      %v2425 = vunpack.c.l.b16 %v2234
      %v2426 = vunpack.c.l.b16 %v2235
      %v2427 = vunpack.c.h.b16 %v2235
      %v2428 = vunpack.c.l.b16 %v2236
      %v2429 = vunpack.c.l.b16 %v2237
      %v2430 = vunpack.c.h.b16 %v2237
      %v2431 = vunpack.c.l.b16 %v2238
      %v2432 = vunpack.c.l.b16 %v2239
      %v2433 = vunpack.c.h.b16 %v2239
      %v2434 = vunpack.c.l.b16 %v2240
      %v2435 = vunpack.c.l.b16 %v2241
      %v2436 = vunpack.c.h.b16 %v2241
      %v2437 = vunpack.c.l.b16 %v2242
      %v2438 = vunpack.c.l.b16 %v2243
      %v2439 = vunpack.c.h.b16 %v2243
      %v2440 = vunpack.c.l.b16 %v2244
      %v2441 = vpack.c.b16 %v2348, %v2345
      %v2442 = vpack.c.b16 %v2349, %v2346
      %v2443 = vpack.c.b16 %v2350, %v2347
      %v2444 = vpack.c.b16 %v2354, %v2351
      %v2445 = vpack.c.b16 %v2355, %v2352
      %v2446 = vpack.c.b16 %v2356, %v2353
      %v2447 = vpack.c.b16 %v2360, %v2357
      %v2448 = vpack.c.b16 %v2361, %v2358
      %v2449 = vpack.c.b16 %v2362, %v2359
      %v2450 = vpack.c.b16 %v2366, %v2363
      %v2451 = vpack.c.b16 %v2367, %v2364
      %v2452 = vpack.c.b16 %v2368, %v2365
      %v2453 = vpack.c.b16 %v2372, %v2369
      %v2454 = vpack.c.b16 %v2373, %v2370
      %v2455 = vpack.c.b16 %v2374, %v2371
      %v2456 = vpack.c.b16 %v2378, %v2375
      %v2457 = vpack.c.b16 %v2379, %v2376
      %v2458 = vpack.c.b16 %v2380, %v2377
      %v2459 = vpack.c.b16 %v2384, %v2381
      %v2460 = vpack.c.b16 %v2385, %v2382
      %v2461 = vpack.c.b16 %v2386, %v2383
      %v2462 = vpack.c.b16 %v2390, %v2387
      %v2463 = vpack.c.b16 %v2391, %v2388
      %v2464 = vpack.c.b16 %v2392, %v2389
      %v2465 = vpack.c.b16 %v2396, %v2393
      %v2466 = vpack.c.b16 %v2397, %v2394
      %v2467 = vpack.c.b16 %v2398, %v2395
      %v2468 = vpack.c.b16 %v2402, %v2399
      %v2469 = vpack.c.b16 %v2403, %v2400
      %v2470 = vpack.c.b16 %v2404, %v2401
      %v2471 = vpack.c.b16 %v2408, %v2405
      %v2472 = vpack.c.b16 %v2409, %v2406
      %v2473 = vpack.c.b16 %v2410, %v2407
      %v2474 = vpack.c.b16 %v2414, %v2411
      %v2475 = vpack.c.b16 %v2415, %v2412
      %v2476 = vpack.c.b16 %v2416, %v2413
      %v2477 = vpack.c.b16 %v2420, %v2417
      %v2478 = vpack.c.b16 %v2421, %v2418
      %v2479 = vpack.c.b16 %v2422, %v2419
      %v2480 = vpack.c.b16 %v2426, %v2423
      %v2481 = vpack.c.b16 %v2427, %v2424
      %v2482 = vpack.c.b16 %v2428, %v2425
      %v2483 = vpack.c.b16 %v2432, %v2429
      %v2484 = vpack.c.b16 %v2433, %v2430
      %v2485 = vpack.c.b16 %v2434, %v2431
      %v2486 = vpack.c.b16 %v2438, %v2435
      %v2487 = vpack.c.b16 %v2439, %v2436
      %v2488 = vpack.c.b16 %v2440, %v2437
      %v2557 = vunpack.c.l.b16 %v2245
      %v2558 = vunpack.c.l.b16 %v2246
      %v2559 = vunpack.c.l.b16 %v2247
      %v2560 = vunpack.c.l.b16 %v2248
      %v2561 = vunpack.c.l.b16 %v2249
      %v2562 = vunpack.c.l.b16 %v2250
      %v2563 = vunpack.c.l.b16 %v2251
      %v2564 = vunpack.c.l.b16 %v2252
      %v2565 = vunpack.c.l.b16 %v2253
      %v2566 = vunpack.c.l.b16 %v2254
      %v2567 = vunpack.c.l.b16 %v2255
      %v2568 = vunpack.c.l.b16 %v2256
      %v2569 = vunpack.c.l.b16 %v2257
      %v2570 = vunpack.c.l.b16 %v2258
      %v2571 = vunpack.c.l.b16 %v2259
      %v2572 = vunpack.c.l.b16 %v2260
      %v2573 = vunpack.c.l.b16 %v2261
      %v2574 = vunpack.c.l.b16 %v2262
      %v2575 = vunpack.c.l.b16 %v2263
      %v2576 = vunpack.c.l.b16 %v2264
      %v2577 = vunpack.c.l.b16 %v2265
      %v2578 = vunpack.c.l.b16 %v2266
      %v2579 = vunpack.c.l.b16 %v2267
      %v2580 = vunpack.c.l.b16 %v2268
      %v2581 = vunpack.c.l.b16 %v2269
      %v2582 = vunpack.c.l.b16 %v2270
      %v2583 = vunpack.c.l.b16 %v2271
      %v2584 = vunpack.c.l.b16 %v2272
      %v2585 = vunpack.c.l.b16 %v2273
      %v2586 = vunpack.c.l.b16 %v2274
      %v2587 = vunpack.c.l.b16 %v2275
      %v2588 = vunpack.c.l.b16 %v2276
      %v2589 = vunpack.c.l.b16 %v2277
      %v2590 = vunpack.c.l.b16 %v2278
      %v2591 = vunpack.c.l.b16 %v2279
      %v2592 = vunpack.c.l.b16 %v2280
      %v2593 = vpack.c.b16 %v2558, %v2557
      %v2594 = vpack.c.b16 %v2560, %v2559
      %v2595 = vpack.c.b16 %v2562, %v2561
      %v2596 = vpack.c.b16 %v2564, %v2563
      %v2597 = vpack.c.b16 %v2566, %v2565
      %v2598 = vpack.c.b16 %v2568, %v2567
      %v2599 = vpack.c.b16 %v2570, %v2569
      %v2600 = vpack.c.b16 %v2572, %v2571
      %v2601 = vpack.c.b16 %v2574, %v2573
      %v2602 = vpack.c.b16 %v2576, %v2575
      %v2603 = vpack.c.b16 %v2578, %v2577
      %v2604 = vpack.c.b16 %v2580, %v2579
      %v2605 = vpack.c.b16 %v2582, %v2581
      %v2606 = vpack.c.b16 %v2584, %v2583
      %v2607 = vpack.c.b16 %v2586, %v2585
      %v2608 = vpack.c.b16 %v2588, %v2587
      %v2609 = vpack.c.b16 %v2590, %v2589
      %v2610 = vpack.c.b16 %v2592, %v2591
      %v2630 = vsel %vm469, %v2443, 0
      %v2633 = vsel %vm469, %v2446, 0
      %v2636 = vsel %vm469, %v2449, 0
      %v2639 = vsel %vm469, %v2452, 0
      %v2642 = vsel %vm469, %v2455, 0
      %v2645 = vsel %vm469, %v2458, 0
      %v2648 = vsel %vm469, %v2461, 0
      %v2651 = vsel %vm469, %v2464, 0
      %v2654 = vsel %vm469, %v2467, 0
      %v2657 = vsel %vm469, %v2470, 0
      %v2660 = vsel %vm469, %v2473, 0
      %v2663 = vsel %vm469, %v2476, 0
      %v2666 = vsel %vm469, %v2479, 0
      %v2669 = vsel %vm469, %v2482, 0
      %v2672 = vsel %vm469, %v2485, 0
      %v2675 = vsel %vm469, %v2488, 0
      %2677 = vmatpush.bf16.msra.mxu0 %v2600
      %2678 = vmatpush.bf16.msra.mxu0 %v2599
      %2679 = vmatpush.bf16.msra.mxu0 %v2598
      %2680 = vmatpush.bf16.msra.mxu0 %v2597
      %2681 = vmatpush.bf16.msra.mxu0 %v2596
      %2682 = vmatpush.bf16.msra.mxu0 %v2595
      %2683 = vmatpush.bf16.msra.mxu0 %v2594
      %2684 = vmatpush.bf16.msra.mxu0 %v2593
      %2685 = vmatmul.bf16.gmra.mxu0 %v2441
      %v2686 = vpop.f32.mrf.mxu0
      %v2687 = vadd.f32 0.0, %v2686
      %v2688 = vpop.f32.mrf.mxu0
      %v2689 = vadd.f32 0.0, %v2688
      %2690 = vmatmul.bf16.gmra.mxu0 %v2444
      %v2691 = vpop.f32.mrf.mxu0
      %v2692 = vadd.f32 0.0, %v2691
      %v2693 = vpop.f32.mrf.mxu0
      %v2694 = vadd.f32 0.0, %v2693
      %2695 = vmatmul.bf16.gmra.mxu0 %v2447
      %v2696 = vpop.f32.mrf.mxu0
      %v2697 = vadd.f32 0.0, %v2696
      %v2698 = vpop.f32.mrf.mxu0
      %v2699 = vadd.f32 0.0, %v2698
      %2700 = vmatmul.bf16.gmra.mxu0 %v2450
      %v2701 = vpop.f32.mrf.mxu0
      %v2702 = vadd.f32 0.0, %v2701
      %v2703 = vpop.f32.mrf.mxu0
      %v2704 = vadd.f32 0.0, %v2703
      %2705 = vmatmul.bf16.gmra.mxu0 %v2453
      %v2706 = vpop.f32.mrf.mxu0
      %v2707 = vadd.f32 0.0, %v2706
      %v2708 = vpop.f32.mrf.mxu0
      %v2709 = vadd.f32 0.0, %v2708
      %2710 = vmatmul.bf16.gmra.mxu0 %v2456
      %v2711 = vpop.f32.mrf.mxu0
      %v2712 = vadd.f32 0.0, %v2711
      %v2713 = vpop.f32.mrf.mxu0
      %v2714 = vadd.f32 0.0, %v2713
      %2715 = vmatmul.bf16.gmra.mxu0 %v2459
      %v2716 = vpop.f32.mrf.mxu0
      %v2717 = vadd.f32 0.0, %v2716
      %v2718 = vpop.f32.mrf.mxu0
      %v2719 = vadd.f32 0.0, %v2718
      %2720 = vmatmul.bf16.gmra.mxu0 %v2462
      %v2721 = vpop.f32.mrf.mxu0
      %v2722 = vadd.f32 0.0, %v2721
      %v2723 = vpop.f32.mrf.mxu0
      %v2724 = vadd.f32 0.0, %v2723
      %2725 = vmatmul.bf16.gmra.mxu0 %v2465
      %v2726 = vpop.f32.mrf.mxu0
      %v2727 = vadd.f32 0.0, %v2726
      %v2728 = vpop.f32.mrf.mxu0
      %v2729 = vadd.f32 0.0, %v2728
      %2730 = vmatmul.bf16.gmra.mxu0 %v2468
      %v2731 = vpop.f32.mrf.mxu0
      %v2732 = vadd.f32 0.0, %v2731
      %v2733 = vpop.f32.mrf.mxu0
      %v2734 = vadd.f32 0.0, %v2733
      %2735 = vmatmul.bf16.gmra.mxu0 %v2471
      %v2736 = vpop.f32.mrf.mxu0
      %v2737 = vadd.f32 0.0, %v2736
      %v2738 = vpop.f32.mrf.mxu0
      %v2739 = vadd.f32 0.0, %v2738
      %2740 = vmatmul.bf16.gmra.mxu0 %v2474
      %v2741 = vpop.f32.mrf.mxu0
      %v2742 = vadd.f32 0.0, %v2741
      %v2743 = vpop.f32.mrf.mxu0
      %v2744 = vadd.f32 0.0, %v2743
      %2745 = vmatmul.bf16.gmra.mxu0 %v2477
      %v2746 = vpop.f32.mrf.mxu0
      %v2747 = vadd.f32 0.0, %v2746
      %v2748 = vpop.f32.mrf.mxu0
      %v2749 = vadd.f32 0.0, %v2748
      %2750 = vmatmul.bf16.gmra.mxu0 %v2480
      %v2751 = vpop.f32.mrf.mxu0
      %v2752 = vadd.f32 0.0, %v2751
      %v2753 = vpop.f32.mrf.mxu0
      %v2754 = vadd.f32 0.0, %v2753
      %2755 = vmatmul.bf16.gmra.mxu0 %v2483
      %v2756 = vpop.f32.mrf.mxu0
      %v2757 = vadd.f32 0.0, %v2756
      %v2758 = vpop.f32.mrf.mxu0
      %v2759 = vadd.f32 0.0, %v2758
      %2760 = vmatmul.bf16.gmra.mxu0 %v2486
      %v2761 = vpop.f32.mrf.mxu0
      %v2762 = vadd.f32 0.0, %v2761
      %v2763 = vpop.f32.mrf.mxu0
      %v2764 = vadd.f32 0.0, %v2763
      %2765 = vdwg.mxu0
      %2766 = vmatpush.bf16.msra.mxu0 %v2608
      %2767 = vmatpush.bf16.msra.mxu0 %v2607
      %2768 = vmatpush.bf16.msra.mxu0 %v2606
      %2769 = vmatpush.bf16.msra.mxu0 %v2605
      %2770 = vmatpush.bf16.msra.mxu0 %v2604
      %2771 = vmatpush.bf16.msra.mxu0 %v2603
      %2772 = vmatpush.bf16.msra.mxu0 %v2602
      %2773 = vmatpush.bf16.msra.mxu0 %v2601
      %2774 = vmatmul.bf16.gmra.mxu0 %v2442
      %v2775 = vpop.f32.mrf.mxu0
      %v2776 = vadd.f32 %v2687, %v2775
      %v2777 = vpop.f32.mrf.mxu0
      %v2778 = vadd.f32 %v2689, %v2777
      %2779 = vmatmul.bf16.gmra.mxu0 %v2445
      %v2780 = vpop.f32.mrf.mxu0
      %v2781 = vadd.f32 %v2692, %v2780
      %v2782 = vpop.f32.mrf.mxu0
      %v2783 = vadd.f32 %v2694, %v2782
      %2784 = vmatmul.bf16.gmra.mxu0 %v2448
      %v2785 = vpop.f32.mrf.mxu0
      %v2786 = vadd.f32 %v2697, %v2785
      %v2787 = vpop.f32.mrf.mxu0
      %v2788 = vadd.f32 %v2699, %v2787
      %2789 = vmatmul.bf16.gmra.mxu0 %v2451
      %v2790 = vpop.f32.mrf.mxu0
      %v2791 = vadd.f32 %v2702, %v2790
      %v2792 = vpop.f32.mrf.mxu0
      %v2793 = vadd.f32 %v2704, %v2792
      %2794 = vmatmul.bf16.gmra.mxu0 %v2454
      %v2795 = vpop.f32.mrf.mxu0
      %v2796 = vadd.f32 %v2707, %v2795
      %v2797 = vpop.f32.mrf.mxu0
      %v2798 = vadd.f32 %v2709, %v2797
      %2799 = vmatmul.bf16.gmra.mxu0 %v2457
      %v2800 = vpop.f32.mrf.mxu0
      %v2801 = vadd.f32 %v2712, %v2800
      %v2802 = vpop.f32.mrf.mxu0
      %v2803 = vadd.f32 %v2714, %v2802
      %2804 = vmatmul.bf16.gmra.mxu0 %v2460
      %v2805 = vpop.f32.mrf.mxu0
      %v2806 = vadd.f32 %v2717, %v2805
      %v2807 = vpop.f32.mrf.mxu0
      %v2808 = vadd.f32 %v2719, %v2807
      %2809 = vmatmul.bf16.gmra.mxu0 %v2463
      %v2810 = vpop.f32.mrf.mxu0
      %v2811 = vadd.f32 %v2722, %v2810
      %v2812 = vpop.f32.mrf.mxu0
      %v2813 = vadd.f32 %v2724, %v2812
      %2814 = vmatmul.bf16.gmra.mxu0 %v2466
      %v2815 = vpop.f32.mrf.mxu0
      %v2816 = vadd.f32 %v2727, %v2815
      %v2817 = vpop.f32.mrf.mxu0
      %v2818 = vadd.f32 %v2729, %v2817
      %2819 = vmatmul.bf16.gmra.mxu0 %v2469
      %v2820 = vpop.f32.mrf.mxu0
      %v2821 = vadd.f32 %v2732, %v2820
      %v2822 = vpop.f32.mrf.mxu0
      %v2823 = vadd.f32 %v2734, %v2822
      %2824 = vmatmul.bf16.gmra.mxu0 %v2472
      %v2825 = vpop.f32.mrf.mxu0
      %v2826 = vadd.f32 %v2737, %v2825
      %v2827 = vpop.f32.mrf.mxu0
      %v2828 = vadd.f32 %v2739, %v2827
      %2829 = vmatmul.bf16.gmra.mxu0 %v2475
      %v2830 = vpop.f32.mrf.mxu0
      %v2831 = vadd.f32 %v2742, %v2830
      %v2832 = vpop.f32.mrf.mxu0
      %v2833 = vadd.f32 %v2744, %v2832
      %2834 = vmatmul.bf16.gmra.mxu0 %v2478
      %v2835 = vpop.f32.mrf.mxu0
      %v2836 = vadd.f32 %v2747, %v2835
      %v2837 = vpop.f32.mrf.mxu0
      %v2838 = vadd.f32 %v2749, %v2837
      %2839 = vmatmul.bf16.gmra.mxu0 %v2481
      %v2840 = vpop.f32.mrf.mxu0
      %v2841 = vadd.f32 %v2752, %v2840
      %v2842 = vpop.f32.mrf.mxu0
      %v2843 = vadd.f32 %v2754, %v2842
      %2844 = vmatmul.bf16.gmra.mxu0 %v2484
      %v2845 = vpop.f32.mrf.mxu0
      %v2846 = vadd.f32 %v2757, %v2845
      %v2847 = vpop.f32.mrf.mxu0
      %v2848 = vadd.f32 %v2759, %v2847
      %2849 = vmatmul.bf16.gmra.mxu0 %v2487
      %v2850 = vpop.f32.mrf.mxu0
      %v2851 = vadd.f32 %v2762, %v2850
      %v2852 = vpop.f32.mrf.mxu0
      %v2853 = vadd.f32 %v2764, %v2852
      %2854 = vdwg.mxu0
      %2855 = vmatpush.bf16.msra.mxu0 0
      %2856 = vmatpush.bf16.msra.mxu0 0
      %2857 = vmatpush.bf16.msra.mxu0 0
      %2858 = vmatpush.bf16.msra.mxu0 0
      %2859 = vmatpush.bf16.msra.mxu0 0
      %2860 = vmatpush.bf16.msra.mxu0 0
      %2861 = vmatpush.bf16.msra.mxu0 %v2610
      %2862 = vmatpush.bf16.msra.mxu0 %v2609
      %2863 = vmatmul.bf16.gmra.mxu0 %v2630
      %v2864 = vpop.f32.mrf.mxu0
      %v2865 = vadd.f32 %v2776, %v2864
      %v2866 = vpop.f32.mrf.mxu0
      %v2867 = vadd.f32 %v2778, %v2866
      %2868 = vmatmul.bf16.gmra.mxu0 %v2633
      %v2869 = vpop.f32.mrf.mxu0
      %v2870 = vadd.f32 %v2781, %v2869
      %v2871 = vpop.f32.mrf.mxu0
      %v2872 = vadd.f32 %v2783, %v2871
      %2873 = vmatmul.bf16.gmra.mxu0 %v2636
      %v2874 = vpop.f32.mrf.mxu0
      %v2875 = vadd.f32 %v2786, %v2874
      %v2876 = vpop.f32.mrf.mxu0
      %v2877 = vadd.f32 %v2788, %v2876
      %2878 = vmatmul.bf16.gmra.mxu0 %v2639
      %v2879 = vpop.f32.mrf.mxu0
      %v2880 = vadd.f32 %v2791, %v2879
      %v2881 = vpop.f32.mrf.mxu0
      %v2882 = vadd.f32 %v2793, %v2881
      %2883 = vmatmul.bf16.gmra.mxu0 %v2642
      %v2884 = vpop.f32.mrf.mxu0
      %v2885 = vadd.f32 %v2796, %v2884
      %v2886 = vpop.f32.mrf.mxu0
      %v2887 = vadd.f32 %v2798, %v2886
      %2888 = vmatmul.bf16.gmra.mxu0 %v2645
      %v2889 = vpop.f32.mrf.mxu0
      %v2890 = vadd.f32 %v2801, %v2889
      %v2891 = vpop.f32.mrf.mxu0
      %v2892 = vadd.f32 %v2803, %v2891
      %2893 = vmatmul.bf16.gmra.mxu0 %v2648
      %v2894 = vpop.f32.mrf.mxu0
      %v2895 = vadd.f32 %v2806, %v2894
      %v2896 = vpop.f32.mrf.mxu0
      %v2897 = vadd.f32 %v2808, %v2896
      %2898 = vmatmul.bf16.gmra.mxu0 %v2651
      %v2899 = vpop.f32.mrf.mxu0
      %v2900 = vadd.f32 %v2811, %v2899
      %v2901 = vpop.f32.mrf.mxu0
      %v2902 = vadd.f32 %v2813, %v2901
      %2903 = vmatmul.bf16.gmra.mxu0 %v2654
      %v2904 = vpop.f32.mrf.mxu0
      %v2905 = vadd.f32 %v2816, %v2904
      %v2906 = vpop.f32.mrf.mxu0
      %v2907 = vadd.f32 %v2818, %v2906
      %2908 = vmatmul.bf16.gmra.mxu0 %v2657
      %v2909 = vpop.f32.mrf.mxu0
      %v2910 = vadd.f32 %v2821, %v2909
      %v2911 = vpop.f32.mrf.mxu0
      %v2912 = vadd.f32 %v2823, %v2911
      %2913 = vmatmul.bf16.gmra.mxu0 %v2660
      %v2914 = vpop.f32.mrf.mxu0
      %v2915 = vadd.f32 %v2826, %v2914
      %v2916 = vpop.f32.mrf.mxu0
      %v2917 = vadd.f32 %v2828, %v2916
      %2918 = vmatmul.bf16.gmra.mxu0 %v2663
      %v2919 = vpop.f32.mrf.mxu0
      %v2920 = vadd.f32 %v2831, %v2919
      %v2921 = vpop.f32.mrf.mxu0
      %v2922 = vadd.f32 %v2833, %v2921
      %2923 = vmatmul.bf16.gmra.mxu0 %v2666
      %v2924 = vpop.f32.mrf.mxu0
      %v2925 = vadd.f32 %v2836, %v2924
      %v2926 = vpop.f32.mrf.mxu0
      %v2927 = vadd.f32 %v2838, %v2926
      %2928 = vmatmul.bf16.gmra.mxu0 %v2669
      %v2929 = vpop.f32.mrf.mxu0
      %v2930 = vadd.f32 %v2841, %v2929
      %v2931 = vpop.f32.mrf.mxu0
      %v2932 = vadd.f32 %v2843, %v2931
      %2933 = vmatmul.bf16.gmra.mxu0 %v2672
      %v2934 = vpop.f32.mrf.mxu0
      %v2935 = vadd.f32 %v2846, %v2934
      %v2936 = vpop.f32.mrf.mxu0
      %v2937 = vadd.f32 %v2848, %v2936
      %2938 = vmatmul.bf16.gmra.mxu0 %v2675
      %v2939 = vpop.f32.mrf.mxu0
      %v2940 = vadd.f32 %v2851, %v2939
      %v2941 = vpop.f32.mrf.mxu0
      %v2942 = vadd.f32 %v2853, %v2941
      %2943 = vdwg.mxu0
      %v2944 = vsel %vm469, %v2865, 0.0
      %v2945 = vsel %vm469, %v2867, 0.0
      %v2946 = vadd.f32 %v2944, %v2945
      %v2947 = vsel %vm469, %v2870, 0.0
      %v2948 = vadd.f32 %v2946, %v2947
      %v2949 = vsel %vm469, %v2872, 0.0
      %v2950 = vadd.f32 %v2948, %v2949
      %v2951 = vsel %vm469, %v2875, 0.0
      %v2952 = vadd.f32 %v2950, %v2951
      %v2953 = vsel %vm469, %v2877, 0.0
      %v2954 = vadd.f32 %v2952, %v2953
      %v2955 = vsel %vm469, %v2880, 0.0
      %v2956 = vadd.f32 %v2954, %v2955
      %v2957 = vsel %vm469, %v2882, 0.0
      %v2958 = vadd.f32 %v2956, %v2957
      %v2959 = vsel %vm469, %v2885, 0.0
      %v2960 = vadd.f32 %v2958, %v2959
      %v2961 = vsel %vm469, %v2887, 0.0
      %v2962 = vadd.f32 %v2960, %v2961
      %v2963 = vsel %vm469, %v2890, 0.0
      %v2964 = vadd.f32 %v2962, %v2963
      %v2965 = vsel %vm469, %v2892, 0.0
      %v2966 = vadd.f32 %v2964, %v2965
      %v2967 = vsel %vm469, %v2895, 0.0
      %v2968 = vadd.f32 %v2966, %v2967
      %v2969 = vsel %vm469, %v2897, 0.0
      %v2970 = vadd.f32 %v2968, %v2969
      %v2971 = vsel %vm469, %v2900, 0.0
      %v2972 = vadd.f32 %v2970, %v2971
      %v2973 = vsel %vm469, %v2902, 0.0
      %v2974 = vadd.f32 %v2972, %v2973
      %v2975 = vsel %vm469, %v2905, 0.0
      %v2976 = vadd.f32 %v2974, %v2975
      %v2977 = vsel %vm469, %v2907, 0.0
      %v2978 = vadd.f32 %v2976, %v2977
      %v2979 = vsel %vm469, %v2910, 0.0
      %v2980 = vadd.f32 %v2978, %v2979
      %v2981 = vsel %vm469, %v2912, 0.0
      %v2982 = vadd.f32 %v2980, %v2981
      %v2983 = vsel %vm469, %v2915, 0.0
      %v2984 = vadd.f32 %v2982, %v2983
      %v2985 = vsel %vm469, %v2917, 0.0
      %v2986 = vadd.f32 %v2984, %v2985
      %v2987 = vsel %vm469, %v2920, 0.0
      %v2988 = vadd.f32 %v2986, %v2987
      %v2989 = vsel %vm469, %v2922, 0.0
      %v2990 = vadd.f32 %v2988, %v2989
      %v2991 = vsel %vm469, %v2925, 0.0
      %v2992 = vadd.f32 %v2990, %v2991
      %v2993 = vsel %vm469, %v2927, 0.0
      %v2994 = vadd.f32 %v2992, %v2993
      %v2995 = vsel %vm469, %v2930, 0.0
      %v2996 = vadd.f32 %v2994, %v2995
      %v2997 = vsel %vm469, %v2932, 0.0
      %v2998 = vadd.f32 %v2996, %v2997
      %v2999 = vsel %vm469, %v2935, 0.0
      %v3000 = vadd.f32 %v2998, %v2999
      %v3001 = vsel %vm469, %v2937, 0.0
      %v3002 = vadd.f32 %v3000, %v3001
      %v3003 = vsel %vm469, %v2940, 0.0
      %v3004 = vadd.f32 %v3002, %v3003
      %v3005 = vsel %vm469, %v2942, 0.0
      %v3006 = vadd.f32 %v3004, %v3005
      %v3007 = vrot.slane %v3006, 4
      %v3008 = vadd.f32 %v3006, %v3007
      %v3009 = vrot.slane %v3008, 2
      %v3010 = vadd.f32 %v3008, %v3009
      %v3011 = vrot.slane %v3010, 1
      %v3012 = vadd.f32 %v3010, %v3011
      %v3013 = vmul.f32 %v2865, %v2865
      %v3014 = vmul.f32 %v2867, %v2867
      %v3015 = vmul.f32 %v2870, %v2870
      %v3016 = vmul.f32 %v2872, %v2872
      %v3017 = vmul.f32 %v2875, %v2875
      %v3018 = vmul.f32 %v2877, %v2877
      %v3019 = vmul.f32 %v2880, %v2880
      %v3020 = vmul.f32 %v2882, %v2882
      %v3021 = vmul.f32 %v2885, %v2885
      %v3022 = vmul.f32 %v2887, %v2887
      %v3023 = vmul.f32 %v2890, %v2890
      %v3024 = vmul.f32 %v2892, %v2892
      %v3025 = vmul.f32 %v2895, %v2895
      %v3026 = vmul.f32 %v2897, %v2897
      %v3027 = vmul.f32 %v2900, %v2900
      %v3028 = vmul.f32 %v2902, %v2902
      %v3029 = vmul.f32 %v2905, %v2905
      %v3030 = vmul.f32 %v2907, %v2907
      %v3031 = vmul.f32 %v2910, %v2910
      %v3032 = vmul.f32 %v2912, %v2912
      %v3033 = vmul.f32 %v2915, %v2915
      %v3034 = vmul.f32 %v2917, %v2917
      %v3035 = vmul.f32 %v2920, %v2920
      %v3036 = vmul.f32 %v2922, %v2922
      %v3037 = vmul.f32 %v2925, %v2925
      %v3038 = vmul.f32 %v2927, %v2927
      %v3039 = vmul.f32 %v2930, %v2930
      %v3040 = vmul.f32 %v2932, %v2932
      %v3041 = vmul.f32 %v2935, %v2935
      %v3042 = vmul.f32 %v2937, %v2937
      %v3043 = vmul.f32 %v2940, %v2940
      %v3044 = vmul.f32 %v2942, %v2942
      %v3045 = vsel %vm469, %v3013, 0.0
      %v3046 = vsel %vm469, %v3014, 0.0
      %v3047 = vadd.f32 %v3045, %v3046
      %v3048 = vsel %vm469, %v3015, 0.0
      %v3049 = vadd.f32 %v3047, %v3048
      %v3050 = vsel %vm469, %v3016, 0.0
      %v3051 = vadd.f32 %v3049, %v3050
      %v3052 = vsel %vm469, %v3017, 0.0
      %v3053 = vadd.f32 %v3051, %v3052
      %v3054 = vsel %vm469, %v3018, 0.0
      %v3055 = vadd.f32 %v3053, %v3054
      %v3056 = vsel %vm469, %v3019, 0.0
      %v3057 = vadd.f32 %v3055, %v3056
      %v3058 = vsel %vm469, %v3020, 0.0
      %v3059 = vadd.f32 %v3057, %v3058
      %v3060 = vsel %vm469, %v3021, 0.0
      %v3061 = vadd.f32 %v3059, %v3060
      %v3062 = vsel %vm469, %v3022, 0.0
      %v3063 = vadd.f32 %v3061, %v3062
      %v3064 = vsel %vm469, %v3023, 0.0
      %v3065 = vadd.f32 %v3063, %v3064
      %v3066 = vsel %vm469, %v3024, 0.0
      %v3067 = vadd.f32 %v3065, %v3066
      %v3068 = vsel %vm469, %v3025, 0.0
      %v3069 = vadd.f32 %v3067, %v3068
      %v3070 = vsel %vm469, %v3026, 0.0
      %v3071 = vadd.f32 %v3069, %v3070
      %v3072 = vsel %vm469, %v3027, 0.0
      %v3073 = vadd.f32 %v3071, %v3072
      %v3074 = vsel %vm469, %v3028, 0.0
      %v3075 = vadd.f32 %v3073, %v3074
      %v3076 = vsel %vm469, %v3029, 0.0
      %v3077 = vadd.f32 %v3075, %v3076
      %v3078 = vsel %vm469, %v3030, 0.0
      %v3079 = vadd.f32 %v3077, %v3078
      %v3080 = vsel %vm469, %v3031, 0.0
      %v3081 = vadd.f32 %v3079, %v3080
      %v3082 = vsel %vm469, %v3032, 0.0
      %v3083 = vadd.f32 %v3081, %v3082
      %v3084 = vsel %vm469, %v3033, 0.0
      %v3085 = vadd.f32 %v3083, %v3084
      %v3086 = vsel %vm469, %v3034, 0.0
      %v3087 = vadd.f32 %v3085, %v3086
      %v3088 = vsel %vm469, %v3035, 0.0
      %v3089 = vadd.f32 %v3087, %v3088
      %v3090 = vsel %vm469, %v3036, 0.0
      %v3091 = vadd.f32 %v3089, %v3090
      %v3092 = vsel %vm469, %v3037, 0.0
      %v3093 = vadd.f32 %v3091, %v3092
      %v3094 = vsel %vm469, %v3038, 0.0
      %v3095 = vadd.f32 %v3093, %v3094
      %v3096 = vsel %vm469, %v3039, 0.0
      %v3097 = vadd.f32 %v3095, %v3096
      %v3098 = vsel %vm469, %v3040, 0.0
      %v3099 = vadd.f32 %v3097, %v3098
      %v3100 = vsel %vm469, %v3041, 0.0
      %v3101 = vadd.f32 %v3099, %v3100
      %v3102 = vsel %vm469, %v3042, 0.0
      %v3103 = vadd.f32 %v3101, %v3102
      %v3104 = vsel %vm469, %v3043, 0.0
      %v3105 = vadd.f32 %v3103, %v3104
      %v3106 = vsel %vm469, %v3044, 0.0
      %v3107 = vadd.f32 %v3105, %v3106
      %v3108 = vrot.slane %v3107, 4
      %v3109 = vadd.f32 %v3107, %v3108
      %v3110 = vrot.slane %v3109, 2
      %v3111 = vadd.f32 %v3109, %v3110
      %v3112 = vrot.slane %v3111, 1
      %v3113 = vadd.f32 %v3111, %v3112
      %vm3114 = vcmask 1040384
      %v3115 = vsel %vm3114, %v3012, %v3113
      %3116 = vst.msk [vmem:[%s235] sm:$0x3] %vm472, %v3115
      %v3117 = vpack.c.bf16 %v2865, %v2865
      %v3118 = vpack.c.bf16 %v2867, %v2867
      %v3119 = vpack.c.bf16 %v2870, %v2870
      %v3120 = vpack.c.bf16 %v2872, %v2872
      %v3121 = vpack.c.bf16 %v2875, %v2875
      %v3122 = vpack.c.bf16 %v2877, %v2877
      %v3123 = vpack.c.bf16 %v2880, %v2880
      %v3124 = vpack.c.bf16 %v2882, %v2882
      %v3125 = vpack.c.bf16 %v2885, %v2885
      %v3126 = vpack.c.bf16 %v2887, %v2887
      %v3127 = vpack.c.bf16 %v2890, %v2890
      %v3128 = vpack.c.bf16 %v2892, %v2892
      %v3129 = vpack.c.bf16 %v2895, %v2895
      %v3130 = vpack.c.bf16 %v2897, %v2897
      %v3131 = vpack.c.bf16 %v2900, %v2900
      %v3132 = vpack.c.bf16 %v2902, %v2902
      %v3133 = vpack.c.bf16 %v2905, %v2905
      %v3134 = vpack.c.bf16 %v2907, %v2907
      %v3135 = vpack.c.bf16 %v2910, %v2910
      %v3136 = vpack.c.bf16 %v2912, %v2912
      %v3137 = vpack.c.bf16 %v2915, %v2915
      %v3138 = vpack.c.bf16 %v2917, %v2917
      %v3139 = vpack.c.bf16 %v2920, %v2920
      %v3140 = vpack.c.bf16 %v2922, %v2922
      %v3141 = vpack.c.bf16 %v2925, %v2925
      %v3142 = vpack.c.bf16 %v2927, %v2927
      %v3143 = vpack.c.bf16 %v2930, %v2930
      %v3144 = vpack.c.bf16 %v2932, %v2932
      %v3145 = vpack.c.bf16 %v2935, %v2935
      %v3146 = vpack.c.bf16 %v2937, %v2937
      %v3147 = vpack.c.bf16 %v2940, %v2940
      %v3148 = vpack.c.bf16 %v2942, %v2942
      %3149 = vst.msk [vmem:[%s231] sm:$0xf] %vm608, %v3117
      %3150 = vst.msk [vmem:[%s231 + $0x4] sm:$0xf] %vm608, %v3118
      %3151 = vst.msk [vmem:[%s231 + $0x8] sm:$0xf] %vm608, %v3119
      %3152 = vst.msk [vmem:[%s231 + $0xc] sm:$0xf] %vm608, %v3120
      %3153 = vst.msk [vmem:[%s231 + $0x10] sm:$0xf] %vm608, %v3121
      %3154 = vst.msk [vmem:[%s231 + $0x14] sm:$0xf] %vm608, %v3122
      %3155 = vst.msk [vmem:[%s231 + $0x18] sm:$0xf] %vm608, %v3123
      %3156 = vst.msk [vmem:[%s231 + $0x1c] sm:$0xf] %vm608, %v3124
      %3157 = vst.msk [vmem:[%s231 + $0x20] sm:$0xf] %vm608, %v3125
      %3158 = vst.msk [vmem:[%s231 + $0x24] sm:$0xf] %vm608, %v3126
      %3159 = vst.msk [vmem:[%s231 + $0x28] sm:$0xf] %vm608, %v3127
      %3160 = vst.msk [vmem:[%s231 + $0x2c] sm:$0xf] %vm608, %v3128
      %3161 = vst.msk [vmem:[%s231 + $0x30] sm:$0xf] %vm608, %v3129
      %3162 = vst.msk [vmem:[%s231 + $0x34] sm:$0xf] %vm608, %v3130
      %3163 = vst.msk [vmem:[%s231 + $0x38] sm:$0xf] %vm608, %v3131
      %3164 = vst.msk [vmem:[%s231 + $0x3c] sm:$0xf] %vm608, %v3132
      %3165 = vst.msk [vmem:[%s231 + $0x40] sm:$0xf] %vm608, %v3133
      %3166 = vst.msk [vmem:[%s231 + $0x44] sm:$0xf] %vm608, %v3134
      %3167 = vst.msk [vmem:[%s231 + $0x48] sm:$0xf] %vm608, %v3135
      %3168 = vst.msk [vmem:[%s231 + $0x4c] sm:$0xf] %vm608, %v3136
      %3169 = vst.msk [vmem:[%s231 + $0x50] sm:$0xf] %vm608, %v3137
      %3170 = vst.msk [vmem:[%s231 + $0x54] sm:$0xf] %vm608, %v3138
      %3171 = vst.msk [vmem:[%s231 + $0x58] sm:$0xf] %vm608, %v3139
      %3172 = vst.msk [vmem:[%s231 + $0x5c] sm:$0xf] %vm608, %v3140
      %3173 = vst.msk [vmem:[%s231 + $0x60] sm:$0xf] %vm608, %v3141
      %3174 = vst.msk [vmem:[%s231 + $0x64] sm:$0xf] %vm608, %v3142
      %3175 = vst.msk [vmem:[%s231 + $0x68] sm:$0xf] %vm608, %v3143
      %3176 = vst.msk [vmem:[%s231 + $0x6c] sm:$0xf] %vm608, %v3144
      %3177 = vst.msk [vmem:[%s231 + $0x70] sm:$0xf] %vm608, %v3145
      %3178 = vst.msk [vmem:[%s231 + $0x74] sm:$0xf] %vm608, %v3146
      %3179 = vst.msk [vmem:[%s231 + $0x78] sm:$0xf] %vm608, %v3147
      %3180 = vst.msk [vmem:[%s231 + $0x7c] sm:$0xf] %vm608, %v3148
      %p3181 = scmp.lt.s32.totalorder %s17, 1
      %s3182 = scalar_select %p3181, %s17, 1
      %s3183 = smul.addr %s3182, 32
      %s3184 = smul.addr %s3183, 4
      %s3185 = scalar_lea.vmem %s4, %s3184
      %p3186 = scmp.lt.s32.totalorder %s17, 1
      %s3187 = scalar_select %p3186, %s17, 1
      %s3188 = smul.addr %s3187, 2
      %s3189 = scalar_lea.vmem %s5, %s3188
      // Predicated region
      $region37: #{contracting_block_forward.5} parent=35 // pred_check
        %p3190 = pneg %p124
      $region38: #{contracting_block_forward.5} parent=35 // pred_check_branch
        %3192 = sbr.rel (%p3190) target = $region40
      $region39: #{contracting_block_forward.5} parent=35 // pred_region
        _
      $region40: #{contracting_block_forward.5} parent=35 // pred_fallthru
        _
      // Predicated region
      $region41: #{contracting_block_forward.5} parent=35 // pred_check
        %p3193 = pneg %p150
      $region42: #{contracting_block_forward.5} parent=35 // pred_check_branch
        %3195 = sbr.rel (%p3193) target = $region44
      $region43: #{contracting_block_forward.5} parent=35 // pred_region
        _
      $region44: #{contracting_block_forward.5} parent=35 // pred_fallthru
        _
    $region36: #{contracting_block_forward.5} parent=5 // pred_fallthru
      _
    %p3196 = scmp.le.s32.totalorder 2, %s12
    // Predicated region
    $region45: #{contracting_block_forward.5} parent=5 // pred_check
      %p3197 = pneg %p3196
    $region46: #{contracting_block_forward.5} parent=5 // pred_check_branch
      %3199 = sbr.rel (%p3197) target = $region48
    $region47: #{contracting_block_forward.5} parent=5 // pred_region
      %s3200 = ssub.s32 %s12, 2
      // Predicated region
      $region49: #{contracting_block_forward.5} parent=47 // pred_check
        %p3201 = pneg %p130
      $region50: #{contracting_block_forward.5} parent=47 // pred_check_branch
        %3203 = sbr.rel (%p3201) target = $region52
      $region51: #{contracting_block_forward.5} parent=47 // pred_region
        %p3204 = scmp.lt.s32.totalorder %s18, 1
        %s3205 = scalar_select %p3204, %s18, 1
        %s3206 = smul.addr %s3205, 32
        %s3207 = smul.addr %s3206, 4
        %s3208 = scalar_lea.vmem %s4, %s3207
      $region52: #{contracting_block_forward.5} parent=47 // pred_fallthru
        _
      // Predicated region
      $region53: #{contracting_block_forward.5} parent=47 // pred_check
        %p3209 = pneg %p156
      $region54: #{contracting_block_forward.5} parent=47 // pred_check_branch
        %3211 = sbr.rel (%p3209) target = $region56
      $region55: #{contracting_block_forward.5} parent=47 // pred_region
        %p3212 = scmp.lt.s32.totalorder %s18, 1
        %s3213 = scalar_select %p3212, %s18, 1
        %s3214 = smul.addr %s3213, 2
        %s3215 = scalar_lea.vmem %s5, %s3214
      $region56: #{contracting_block_forward.5} parent=47 // pred_fallthru
        _
    $region48: #{contracting_block_forward.5} parent=5 // pred_fallthru
      _
  $region6: #{contracting_block_forward.5} parent=0 // loop_footer
    %s16 = sadd.s32 1, %s12
  $region7: #{contracting_block_forward.5} parent=0 // loop_footer_branch
    %11 = sbr.rel target = $region3
  $region8: #{contracting_block_forward.5} parent=0 // loop_exit
    _

</llo_original>
